<compile_context>
chip_gen: v7x
topology: tpu7x:2x2x1
jax: 0.10.0
libtpu: 0.0.40
codegen_flags: <defaults>
</compile_context>

<pallas_src>
import functools

import jax
import jax.numpy as jnp
from jax.experimental import pallas as pl
from jax.experimental.pallas import tpu as pltpu


MATMUL_DTYPE = jnp.bfloat16     # MXU operand dtype (accumulation stays f32)
ACT_DTYPE = jnp.bfloat16        # inter-stage activation storage dtype
_VMEM_LIMIT = 32 * 1024 * 1024  # safe on v5e/v6e/v7x; our tiles are << this


def _pick_bt(n):
    """Images folded into the lane axis per conv grid step.

    Bt >= 2 keeps stage-3 pool chunks / output rows at >= 128 lanes
    (unmasked vst, no XLU shuffles); larger Bt amortizes per-step overhead.
    """
    for bt in (8, 4, 2):
        if n >= bt:
            return bt
    return 2


# ----------------------------- Pallas kernels ------------------------------

def _conv_relu_pool_kernel(x_ref, w_ref, b_ref, o_ref, *, l):
    # x_ref: (1, Cin*9, 4*L)  im2col slab for one batch tile; columns are
    #        pool-position-major chunks of width L = Bt*Q (L % 128 == 0),
    #        within a chunk: image-within-tile major, pooled pixel minor.
    # w_ref: (Cout, Cin*9)    conv weight, contraction order (cin, tap)
    #                         == plain reshape of the PyTorch weight.
    # b_ref: (Cout, 1)        f32 bias
    # o_ref: (1, Cout, L)     pooled activation (bf16), lane axis = L
    acc = jnp.dot(w_ref[...], x_ref[0],
                  preferred_element_type=jnp.float32)        # (Cout, 4*L) f32
    acc = jnp.maximum(acc + b_ref[...], 0.0)                 # bias + ReLU
    # 2x2/stride-2 max-pool == elementwise max over the four L-wide,
    # 128-aligned pool-position chunks (pure VPU, no lane shuffles).
    m0 = jnp.maximum(acc[:, 0 * l:1 * l], acc[:, 1 * l:2 * l])
    m1 = jnp.maximum(acc[:, 2 * l:3 * l], acc[:, 3 * l:4 * l])
    o_ref[0] = jnp.maximum(m0, m1).astype(o_ref.dtype)


def _mlp_kernel(x_ref, w1_ref, b1_ref, w2_ref, b2_ref, o_ref):
    # x: (Bm, 4096) bf16, w1: (4096, 128) bf16, b1: (1, 128) f32,
    # w2: (128, K) bf16,  b2: (1, K) f32,      o: (Bm, K) f32
    h = jnp.dot(x_ref[...], w1_ref[...], preferred_element_type=jnp.float32)
    h = jnp.maximum(h + b1_ref[...], 0.0)
    h = jnp.dot(h.astype(w2_ref.dtype), w2_ref[...],
                preferred_element_type=jnp.float32)
    o_ref[...] = h + b2_ref[...]


# ------------------------------- Wrappers -----------------------------------

def conv3x3_relu_pool(x, w, b, *, compute_dtype=MATMUL_DTYPE,
                      out_dtype=ACT_DTYPE):
    """Fused Conv2d(k=3, pad=1) + ReLU + MaxPool2d(2,2) on a batch-tiled,
    channel-major layout.

    x : (G, Cin, Bt, H, W)   activations (any float dtype)
    w : (Cout, Cin, 3, 3)    PyTorch Conv2d weight layout
    b : (Cout,)
    returns (G, Cout, Bt, H//2, W//2) in `out_dtype`
    """
    g, cin, bt, h, wd = x.shape
    cout = w.shape[0]
    h2, w2 = h // 2, wd // 2
    q = h2 * w2
    l = bt * q                      # lane width of one pool-position chunk

    # ---- XLA glue: single-concatenate im2col slab --------------------------
    # slab[gi, c*9 + t, p*L + j*q + pix] = xp[gi, c, j, (dy+py)+2*pr, (dx+px)+2*pc]
    # with t = dy*3+dx, p = py*2+px, pix = pr*W2+pc.  Built from 36 strided
    # slices + ONE stack (the follow-up reshape is metadata-only).
    xp = jnp.pad(x.astype(compute_dtype),
                 ((0, 0), (0, 0), (0, 0), (1, 1), (1, 1)))
    pieces = []
    for dy in range(3):
        for dx in range(3):
            for py in range(2):
                for px in range(2):
                    pieces.append(
                        xp[:, :, :, dy + py:dy + py + h:2,
                                    dx + px:dx + px + wd:2]
                        .reshape(g, cin, l))
    slab = jnp.stack(pieces, axis=2).reshape(g, cin * 9, 4 * l)

    # Contraction order (cin, dy, dx) == the PyTorch weight's own layout.
    w2d = w.reshape(cout, cin * 9).astype(compute_dtype)
    b2d = b.reshape(cout, 1).astype(jnp.float32)

    out = pl.pallas_call(
        functools.partial(_conv_relu_pool_kernel, l=l),
        out_shape=jax.ShapeDtypeStruct((g, cout, l), out_dtype),
        grid=(g,),
        in_specs=[
            pl.BlockSpec((1, cin * 9, 4 * l), lambda i: (i, 0, 0)),
            pl.BlockSpec((cout, cin * 9), lambda i: (0, 0)),
            pl.BlockSpec((cout, 1), lambda i: (0, 0)),
        ],
        out_specs=pl.BlockSpec((1, cout, l), lambda i: (i, 0, 0)),
        compiler_params=pltpu.CompilerParams(
            dimension_semantics=("parallel",),
            vmem_limit_bytes=_VMEM_LIMIT),
    )(slab, w2d, b2d)
    # (G, Cout, L) -> (G, Cout, Bt, H2, W2): next stage's input layout, no
    # transpose needed.
    return out.reshape(g, cout, bt, h2, w2)


def classifier(x_flat, w1, b1, w2, b2, *, compute_dtype=MATMUL_DTYPE,
               block_rows=16):
    """Linear(4096,128) + ReLU + Linear(128,K).  Weights in PyTorch (out,in).

    Batch is padded to a multiple of 16 rows (full bf16 sublane packing) and
    gridded in 16-row blocks marked "parallel" so both v7x TensorCores run.
    """
    n, d = x_flat.shape
    k = w2.shape[0]
    n_pad = ((n + block_rows - 1) // block_rows) * block_rows
    xp = jnp.pad(x_flat.astype(compute_dtype), ((0, n_pad - n), (0, 0)))
    w1t = jnp.transpose(w1).astype(compute_dtype)            # (4096, 128)
    w2t = jnp.transpose(w2).astype(compute_dtype)            # (128, K)
    dh = w1t.shape[1]

    out = pl.pallas_call(
        _mlp_kernel,
        out_shape=jax.ShapeDtypeStruct((n_pad, k), jnp.float32),
        grid=(n_pad // block_rows,),
        in_specs=[
            pl.BlockSpec((block_rows, d), lambda i: (i, 0)),
            pl.BlockSpec((d, dh), lambda i: (0, 0)),
            pl.BlockSpec((1, dh), lambda i: (0, 0)),
            pl.BlockSpec((dh, k), lambda i: (0, 0)),
            pl.BlockSpec((1, k), lambda i: (0, 0)),
        ],
        out_specs=pl.BlockSpec((block_rows, k), lambda i: (i, 0)),
        compiler_params=pltpu.CompilerParams(
            dimension_semantics=("parallel",),
            vmem_limit_bytes=_VMEM_LIMIT),
    )(xp, w1t, b1.reshape(1, -1).astype(jnp.float32),
      w2t, b2.reshape(1, -1).astype(jnp.float32))
    return out[:n]


def multi_class_cnn_forward(x_nchw, params):
    n, cin, h, wd = x_nchw.shape
    bt = _pick_bt(n)
    n_pad = -(-n // bt) * bt
    g = n_pad // bt

    # (N,C,H,W) -> batch-tiled channel-major layout (G, C, Bt, H, W).
    x = jnp.pad(x_nchw.astype(jnp.float32),
                ((0, n_pad - n), (0, 0), (0, 0), (0, 0)))
    x = x.reshape(g, bt, cin, h, wd).transpose(0, 2, 1, 3, 4)

    x = conv3x3_relu_pool(x, params["w_c1"], params["b_c1"])  # (G,16,Bt,32,32)
    x = conv3x3_relu_pool(x, params["w_c2"], params["b_c2"])  # (G,32,Bt,16,16)
    x = conv3x3_relu_pool(x, params["w_c3"], params["b_c3"])  # (G,64,Bt, 8, 8)

    # nn.Flatten on NCHW: feature order (c, y, x) per image.
    feat = x.shape[1] * x.shape[3] * x.shape[4]
    x_flat = x.transpose(0, 2, 1, 3, 4).reshape(n_pad, feat)[:n]
    return classifier(x_flat, params["w_l1"], params["b_l1"],
                      params["w_l2"], params["b_l2"])


# --------------------------- Deterministic params ---------------------------

def init_params(key, num_classes):
    ks = jax.random.split(key, 10)

    def conv_w(k, cin, cout):
        # PyTorch Conv2d layout: (Cout, Cin, kh, kw)
        scale = 1.0 / jnp.sqrt(3.0 * 3.0 * cin)
        return jax.random.normal(k, (cout, cin, 3, 3), jnp.float32) * scale

    def lin_w(k, fin, fout):
        # PyTorch Linear layout: (out_features, in_features)
        scale = 1.0 / jnp.sqrt(jnp.float32(fin))
        return jax.random.normal(k, (fout, fin), jnp.float32) * scale

    return {
        "w_c1": conv_w(ks[0], 3, 16),
        "b_c1": jax.random.normal(ks[1], (16,), jnp.float32) * 0.01,
        "w_c2": conv_w(ks[2], 16, 32),
        "b_c2": jax.random.normal(ks[3], (32,), jnp.float32) * 0.01,
        "w_c3": conv_w(ks[4], 32, 64),
        "b_c3": jax.random.normal(ks[5], (64,), jnp.float32) * 0.01,
        "w_l1": lin_w(ks[6], 64 * 8 * 8, 128),
        "b_l1": jax.random.normal(ks[7], (128,), jnp.float32) * 0.01,
        "w_l2": lin_w(ks[8], 128, num_classes),
        "b_l2": jax.random.normal(ks[9], (num_classes,), jnp.float32) * 0.01,
    }


# ----------------------------------- Main ------------------------------------

if __name__ == "__main__":
    num_classes = 10
    key = jax.random.PRNGKey(0)
    k_x, k_p = jax.random.split(key)

    # PyTorch-style NCHW input; 64x64 spatial is implied by Linear(64*8*8, .)
    x = jax.random.normal(k_x, (2, 3, 64, 64), jnp.float32)
    params = init_params(k_p, num_classes)

    fwd = jax.jit(multi_class_cnn_forward)
    out = fwd(x, params)
    out = jax.block_until_ready(out)

    assert out.shape == (2, num_classes)
    assert out.dtype == jnp.float32
    assert bool(jnp.all(jnp.isfinite(out)))
    print("KERNEL_OK")
</pallas_src>

<mosaic_0001>
module attributes {stable_mosaic.version = 11 : i64} {
  func.func @_conv_relu_pool_kernel(%arg0: i32, %arg1: memref<1x27x8192xbf16, #tpu.memory_space<vmem>>, %arg2: memref<16x27xbf16, #tpu.memory_space<vmem>>, %arg3: memref<16x1xf32, #tpu.memory_space<vmem>>, %arg4: memref<1x16x2048xbf16, #tpu.memory_space<vmem>>) attributes {dimension_semantics = [#tpu.dimension_semantics<parallel>], iteration_bounds = array<i64: 1>, scalar_prefetch = 0 : i64, scratch_operands = 0 : i64, tpu.core_type = #tpu.core_type<tc>, window_params = [{transform_indices = @transform_0, window_bounds = array<i64: 1, 27, 8192>}, {pipeline_mode = #tpu.pipeline_mode<synchronous>, transform_indices = @transform_1, window_bounds = array<i64: 16, 27>}, {pipeline_mode = #tpu.pipeline_mode<synchronous>, transform_indices = @transform_2, window_bounds = array<i64: 16, 1>}, {transform_indices = @transform_3, window_bounds = array<i64: 1, 16, 2048>}]} {
    %c0 = arith.constant 0 : index
    %c0_0 = arith.constant 0 : index
    %0 = vector.load %arg2[%c0, %c0_0] : memref<16x27xbf16, #tpu.memory_space<vmem>>, vector<16x27xbf16>
    %c0_1 = arith.constant 0 : index
    %c0_2 = arith.constant 0 : index
    %c0_3 = arith.constant 0 : index
    %1 = vector.load %arg1[%c0_1, %c0_2, %c0_3] : memref<1x27x8192xbf16, #tpu.memory_space<vmem>>, vector<1x27x8192xbf16>
    %2 = vector.shape_cast %1 : vector<1x27x8192xbf16> to vector<27x8192xbf16>
    %cst = arith.constant dense<0.000000e+00> : vector<16x8192xf32>
    %3 = tpu.matmul %0, %2, %cst {dimension_numbers = #tpu.dot_dimension_numbers<[1], [0], [0], [1], [0, 0, 1, 1], [], []>} : vector<16x27xbf16>, vector<27x8192xbf16>, vector<16x8192xf32> -> vector<16x8192xf32>
    %c0_4 = arith.constant 0 : index
    %c0_5 = arith.constant 0 : index
    %4 = vector.load %arg3[%c0_4, %c0_5] : memref<16x1xf32, #tpu.memory_space<vmem>>, vector<16x1xf32>
    %5 = vector.broadcast %4 : vector<16x1xf32> to vector<16x8192xf32>
    %6 = arith.addf %3, %5 : vector<16x8192xf32>
    %cst_6 = arith.constant 0.000000e+00 : f32
    %7 = vector.broadcast %cst_6 : f32 to vector<16x8192xf32>
    %8 = arith.maximumf %6, %7 : vector<16x8192xf32>
    %9 = vector.extract_strided_slice %8 {offsets = [0, 0], sizes = [16, 2048], strides = [1, 1]} : vector<16x8192xf32> to vector<16x2048xf32>
    %10 = vector.extract_strided_slice %8 {offsets = [0, 2048], sizes = [16, 2048], strides = [1, 1]} : vector<16x8192xf32> to vector<16x2048xf32>
    %11 = arith.maximumf %9, %10 : vector<16x2048xf32>
    %12 = vector.extract_strided_slice %8 {offsets = [0, 4096], sizes = [16, 2048], strides = [1, 1]} : vector<16x8192xf32> to vector<16x2048xf32>
    %13 = vector.extract_strided_slice %8 {offsets = [0, 6144], sizes = [16, 2048], strides = [1, 1]} : vector<16x8192xf32> to vector<16x2048xf32>
    %14 = arith.maximumf %12, %13 : vector<16x2048xf32>
    %15 = arith.maximumf %11, %14 : vector<16x2048xf32>
    %16 = arith.truncf %15 : vector<16x2048xf32> to vector<16x2048xbf16>
    %c0_7 = arith.constant 0 : index
    %c0_8 = arith.constant 0 : index
    %c0_9 = arith.constant 0 : index
    %17 = vector.load %arg4[%c0_7, %c0_8, %c0_9] : memref<1x16x2048xbf16, #tpu.memory_space<vmem>>, vector<1x16x2048xbf16>
    %18 = vector.shape_cast %17 : vector<1x16x2048xbf16> to vector<16x2048xbf16>
    %19 = vector.shape_cast %16 : vector<16x2048xbf16> to vector<1x16x2048xbf16>
    tpu.vector_store %arg4[%c0_7, %c0_8, %c0_9], %19 {strides = array<i32>} : memref<1x16x2048xbf16, #tpu.memory_space<vmem>>, vector<1x16x2048xbf16>,
    return
  }
  func.func @transform_0(%arg0: i32) -> (i32, i32, i32) {
    %c0_i32 = arith.constant 0 : i32
    %c0_i32_0 = arith.constant 0 : i32
    %c0_i32_1 = arith.constant 0 : i32
    return %arg0, %c0_i32, %c0_i32_0 : i32, i32, i32
  }
  func.func @transform_1(%arg0: i32) -> (i32, i32) {
    %c0_i32 = arith.constant 0 : i32
    %c0_i32_0 = arith.constant 0 : i32
    %c0_i32_1 = arith.constant 0 : i32
    return %c0_i32, %c0_i32_0 : i32, i32
  }
  func.func @transform_2(%arg0: i32) -> (i32, i32) {
    %c0_i32 = arith.constant 0 : i32
    %c0_i32_0 = arith.constant 0 : i32
    %c0_i32_1 = arith.constant 0 : i32
    return %c0_i32, %c0_i32_0 : i32, i32
  }
  func.func @transform_3(%arg0: i32) -> (i32, i32, i32) {
    %c0_i32 = arith.constant 0 : i32
    %c0_i32_0 = arith.constant 0 : i32
    %c0_i32_1 = arith.constant 0 : i32
    return %arg0, %c0_i32, %c0_i32_0 : i32, i32, i32
  }
}

module attributes {stable_mosaic.version = 11 : i64} {
  func.func @_conv_relu_pool_kernel(%arg0: i32, %arg1: memref<1x144x2048xbf16, #tpu.memory_space<vmem>>, %arg2: memref<32x144xbf16, #tpu.memory_space<vmem>>, %arg3: memref<32x1xf32, #tpu.memory_space<vmem>>, %arg4: memref<1x32x512xbf16, #tpu.memory_space<vmem>>) attributes {dimension_semantics = [#tpu.dimension_semantics<parallel>], iteration_bounds = array<i64: 1>, scalar_prefetch = 0 : i64, scratch_operands = 0 : i64, tpu.core_type = #tpu.core_type<tc>, window_params = [{transform_indices = @transform_0, window_bounds = array<i64: 1, 144, 2048>}, {pipeline_mode = #tpu.pipeline_mode<synchronous>, transform_indices = @transform_1, window_bounds = array<i64: 32, 144>}, {pipeline_mode = #tpu.pipeline_mode<synchronous>, transform_indices = @transform_2, window_bounds = array<i64: 32, 1>}, {transform_indices = @transform_3, window_bounds = array<i64: 1, 32, 512>}]} {
    %c0 = arith.constant 0 : index
    %c0_0 = arith.constant 0 : index
    %0 = vector.load %arg2[%c0, %c0_0] : memref<32x144xbf16, #tpu.memory_space<vmem>>, vector<32x144xbf16>
    %c0_1 = arith.constant 0 : index
    %c0_2 = arith.constant 0 : index
    %c0_3 = arith.constant 0 : index
    %1 = vector.load %arg1[%c0_1, %c0_2, %c0_3] : memref<1x144x2048xbf16, #tpu.memory_space<vmem>>, vector<1x144x2048xbf16>
    %2 = vector.shape_cast %1 : vector<1x144x2048xbf16> to vector<144x2048xbf16>
    %cst = arith.constant dense<0.000000e+00> : vector<32x2048xf32>
    %3 = tpu.matmul %0, %2, %cst {dimension_numbers = #tpu.dot_dimension_numbers<[1], [0], [0], [1], [0, 0, 1, 1], [], []>} : vector<32x144xbf16>, vector<144x2048xbf16>, vector<32x2048xf32> -> vector<32x2048xf32>
    %c0_4 = arith.constant 0 : index
    %c0_5 = arith.constant 0 : index
    %4 = vector.load %arg3[%c0_4, %c0_5] : memref<32x1xf32, #tpu.memory_space<vmem>>, vector<32x1xf32>
    %5 = vector.broadcast %4 : vector<32x1xf32> to vector<32x2048xf32>
    %6 = arith.addf %3, %5 : vector<32x2048xf32>
    %cst_6 = arith.constant 0.000000e+00 : f32
    %7 = vector.broadcast %cst_6 : f32 to vector<32x2048xf32>
    %8 = arith.maximumf %6, %7 : vector<32x2048xf32>
    %9 = vector.extract_strided_slice %8 {offsets = [0, 0], sizes = [32, 512], strides = [1, 1]} : vector<32x2048xf32> to vector<32x512xf32>
    %10 = vector.extract_strided_slice %8 {offsets = [0, 512], sizes = [32, 512], strides = [1, 1]} : vector<32x2048xf32> to vector<32x512xf32>
    %11 = arith.maximumf %9, %10 : vector<32x512xf32>
    %12 = vector.extract_strided_slice %8 {offsets = [0, 1024], sizes = [32, 512], strides = [1, 1]} : vector<32x2048xf32> to vector<32x512xf32>
    %13 = vector.extract_strided_slice %8 {offsets = [0, 1536], sizes = [32, 512], strides = [1, 1]} : vector<32x2048xf32> to vector<32x512xf32>
    %14 = arith.maximumf %12, %13 : vector<32x512xf32>
    %15 = arith.maximumf %11, %14 : vector<32x512xf32>
    %16 = arith.truncf %15 : vector<32x512xf32> to vector<32x512xbf16>
    %c0_7 = arith.constant 0 : index
    %c0_8 = arith.constant 0 : index
    %c0_9 = arith.constant 0 : index
    %17 = vector.load %arg4[%c0_7, %c0_8, %c0_9] : memref<1x32x512xbf16, #tpu.memory_space<vmem>>, vector<1x32x512xbf16>
    %18 = vector.shape_cast %17 : vector<1x32x512xbf16> to vector<32x512xbf16>
    %19 = vector.shape_cast %16 : vector<32x512xbf16> to vector<1x32x512xbf16>
    tpu.vector_store %arg4[%c0_7, %c0_8, %c0_9], %19 {strides = array<i32>} : memref<1x32x512xbf16, #tpu.memory_space<vmem>>, vector<1x32x512xbf16>,
    return
  }
  func.func @transform_0(%arg0: i32) -> (i32, i32, i32) {
    %c0_i32 = arith.constant 0 : i32
    %c0_i32_0 = arith.constant 0 : i32
    %c0_i32_1 = arith.constant 0 : i32
    return %arg0, %c0_i32, %c0_i32_0 : i32, i32, i32
  }
  func.func @transform_1(%arg0: i32) -> (i32, i32) {
    %c0_i32 = arith.constant 0 : i32
    %c0_i32_0 = arith.constant 0 : i32
    %c0_i32_1 = arith.constant 0 : i32
    return %c0_i32, %c0_i32_0 : i32, i32
  }
  func.func @transform_2(%arg0: i32) -> (i32, i32) {
    %c0_i32 = arith.constant 0 : i32
    %c0_i32_0 = arith.constant 0 : i32
    %c0_i32_1 = arith.constant 0 : i32
    return %c0_i32, %c0_i32_0 : i32, i32
  }
  func.func @transform_3(%arg0: i32) -> (i32, i32, i32) {
    %c0_i32 = arith.constant 0 : i32
    %c0_i32_0 = arith.constant 0 : i32
    %c0_i32_1 = arith.constant 0 : i32
    return %arg0, %c0_i32, %c0_i32_0 : i32, i32, i32
  }
}

module attributes {stable_mosaic.version = 11 : i64} {
  func.func @_conv_relu_pool_kernel(%arg0: i32, %arg1: memref<1x288x512xbf16, #tpu.memory_space<vmem>>, %arg2: memref<64x288xbf16, #tpu.memory_space<vmem>>, %arg3: memref<64x1xf32, #tpu.memory_space<vmem>>, %arg4: memref<1x64x128xbf16, #tpu.memory_space<vmem>>) attributes {dimension_semantics = [#tpu.dimension_semantics<parallel>], iteration_bounds = array<i64: 1>, scalar_prefetch = 0 : i64, scratch_operands = 0 : i64, tpu.core_type = #tpu.core_type<tc>, window_params = [{transform_indices = @transform_0, window_bounds = array<i64: 1, 288, 512>}, {pipeline_mode = #tpu.pipeline_mode<synchronous>, transform_indices = @transform_1, window_bounds = array<i64: 64, 288>}, {pipeline_mode = #tpu.pipeline_mode<synchronous>, transform_indices = @transform_2, window_bounds = array<i64: 64, 1>}, {transform_indices = @transform_3, window_bounds = array<i64: 1, 64, 128>}]} {
    %c0 = arith.constant 0 : index
    %c0_0 = arith.constant 0 : index
    %0 = vector.load %arg2[%c0, %c0_0] : memref<64x288xbf16, #tpu.memory_space<vmem>>, vector<64x288xbf16>
    %c0_1 = arith.constant 0 : index
    %c0_2 = arith.constant 0 : index
    %c0_3 = arith.constant 0 : index
    %1 = vector.load %arg1[%c0_1, %c0_2, %c0_3] : memref<1x288x512xbf16, #tpu.memory_space<vmem>>, vector<1x288x512xbf16>
    %2 = vector.shape_cast %1 : vector<1x288x512xbf16> to vector<288x512xbf16>
    %cst = arith.constant dense<0.000000e+00> : vector<64x512xf32>
    %3 = tpu.matmul %0, %2, %cst {dimension_numbers = #tpu.dot_dimension_numbers<[1], [0], [0], [1], [0, 0, 1, 1], [], []>} : vector<64x288xbf16>, vector<288x512xbf16>, vector<64x512xf32> -> vector<64x512xf32>
    %c0_4 = arith.constant 0 : index
    %c0_5 = arith.constant 0 : index
    %4 = vector.load %arg3[%c0_4, %c0_5] : memref<64x1xf32, #tpu.memory_space<vmem>>, vector<64x1xf32>
    %5 = vector.broadcast %4 : vector<64x1xf32> to vector<64x512xf32>
    %6 = arith.addf %3, %5 : vector<64x512xf32>
    %cst_6 = arith.constant 0.000000e+00 : f32
    %7 = vector.broadcast %cst_6 : f32 to vector<64x512xf32>
    %8 = arith.maximumf %6, %7 : vector<64x512xf32>
    %9 = vector.extract_strided_slice %8 {offsets = [0, 0], sizes = [64, 128], strides = [1, 1]} : vector<64x512xf32> to vector<64x128xf32>
    %10 = vector.extract_strided_slice %8 {offsets = [0, 128], sizes = [64, 128], strides = [1, 1]} : vector<64x512xf32> to vector<64x128xf32>
    %11 = arith.maximumf %9, %10 : vector<64x128xf32>
    %12 = vector.extract_strided_slice %8 {offsets = [0, 256], sizes = [64, 128], strides = [1, 1]} : vector<64x512xf32> to vector<64x128xf32>
    %13 = vector.extract_strided_slice %8 {offsets = [0, 384], sizes = [64, 128], strides = [1, 1]} : vector<64x512xf32> to vector<64x128xf32>
    %14 = arith.maximumf %12, %13 : vector<64x128xf32>
    %15 = arith.maximumf %11, %14 : vector<64x128xf32>
    %16 = arith.truncf %15 : vector<64x128xf32> to vector<64x128xbf16>
    %c0_7 = arith.constant 0 : index
    %c0_8 = arith.constant 0 : index
    %c0_9 = arith.constant 0 : index
    %17 = vector.load %arg4[%c0_7, %c0_8, %c0_9] : memref<1x64x128xbf16, #tpu.memory_space<vmem>>, vector<1x64x128xbf16>
    %18 = vector.shape_cast %17 : vector<1x64x128xbf16> to vector<64x128xbf16>
    %19 = vector.shape_cast %16 : vector<64x128xbf16> to vector<1x64x128xbf16>
    tpu.vector_store %arg4[%c0_7, %c0_8, %c0_9], %19 {strides = array<i32>} : memref<1x64x128xbf16, #tpu.memory_space<vmem>>, vector<1x64x128xbf16>,
    return
  }
  func.func @transform_0(%arg0: i32) -> (i32, i32, i32) {
    %c0_i32 = arith.constant 0 : i32
    %c0_i32_0 = arith.constant 0 : i32
    %c0_i32_1 = arith.constant 0 : i32
    return %arg0, %c0_i32, %c0_i32_0 : i32, i32, i32
  }
  func.func @transform_1(%arg0: i32) -> (i32, i32) {
    %c0_i32 = arith.constant 0 : i32
    %c0_i32_0 = arith.constant 0 : i32
    %c0_i32_1 = arith.constant 0 : i32
    return %c0_i32, %c0_i32_0 : i32, i32
  }
  func.func @transform_2(%arg0: i32) -> (i32, i32) {
    %c0_i32 = arith.constant 0 : i32
    %c0_i32_0 = arith.constant 0 : i32
    %c0_i32_1 = arith.constant 0 : i32
    return %c0_i32, %c0_i32_0 : i32, i32
  }
  func.func @transform_3(%arg0: i32) -> (i32, i32, i32) {
    %c0_i32 = arith.constant 0 : i32
    %c0_i32_0 = arith.constant 0 : i32
    %c0_i32_1 = arith.constant 0 : i32
    return %arg0, %c0_i32, %c0_i32_0 : i32, i32, i32
  }
}

module attributes {stable_mosaic.version = 11 : i64} {
  func.func @_mlp_kernel(%arg0: i32, %arg1: memref<16x4096xbf16, #tpu.memory_space<vmem>>, %arg2: memref<4096x128xbf16, #tpu.memory_space<vmem>>, %arg3: memref<1x128xf32, #tpu.memory_space<vmem>>, %arg4: memref<128x10xbf16, #tpu.memory_space<vmem>>, %arg5: memref<1x10xf32, #tpu.memory_space<vmem>>, %arg6: memref<16x10xf32, #tpu.memory_space<vmem>>) attributes {dimension_semantics = [#tpu.dimension_semantics<parallel>], iteration_bounds = array<i64: 1>, scalar_prefetch = 0 : i64, scratch_operands = 0 : i64, tpu.core_type = #tpu.core_type<tc>, window_params = [{transform_indices = @transform_0, window_bounds = array<i64: 16, 4096>}, {pipeline_mode = #tpu.pipeline_mode<synchronous>, transform_indices = @transform_1, window_bounds = array<i64: 4096, 128>}, {pipeline_mode = #tpu.pipeline_mode<synchronous>, transform_indices = @transform_2, window_bounds = array<i64: 1, 128>}, {pipeline_mode = #tpu.pipeline_mode<synchronous>, transform_indices = @transform_3, window_bounds = array<i64: 128, 10>}, {pipeline_mode = #tpu.pipeline_mode<synchronous>, transform_indices = @transform_4, window_bounds = array<i64: 1, 10>}, {transform_indices = @transform_5, window_bounds = array<i64: 16, 10>}]} {
    %c0 = arith.constant 0 : index
    %c0_0 = arith.constant 0 : index
    %0 = vector.load %arg1[%c0, %c0_0] : memref<16x4096xbf16, #tpu.memory_space<vmem>>, vector<16x4096xbf16>
    %c0_1 = arith.constant 0 : index
    %c0_2 = arith.constant 0 : index
    %1 = vector.load %arg2[%c0_1, %c0_2] : memref<4096x128xbf16, #tpu.memory_space<vmem>>, vector<4096x128xbf16>
    %cst = arith.constant dense<0.000000e+00> : vector<16x128xf32>
    %2 = tpu.matmul %0, %1, %cst {dimension_numbers = #tpu.dot_dimension_numbers<[1], [0], [0], [1], [0, 0, 1, 1], [], []>} : vector<16x4096xbf16>, vector<4096x128xbf16>, vector<16x128xf32> -> vector<16x128xf32>
    %c0_3 = arith.constant 0 : index
    %c0_4 = arith.constant 0 : index
    %3 = vector.load %arg3[%c0_3, %c0_4] : memref<1x128xf32, #tpu.memory_space<vmem>>, vector<1x128xf32>
    %4 = vector.broadcast %3 : vector<1x128xf32> to vector<16x128xf32>
    %5 = arith.addf %2, %4 : vector<16x128xf32>
    %cst_5 = arith.constant 0.000000e+00 : f32
    %6 = vector.broadcast %cst_5 : f32 to vector<16x128xf32>
    %7 = arith.maximumf %5, %6 : vector<16x128xf32>
    %8 = arith.truncf %7 : vector<16x128xf32> to vector<16x128xbf16>
    %c0_6 = arith.constant 0 : index
    %c0_7 = arith.constant 0 : index
    %9 = vector.load %arg4[%c0_6, %c0_7] : memref<128x10xbf16, #tpu.memory_space<vmem>>, vector<128x10xbf16>
    %cst_8 = arith.constant dense<0.000000e+00> : vector<16x10xf32>
    %10 = tpu.matmul %8, %9, %cst_8 {dimension_numbers = #tpu.dot_dimension_numbers<[1], [0], [0], [1], [0, 0, 1, 1], [], []>} : vector<16x128xbf16>, vector<128x10xbf16>, vector<16x10xf32> -> vector<16x10xf32>
    %c0_9 = arith.constant 0 : index
    %c0_10 = arith.constant 0 : index
    %11 = vector.load %arg5[%c0_9, %c0_10] : memref<1x10xf32, #tpu.memory_space<vmem>>, vector<1x10xf32>
    %12 = vector.broadcast %11 : vector<1x10xf32> to vector<16x10xf32>
    %13 = arith.addf %10, %12 : vector<16x10xf32>
    %c0_11 = arith.constant 0 : index
    %c0_12 = arith.constant 0 : index
    %14 = vector.load %arg6[%c0_11, %c0_12] : memref<16x10xf32, #tpu.memory_space<vmem>>, vector<16x10xf32>
    tpu.vector_store %arg6[%c0_11, %c0_12], %13 {strides = array<i32>} : memref<16x10xf32, #tpu.memory_space<vmem>>, vector<16x10xf32>,
    return
  }
  func.func @transform_0(%arg0: i32) -> (i32, i32) {
    %c0_i32 = arith.constant 0 : i32
    %c0_i32_0 = arith.constant 0 : i32
    return %arg0, %c0_i32 : i32, i32
  }
  func.func @transform_1(%arg0: i32) -> (i32, i32) {
    %c0_i32 = arith.constant 0 : i32
    %c0_i32_0 = arith.constant 0 : i32
    %c0_i32_1 = arith.constant 0 : i32
    return %c0_i32, %c0_i32_0 : i32, i32
  }
  func.func @transform_2(%arg0: i32) -> (i32, i32) {
    %c0_i32 = arith.constant 0 : i32
    %c0_i32_0 = arith.constant 0 : i32
    %c0_i32_1 = arith.constant 0 : i32
    return %c0_i32, %c0_i32_0 : i32, i32
  }
  func.func @transform_3(%arg0: i32) -> (i32, i32) {
    %c0_i32 = arith.constant 0 : i32
    %c0_i32_0 = arith.constant 0 : i32
    %c0_i32_1 = arith.constant 0 : i32
    return %c0_i32, %c0_i32_0 : i32, i32
  }
  func.func @transform_4(%arg0: i32) -> (i32, i32) {
    %c0_i32 = arith.constant 0 : i32
    %c0_i32_0 = arith.constant 0 : i32
    %c0_i32_1 = arith.constant 0 : i32
    return %c0_i32, %c0_i32_0 : i32, i32
  }
  func.func @transform_5(%arg0: i32) -> (i32, i32) {
    %c0_i32 = arith.constant 0 : i32
    %c0_i32_0 = arith.constant 0 : i32
    return %arg0, %c0_i32 : i32, i32
  }
}

</mosaic_0001>

<llo_original>
// kernel: multi_class_cnn_forward.4
$region0: #{multi_class_cnn_forward.4}
  #allocation0 [shape = 'u32[]', space=smem, size = 0x4, offset = 0x4, fixed_abs, tag = 'smem constant byte address 0x4 - core index']
  #allocation1 [shape = 'u32[144,128]{1,0:T(1,128)}', space=vmem, size = 0x12000, scoped, tag = 'internal scratch']
  %s0 = inlined_call_operand.vmem [shape: bf16[1,27,8192], index: 0, kind: input, shape index: {}]
  %s1 = inlined_call_operand.vmem [shape: bf16[16,27], index: 1, kind: input, shape index: {}]
  %s2 = inlined_call_operand.vmem [shape: f32[16,1], index: 2, kind: input, shape index: {}]
  %s3 = inlined_call_operand.vmem [shape: bf16[1,16,2048], index: 3, kind: output, shape index: {}]
  %s4 = sld [smem:[#allocation0]]
  $region22: #{multi_class_cnn_forward.4} parent=0
    _
  %s6 = ssub.s32 1, %s4
  %s7 = scalar_select 0, %s6, %s4
  // Predicated region
  $region2: #{multi_class_cnn_forward.4} parent=0 // pred_check
    _
  $region3: #{multi_class_cnn_forward.4} parent=0 // pred_check_branch
    %9 = sbr.rel (0) target = $region5
  $region4: #{multi_class_cnn_forward.4} parent=0 // pred_region
    _
  $region5: #{multi_class_cnn_forward.4} parent=0 // pred_fallthru
    _
  // Predicated region
  $region6: #{multi_class_cnn_forward.4} parent=0 // pred_check
    _
  $region7: #{multi_class_cnn_forward.4} parent=0 // pred_check_branch
    %11 = sbr.rel (0) target = $region9
  $region8: #{multi_class_cnn_forward.4} parent=0 // pred_region
    _
  $region9: #{multi_class_cnn_forward.4} parent=0 // pred_fallthru
    _
  // Predicated region
  $region10: #{multi_class_cnn_forward.4} parent=0 // pred_check
    _
  $region11: #{multi_class_cnn_forward.4} parent=0 // pred_check_branch
    %13 = sbr.rel (0) target = $region13
  $region12: #{multi_class_cnn_forward.4} parent=0 // pred_region
    _
  $region13: #{multi_class_cnn_forward.4} parent=0 // pred_fallthru
    _
  %v15 = vld [vmem:[%s1] sm:$0xf]
  %v16 = vld [vmem:[%s1 + $0x4] sm:$0xf]
  %v17 = vld [vmem:[%s0] sm:$0xff]
  %v18 = vld [vmem:[%s0 + $0x8] sm:$0xff]
  %v19 = vld [vmem:[%s0 + $0x10] sm:$0xff]
  %v20 = vld [vmem:[%s0 + $0x18] sm:$0xff]
  %v21 = vld [vmem:[%s0 + $0x20] sm:$0xff]
  %v22 = vld [vmem:[%s0 + $0x28] sm:$0xff]
  %v23 = vld [vmem:[%s0 + $0x30] sm:$0xff]
  %v24 = vld [vmem:[%s0 + $0x38] sm:$0xff]
  %v25 = vld [vmem:[%s0 + $0x40] sm:$0xff]
  %v26 = vld [vmem:[%s0 + $0x48] sm:$0xff]
  %v27 = vld [vmem:[%s0 + $0x50] sm:$0xff]
  %v28 = vld [vmem:[%s0 + $0x58] sm:$0xff]
  %v29 = vld [vmem:[%s0 + $0x60] sm:$0xff]
  %v30 = vld [vmem:[%s0 + $0x68] sm:$0xff]
  %v31 = vld [vmem:[%s0 + $0x70] sm:$0xff]
  %v32 = vld [vmem:[%s0 + $0x78] sm:$0xff]
  %v33 = vld [vmem:[%s0 + $0x80] sm:$0xff]
  %v34 = vld [vmem:[%s0 + $0x88] sm:$0xff]
  %v35 = vld [vmem:[%s0 + $0x90] sm:$0xff]
  %v36 = vld [vmem:[%s0 + $0x98] sm:$0xff]
  %v37 = vld [vmem:[%s0 + $0xa0] sm:$0xff]
  %v38 = vld [vmem:[%s0 + $0xa8] sm:$0xff]
  %v39 = vld [vmem:[%s0 + $0xb0] sm:$0xff]
  %v40 = vld [vmem:[%s0 + $0xb8] sm:$0xff]
  %v41 = vld [vmem:[%s0 + $0xc0] sm:$0xff]
  %v42 = vld [vmem:[%s0 + $0xc8] sm:$0xff]
  %v43 = vld [vmem:[%s0 + $0xd0] sm:$0xff]
  %v44 = vld [vmem:[%s0 + $0xd8] sm:$0xff]
  %v45 = vld [vmem:[%s0 + $0xe0] sm:$0xff]
  %v46 = vld [vmem:[%s0 + $0xe8] sm:$0xff]
  %v47 = vld [vmem:[%s0 + $0xf0] sm:$0xff]
  %v48 = vld [vmem:[%s0 + $0xf8] sm:$0xff]
  %v49 = vld [vmem:[%s0 + $0x100] sm:$0xff]
  %v50 = vld [vmem:[%s0 + $0x108] sm:$0xff]
  %v51 = vld [vmem:[%s0 + $0x110] sm:$0xff]
  %v52 = vld [vmem:[%s0 + $0x118] sm:$0xff]
  %v53 = vld [vmem:[%s0 + $0x120] sm:$0xff]
  %v54 = vld [vmem:[%s0 + $0x128] sm:$0xff]
  %v55 = vld [vmem:[%s0 + $0x130] sm:$0xff]
  %v56 = vld [vmem:[%s0 + $0x138] sm:$0xff]
  %v57 = vld [vmem:[%s0 + $0x140] sm:$0xff]
  %v58 = vld [vmem:[%s0 + $0x148] sm:$0xff]
  %v59 = vld [vmem:[%s0 + $0x150] sm:$0xff]
  %v60 = vld [vmem:[%s0 + $0x158] sm:$0xff]
  %v61 = vld [vmem:[%s0 + $0x160] sm:$0xff]
  %v62 = vld [vmem:[%s0 + $0x168] sm:$0xff]
  %v63 = vld [vmem:[%s0 + $0x170] sm:$0xff]
  %v64 = vld [vmem:[%s0 + $0x178] sm:$0xff]
  %v65 = vld [vmem:[%s0 + $0x180] sm:$0xff]
  %v66 = vld [vmem:[%s0 + $0x188] sm:$0xff]
  %v67 = vld [vmem:[%s0 + $0x190] sm:$0xff]
  %v68 = vld [vmem:[%s0 + $0x198] sm:$0xff]
  %v69 = vld [vmem:[%s0 + $0x1a0] sm:$0xff]
  %v70 = vld [vmem:[%s0 + $0x1a8] sm:$0xff]
  %v71 = vld [vmem:[%s0 + $0x1b0] sm:$0xff]
  %v72 = vld [vmem:[%s0 + $0x1b8] sm:$0xff]
  %v73 = vld [vmem:[%s0 + $0x1c0] sm:$0xff]
  %v74 = vld [vmem:[%s0 + $0x1c8] sm:$0xff]
  %v75 = vld [vmem:[%s0 + $0x1d0] sm:$0xff]
  %v76 = vld [vmem:[%s0 + $0x1d8] sm:$0xff]
  %v77 = vld [vmem:[%s0 + $0x1e0] sm:$0xff]
  %v78 = vld [vmem:[%s0 + $0x1e8] sm:$0xff]
  %v79 = vld [vmem:[%s0 + $0x1f0] sm:$0xff]
  %v80 = vld [vmem:[%s0 + $0x1f8] sm:$0xff]
  %v81 = vld [vmem:[%s0 + $0x200] sm:$0xff]
  %v82 = vld [vmem:[%s0 + $0x208] sm:$0xff]
  %v83 = vld [vmem:[%s0 + $0x210] sm:$0xff]
  %v84 = vld [vmem:[%s0 + $0x218] sm:$0xff]
  %v85 = vld [vmem:[%s0 + $0x220] sm:$0xff]
  %v86 = vld [vmem:[%s0 + $0x228] sm:$0xff]
  %v87 = vld [vmem:[%s0 + $0x230] sm:$0xff]
  %v88 = vld [vmem:[%s0 + $0x238] sm:$0xff]
  %v89 = vld [vmem:[%s0 + $0x240] sm:$0xff]
  %v90 = vld [vmem:[%s0 + $0x248] sm:$0xff]
  %v91 = vld [vmem:[%s0 + $0x250] sm:$0xff]
  %v92 = vld [vmem:[%s0 + $0x258] sm:$0xff]
  %v93 = vld [vmem:[%s0 + $0x260] sm:$0xff]
  %v94 = vld [vmem:[%s0 + $0x268] sm:$0xff]
  %v95 = vld [vmem:[%s0 + $0x270] sm:$0xff]
  %v96 = vld [vmem:[%s0 + $0x278] sm:$0xff]
  %v97 = vld [vmem:[%s0 + $0x280] sm:$0xff]
  %v98 = vld [vmem:[%s0 + $0x288] sm:$0xff]
  %v99 = vld [vmem:[%s0 + $0x290] sm:$0xff]
  %v100 = vld [vmem:[%s0 + $0x298] sm:$0xff]
  %v101 = vld [vmem:[%s0 + $0x2a0] sm:$0xff]
  %v102 = vld [vmem:[%s0 + $0x2a8] sm:$0xff]
  %v103 = vld [vmem:[%s0 + $0x2b0] sm:$0xff]
  %v104 = vld [vmem:[%s0 + $0x2b8] sm:$0xff]
  %v105 = vld [vmem:[%s0 + $0x2c0] sm:$0xff]
  %v106 = vld [vmem:[%s0 + $0x2c8] sm:$0xff]
  %v107 = vld [vmem:[%s0 + $0x2d0] sm:$0xff]
  %v108 = vld [vmem:[%s0 + $0x2d8] sm:$0xff]
  %v109 = vld [vmem:[%s0 + $0x2e0] sm:$0xff]
  %v110 = vld [vmem:[%s0 + $0x2e8] sm:$0xff]
  %v111 = vld [vmem:[%s0 + $0x2f0] sm:$0xff]
  %v112 = vld [vmem:[%s0 + $0x2f8] sm:$0xff]
  %v113 = vld [vmem:[%s0 + $0x300] sm:$0x33]
  %v114 = vld [vmem:[%s0 + $0x308] sm:$0x33]
  %v115 = vld [vmem:[%s0 + $0x310] sm:$0x33]
  %v116 = vld [vmem:[%s0 + $0x318] sm:$0x33]
  %v117 = vld [vmem:[%s0 + $0x320] sm:$0x33]
  %v118 = vld [vmem:[%s0 + $0x328] sm:$0x33]
  %v119 = vld [vmem:[%s0 + $0x330] sm:$0x33]
  %v120 = vld [vmem:[%s0 + $0x338] sm:$0x33]
  %v121 = vld [vmem:[%s0 + $0x340] sm:$0x33]
  %v122 = vld [vmem:[%s0 + $0x348] sm:$0x33]
  %v123 = vld [vmem:[%s0 + $0x350] sm:$0x33]
  %v124 = vld [vmem:[%s0 + $0x358] sm:$0x33]
  %v125 = vld [vmem:[%s0 + $0x360] sm:$0x33]
  %v126 = vld [vmem:[%s0 + $0x368] sm:$0x33]
  %v127 = vld [vmem:[%s0 + $0x370] sm:$0x33]
  %v128 = vld [vmem:[%s0 + $0x378] sm:$0x33]
  %v129 = vld [vmem:[%s0 + $0x380] sm:$0x33]
  %v130 = vld [vmem:[%s0 + $0x388] sm:$0x33]
  %v131 = vld [vmem:[%s0 + $0x390] sm:$0x33]
  %v132 = vld [vmem:[%s0 + $0x398] sm:$0x33]
  %v133 = vld [vmem:[%s0 + $0x3a0] sm:$0x33]
  %v134 = vld [vmem:[%s0 + $0x3a8] sm:$0x33]
  %v135 = vld [vmem:[%s0 + $0x3b0] sm:$0x33]
  %v136 = vld [vmem:[%s0 + $0x3b8] sm:$0x33]
  %v137 = vld [vmem:[%s0 + $0x3c0] sm:$0x33]
  %v138 = vld [vmem:[%s0 + $0x3c8] sm:$0x33]
  %v139 = vld [vmem:[%s0 + $0x3d0] sm:$0x33]
  %v140 = vld [vmem:[%s0 + $0x3d8] sm:$0x33]
  %v141 = vld [vmem:[%s0 + $0x3e0] sm:$0x33]
  %v142 = vld [vmem:[%s0 + $0x3e8] sm:$0x33]
  %v143 = vld [vmem:[%s0 + $0x3f0] sm:$0x33]
  %v144 = vld [vmem:[%s0 + $0x3f8] sm:$0x33]
  %v145 = vld [vmem:[%s2] sm:$0xff]
  %v146 = vld [vmem:[%s2 + $0x8] sm:$0xff]
  %148 = vset.pattern.permute.xlu0 0
  %149 = vperm.xlu0 %148, %v145
  %v150 = vpop.permute.xlu0 %149
  %153 = vset.pattern.permute.xlu0 0
  %154 = vperm.xlu0 %153, %v146
  %v155 = vpop.permute.xlu0 %154
  %v159 = vunpack.c.l.b16 %v15
  %v160 = vunpack.c.l.b16 %v16
  %v161 = vpack.c.b16 %v160, %v159
  %v290 = vunpack.c.l.b16 %v17
  %v291 = vunpack.c.h.b16 %v17
  %v292 = vunpack.c.l.b16 %v18
  %v293 = vunpack.c.h.b16 %v18
  %v294 = vunpack.c.l.b16 %v19
  %v295 = vunpack.c.h.b16 %v19
  %v296 = vunpack.c.l.b16 %v20
  %v297 = vunpack.c.h.b16 %v20
  %v298 = vunpack.c.l.b16 %v21
  %v299 = vunpack.c.h.b16 %v21
  %v300 = vunpack.c.l.b16 %v22
  %v301 = vunpack.c.h.b16 %v22
  %v302 = vunpack.c.l.b16 %v23
  %v303 = vunpack.c.h.b16 %v23
  %v304 = vunpack.c.l.b16 %v24
  %v305 = vunpack.c.h.b16 %v24
  %v306 = vunpack.c.l.b16 %v25
  %v307 = vunpack.c.h.b16 %v25
  %v308 = vunpack.c.l.b16 %v26
  %v309 = vunpack.c.h.b16 %v26
  %v310 = vunpack.c.l.b16 %v27
  %v311 = vunpack.c.h.b16 %v27
  %v312 = vunpack.c.l.b16 %v28
  %v313 = vunpack.c.h.b16 %v28
  %v314 = vunpack.c.l.b16 %v29
  %v315 = vunpack.c.h.b16 %v29
  %v316 = vunpack.c.l.b16 %v30
  %v317 = vunpack.c.h.b16 %v30
  %v318 = vunpack.c.l.b16 %v31
  %v319 = vunpack.c.h.b16 %v31
  %v320 = vunpack.c.l.b16 %v32
  %v321 = vunpack.c.h.b16 %v32
  %v322 = vunpack.c.l.b16 %v33
  %v323 = vunpack.c.h.b16 %v33
  %v324 = vunpack.c.l.b16 %v34
  %v325 = vunpack.c.h.b16 %v34
  %v326 = vunpack.c.l.b16 %v35
  %v327 = vunpack.c.h.b16 %v35
  %v328 = vunpack.c.l.b16 %v36
  %v329 = vunpack.c.h.b16 %v36
  %v330 = vunpack.c.l.b16 %v37
  %v331 = vunpack.c.h.b16 %v37
  %v332 = vunpack.c.l.b16 %v38
  %v333 = vunpack.c.h.b16 %v38
  %v334 = vunpack.c.l.b16 %v39
  %v335 = vunpack.c.h.b16 %v39
  %v336 = vunpack.c.l.b16 %v40
  %v337 = vunpack.c.h.b16 %v40
  %v338 = vunpack.c.l.b16 %v41
  %v339 = vunpack.c.h.b16 %v41
  %v340 = vunpack.c.l.b16 %v42
  %v341 = vunpack.c.h.b16 %v42
  %v342 = vunpack.c.l.b16 %v43
  %v343 = vunpack.c.h.b16 %v43
  %v344 = vunpack.c.l.b16 %v44
  %v345 = vunpack.c.h.b16 %v44
  %v346 = vunpack.c.l.b16 %v45
  %v347 = vunpack.c.h.b16 %v45
  %v348 = vunpack.c.l.b16 %v46
  %v349 = vunpack.c.h.b16 %v46
  %v350 = vunpack.c.l.b16 %v47
  %v351 = vunpack.c.h.b16 %v47
  %v352 = vunpack.c.l.b16 %v48
  %v353 = vunpack.c.h.b16 %v48
  %v354 = vunpack.c.l.b16 %v49
  %v355 = vunpack.c.h.b16 %v49
  %v356 = vunpack.c.l.b16 %v50
  %v357 = vunpack.c.h.b16 %v50
  %v358 = vunpack.c.l.b16 %v51
  %v359 = vunpack.c.h.b16 %v51
  %v360 = vunpack.c.l.b16 %v52
  %v361 = vunpack.c.h.b16 %v52
  %v362 = vunpack.c.l.b16 %v53
  %v363 = vunpack.c.h.b16 %v53
  %v364 = vunpack.c.l.b16 %v54
  %v365 = vunpack.c.h.b16 %v54
  %v366 = vunpack.c.l.b16 %v55
  %v367 = vunpack.c.h.b16 %v55
  %v368 = vunpack.c.l.b16 %v56
  %v369 = vunpack.c.h.b16 %v56
  %v370 = vunpack.c.l.b16 %v57
  %v371 = vunpack.c.h.b16 %v57
  %v372 = vunpack.c.l.b16 %v58
  %v373 = vunpack.c.h.b16 %v58
  %v374 = vunpack.c.l.b16 %v59
  %v375 = vunpack.c.h.b16 %v59
  %v376 = vunpack.c.l.b16 %v60
  %v377 = vunpack.c.h.b16 %v60
  %v378 = vunpack.c.l.b16 %v61
  %v379 = vunpack.c.h.b16 %v61
  %v380 = vunpack.c.l.b16 %v62
  %v381 = vunpack.c.h.b16 %v62
  %v382 = vunpack.c.l.b16 %v63
  %v383 = vunpack.c.h.b16 %v63
  %v384 = vunpack.c.l.b16 %v64
  %v385 = vunpack.c.h.b16 %v64
  %v386 = vunpack.c.l.b16 %v65
  %v387 = vunpack.c.h.b16 %v65
  %v388 = vunpack.c.l.b16 %v66
  %v389 = vunpack.c.h.b16 %v66
  %v390 = vunpack.c.l.b16 %v67
  %v391 = vunpack.c.h.b16 %v67
  %v392 = vunpack.c.l.b16 %v68
  %v393 = vunpack.c.h.b16 %v68
  %v394 = vunpack.c.l.b16 %v69
  %v395 = vunpack.c.h.b16 %v69
  %v396 = vunpack.c.l.b16 %v70
  %v397 = vunpack.c.h.b16 %v70
  %v398 = vunpack.c.l.b16 %v71
  %v399 = vunpack.c.h.b16 %v71
  %v400 = vunpack.c.l.b16 %v72
  %v401 = vunpack.c.h.b16 %v72
  %v402 = vunpack.c.l.b16 %v73
  %v403 = vunpack.c.h.b16 %v73
  %v404 = vunpack.c.l.b16 %v74
  %v405 = vunpack.c.h.b16 %v74
  %v406 = vunpack.c.l.b16 %v75
  %v407 = vunpack.c.h.b16 %v75
  %v408 = vunpack.c.l.b16 %v76
  %v409 = vunpack.c.h.b16 %v76
  %v410 = vunpack.c.l.b16 %v77
  %v411 = vunpack.c.h.b16 %v77
  %v412 = vunpack.c.l.b16 %v78
  %v413 = vunpack.c.h.b16 %v78
  %v414 = vunpack.c.l.b16 %v79
  %v415 = vunpack.c.h.b16 %v79
  %v416 = vunpack.c.l.b16 %v80
  %v417 = vunpack.c.h.b16 %v80
  %v418 = vunpack.c.l.b16 %v81
  %v419 = vunpack.c.h.b16 %v81
  %v420 = vunpack.c.l.b16 %v82
  %v421 = vunpack.c.h.b16 %v82
  %v422 = vunpack.c.l.b16 %v83
  %v423 = vunpack.c.h.b16 %v83
  %v424 = vunpack.c.l.b16 %v84
  %v425 = vunpack.c.h.b16 %v84
  %v426 = vunpack.c.l.b16 %v85
  %v427 = vunpack.c.h.b16 %v85
  %v428 = vunpack.c.l.b16 %v86
  %v429 = vunpack.c.h.b16 %v86
  %v430 = vunpack.c.l.b16 %v87
  %v431 = vunpack.c.h.b16 %v87
  %v432 = vunpack.c.l.b16 %v88
  %v433 = vunpack.c.h.b16 %v88
  %v434 = vunpack.c.l.b16 %v89
  %v435 = vunpack.c.h.b16 %v89
  %v436 = vunpack.c.l.b16 %v90
  %v437 = vunpack.c.h.b16 %v90
  %v438 = vunpack.c.l.b16 %v91
  %v439 = vunpack.c.h.b16 %v91
  %v440 = vunpack.c.l.b16 %v92
  %v441 = vunpack.c.h.b16 %v92
  %v442 = vunpack.c.l.b16 %v93
  %v443 = vunpack.c.h.b16 %v93
  %v444 = vunpack.c.l.b16 %v94
  %v445 = vunpack.c.h.b16 %v94
  %v446 = vunpack.c.l.b16 %v95
  %v447 = vunpack.c.h.b16 %v95
  %v448 = vunpack.c.l.b16 %v96
  %v449 = vunpack.c.h.b16 %v96
  %v450 = vunpack.c.l.b16 %v97
  %v451 = vunpack.c.h.b16 %v97
  %v452 = vunpack.c.l.b16 %v98
  %v453 = vunpack.c.h.b16 %v98
  %v454 = vunpack.c.l.b16 %v99
  %v455 = vunpack.c.h.b16 %v99
  %v456 = vunpack.c.l.b16 %v100
  %v457 = vunpack.c.h.b16 %v100
  %v458 = vunpack.c.l.b16 %v101
  %v459 = vunpack.c.h.b16 %v101
  %v460 = vunpack.c.l.b16 %v102
  %v461 = vunpack.c.h.b16 %v102
  %v462 = vunpack.c.l.b16 %v103
  %v463 = vunpack.c.h.b16 %v103
  %v464 = vunpack.c.l.b16 %v104
  %v465 = vunpack.c.h.b16 %v104
  %v466 = vunpack.c.l.b16 %v105
  %v467 = vunpack.c.h.b16 %v105
  %v468 = vunpack.c.l.b16 %v106
  %v469 = vunpack.c.h.b16 %v106
  %v470 = vunpack.c.l.b16 %v107
  %v471 = vunpack.c.h.b16 %v107
  %v472 = vunpack.c.l.b16 %v108
  %v473 = vunpack.c.h.b16 %v108
  %v474 = vunpack.c.l.b16 %v109
  %v475 = vunpack.c.h.b16 %v109
  %v476 = vunpack.c.l.b16 %v110
  %v477 = vunpack.c.h.b16 %v110
  %v478 = vunpack.c.l.b16 %v111
  %v479 = vunpack.c.h.b16 %v111
  %v480 = vunpack.c.l.b16 %v112
  %v481 = vunpack.c.h.b16 %v112
  %v482 = vunpack.c.l.b16 %v113
  %v483 = vunpack.c.h.b16 %v113
  %v484 = vunpack.c.l.b16 %v114
  %v485 = vunpack.c.h.b16 %v114
  %v486 = vunpack.c.l.b16 %v115
  %v487 = vunpack.c.h.b16 %v115
  %v488 = vunpack.c.l.b16 %v116
  %v489 = vunpack.c.h.b16 %v116
  %v490 = vunpack.c.l.b16 %v117
  %v491 = vunpack.c.h.b16 %v117
  %v492 = vunpack.c.l.b16 %v118
  %v493 = vunpack.c.h.b16 %v118
  %v494 = vunpack.c.l.b16 %v119
  %v495 = vunpack.c.h.b16 %v119
  %v496 = vunpack.c.l.b16 %v120
  %v497 = vunpack.c.h.b16 %v120
  %v498 = vunpack.c.l.b16 %v121
  %v499 = vunpack.c.h.b16 %v121
  %v500 = vunpack.c.l.b16 %v122
  %v501 = vunpack.c.h.b16 %v122
  %v502 = vunpack.c.l.b16 %v123
  %v503 = vunpack.c.h.b16 %v123
  %v504 = vunpack.c.l.b16 %v124
  %v505 = vunpack.c.h.b16 %v124
  %v506 = vunpack.c.l.b16 %v125
  %v507 = vunpack.c.h.b16 %v125
  %v508 = vunpack.c.l.b16 %v126
  %v509 = vunpack.c.h.b16 %v126
  %v510 = vunpack.c.l.b16 %v127
  %v511 = vunpack.c.h.b16 %v127
  %v512 = vunpack.c.l.b16 %v128
  %v513 = vunpack.c.h.b16 %v128
  %v514 = vunpack.c.l.b16 %v129
  %v515 = vunpack.c.h.b16 %v129
  %v516 = vunpack.c.l.b16 %v130
  %v517 = vunpack.c.h.b16 %v130
  %v518 = vunpack.c.l.b16 %v131
  %v519 = vunpack.c.h.b16 %v131
  %v520 = vunpack.c.l.b16 %v132
  %v521 = vunpack.c.h.b16 %v132
  %v522 = vunpack.c.l.b16 %v133
  %v523 = vunpack.c.h.b16 %v133
  %v524 = vunpack.c.l.b16 %v134
  %v525 = vunpack.c.h.b16 %v134
  %v526 = vunpack.c.l.b16 %v135
  %v527 = vunpack.c.h.b16 %v135
  %v528 = vunpack.c.l.b16 %v136
  %v529 = vunpack.c.h.b16 %v136
  %v530 = vunpack.c.l.b16 %v137
  %v531 = vunpack.c.h.b16 %v137
  %v532 = vunpack.c.l.b16 %v138
  %v533 = vunpack.c.h.b16 %v138
  %v534 = vunpack.c.l.b16 %v139
  %v535 = vunpack.c.h.b16 %v139
  %v536 = vunpack.c.l.b16 %v140
  %v537 = vunpack.c.h.b16 %v140
  %v538 = vunpack.c.l.b16 %v141
  %v539 = vunpack.c.h.b16 %v141
  %v540 = vunpack.c.l.b16 %v142
  %v541 = vunpack.c.h.b16 %v142
  %v542 = vunpack.c.l.b16 %v143
  %v543 = vunpack.c.h.b16 %v143
  %v544 = vunpack.c.l.b16 %v144
  %v545 = vunpack.c.h.b16 %v144
  %v546 = vpack.c.b16 %v354, %v290
  %v547 = vpack.c.b16 %v355, %v291
  %v548 = vpack.c.b16 %v356, %v292
  %v549 = vpack.c.b16 %v357, %v293
  %v550 = vpack.c.b16 %v358, %v294
  %v551 = vpack.c.b16 %v359, %v295
  %v552 = vpack.c.b16 %v360, %v296
  %v553 = vpack.c.b16 %v361, %v297
  %v554 = vpack.c.b16 %v362, %v298
  %v555 = vpack.c.b16 %v363, %v299
  %v556 = vpack.c.b16 %v364, %v300
  %v557 = vpack.c.b16 %v365, %v301
  %v558 = vpack.c.b16 %v366, %v302
  %v559 = vpack.c.b16 %v367, %v303
  %v560 = vpack.c.b16 %v368, %v304
  %v561 = vpack.c.b16 %v369, %v305
  %v562 = vpack.c.b16 %v370, %v306
  %v563 = vpack.c.b16 %v371, %v307
  %v564 = vpack.c.b16 %v372, %v308
  %v565 = vpack.c.b16 %v373, %v309
  %v566 = vpack.c.b16 %v374, %v310
  %v567 = vpack.c.b16 %v375, %v311
  %v568 = vpack.c.b16 %v376, %v312
  %v569 = vpack.c.b16 %v377, %v313
  %v570 = vpack.c.b16 %v378, %v314
  %v571 = vpack.c.b16 %v379, %v315
  %v572 = vpack.c.b16 %v380, %v316
  %v573 = vpack.c.b16 %v381, %v317
  %v574 = vpack.c.b16 %v382, %v318
  %v575 = vpack.c.b16 %v383, %v319
  %v576 = vpack.c.b16 %v384, %v320
  %v577 = vpack.c.b16 %v385, %v321
  %v578 = vpack.c.b16 %v386, %v322
  %v579 = vpack.c.b16 %v387, %v323
  %v580 = vpack.c.b16 %v388, %v324
  %v581 = vpack.c.b16 %v389, %v325
  %v582 = vpack.c.b16 %v390, %v326
  %v583 = vpack.c.b16 %v391, %v327
  %v584 = vpack.c.b16 %v392, %v328
  %v585 = vpack.c.b16 %v393, %v329
  %v586 = vpack.c.b16 %v394, %v330
  %v587 = vpack.c.b16 %v395, %v331
  %v588 = vpack.c.b16 %v396, %v332
  %v589 = vpack.c.b16 %v397, %v333
  %v590 = vpack.c.b16 %v398, %v334
  %v591 = vpack.c.b16 %v399, %v335
  %v592 = vpack.c.b16 %v400, %v336
  %v593 = vpack.c.b16 %v401, %v337
  %v594 = vpack.c.b16 %v402, %v338
  %v595 = vpack.c.b16 %v403, %v339
  %v596 = vpack.c.b16 %v404, %v340
  %v597 = vpack.c.b16 %v405, %v341
  %v598 = vpack.c.b16 %v406, %v342
  %v599 = vpack.c.b16 %v407, %v343
  %v600 = vpack.c.b16 %v408, %v344
  %v601 = vpack.c.b16 %v409, %v345
  %v602 = vpack.c.b16 %v410, %v346
  %v603 = vpack.c.b16 %v411, %v347
  %v604 = vpack.c.b16 %v412, %v348
  %v605 = vpack.c.b16 %v413, %v349
  %v606 = vpack.c.b16 %v414, %v350
  %v607 = vpack.c.b16 %v415, %v351
  %v608 = vpack.c.b16 %v416, %v352
  %v609 = vpack.c.b16 %v417, %v353
  %v610 = vpack.c.b16 %v482, %v418
  %v611 = vpack.c.b16 %v483, %v419
  %v612 = vpack.c.b16 %v484, %v420
  %v613 = vpack.c.b16 %v485, %v421
  %v614 = vpack.c.b16 %v486, %v422
  %v615 = vpack.c.b16 %v487, %v423
  %v616 = vpack.c.b16 %v488, %v424
  %v617 = vpack.c.b16 %v489, %v425
  %v618 = vpack.c.b16 %v490, %v426
  %v619 = vpack.c.b16 %v491, %v427
  %v620 = vpack.c.b16 %v492, %v428
  %v621 = vpack.c.b16 %v493, %v429
  %v622 = vpack.c.b16 %v494, %v430
  %v623 = vpack.c.b16 %v495, %v431
  %v624 = vpack.c.b16 %v496, %v432
  %v625 = vpack.c.b16 %v497, %v433
  %v626 = vpack.c.b16 %v498, %v434
  %v627 = vpack.c.b16 %v499, %v435
  %v628 = vpack.c.b16 %v500, %v436
  %v629 = vpack.c.b16 %v501, %v437
  %v630 = vpack.c.b16 %v502, %v438
  %v631 = vpack.c.b16 %v503, %v439
  %v632 = vpack.c.b16 %v504, %v440
  %v633 = vpack.c.b16 %v505, %v441
  %v634 = vpack.c.b16 %v506, %v442
  %v635 = vpack.c.b16 %v507, %v443
  %v636 = vpack.c.b16 %v508, %v444
  %v637 = vpack.c.b16 %v509, %v445
  %v638 = vpack.c.b16 %v510, %v446
  %v639 = vpack.c.b16 %v511, %v447
  %v640 = vpack.c.b16 %v512, %v448
  %v641 = vpack.c.b16 %v513, %v449
  %v642 = vpack.c.b16 %v514, %v450
  %v643 = vpack.c.b16 %v515, %v451
  %v644 = vpack.c.b16 %v516, %v452
  %v645 = vpack.c.b16 %v517, %v453
  %v646 = vpack.c.b16 %v518, %v454
  %v647 = vpack.c.b16 %v519, %v455
  %v648 = vpack.c.b16 %v520, %v456
  %v649 = vpack.c.b16 %v521, %v457
  %v650 = vpack.c.b16 %v522, %v458
  %v651 = vpack.c.b16 %v523, %v459
  %v652 = vpack.c.b16 %v524, %v460
  %v653 = vpack.c.b16 %v525, %v461
  %v654 = vpack.c.b16 %v526, %v462
  %v655 = vpack.c.b16 %v527, %v463
  %v656 = vpack.c.b16 %v528, %v464
  %v657 = vpack.c.b16 %v529, %v465
  %v658 = vpack.c.b16 %v530, %v466
  %v659 = vpack.c.b16 %v531, %v467
  %v660 = vpack.c.b16 %v532, %v468
  %v661 = vpack.c.b16 %v533, %v469
  %v662 = vpack.c.b16 %v534, %v470
  %v663 = vpack.c.b16 %v535, %v471
  %v664 = vpack.c.b16 %v536, %v472
  %v665 = vpack.c.b16 %v537, %v473
  %v666 = vpack.c.b16 %v538, %v474
  %v667 = vpack.c.b16 %v539, %v475
  %v668 = vpack.c.b16 %v540, %v476
  %v669 = vpack.c.b16 %v541, %v477
  %v670 = vpack.c.b16 %v542, %v478
  %v671 = vpack.c.b16 %v543, %v479
  %v672 = vpack.c.b16 %v544, %v480
  %v673 = vpack.c.b16 %v545, %v481
  %vm738 = vcmask 220160
  %v740 = vsel %vm738, %v161, 0
  %vm742 = vcmask 1044480
  %vm743 = vcmask 1045504
  %v744 = vsel %vm742, 4294967295, 65535
  %v745 = vsel %vm743, %v744, 0
  %v747 = vand.u32 %v610, %v745
  %v750 = vand.u32 %v611, %v745
  %v753 = vand.u32 %v612, %v745
  %v756 = vand.u32 %v613, %v745
  %v759 = vand.u32 %v614, %v745
  %v762 = vand.u32 %v615, %v745
  %v765 = vand.u32 %v616, %v745
  %v768 = vand.u32 %v617, %v745
  %v771 = vand.u32 %v618, %v745
  %v774 = vand.u32 %v619, %v745
  %v777 = vand.u32 %v620, %v745
  %v780 = vand.u32 %v621, %v745
  %v783 = vand.u32 %v622, %v745
  %v786 = vand.u32 %v623, %v745
  %v789 = vand.u32 %v624, %v745
  %v792 = vand.u32 %v625, %v745
  %v795 = vand.u32 %v626, %v745
  %v798 = vand.u32 %v627, %v745
  %v801 = vand.u32 %v628, %v745
  %v804 = vand.u32 %v629, %v745
  %v807 = vand.u32 %v630, %v745
  %v810 = vand.u32 %v631, %v745
  %v813 = vand.u32 %v632, %v745
  %v816 = vand.u32 %v633, %v745
  %v819 = vand.u32 %v634, %v745
  %v822 = vand.u32 %v635, %v745
  %v825 = vand.u32 %v636, %v745
  %v828 = vand.u32 %v637, %v745
  %v831 = vand.u32 %v638, %v745
  %v834 = vand.u32 %v639, %v745
  %v837 = vand.u32 %v640, %v745
  %v840 = vand.u32 %v641, %v745
  %v843 = vand.u32 %v642, %v745
  %v846 = vand.u32 %v643, %v745
  %v849 = vand.u32 %v644, %v745
  %v852 = vand.u32 %v645, %v745
  %v855 = vand.u32 %v646, %v745
  %v858 = vand.u32 %v647, %v745
  %v861 = vand.u32 %v648, %v745
  %v864 = vand.u32 %v649, %v745
  %v867 = vand.u32 %v650, %v745
  %v870 = vand.u32 %v651, %v745
  %v873 = vand.u32 %v652, %v745
  %v876 = vand.u32 %v653, %v745
  %v879 = vand.u32 %v654, %v745
  %v882 = vand.u32 %v655, %v745
  %v885 = vand.u32 %v656, %v745
  %v888 = vand.u32 %v657, %v745
  %v891 = vand.u32 %v658, %v745
  %v894 = vand.u32 %v659, %v745
  %v897 = vand.u32 %v660, %v745
  %v900 = vand.u32 %v661, %v745
  %v903 = vand.u32 %v662, %v745
  %v906 = vand.u32 %v663, %v745
  %v909 = vand.u32 %v664, %v745
  %v912 = vand.u32 %v665, %v745
  %v915 = vand.u32 %v666, %v745
  %v918 = vand.u32 %v667, %v745
  %v921 = vand.u32 %v668, %v745
  %v924 = vand.u32 %v669, %v745
  %v927 = vand.u32 %v670, %v745
  %v930 = vand.u32 %v671, %v745
  %v933 = vand.u32 %v672, %v745
  %v936 = vand.u32 %v673, %v745
  %938 = vmatprep.subr.bf16.mxu0 %v547
  %939 = vmatpush1.bf16.msra.mxu0 %v546
  %940 = vmatprep.subr.bf16.mxu0 %v750
  %941 = vmatpush1.bf16.msra.mxu0 %v747
  %942 = vmatprep.subr.bf16.mxu0 0
  %943 = vmatpush1.bf16.msra.mxu0 0
  %944 = vmatprep.subr.bf16.mxu0 0
  %945 = vmatpush1.bf16.msra.mxu0 0
  %946 = vmatprep.subr.bf16.mxu0 0
  %947 = vmatpush1.bf16.msra.mxu0 0
  %948 = vmatprep.subr.bf16.mxu0 0
  %949 = vmatpush1.bf16.msra.mxu0 0
  %950 = vmatprep.subr.bf16.mxu0 0
  %951 = vmatpush1.bf16.msra.mxu0 0
  %952 = vmatprep.subr.bf16.mxu0 0
  %953 = vmatpush1.bf16.msra.mxu0 0
  %954 = vmatprep.subr.bf16.mxu0 0
  %955 = vmatpush1.bf16.msra.mxu0 0
  %956 = vmatprep.subr.bf16.mxu0 0
  %957 = vmatpush1.bf16.msra.mxu0 0
  %958 = vmatprep.subr.bf16.mxu0 0
  %959 = vmatpush1.bf16.msra.mxu0 0
  %960 = vmatprep.subr.bf16.mxu0 0
  %961 = vmatpush1.bf16.msra.mxu0 0
  %962 = vmatprep.subr.bf16.mxu0 0
  %963 = vmatpush1.bf16.msra.mxu0 0
  %964 = vmatprep.subr.bf16.mxu0 0
  %965 = vmatpush1.bf16.msra.mxu0 0
  %966 = vmatprep.subr.bf16.mxu0 0
  %967 = vmatpush1.bf16.msra.mxu0 0
  %968 = vmatprep.subr.bf16.mxu0 0
  %969 = vmatpush1.bf16.msra.mxu0 0
  %970 = vmatprep.mubr.bf16.mxu0 0
  %971 = vmatmul.mubr.bf16.gmra.mrb[0].mxu0 %v740
  %v972 = vpop.f32.mrb[0].mxu0
  %v973 = vadd.f32 %v150, %v972
  %v974 = vpop.f32.mrb[0].mxu0
  %v975 = vadd.f32 %v150, %v974
  %v976 = vpop.f32.mrb[0].mxu0
  %v977 = vadd.f32 %v155, %v976
  %v978 = vpop.f32.mrb[0].mxu0
  %v979 = vadd.f32 %v155, %v978
  %980 = vdwg.mxu0
  %981 = vmatprep.subr.bf16.mxu0 %v549
  %982 = vmatpush1.bf16.msra.mxu0 %v548
  %983 = vmatprep.subr.bf16.mxu0 %v756
  %984 = vmatpush1.bf16.msra.mxu0 %v753
  %985 = vmatprep.subr.bf16.mxu0 0
  %986 = vmatpush1.bf16.msra.mxu0 0
  %987 = vmatprep.subr.bf16.mxu0 0
  %988 = vmatpush1.bf16.msra.mxu0 0
  %989 = vmatprep.subr.bf16.mxu0 0
  %990 = vmatpush1.bf16.msra.mxu0 0
  %991 = vmatprep.subr.bf16.mxu0 0
  %992 = vmatpush1.bf16.msra.mxu0 0
  %993 = vmatprep.subr.bf16.mxu0 0
  %994 = vmatpush1.bf16.msra.mxu0 0
  %995 = vmatprep.subr.bf16.mxu0 0
  %996 = vmatpush1.bf16.msra.mxu0 0
  %997 = vmatprep.subr.bf16.mxu0 0
  %998 = vmatpush1.bf16.msra.mxu0 0
  %999 = vmatprep.subr.bf16.mxu0 0
  %1000 = vmatpush1.bf16.msra.mxu0 0
  %1001 = vmatprep.subr.bf16.mxu0 0
  %1002 = vmatpush1.bf16.msra.mxu0 0
  %1003 = vmatprep.subr.bf16.mxu0 0
  %1004 = vmatpush1.bf16.msra.mxu0 0
  %1005 = vmatprep.subr.bf16.mxu0 0
  %1006 = vmatpush1.bf16.msra.mxu0 0
  %1007 = vmatprep.subr.bf16.mxu0 0
  %1008 = vmatpush1.bf16.msra.mxu0 0
  %1009 = vmatprep.subr.bf16.mxu0 0
  %1010 = vmatpush1.bf16.msra.mxu0 0
  %1011 = vmatprep.subr.bf16.mxu0 0
  %1012 = vmatpush1.bf16.msra.mxu0 0
  %1013 = vmatprep.mubr.bf16.mxu0 0
  %1014 = vmatmul.mubr.bf16.gmra.mrb[0].mxu0 %v740
  %v1015 = vpop.f32.mrb[0].mxu0
  %v1016 = vadd.f32 %v150, %v1015
  %v1017 = vpop.f32.mrb[0].mxu0
  %v1018 = vadd.f32 %v150, %v1017
  %v1019 = vpop.f32.mrb[0].mxu0
  %v1020 = vadd.f32 %v155, %v1019
  %v1021 = vpop.f32.mrb[0].mxu0
  %v1022 = vadd.f32 %v155, %v1021
  %1023 = vdwg.mxu0
  %1024 = vmatprep.subr.bf16.mxu0 %v551
  %1025 = vmatpush1.bf16.msra.mxu0 %v550
  %1026 = vmatprep.subr.bf16.mxu0 %v762
  %1027 = vmatpush1.bf16.msra.mxu0 %v759
  %1028 = vmatprep.subr.bf16.mxu0 0
  %1029 = vmatpush1.bf16.msra.mxu0 0
  %1030 = vmatprep.subr.bf16.mxu0 0
  %1031 = vmatpush1.bf16.msra.mxu0 0
  %1032 = vmatprep.subr.bf16.mxu0 0
  %1033 = vmatpush1.bf16.msra.mxu0 0
  %1034 = vmatprep.subr.bf16.mxu0 0
  %1035 = vmatpush1.bf16.msra.mxu0 0
  %1036 = vmatprep.subr.bf16.mxu0 0
  %1037 = vmatpush1.bf16.msra.mxu0 0
  %1038 = vmatprep.subr.bf16.mxu0 0
  %1039 = vmatpush1.bf16.msra.mxu0 0
  %1040 = vmatprep.subr.bf16.mxu0 0
  %1041 = vmatpush1.bf16.msra.mxu0 0
  %1042 = vmatprep.subr.bf16.mxu0 0
  %1043 = vmatpush1.bf16.msra.mxu0 0
  %1044 = vmatprep.subr.bf16.mxu0 0
  %1045 = vmatpush1.bf16.msra.mxu0 0
  %1046 = vmatprep.subr.bf16.mxu0 0
  %1047 = vmatpush1.bf16.msra.mxu0 0
  %1048 = vmatprep.subr.bf16.mxu0 0
  %1049 = vmatpush1.bf16.msra.mxu0 0
  %1050 = vmatprep.subr.bf16.mxu0 0
  %1051 = vmatpush1.bf16.msra.mxu0 0
  %1052 = vmatprep.subr.bf16.mxu0 0
  %1053 = vmatpush1.bf16.msra.mxu0 0
  %1054 = vmatprep.subr.bf16.mxu0 0
  %1055 = vmatpush1.bf16.msra.mxu0 0
  %1056 = vmatprep.mubr.bf16.mxu0 0
  %1057 = vmatmul.mubr.bf16.gmra.mrb[0].mxu0 %v740
  %v1058 = vpop.f32.mrb[0].mxu0
  %v1059 = vadd.f32 %v150, %v1058
  %v1060 = vpop.f32.mrb[0].mxu0
  %v1061 = vadd.f32 %v150, %v1060
  %v1062 = vpop.f32.mrb[0].mxu0
  %v1063 = vadd.f32 %v155, %v1062
  %v1064 = vpop.f32.mrb[0].mxu0
  %v1065 = vadd.f32 %v155, %v1064
  %1066 = vdwg.mxu0
  %1067 = vmatprep.subr.bf16.mxu0 %v553
  %1068 = vmatpush1.bf16.msra.mxu0 %v552
  %1069 = vmatprep.subr.bf16.mxu0 %v768
  %1070 = vmatpush1.bf16.msra.mxu0 %v765
  %1071 = vmatprep.subr.bf16.mxu0 0
  %1072 = vmatpush1.bf16.msra.mxu0 0
  %1073 = vmatprep.subr.bf16.mxu0 0
  %1074 = vmatpush1.bf16.msra.mxu0 0
  %1075 = vmatprep.subr.bf16.mxu0 0
  %1076 = vmatpush1.bf16.msra.mxu0 0
  %1077 = vmatprep.subr.bf16.mxu0 0
  %1078 = vmatpush1.bf16.msra.mxu0 0
  %1079 = vmatprep.subr.bf16.mxu0 0
  %1080 = vmatpush1.bf16.msra.mxu0 0
  %1081 = vmatprep.subr.bf16.mxu0 0
  %1082 = vmatpush1.bf16.msra.mxu0 0
  %1083 = vmatprep.subr.bf16.mxu0 0
  %1084 = vmatpush1.bf16.msra.mxu0 0
  %1085 = vmatprep.subr.bf16.mxu0 0
  %1086 = vmatpush1.bf16.msra.mxu0 0
  %1087 = vmatprep.subr.bf16.mxu0 0
  %1088 = vmatpush1.bf16.msra.mxu0 0
  %1089 = vmatprep.subr.bf16.mxu0 0
  %1090 = vmatpush1.bf16.msra.mxu0 0
  %1091 = vmatprep.subr.bf16.mxu0 0
  %1092 = vmatpush1.bf16.msra.mxu0 0
  %1093 = vmatprep.subr.bf16.mxu0 0
  %1094 = vmatpush1.bf16.msra.mxu0 0
  %1095 = vmatprep.subr.bf16.mxu0 0
  %1096 = vmatpush1.bf16.msra.mxu0 0
  %1097 = vmatprep.subr.bf16.mxu0 0
  %1098 = vmatpush1.bf16.msra.mxu0 0
  %1099 = vmatprep.mubr.bf16.mxu0 0
  %1100 = vmatmul.mubr.bf16.gmra.mrb[0].mxu0 %v740
  %v1101 = vpop.f32.mrb[0].mxu0
  %v1102 = vadd.f32 %v150, %v1101
  %v1103 = vpop.f32.mrb[0].mxu0
  %v1104 = vadd.f32 %v150, %v1103
  %v1105 = vpop.f32.mrb[0].mxu0
  %v1106 = vadd.f32 %v155, %v1105
  %v1107 = vpop.f32.mrb[0].mxu0
  %v1108 = vadd.f32 %v155, %v1107
  %1109 = vdwg.mxu0
  %1110 = vmatprep.subr.bf16.mxu0 %v555
  %1111 = vmatpush1.bf16.msra.mxu0 %v554
  %1112 = vmatprep.subr.bf16.mxu0 %v774
  %1113 = vmatpush1.bf16.msra.mxu0 %v771
  %1114 = vmatprep.subr.bf16.mxu0 0
  %1115 = vmatpush1.bf16.msra.mxu0 0
  %1116 = vmatprep.subr.bf16.mxu0 0
  %1117 = vmatpush1.bf16.msra.mxu0 0
  %1118 = vmatprep.subr.bf16.mxu0 0
  %1119 = vmatpush1.bf16.msra.mxu0 0
  %1120 = vmatprep.subr.bf16.mxu0 0
  %1121 = vmatpush1.bf16.msra.mxu0 0
  %1122 = vmatprep.subr.bf16.mxu0 0
  %1123 = vmatpush1.bf16.msra.mxu0 0
  %1124 = vmatprep.subr.bf16.mxu0 0
  %1125 = vmatpush1.bf16.msra.mxu0 0
  %1126 = vmatprep.subr.bf16.mxu0 0
  %1127 = vmatpush1.bf16.msra.mxu0 0
  %1128 = vmatprep.subr.bf16.mxu0 0
  %1129 = vmatpush1.bf16.msra.mxu0 0
  %1130 = vmatprep.subr.bf16.mxu0 0
  %1131 = vmatpush1.bf16.msra.mxu0 0
  %1132 = vmatprep.subr.bf16.mxu0 0
  %1133 = vmatpush1.bf16.msra.mxu0 0
  %1134 = vmatprep.subr.bf16.mxu0 0
  %1135 = vmatpush1.bf16.msra.mxu0 0
  %1136 = vmatprep.subr.bf16.mxu0 0
  %1137 = vmatpush1.bf16.msra.mxu0 0
  %1138 = vmatprep.subr.bf16.mxu0 0
  %1139 = vmatpush1.bf16.msra.mxu0 0
  %1140 = vmatprep.subr.bf16.mxu0 0
  %1141 = vmatpush1.bf16.msra.mxu0 0
  %1142 = vmatprep.mubr.bf16.mxu0 0
  %1143 = vmatmul.mubr.bf16.gmra.mrb[0].mxu0 %v740
  %v1144 = vpop.f32.mrb[0].mxu0
  %v1145 = vadd.f32 %v150, %v1144
  %v1146 = vpop.f32.mrb[0].mxu0
  %v1147 = vadd.f32 %v150, %v1146
  %v1148 = vpop.f32.mrb[0].mxu0
  %v1149 = vadd.f32 %v155, %v1148
  %v1150 = vpop.f32.mrb[0].mxu0
  %v1151 = vadd.f32 %v155, %v1150
  %1152 = vdwg.mxu0
  %1153 = vmatprep.subr.bf16.mxu0 %v557
  %1154 = vmatpush1.bf16.msra.mxu0 %v556
  %1155 = vmatprep.subr.bf16.mxu0 %v780
  %1156 = vmatpush1.bf16.msra.mxu0 %v777
  %1157 = vmatprep.subr.bf16.mxu0 0
  %1158 = vmatpush1.bf16.msra.mxu0 0
  %1159 = vmatprep.subr.bf16.mxu0 0
  %1160 = vmatpush1.bf16.msra.mxu0 0
  %1161 = vmatprep.subr.bf16.mxu0 0
  %1162 = vmatpush1.bf16.msra.mxu0 0
  %1163 = vmatprep.subr.bf16.mxu0 0
  %1164 = vmatpush1.bf16.msra.mxu0 0
  %1165 = vmatprep.subr.bf16.mxu0 0
  %1166 = vmatpush1.bf16.msra.mxu0 0
  %1167 = vmatprep.subr.bf16.mxu0 0
  %1168 = vmatpush1.bf16.msra.mxu0 0
  %1169 = vmatprep.subr.bf16.mxu0 0
  %1170 = vmatpush1.bf16.msra.mxu0 0
  %1171 = vmatprep.subr.bf16.mxu0 0
  %1172 = vmatpush1.bf16.msra.mxu0 0
  %1173 = vmatprep.subr.bf16.mxu0 0
  %1174 = vmatpush1.bf16.msra.mxu0 0
  %1175 = vmatprep.subr.bf16.mxu0 0
  %1176 = vmatpush1.bf16.msra.mxu0 0
  %1177 = vmatprep.subr.bf16.mxu0 0
  %1178 = vmatpush1.bf16.msra.mxu0 0
  %1179 = vmatprep.subr.bf16.mxu0 0
  %1180 = vmatpush1.bf16.msra.mxu0 0
  %1181 = vmatprep.subr.bf16.mxu0 0
  %1182 = vmatpush1.bf16.msra.mxu0 0
  %1183 = vmatprep.subr.bf16.mxu0 0
  %1184 = vmatpush1.bf16.msra.mxu0 0
  %1185 = vmatprep.mubr.bf16.mxu0 0
  %1186 = vmatmul.mubr.bf16.gmra.mrb[0].mxu0 %v740
  %v1187 = vpop.f32.mrb[0].mxu0
  %v1188 = vadd.f32 %v150, %v1187
  %v1189 = vpop.f32.mrb[0].mxu0
  %v1190 = vadd.f32 %v150, %v1189
  %v1191 = vpop.f32.mrb[0].mxu0
  %v1192 = vadd.f32 %v155, %v1191
  %v1193 = vpop.f32.mrb[0].mxu0
  %v1194 = vadd.f32 %v155, %v1193
  %1195 = vdwg.mxu0
  %1196 = vmatprep.subr.bf16.mxu0 %v559
  %1197 = vmatpush1.bf16.msra.mxu0 %v558
  %1198 = vmatprep.subr.bf16.mxu0 %v786
  %1199 = vmatpush1.bf16.msra.mxu0 %v783
  %1200 = vmatprep.subr.bf16.mxu0 0
  %1201 = vmatpush1.bf16.msra.mxu0 0
  %1202 = vmatprep.subr.bf16.mxu0 0
  %1203 = vmatpush1.bf16.msra.mxu0 0
  %1204 = vmatprep.subr.bf16.mxu0 0
  %1205 = vmatpush1.bf16.msra.mxu0 0
  %1206 = vmatprep.subr.bf16.mxu0 0
  %1207 = vmatpush1.bf16.msra.mxu0 0
  %1208 = vmatprep.subr.bf16.mxu0 0
  %1209 = vmatpush1.bf16.msra.mxu0 0
  %1210 = vmatprep.subr.bf16.mxu0 0
  %1211 = vmatpush1.bf16.msra.mxu0 0
  %1212 = vmatprep.subr.bf16.mxu0 0
  %1213 = vmatpush1.bf16.msra.mxu0 0
  %1214 = vmatprep.subr.bf16.mxu0 0
  %1215 = vmatpush1.bf16.msra.mxu0 0
  %1216 = vmatprep.subr.bf16.mxu0 0
  %1217 = vmatpush1.bf16.msra.mxu0 0
  %1218 = vmatprep.subr.bf16.mxu0 0
  %1219 = vmatpush1.bf16.msra.mxu0 0
  %1220 = vmatprep.subr.bf16.mxu0 0
  %1221 = vmatpush1.bf16.msra.mxu0 0
  %1222 = vmatprep.subr.bf16.mxu0 0
  %1223 = vmatpush1.bf16.msra.mxu0 0
  %1224 = vmatprep.subr.bf16.mxu0 0
  %1225 = vmatpush1.bf16.msra.mxu0 0
  %1226 = vmatprep.subr.bf16.mxu0 0
  %1227 = vmatpush1.bf16.msra.mxu0 0
  %1228 = vmatprep.mubr.bf16.mxu0 0
  %1229 = vmatmul.mubr.bf16.gmra.mrb[0].mxu0 %v740
  %v1230 = vpop.f32.mrb[0].mxu0
  %v1231 = vadd.f32 %v150, %v1230
  %v1232 = vpop.f32.mrb[0].mxu0
  %v1233 = vadd.f32 %v150, %v1232
  %v1234 = vpop.f32.mrb[0].mxu0
  %v1235 = vadd.f32 %v155, %v1234
  %v1236 = vpop.f32.mrb[0].mxu0
  %v1237 = vadd.f32 %v155, %v1236
  %1238 = vdwg.mxu0
  %1239 = vmatprep.subr.bf16.mxu0 %v561
  %1240 = vmatpush1.bf16.msra.mxu0 %v560
  %1241 = vmatprep.subr.bf16.mxu0 %v792
  %1242 = vmatpush1.bf16.msra.mxu0 %v789
  %1243 = vmatprep.subr.bf16.mxu0 0
  %1244 = vmatpush1.bf16.msra.mxu0 0
  %1245 = vmatprep.subr.bf16.mxu0 0
  %1246 = vmatpush1.bf16.msra.mxu0 0
  %1247 = vmatprep.subr.bf16.mxu0 0
  %1248 = vmatpush1.bf16.msra.mxu0 0
  %1249 = vmatprep.subr.bf16.mxu0 0
  %1250 = vmatpush1.bf16.msra.mxu0 0
  %1251 = vmatprep.subr.bf16.mxu0 0
  %1252 = vmatpush1.bf16.msra.mxu0 0
  %1253 = vmatprep.subr.bf16.mxu0 0
  %1254 = vmatpush1.bf16.msra.mxu0 0
  %1255 = vmatprep.subr.bf16.mxu0 0
  %1256 = vmatpush1.bf16.msra.mxu0 0
  %1257 = vmatprep.subr.bf16.mxu0 0
  %1258 = vmatpush1.bf16.msra.mxu0 0
  %1259 = vmatprep.subr.bf16.mxu0 0
  %1260 = vmatpush1.bf16.msra.mxu0 0
  %1261 = vmatprep.subr.bf16.mxu0 0
  %1262 = vmatpush1.bf16.msra.mxu0 0
  %1263 = vmatprep.subr.bf16.mxu0 0
  %1264 = vmatpush1.bf16.msra.mxu0 0
  %1265 = vmatprep.subr.bf16.mxu0 0
  %1266 = vmatpush1.bf16.msra.mxu0 0
  %1267 = vmatprep.subr.bf16.mxu0 0
  %1268 = vmatpush1.bf16.msra.mxu0 0
  %1269 = vmatprep.subr.bf16.mxu0 0
  %1270 = vmatpush1.bf16.msra.mxu0 0
  %1271 = vmatprep.mubr.bf16.mxu0 0
  %1272 = vmatmul.mubr.bf16.gmra.mrb[0].mxu0 %v740
  %v1273 = vpop.f32.mrb[0].mxu0
  %v1274 = vadd.f32 %v150, %v1273
  %v1275 = vpop.f32.mrb[0].mxu0
  %v1276 = vadd.f32 %v150, %v1275
  %v1277 = vpop.f32.mrb[0].mxu0
  %v1278 = vadd.f32 %v155, %v1277
  %v1279 = vpop.f32.mrb[0].mxu0
  %v1280 = vadd.f32 %v155, %v1279
  %1281 = vdwg.mxu0
  %1282 = vmatprep.subr.bf16.mxu0 %v563
  %1283 = vmatpush1.bf16.msra.mxu0 %v562
  %1284 = vmatprep.subr.bf16.mxu0 %v798
  %1285 = vmatpush1.bf16.msra.mxu0 %v795
  %1286 = vmatprep.subr.bf16.mxu0 0
  %1287 = vmatpush1.bf16.msra.mxu0 0
  %1288 = vmatprep.subr.bf16.mxu0 0
  %1289 = vmatpush1.bf16.msra.mxu0 0
  %1290 = vmatprep.subr.bf16.mxu0 0
  %1291 = vmatpush1.bf16.msra.mxu0 0
  %1292 = vmatprep.subr.bf16.mxu0 0
  %1293 = vmatpush1.bf16.msra.mxu0 0
  %1294 = vmatprep.subr.bf16.mxu0 0
  %1295 = vmatpush1.bf16.msra.mxu0 0
  %1296 = vmatprep.subr.bf16.mxu0 0
  %1297 = vmatpush1.bf16.msra.mxu0 0
  %1298 = vmatprep.subr.bf16.mxu0 0
  %1299 = vmatpush1.bf16.msra.mxu0 0
  %1300 = vmatprep.subr.bf16.mxu0 0
  %1301 = vmatpush1.bf16.msra.mxu0 0
  %1302 = vmatprep.subr.bf16.mxu0 0
  %1303 = vmatpush1.bf16.msra.mxu0 0
  %1304 = vmatprep.subr.bf16.mxu0 0
  %1305 = vmatpush1.bf16.msra.mxu0 0
  %1306 = vmatprep.subr.bf16.mxu0 0
  %1307 = vmatpush1.bf16.msra.mxu0 0
  %1308 = vmatprep.subr.bf16.mxu0 0
  %1309 = vmatpush1.bf16.msra.mxu0 0
  %1310 = vmatprep.subr.bf16.mxu0 0
  %1311 = vmatpush1.bf16.msra.mxu0 0
  %1312 = vmatprep.subr.bf16.mxu0 0
  %1313 = vmatpush1.bf16.msra.mxu0 0
  %1314 = vmatprep.mubr.bf16.mxu0 0
  %1315 = vmatmul.mubr.bf16.gmra.mrb[0].mxu0 %v740
  %v1316 = vpop.f32.mrb[0].mxu0
  %v1317 = vadd.f32 %v150, %v1316
  %v1318 = vpop.f32.mrb[0].mxu0
  %v1319 = vadd.f32 %v150, %v1318
  %v1320 = vpop.f32.mrb[0].mxu0
  %v1321 = vadd.f32 %v155, %v1320
  %v1322 = vpop.f32.mrb[0].mxu0
  %v1323 = vadd.f32 %v155, %v1322
  %1324 = vdwg.mxu0
  %1325 = vmatprep.subr.bf16.mxu0 %v565
  %1326 = vmatpush1.bf16.msra.mxu0 %v564
  %1327 = vmatprep.subr.bf16.mxu0 %v804
  %1328 = vmatpush1.bf16.msra.mxu0 %v801
  %1329 = vmatprep.subr.bf16.mxu0 0
  %1330 = vmatpush1.bf16.msra.mxu0 0
  %1331 = vmatprep.subr.bf16.mxu0 0
  %1332 = vmatpush1.bf16.msra.mxu0 0
  %1333 = vmatprep.subr.bf16.mxu0 0
  %1334 = vmatpush1.bf16.msra.mxu0 0
  %1335 = vmatprep.subr.bf16.mxu0 0
  %1336 = vmatpush1.bf16.msra.mxu0 0
  %1337 = vmatprep.subr.bf16.mxu0 0
  %1338 = vmatpush1.bf16.msra.mxu0 0
  %1339 = vmatprep.subr.bf16.mxu0 0
  %1340 = vmatpush1.bf16.msra.mxu0 0
  %1341 = vmatprep.subr.bf16.mxu0 0
  %1342 = vmatpush1.bf16.msra.mxu0 0
  %1343 = vmatprep.subr.bf16.mxu0 0
  %1344 = vmatpush1.bf16.msra.mxu0 0
  %1345 = vmatprep.subr.bf16.mxu0 0
  %1346 = vmatpush1.bf16.msra.mxu0 0
  %1347 = vmatprep.subr.bf16.mxu0 0
  %1348 = vmatpush1.bf16.msra.mxu0 0
  %1349 = vmatprep.subr.bf16.mxu0 0
  %1350 = vmatpush1.bf16.msra.mxu0 0
  %1351 = vmatprep.subr.bf16.mxu0 0
  %1352 = vmatpush1.bf16.msra.mxu0 0
  %1353 = vmatprep.subr.bf16.mxu0 0
  %1354 = vmatpush1.bf16.msra.mxu0 0
  %1355 = vmatprep.subr.bf16.mxu0 0
  %1356 = vmatpush1.bf16.msra.mxu0 0
  %1357 = vmatprep.mubr.bf16.mxu0 0
  %1358 = vmatmul.mubr.bf16.gmra.mrb[0].mxu0 %v740
  %v1359 = vpop.f32.mrb[0].mxu0
  %v1360 = vadd.f32 %v150, %v1359
  %v1361 = vpop.f32.mrb[0].mxu0
  %v1362 = vadd.f32 %v150, %v1361
  %v1363 = vpop.f32.mrb[0].mxu0
  %v1364 = vadd.f32 %v155, %v1363
  %v1365 = vpop.f32.mrb[0].mxu0
  %v1366 = vadd.f32 %v155, %v1365
  %1367 = vdwg.mxu0
  %1368 = vmatprep.subr.bf16.mxu0 %v567
  %1369 = vmatpush1.bf16.msra.mxu0 %v566
  %1370 = vmatprep.subr.bf16.mxu0 %v810
  %1371 = vmatpush1.bf16.msra.mxu0 %v807
  %1372 = vmatprep.subr.bf16.mxu0 0
  %1373 = vmatpush1.bf16.msra.mxu0 0
  %1374 = vmatprep.subr.bf16.mxu0 0
  %1375 = vmatpush1.bf16.msra.mxu0 0
  %1376 = vmatprep.subr.bf16.mxu0 0
  %1377 = vmatpush1.bf16.msra.mxu0 0
  %1378 = vmatprep.subr.bf16.mxu0 0
  %1379 = vmatpush1.bf16.msra.mxu0 0
  %1380 = vmatprep.subr.bf16.mxu0 0
  %1381 = vmatpush1.bf16.msra.mxu0 0
  %1382 = vmatprep.subr.bf16.mxu0 0
  %1383 = vmatpush1.bf16.msra.mxu0 0
  %1384 = vmatprep.subr.bf16.mxu0 0
  %1385 = vmatpush1.bf16.msra.mxu0 0
  %1386 = vmatprep.subr.bf16.mxu0 0
  %1387 = vmatpush1.bf16.msra.mxu0 0
  %1388 = vmatprep.subr.bf16.mxu0 0
  %1389 = vmatpush1.bf16.msra.mxu0 0
  %1390 = vmatprep.subr.bf16.mxu0 0
  %1391 = vmatpush1.bf16.msra.mxu0 0
  %1392 = vmatprep.subr.bf16.mxu0 0
  %1393 = vmatpush1.bf16.msra.mxu0 0
  %1394 = vmatprep.subr.bf16.mxu0 0
  %1395 = vmatpush1.bf16.msra.mxu0 0
  %1396 = vmatprep.subr.bf16.mxu0 0
  %1397 = vmatpush1.bf16.msra.mxu0 0
  %1398 = vmatprep.subr.bf16.mxu0 0
  %1399 = vmatpush1.bf16.msra.mxu0 0
  %1400 = vmatprep.mubr.bf16.mxu0 0
  %1401 = vmatmul.mubr.bf16.gmra.mrb[0].mxu0 %v740
  %v1402 = vpop.f32.mrb[0].mxu0
  %v1403 = vadd.f32 %v150, %v1402
  %v1404 = vpop.f32.mrb[0].mxu0
  %v1405 = vadd.f32 %v150, %v1404
  %v1406 = vpop.f32.mrb[0].mxu0
  %v1407 = vadd.f32 %v155, %v1406
  %v1408 = vpop.f32.mrb[0].mxu0
  %v1409 = vadd.f32 %v155, %v1408
  %1410 = vdwg.mxu0
  %1411 = vmatprep.subr.bf16.mxu0 %v569
  %1412 = vmatpush1.bf16.msra.mxu0 %v568
  %1413 = vmatprep.subr.bf16.mxu0 %v816
  %1414 = vmatpush1.bf16.msra.mxu0 %v813
  %1415 = vmatprep.subr.bf16.mxu0 0
  %1416 = vmatpush1.bf16.msra.mxu0 0
  %1417 = vmatprep.subr.bf16.mxu0 0
  %1418 = vmatpush1.bf16.msra.mxu0 0
  %1419 = vmatprep.subr.bf16.mxu0 0
  %1420 = vmatpush1.bf16.msra.mxu0 0
  %1421 = vmatprep.subr.bf16.mxu0 0
  %1422 = vmatpush1.bf16.msra.mxu0 0
  %1423 = vmatprep.subr.bf16.mxu0 0
  %1424 = vmatpush1.bf16.msra.mxu0 0
  %1425 = vmatprep.subr.bf16.mxu0 0
  %1426 = vmatpush1.bf16.msra.mxu0 0
  %1427 = vmatprep.subr.bf16.mxu0 0
  %1428 = vmatpush1.bf16.msra.mxu0 0
  %1429 = vmatprep.subr.bf16.mxu0 0
  %1430 = vmatpush1.bf16.msra.mxu0 0
  %1431 = vmatprep.subr.bf16.mxu0 0
  %1432 = vmatpush1.bf16.msra.mxu0 0
  %1433 = vmatprep.subr.bf16.mxu0 0
  %1434 = vmatpush1.bf16.msra.mxu0 0
  %1435 = vmatprep.subr.bf16.mxu0 0
  %1436 = vmatpush1.bf16.msra.mxu0 0
  %1437 = vmatprep.subr.bf16.mxu0 0
  %1438 = vmatpush1.bf16.msra.mxu0 0
  %1439 = vmatprep.subr.bf16.mxu0 0
  %1440 = vmatpush1.bf16.msra.mxu0 0
  %1441 = vmatprep.subr.bf16.mxu0 0
  %1442 = vmatpush1.bf16.msra.mxu0 0
  %1443 = vmatprep.mubr.bf16.mxu0 0
  %1444 = vmatmul.mubr.bf16.gmra.mrb[0].mxu0 %v740
  %v1445 = vpop.f32.mrb[0].mxu0
  %v1446 = vadd.f32 %v150, %v1445
  %v1447 = vpop.f32.mrb[0].mxu0
  %v1448 = vadd.f32 %v150, %v1447
  %v1449 = vpop.f32.mrb[0].mxu0
  %v1450 = vadd.f32 %v155, %v1449
  %v1451 = vpop.f32.mrb[0].mxu0
  %v1452 = vadd.f32 %v155, %v1451
  %1453 = vdwg.mxu0
  %1454 = vmatprep.subr.bf16.mxu0 %v571
  %1455 = vmatpush1.bf16.msra.mxu0 %v570
  %1456 = vmatprep.subr.bf16.mxu0 %v822
  %1457 = vmatpush1.bf16.msra.mxu0 %v819
  %1458 = vmatprep.subr.bf16.mxu0 0
  %1459 = vmatpush1.bf16.msra.mxu0 0
  %1460 = vmatprep.subr.bf16.mxu0 0
  %1461 = vmatpush1.bf16.msra.mxu0 0
  %1462 = vmatprep.subr.bf16.mxu0 0
  %1463 = vmatpush1.bf16.msra.mxu0 0
  %1464 = vmatprep.subr.bf16.mxu0 0
  %1465 = vmatpush1.bf16.msra.mxu0 0
  %1466 = vmatprep.subr.bf16.mxu0 0
  %1467 = vmatpush1.bf16.msra.mxu0 0
  %1468 = vmatprep.subr.bf16.mxu0 0
  %1469 = vmatpush1.bf16.msra.mxu0 0
  %1470 = vmatprep.subr.bf16.mxu0 0
  %1471 = vmatpush1.bf16.msra.mxu0 0
  %1472 = vmatprep.subr.bf16.mxu0 0
  %1473 = vmatpush1.bf16.msra.mxu0 0
  %1474 = vmatprep.subr.bf16.mxu0 0
  %1475 = vmatpush1.bf16.msra.mxu0 0
  %1476 = vmatprep.subr.bf16.mxu0 0
  %1477 = vmatpush1.bf16.msra.mxu0 0
  %1478 = vmatprep.subr.bf16.mxu0 0
  %1479 = vmatpush1.bf16.msra.mxu0 0
  %1480 = vmatprep.subr.bf16.mxu0 0
  %1481 = vmatpush1.bf16.msra.mxu0 0
  %1482 = vmatprep.subr.bf16.mxu0 0
  %1483 = vmatpush1.bf16.msra.mxu0 0
  %1484 = vmatprep.subr.bf16.mxu0 0
  %1485 = vmatpush1.bf16.msra.mxu0 0
  %1486 = vmatprep.mubr.bf16.mxu0 0
  %1487 = vmatmul.mubr.bf16.gmra.mrb[0].mxu0 %v740
  %v1488 = vpop.f32.mrb[0].mxu0
  %v1489 = vadd.f32 %v150, %v1488
  %v1490 = vpop.f32.mrb[0].mxu0
  %v1491 = vadd.f32 %v150, %v1490
  %v1492 = vpop.f32.mrb[0].mxu0
  %v1493 = vadd.f32 %v155, %v1492
  %v1494 = vpop.f32.mrb[0].mxu0
  %v1495 = vadd.f32 %v155, %v1494
  %1496 = vdwg.mxu0
  %1497 = vmatprep.subr.bf16.mxu0 %v573
  %1498 = vmatpush1.bf16.msra.mxu0 %v572
  %1499 = vmatprep.subr.bf16.mxu0 %v828
  %1500 = vmatpush1.bf16.msra.mxu0 %v825
  %1501 = vmatprep.subr.bf16.mxu0 0
  %1502 = vmatpush1.bf16.msra.mxu0 0
  %1503 = vmatprep.subr.bf16.mxu0 0
  %1504 = vmatpush1.bf16.msra.mxu0 0
  %1505 = vmatprep.subr.bf16.mxu0 0
  %1506 = vmatpush1.bf16.msra.mxu0 0
  %1507 = vmatprep.subr.bf16.mxu0 0
  %1508 = vmatpush1.bf16.msra.mxu0 0
  %1509 = vmatprep.subr.bf16.mxu0 0
  %1510 = vmatpush1.bf16.msra.mxu0 0
  %1511 = vmatprep.subr.bf16.mxu0 0
  %1512 = vmatpush1.bf16.msra.mxu0 0
  %1513 = vmatprep.subr.bf16.mxu0 0
  %1514 = vmatpush1.bf16.msra.mxu0 0
  %1515 = vmatprep.subr.bf16.mxu0 0
  %1516 = vmatpush1.bf16.msra.mxu0 0
  %1517 = vmatprep.subr.bf16.mxu0 0
  %1518 = vmatpush1.bf16.msra.mxu0 0
  %1519 = vmatprep.subr.bf16.mxu0 0
  %1520 = vmatpush1.bf16.msra.mxu0 0
  %1521 = vmatprep.subr.bf16.mxu0 0
  %1522 = vmatpush1.bf16.msra.mxu0 0
  %1523 = vmatprep.subr.bf16.mxu0 0
  %1524 = vmatpush1.bf16.msra.mxu0 0
  %1525 = vmatprep.subr.bf16.mxu0 0
  %1526 = vmatpush1.bf16.msra.mxu0 0
  %1527 = vmatprep.subr.bf16.mxu0 0
  %1528 = vmatpush1.bf16.msra.mxu0 0
  %1529 = vmatprep.mubr.bf16.mxu0 0
  %1530 = vmatmul.mubr.bf16.gmra.mrb[0].mxu0 %v740
  %v1531 = vpop.f32.mrb[0].mxu0
  %v1532 = vadd.f32 %v150, %v1531
  %v1533 = vpop.f32.mrb[0].mxu0
  %v1534 = vadd.f32 %v150, %v1533
  %v1535 = vpop.f32.mrb[0].mxu0
  %v1536 = vadd.f32 %v155, %v1535
  %v1537 = vpop.f32.mrb[0].mxu0
  %v1538 = vadd.f32 %v155, %v1537
  %1539 = vdwg.mxu0
  %1540 = vmatprep.subr.bf16.mxu0 %v575
  %1541 = vmatpush1.bf16.msra.mxu0 %v574
  %1542 = vmatprep.subr.bf16.mxu0 %v834
  %1543 = vmatpush1.bf16.msra.mxu0 %v831
  %1544 = vmatprep.subr.bf16.mxu0 0
  %1545 = vmatpush1.bf16.msra.mxu0 0
  %1546 = vmatprep.subr.bf16.mxu0 0
  %1547 = vmatpush1.bf16.msra.mxu0 0
  %1548 = vmatprep.subr.bf16.mxu0 0
  %1549 = vmatpush1.bf16.msra.mxu0 0
  %1550 = vmatprep.subr.bf16.mxu0 0
  %1551 = vmatpush1.bf16.msra.mxu0 0
  %1552 = vmatprep.subr.bf16.mxu0 0
  %1553 = vmatpush1.bf16.msra.mxu0 0
  %1554 = vmatprep.subr.bf16.mxu0 0
  %1555 = vmatpush1.bf16.msra.mxu0 0
  %1556 = vmatprep.subr.bf16.mxu0 0
  %1557 = vmatpush1.bf16.msra.mxu0 0
  %1558 = vmatprep.subr.bf16.mxu0 0
  %1559 = vmatpush1.bf16.msra.mxu0 0
  %1560 = vmatprep.subr.bf16.mxu0 0
  %1561 = vmatpush1.bf16.msra.mxu0 0
  %1562 = vmatprep.subr.bf16.mxu0 0
  %1563 = vmatpush1.bf16.msra.mxu0 0
  %1564 = vmatprep.subr.bf16.mxu0 0
  %1565 = vmatpush1.bf16.msra.mxu0 0
  %1566 = vmatprep.subr.bf16.mxu0 0
  %1567 = vmatpush1.bf16.msra.mxu0 0
  %1568 = vmatprep.subr.bf16.mxu0 0
  %1569 = vmatpush1.bf16.msra.mxu0 0
  %1570 = vmatprep.subr.bf16.mxu0 0
  %1571 = vmatpush1.bf16.msra.mxu0 0
  %1572 = vmatprep.mubr.bf16.mxu0 0
  %1573 = vmatmul.mubr.bf16.gmra.mrb[0].mxu0 %v740
  %v1574 = vpop.f32.mrb[0].mxu0
  %v1575 = vadd.f32 %v150, %v1574
  %v1576 = vpop.f32.mrb[0].mxu0
  %v1577 = vadd.f32 %v150, %v1576
  %v1578 = vpop.f32.mrb[0].mxu0
  %v1579 = vadd.f32 %v155, %v1578
  %v1580 = vpop.f32.mrb[0].mxu0
  %v1581 = vadd.f32 %v155, %v1580
  %1582 = vdwg.mxu0
  %1583 = vmatprep.subr.bf16.mxu0 %v577
  %1584 = vmatpush1.bf16.msra.mxu0 %v576
  %1585 = vmatprep.subr.bf16.mxu0 %v840
  %1586 = vmatpush1.bf16.msra.mxu0 %v837
  %1587 = vmatprep.subr.bf16.mxu0 0
  %1588 = vmatpush1.bf16.msra.mxu0 0
  %1589 = vmatprep.subr.bf16.mxu0 0
  %1590 = vmatpush1.bf16.msra.mxu0 0
  %1591 = vmatprep.subr.bf16.mxu0 0
  %1592 = vmatpush1.bf16.msra.mxu0 0
  %1593 = vmatprep.subr.bf16.mxu0 0
  %1594 = vmatpush1.bf16.msra.mxu0 0
  %1595 = vmatprep.subr.bf16.mxu0 0
  %1596 = vmatpush1.bf16.msra.mxu0 0
  %1597 = vmatprep.subr.bf16.mxu0 0
  %1598 = vmatpush1.bf16.msra.mxu0 0
  %1599 = vmatprep.subr.bf16.mxu0 0
  %1600 = vmatpush1.bf16.msra.mxu0 0
  %1601 = vmatprep.subr.bf16.mxu0 0
  %1602 = vmatpush1.bf16.msra.mxu0 0
  %1603 = vmatprep.subr.bf16.mxu0 0
  %1604 = vmatpush1.bf16.msra.mxu0 0
  %1605 = vmatprep.subr.bf16.mxu0 0
  %1606 = vmatpush1.bf16.msra.mxu0 0
  %1607 = vmatprep.subr.bf16.mxu0 0
  %1608 = vmatpush1.bf16.msra.mxu0 0
  %1609 = vmatprep.subr.bf16.mxu0 0
  %1610 = vmatpush1.bf16.msra.mxu0 0
  %1611 = vmatprep.subr.bf16.mxu0 0
  %1612 = vmatpush1.bf16.msra.mxu0 0
  %1613 = vmatprep.subr.bf16.mxu0 0
  %1614 = vmatpush1.bf16.msra.mxu0 0
  %1615 = vmatprep.mubr.bf16.mxu0 0
  %1616 = vmatmul.mubr.bf16.gmra.mrb[0].mxu0 %v740
  %v1617 = vpop.f32.mrb[0].mxu0
  %v1618 = vadd.f32 %v150, %v1617
  %v1619 = vpop.f32.mrb[0].mxu0
  %v1620 = vadd.f32 %v150, %v1619
  %v1621 = vpop.f32.mrb[0].mxu0
  %v1622 = vadd.f32 %v155, %v1621
  %v1623 = vpop.f32.mrb[0].mxu0
  %v1624 = vadd.f32 %v155, %v1623
  %1625 = vdwg.mxu0
  %1626 = vmatprep.subr.bf16.mxu0 %v579
  %1627 = vmatpush1.bf16.msra.mxu0 %v578
  %1628 = vmatprep.subr.bf16.mxu0 %v846
  %1629 = vmatpush1.bf16.msra.mxu0 %v843
  %1630 = vmatprep.subr.bf16.mxu0 0
  %1631 = vmatpush1.bf16.msra.mxu0 0
  %1632 = vmatprep.subr.bf16.mxu0 0
  %1633 = vmatpush1.bf16.msra.mxu0 0
  %1634 = vmatprep.subr.bf16.mxu0 0
  %1635 = vmatpush1.bf16.msra.mxu0 0
  %1636 = vmatprep.subr.bf16.mxu0 0
  %1637 = vmatpush1.bf16.msra.mxu0 0
  %1638 = vmatprep.subr.bf16.mxu0 0
  %1639 = vmatpush1.bf16.msra.mxu0 0
  %1640 = vmatprep.subr.bf16.mxu0 0
  %1641 = vmatpush1.bf16.msra.mxu0 0
  %1642 = vmatprep.subr.bf16.mxu0 0
  %1643 = vmatpush1.bf16.msra.mxu0 0
  %1644 = vmatprep.subr.bf16.mxu0 0
  %1645 = vmatpush1.bf16.msra.mxu0 0
  %1646 = vmatprep.subr.bf16.mxu0 0
  %1647 = vmatpush1.bf16.msra.mxu0 0
  %1648 = vmatprep.subr.bf16.mxu0 0
  %1649 = vmatpush1.bf16.msra.mxu0 0
  %1650 = vmatprep.subr.bf16.mxu0 0
  %1651 = vmatpush1.bf16.msra.mxu0 0
  %1652 = vmatprep.subr.bf16.mxu0 0
  %1653 = vmatpush1.bf16.msra.mxu0 0
  %1654 = vmatprep.subr.bf16.mxu0 0
  %1655 = vmatpush1.bf16.msra.mxu0 0
  %1656 = vmatprep.subr.bf16.mxu0 0
  %1657 = vmatpush1.bf16.msra.mxu0 0
  %1658 = vmatprep.mubr.bf16.mxu0 0
  %1659 = vmatmul.mubr.bf16.gmra.mrb[0].mxu0 %v740
  %v1660 = vpop.f32.mrb[0].mxu0
  %v1661 = vadd.f32 %v150, %v1660
  %v1662 = vpop.f32.mrb[0].mxu0
  %v1663 = vadd.f32 %v150, %v1662
  %v1664 = vpop.f32.mrb[0].mxu0
  %v1665 = vadd.f32 %v155, %v1664
  %v1666 = vpop.f32.mrb[0].mxu0
  %v1667 = vadd.f32 %v155, %v1666
  %1668 = vdwg.mxu0
  %1669 = vmatprep.subr.bf16.mxu0 %v581
  %1670 = vmatpush1.bf16.msra.mxu0 %v580
  %1671 = vmatprep.subr.bf16.mxu0 %v852
  %1672 = vmatpush1.bf16.msra.mxu0 %v849
  %1673 = vmatprep.subr.bf16.mxu0 0
  %1674 = vmatpush1.bf16.msra.mxu0 0
  %1675 = vmatprep.subr.bf16.mxu0 0
  %1676 = vmatpush1.bf16.msra.mxu0 0
  %1677 = vmatprep.subr.bf16.mxu0 0
  %1678 = vmatpush1.bf16.msra.mxu0 0
  %1679 = vmatprep.subr.bf16.mxu0 0
  %1680 = vmatpush1.bf16.msra.mxu0 0
  %1681 = vmatprep.subr.bf16.mxu0 0
  %1682 = vmatpush1.bf16.msra.mxu0 0
  %1683 = vmatprep.subr.bf16.mxu0 0
  %1684 = vmatpush1.bf16.msra.mxu0 0
  %1685 = vmatprep.subr.bf16.mxu0 0
  %1686 = vmatpush1.bf16.msra.mxu0 0
  %1687 = vmatprep.subr.bf16.mxu0 0
  %1688 = vmatpush1.bf16.msra.mxu0 0
  %1689 = vmatprep.subr.bf16.mxu0 0
  %1690 = vmatpush1.bf16.msra.mxu0 0
  %1691 = vmatprep.subr.bf16.mxu0 0
  %1692 = vmatpush1.bf16.msra.mxu0 0
  %1693 = vmatprep.subr.bf16.mxu0 0
  %1694 = vmatpush1.bf16.msra.mxu0 0
  %1695 = vmatprep.subr.bf16.mxu0 0
  %1696 = vmatpush1.bf16.msra.mxu0 0
  %1697 = vmatprep.subr.bf16.mxu0 0
  %1698 = vmatpush1.bf16.msra.mxu0 0
  %1699 = vmatprep.subr.bf16.mxu0 0
  %1700 = vmatpush1.bf16.msra.mxu0 0
  %1701 = vmatprep.mubr.bf16.mxu0 0
  %1702 = vmatmul.mubr.bf16.gmra.mrb[0].mxu0 %v740
  %v1703 = vpop.f32.mrb[0].mxu0
  %v1704 = vadd.f32 %v150, %v1703
  %v1705 = vpop.f32.mrb[0].mxu0
  %v1706 = vadd.f32 %v150, %v1705
  %v1707 = vpop.f32.mrb[0].mxu0
  %v1708 = vadd.f32 %v155, %v1707
  %v1709 = vpop.f32.mrb[0].mxu0
  %v1710 = vadd.f32 %v155, %v1709
  %1711 = vdwg.mxu0
  %1712 = vmatprep.subr.bf16.mxu0 %v583
  %1713 = vmatpush1.bf16.msra.mxu0 %v582
  %1714 = vmatprep.subr.bf16.mxu0 %v858
  %1715 = vmatpush1.bf16.msra.mxu0 %v855
  %1716 = vmatprep.subr.bf16.mxu0 0
  %1717 = vmatpush1.bf16.msra.mxu0 0
  %1718 = vmatprep.subr.bf16.mxu0 0
  %1719 = vmatpush1.bf16.msra.mxu0 0
  %1720 = vmatprep.subr.bf16.mxu0 0
  %1721 = vmatpush1.bf16.msra.mxu0 0
  %1722 = vmatprep.subr.bf16.mxu0 0
  %1723 = vmatpush1.bf16.msra.mxu0 0
  %1724 = vmatprep.subr.bf16.mxu0 0
  %1725 = vmatpush1.bf16.msra.mxu0 0
  %1726 = vmatprep.subr.bf16.mxu0 0
  %1727 = vmatpush1.bf16.msra.mxu0 0
  %1728 = vmatprep.subr.bf16.mxu0 0
  %1729 = vmatpush1.bf16.msra.mxu0 0
  %1730 = vmatprep.subr.bf16.mxu0 0
  %1731 = vmatpush1.bf16.msra.mxu0 0
  %1732 = vmatprep.subr.bf16.mxu0 0
  %1733 = vmatpush1.bf16.msra.mxu0 0
  %1734 = vmatprep.subr.bf16.mxu0 0
  %1735 = vmatpush1.bf16.msra.mxu0 0
  %1736 = vmatprep.subr.bf16.mxu0 0
  %1737 = vmatpush1.bf16.msra.mxu0 0
  %1738 = vmatprep.subr.bf16.mxu0 0
  %1739 = vmatpush1.bf16.msra.mxu0 0
  %1740 = vmatprep.subr.bf16.mxu0 0
  %1741 = vmatpush1.bf16.msra.mxu0 0
  %1742 = vmatprep.subr.bf16.mxu0 0
  %1743 = vmatpush1.bf16.msra.mxu0 0
  %1744 = vmatprep.mubr.bf16.mxu0 0
  %1745 = vmatmul.mubr.bf16.gmra.mrb[0].mxu0 %v740
  %v1746 = vpop.f32.mrb[0].mxu0
  %v1747 = vadd.f32 %v150, %v1746
  %v1748 = vpop.f32.mrb[0].mxu0
  %v1749 = vadd.f32 %v150, %v1748
  %v1750 = vpop.f32.mrb[0].mxu0
  %v1751 = vadd.f32 %v155, %v1750
  %v1752 = vpop.f32.mrb[0].mxu0
  %v1753 = vadd.f32 %v155, %v1752
  %1754 = vdwg.mxu0
  %1755 = vmatprep.subr.bf16.mxu0 %v585
  %1756 = vmatpush1.bf16.msra.mxu0 %v584
  %1757 = vmatprep.subr.bf16.mxu0 %v864
  %1758 = vmatpush1.bf16.msra.mxu0 %v861
  %1759 = vmatprep.subr.bf16.mxu0 0
  %1760 = vmatpush1.bf16.msra.mxu0 0
  %1761 = vmatprep.subr.bf16.mxu0 0
  %1762 = vmatpush1.bf16.msra.mxu0 0
  %1763 = vmatprep.subr.bf16.mxu0 0
  %1764 = vmatpush1.bf16.msra.mxu0 0
  %1765 = vmatprep.subr.bf16.mxu0 0
  %1766 = vmatpush1.bf16.msra.mxu0 0
  %1767 = vmatprep.subr.bf16.mxu0 0
  %1768 = vmatpush1.bf16.msra.mxu0 0
  %1769 = vmatprep.subr.bf16.mxu0 0
  %1770 = vmatpush1.bf16.msra.mxu0 0
  %1771 = vmatprep.subr.bf16.mxu0 0
  %1772 = vmatpush1.bf16.msra.mxu0 0
  %1773 = vmatprep.subr.bf16.mxu0 0
  %1774 = vmatpush1.bf16.msra.mxu0 0
  %1775 = vmatprep.subr.bf16.mxu0 0
  %1776 = vmatpush1.bf16.msra.mxu0 0
  %1777 = vmatprep.subr.bf16.mxu0 0
  %1778 = vmatpush1.bf16.msra.mxu0 0
  %1779 = vmatprep.subr.bf16.mxu0 0
  %1780 = vmatpush1.bf16.msra.mxu0 0
  %1781 = vmatprep.subr.bf16.mxu0 0
  %1782 = vmatpush1.bf16.msra.mxu0 0
  %1783 = vmatprep.subr.bf16.mxu0 0
  %1784 = vmatpush1.bf16.msra.mxu0 0
  %1785 = vmatprep.subr.bf16.mxu0 0
  %1786 = vmatpush1.bf16.msra.mxu0 0
  %1787 = vmatprep.mubr.bf16.mxu0 0
  %1788 = vmatmul.mubr.bf16.gmra.mrb[0].mxu0 %v740
  %v1789 = vpop.f32.mrb[0].mxu0
  %v1790 = vadd.f32 %v150, %v1789
  %v1791 = vpop.f32.mrb[0].mxu0
  %v1792 = vadd.f32 %v150, %v1791
  %v1793 = vpop.f32.mrb[0].mxu0
  %v1794 = vadd.f32 %v155, %v1793
  %v1795 = vpop.f32.mrb[0].mxu0
  %v1796 = vadd.f32 %v155, %v1795
  %1797 = vdwg.mxu0
  %1798 = vmatprep.subr.bf16.mxu0 %v587
  %1799 = vmatpush1.bf16.msra.mxu0 %v586
  %1800 = vmatprep.subr.bf16.mxu0 %v870
  %1801 = vmatpush1.bf16.msra.mxu0 %v867
  %1802 = vmatprep.subr.bf16.mxu0 0
  %1803 = vmatpush1.bf16.msra.mxu0 0
  %1804 = vmatprep.subr.bf16.mxu0 0
  %1805 = vmatpush1.bf16.msra.mxu0 0
  %1806 = vmatprep.subr.bf16.mxu0 0
  %1807 = vmatpush1.bf16.msra.mxu0 0
  %1808 = vmatprep.subr.bf16.mxu0 0
  %1809 = vmatpush1.bf16.msra.mxu0 0
  %1810 = vmatprep.subr.bf16.mxu0 0
  %1811 = vmatpush1.bf16.msra.mxu0 0
  %1812 = vmatprep.subr.bf16.mxu0 0
  %1813 = vmatpush1.bf16.msra.mxu0 0
  %1814 = vmatprep.subr.bf16.mxu0 0
  %1815 = vmatpush1.bf16.msra.mxu0 0
  %1816 = vmatprep.subr.bf16.mxu0 0
  %1817 = vmatpush1.bf16.msra.mxu0 0
  %1818 = vmatprep.subr.bf16.mxu0 0
  %1819 = vmatpush1.bf16.msra.mxu0 0
  %1820 = vmatprep.subr.bf16.mxu0 0
  %1821 = vmatpush1.bf16.msra.mxu0 0
  %1822 = vmatprep.subr.bf16.mxu0 0
  %1823 = vmatpush1.bf16.msra.mxu0 0
  %1824 = vmatprep.subr.bf16.mxu0 0
  %1825 = vmatpush1.bf16.msra.mxu0 0
  %1826 = vmatprep.subr.bf16.mxu0 0
  %1827 = vmatpush1.bf16.msra.mxu0 0
  %1828 = vmatprep.subr.bf16.mxu0 0
  %1829 = vmatpush1.bf16.msra.mxu0 0
  %1830 = vmatprep.mubr.bf16.mxu0 0
  %1831 = vmatmul.mubr.bf16.gmra.mrb[0].mxu0 %v740
  %v1832 = vpop.f32.mrb[0].mxu0
  %v1833 = vadd.f32 %v150, %v1832
  %v1834 = vpop.f32.mrb[0].mxu0
  %v1835 = vadd.f32 %v150, %v1834
  %v1836 = vpop.f32.mrb[0].mxu0
  %v1837 = vadd.f32 %v155, %v1836
  %v1838 = vpop.f32.mrb[0].mxu0
  %v1839 = vadd.f32 %v155, %v1838
  %1840 = vdwg.mxu0
  %1841 = vmatprep.subr.bf16.mxu0 %v589
  %1842 = vmatpush1.bf16.msra.mxu0 %v588
  %1843 = vmatprep.subr.bf16.mxu0 %v876
  %1844 = vmatpush1.bf16.msra.mxu0 %v873
  %1845 = vmatprep.subr.bf16.mxu0 0
  %1846 = vmatpush1.bf16.msra.mxu0 0
  %1847 = vmatprep.subr.bf16.mxu0 0
  %1848 = vmatpush1.bf16.msra.mxu0 0
  %1849 = vmatprep.subr.bf16.mxu0 0
  %1850 = vmatpush1.bf16.msra.mxu0 0
  %1851 = vmatprep.subr.bf16.mxu0 0
  %1852 = vmatpush1.bf16.msra.mxu0 0
  %1853 = vmatprep.subr.bf16.mxu0 0
  %1854 = vmatpush1.bf16.msra.mxu0 0
  %1855 = vmatprep.subr.bf16.mxu0 0
  %1856 = vmatpush1.bf16.msra.mxu0 0
  %1857 = vmatprep.subr.bf16.mxu0 0
  %1858 = vmatpush1.bf16.msra.mxu0 0
  %1859 = vmatprep.subr.bf16.mxu0 0
  %1860 = vmatpush1.bf16.msra.mxu0 0
  %1861 = vmatprep.subr.bf16.mxu0 0
  %1862 = vmatpush1.bf16.msra.mxu0 0
  %1863 = vmatprep.subr.bf16.mxu0 0
  %1864 = vmatpush1.bf16.msra.mxu0 0
  %1865 = vmatprep.subr.bf16.mxu0 0
  %1866 = vmatpush1.bf16.msra.mxu0 0
  %1867 = vmatprep.subr.bf16.mxu0 0
  %1868 = vmatpush1.bf16.msra.mxu0 0
  %1869 = vmatprep.subr.bf16.mxu0 0
  %1870 = vmatpush1.bf16.msra.mxu0 0
  %1871 = vmatprep.subr.bf16.mxu0 0
  %1872 = vmatpush1.bf16.msra.mxu0 0
  %1873 = vmatprep.mubr.bf16.mxu0 0
  %1874 = vmatmul.mubr.bf16.gmra.mrb[0].mxu0 %v740
  %v1875 = vpop.f32.mrb[0].mxu0
  %v1876 = vadd.f32 %v150, %v1875
  %v1877 = vpop.f32.mrb[0].mxu0
  %v1878 = vadd.f32 %v150, %v1877
  %v1879 = vpop.f32.mrb[0].mxu0
  %v1880 = vadd.f32 %v155, %v1879
  %v1881 = vpop.f32.mrb[0].mxu0
  %v1882 = vadd.f32 %v155, %v1881
  %1883 = vdwg.mxu0
  %1884 = vmatprep.subr.bf16.mxu0 %v591
  %1885 = vmatpush1.bf16.msra.mxu0 %v590
  %1886 = vmatprep.subr.bf16.mxu0 %v882
  %1887 = vmatpush1.bf16.msra.mxu0 %v879
  %1888 = vmatprep.subr.bf16.mxu0 0
  %1889 = vmatpush1.bf16.msra.mxu0 0
  %1890 = vmatprep.subr.bf16.mxu0 0
  %1891 = vmatpush1.bf16.msra.mxu0 0
  %1892 = vmatprep.subr.bf16.mxu0 0
  %1893 = vmatpush1.bf16.msra.mxu0 0
  %1894 = vmatprep.subr.bf16.mxu0 0
  %1895 = vmatpush1.bf16.msra.mxu0 0
  %1896 = vmatprep.subr.bf16.mxu0 0
  %1897 = vmatpush1.bf16.msra.mxu0 0
  %1898 = vmatprep.subr.bf16.mxu0 0
  %1899 = vmatpush1.bf16.msra.mxu0 0
  %1900 = vmatprep.subr.bf16.mxu0 0
  %1901 = vmatpush1.bf16.msra.mxu0 0
  %1902 = vmatprep.subr.bf16.mxu0 0
  %1903 = vmatpush1.bf16.msra.mxu0 0
  %1904 = vmatprep.subr.bf16.mxu0 0
  %1905 = vmatpush1.bf16.msra.mxu0 0
  %1906 = vmatprep.subr.bf16.mxu0 0
  %1907 = vmatpush1.bf16.msra.mxu0 0
  %1908 = vmatprep.subr.bf16.mxu0 0
  %1909 = vmatpush1.bf16.msra.mxu0 0
  %1910 = vmatprep.subr.bf16.mxu0 0
  %1911 = vmatpush1.bf16.msra.mxu0 0
  %1912 = vmatprep.subr.bf16.mxu0 0
  %1913 = vmatpush1.bf16.msra.mxu0 0
  %1914 = vmatprep.subr.bf16.mxu0 0
  %1915 = vmatpush1.bf16.msra.mxu0 0
  %1916 = vmatprep.mubr.bf16.mxu0 0
  %1917 = vmatmul.mubr.bf16.gmra.mrb[0].mxu0 %v740
  %v1918 = vpop.f32.mrb[0].mxu0
  %v1919 = vadd.f32 %v150, %v1918
  %v1920 = vpop.f32.mrb[0].mxu0
  %v1921 = vadd.f32 %v150, %v1920
  %v1922 = vpop.f32.mrb[0].mxu0
  %v1923 = vadd.f32 %v155, %v1922
  %v1924 = vpop.f32.mrb[0].mxu0
  %v1925 = vadd.f32 %v155, %v1924
  %1926 = vdwg.mxu0
  %1927 = vmatprep.subr.bf16.mxu0 %v593
  %1928 = vmatpush1.bf16.msra.mxu0 %v592
  %1929 = vmatprep.subr.bf16.mxu0 %v888
  %1930 = vmatpush1.bf16.msra.mxu0 %v885
  %1931 = vmatprep.subr.bf16.mxu0 0
  %1932 = vmatpush1.bf16.msra.mxu0 0
  %1933 = vmatprep.subr.bf16.mxu0 0
  %1934 = vmatpush1.bf16.msra.mxu0 0
  %1935 = vmatprep.subr.bf16.mxu0 0
  %1936 = vmatpush1.bf16.msra.mxu0 0
  %1937 = vmatprep.subr.bf16.mxu0 0
  %1938 = vmatpush1.bf16.msra.mxu0 0
  %1939 = vmatprep.subr.bf16.mxu0 0
  %1940 = vmatpush1.bf16.msra.mxu0 0
  %1941 = vmatprep.subr.bf16.mxu0 0
  %1942 = vmatpush1.bf16.msra.mxu0 0
  %1943 = vmatprep.subr.bf16.mxu0 0
  %1944 = vmatpush1.bf16.msra.mxu0 0
  %1945 = vmatprep.subr.bf16.mxu0 0
  %1946 = vmatpush1.bf16.msra.mxu0 0
  %1947 = vmatprep.subr.bf16.mxu0 0
  %1948 = vmatpush1.bf16.msra.mxu0 0
  %1949 = vmatprep.subr.bf16.mxu0 0
  %1950 = vmatpush1.bf16.msra.mxu0 0
  %1951 = vmatprep.subr.bf16.mxu0 0
  %1952 = vmatpush1.bf16.msra.mxu0 0
  %1953 = vmatprep.subr.bf16.mxu0 0
  %1954 = vmatpush1.bf16.msra.mxu0 0
  %1955 = vmatprep.subr.bf16.mxu0 0
  %1956 = vmatpush1.bf16.msra.mxu0 0
  %1957 = vmatprep.subr.bf16.mxu0 0
  %1958 = vmatpush1.bf16.msra.mxu0 0
  %1959 = vmatprep.mubr.bf16.mxu0 0
  %1960 = vmatmul.mubr.bf16.gmra.mrb[0].mxu0 %v740
  %v1961 = vpop.f32.mrb[0].mxu0
  %v1962 = vadd.f32 %v150, %v1961
  %v1963 = vpop.f32.mrb[0].mxu0
  %v1964 = vadd.f32 %v150, %v1963
  %v1965 = vpop.f32.mrb[0].mxu0
  %v1966 = vadd.f32 %v155, %v1965
  %v1967 = vpop.f32.mrb[0].mxu0
  %v1968 = vadd.f32 %v155, %v1967
  %1969 = vdwg.mxu0
  %1970 = vmatprep.subr.bf16.mxu0 %v595
  %1971 = vmatpush1.bf16.msra.mxu0 %v594
  %1972 = vmatprep.subr.bf16.mxu0 %v894
  %1973 = vmatpush1.bf16.msra.mxu0 %v891
  %1974 = vmatprep.subr.bf16.mxu0 0
  %1975 = vmatpush1.bf16.msra.mxu0 0
  %1976 = vmatprep.subr.bf16.mxu0 0
  %1977 = vmatpush1.bf16.msra.mxu0 0
  %1978 = vmatprep.subr.bf16.mxu0 0
  %1979 = vmatpush1.bf16.msra.mxu0 0
  %1980 = vmatprep.subr.bf16.mxu0 0
  %1981 = vmatpush1.bf16.msra.mxu0 0
  %1982 = vmatprep.subr.bf16.mxu0 0
  %1983 = vmatpush1.bf16.msra.mxu0 0
  %1984 = vmatprep.subr.bf16.mxu0 0
  %1985 = vmatpush1.bf16.msra.mxu0 0
  %1986 = vmatprep.subr.bf16.mxu0 0
  %1987 = vmatpush1.bf16.msra.mxu0 0
  %1988 = vmatprep.subr.bf16.mxu0 0
  %1989 = vmatpush1.bf16.msra.mxu0 0
  %1990 = vmatprep.subr.bf16.mxu0 0
  %1991 = vmatpush1.bf16.msra.mxu0 0
  %1992 = vmatprep.subr.bf16.mxu0 0
  %1993 = vmatpush1.bf16.msra.mxu0 0
  %1994 = vmatprep.subr.bf16.mxu0 0
  %1995 = vmatpush1.bf16.msra.mxu0 0
  %1996 = vmatprep.subr.bf16.mxu0 0
  %1997 = vmatpush1.bf16.msra.mxu0 0
  %1998 = vmatprep.subr.bf16.mxu0 0
  %1999 = vmatpush1.bf16.msra.mxu0 0
  %2000 = vmatprep.subr.bf16.mxu0 0
  %2001 = vmatpush1.bf16.msra.mxu0 0
  %2002 = vmatprep.mubr.bf16.mxu0 0
  %2003 = vmatmul.mubr.bf16.gmra.mrb[0].mxu0 %v740
  %v2004 = vpop.f32.mrb[0].mxu0
  %v2005 = vadd.f32 %v150, %v2004
  %v2006 = vpop.f32.mrb[0].mxu0
  %v2007 = vadd.f32 %v150, %v2006
  %v2008 = vpop.f32.mrb[0].mxu0
  %v2009 = vadd.f32 %v155, %v2008
  %v2010 = vpop.f32.mrb[0].mxu0
  %v2011 = vadd.f32 %v155, %v2010
  %2012 = vdwg.mxu0
  %2013 = vmatprep.subr.bf16.mxu0 %v597
  %2014 = vmatpush1.bf16.msra.mxu0 %v596
  %2015 = vmatprep.subr.bf16.mxu0 %v900
  %2016 = vmatpush1.bf16.msra.mxu0 %v897
  %2017 = vmatprep.subr.bf16.mxu0 0
  %2018 = vmatpush1.bf16.msra.mxu0 0
  %2019 = vmatprep.subr.bf16.mxu0 0
  %2020 = vmatpush1.bf16.msra.mxu0 0
  %2021 = vmatprep.subr.bf16.mxu0 0
  %2022 = vmatpush1.bf16.msra.mxu0 0
  %2023 = vmatprep.subr.bf16.mxu0 0
  %2024 = vmatpush1.bf16.msra.mxu0 0
  %2025 = vmatprep.subr.bf16.mxu0 0
  %2026 = vmatpush1.bf16.msra.mxu0 0
  %2027 = vmatprep.subr.bf16.mxu0 0
  %2028 = vmatpush1.bf16.msra.mxu0 0
  %2029 = vmatprep.subr.bf16.mxu0 0
  %2030 = vmatpush1.bf16.msra.mxu0 0
  %2031 = vmatprep.subr.bf16.mxu0 0
  %2032 = vmatpush1.bf16.msra.mxu0 0
  %2033 = vmatprep.subr.bf16.mxu0 0
  %2034 = vmatpush1.bf16.msra.mxu0 0
  %2035 = vmatprep.subr.bf16.mxu0 0
  %2036 = vmatpush1.bf16.msra.mxu0 0
  %2037 = vmatprep.subr.bf16.mxu0 0
  %2038 = vmatpush1.bf16.msra.mxu0 0
  %2039 = vmatprep.subr.bf16.mxu0 0
  %2040 = vmatpush1.bf16.msra.mxu0 0
  %2041 = vmatprep.subr.bf16.mxu0 0
  %2042 = vmatpush1.bf16.msra.mxu0 0
  %2043 = vmatprep.subr.bf16.mxu0 0
  %2044 = vmatpush1.bf16.msra.mxu0 0
  %2045 = vmatprep.mubr.bf16.mxu0 0
  %2046 = vmatmul.mubr.bf16.gmra.mrb[0].mxu0 %v740
  %v2047 = vpop.f32.mrb[0].mxu0
  %v2048 = vadd.f32 %v150, %v2047
  %v2049 = vpop.f32.mrb[0].mxu0
  %v2050 = vadd.f32 %v150, %v2049
  %v2051 = vpop.f32.mrb[0].mxu0
  %v2052 = vadd.f32 %v155, %v2051
  %v2053 = vpop.f32.mrb[0].mxu0
  %v2054 = vadd.f32 %v155, %v2053
  %2055 = vdwg.mxu0
  %2056 = vmatprep.subr.bf16.mxu0 %v599
  %2057 = vmatpush1.bf16.msra.mxu0 %v598
  %2058 = vmatprep.subr.bf16.mxu0 %v906
  %2059 = vmatpush1.bf16.msra.mxu0 %v903
  %2060 = vmatprep.subr.bf16.mxu0 0
  %2061 = vmatpush1.bf16.msra.mxu0 0
  %2062 = vmatprep.subr.bf16.mxu0 0
  %2063 = vmatpush1.bf16.msra.mxu0 0
  %2064 = vmatprep.subr.bf16.mxu0 0
  %2065 = vmatpush1.bf16.msra.mxu0 0
  %2066 = vmatprep.subr.bf16.mxu0 0
  %2067 = vmatpush1.bf16.msra.mxu0 0
  %2068 = vmatprep.subr.bf16.mxu0 0
  %2069 = vmatpush1.bf16.msra.mxu0 0
  %2070 = vmatprep.subr.bf16.mxu0 0
  %2071 = vmatpush1.bf16.msra.mxu0 0
  %2072 = vmatprep.subr.bf16.mxu0 0
  %2073 = vmatpush1.bf16.msra.mxu0 0
  %2074 = vmatprep.subr.bf16.mxu0 0
  %2075 = vmatpush1.bf16.msra.mxu0 0
  %2076 = vmatprep.subr.bf16.mxu0 0
  %2077 = vmatpush1.bf16.msra.mxu0 0
  %2078 = vmatprep.subr.bf16.mxu0 0
  %2079 = vmatpush1.bf16.msra.mxu0 0
  %2080 = vmatprep.subr.bf16.mxu0 0
  %2081 = vmatpush1.bf16.msra.mxu0 0
  %2082 = vmatprep.subr.bf16.mxu0 0
  %2083 = vmatpush1.bf16.msra.mxu0 0
  %2084 = vmatprep.subr.bf16.mxu0 0
  %2085 = vmatpush1.bf16.msra.mxu0 0
  %2086 = vmatprep.subr.bf16.mxu0 0
  %2087 = vmatpush1.bf16.msra.mxu0 0
  %2088 = vmatprep.mubr.bf16.mxu0 0
  %2089 = vmatmul.mubr.bf16.gmra.mrb[0].mxu0 %v740
  %v2090 = vpop.f32.mrb[0].mxu0
  %v2091 = vadd.f32 %v150, %v2090
  %v2092 = vpop.f32.mrb[0].mxu0
  %v2093 = vadd.f32 %v150, %v2092
  %v2094 = vpop.f32.mrb[0].mxu0
  %v2095 = vadd.f32 %v155, %v2094
  %v2096 = vpop.f32.mrb[0].mxu0
  %v2097 = vadd.f32 %v155, %v2096
  %2098 = vdwg.mxu0
  %2099 = vmatprep.subr.bf16.mxu0 %v601
  %2100 = vmatpush1.bf16.msra.mxu0 %v600
  %2101 = vmatprep.subr.bf16.mxu0 %v912
  %2102 = vmatpush1.bf16.msra.mxu0 %v909
  %2103 = vmatprep.subr.bf16.mxu0 0
  %2104 = vmatpush1.bf16.msra.mxu0 0
  %2105 = vmatprep.subr.bf16.mxu0 0
  %2106 = vmatpush1.bf16.msra.mxu0 0
  %2107 = vmatprep.subr.bf16.mxu0 0
  %2108 = vmatpush1.bf16.msra.mxu0 0
  %2109 = vmatprep.subr.bf16.mxu0 0
  %2110 = vmatpush1.bf16.msra.mxu0 0
  %2111 = vmatprep.subr.bf16.mxu0 0
  %2112 = vmatpush1.bf16.msra.mxu0 0
  %2113 = vmatprep.subr.bf16.mxu0 0
  %2114 = vmatpush1.bf16.msra.mxu0 0
  %2115 = vmatprep.subr.bf16.mxu0 0
  %2116 = vmatpush1.bf16.msra.mxu0 0
  %2117 = vmatprep.subr.bf16.mxu0 0
  %2118 = vmatpush1.bf16.msra.mxu0 0
  %2119 = vmatprep.subr.bf16.mxu0 0
  %2120 = vmatpush1.bf16.msra.mxu0 0
  %2121 = vmatprep.subr.bf16.mxu0 0
  %2122 = vmatpush1.bf16.msra.mxu0 0
  %2123 = vmatprep.subr.bf16.mxu0 0
  %2124 = vmatpush1.bf16.msra.mxu0 0
  %2125 = vmatprep.subr.bf16.mxu0 0
  %2126 = vmatpush1.bf16.msra.mxu0 0
  %2127 = vmatprep.subr.bf16.mxu0 0
  %2128 = vmatpush1.bf16.msra.mxu0 0
  %2129 = vmatprep.subr.bf16.mxu0 0
  %2130 = vmatpush1.bf16.msra.mxu0 0
  %2131 = vmatprep.mubr.bf16.mxu0 0
  %2132 = vmatmul.mubr.bf16.gmra.mrb[0].mxu0 %v740
  %v2133 = vpop.f32.mrb[0].mxu0
  %v2134 = vadd.f32 %v150, %v2133
  %v2135 = vpop.f32.mrb[0].mxu0
  %v2136 = vadd.f32 %v150, %v2135
  %v2137 = vpop.f32.mrb[0].mxu0
  %v2138 = vadd.f32 %v155, %v2137
  %v2139 = vpop.f32.mrb[0].mxu0
  %v2140 = vadd.f32 %v155, %v2139
  %2141 = vdwg.mxu0
  %2142 = vmatprep.subr.bf16.mxu0 %v603
  %2143 = vmatpush1.bf16.msra.mxu0 %v602
  %2144 = vmatprep.subr.bf16.mxu0 %v918
  %2145 = vmatpush1.bf16.msra.mxu0 %v915
  %2146 = vmatprep.subr.bf16.mxu0 0
  %2147 = vmatpush1.bf16.msra.mxu0 0
  %2148 = vmatprep.subr.bf16.mxu0 0
  %2149 = vmatpush1.bf16.msra.mxu0 0
  %2150 = vmatprep.subr.bf16.mxu0 0
  %2151 = vmatpush1.bf16.msra.mxu0 0
  %2152 = vmatprep.subr.bf16.mxu0 0
  %2153 = vmatpush1.bf16.msra.mxu0 0
  %2154 = vmatprep.subr.bf16.mxu0 0
  %2155 = vmatpush1.bf16.msra.mxu0 0
  %2156 = vmatprep.subr.bf16.mxu0 0
  %2157 = vmatpush1.bf16.msra.mxu0 0
  %2158 = vmatprep.subr.bf16.mxu0 0
  %2159 = vmatpush1.bf16.msra.mxu0 0
  %2160 = vmatprep.subr.bf16.mxu0 0
  %2161 = vmatpush1.bf16.msra.mxu0 0
  %2162 = vmatprep.subr.bf16.mxu0 0
  %2163 = vmatpush1.bf16.msra.mxu0 0
  %2164 = vmatprep.subr.bf16.mxu0 0
  %2165 = vmatpush1.bf16.msra.mxu0 0
  %2166 = vmatprep.subr.bf16.mxu0 0
  %2167 = vmatpush1.bf16.msra.mxu0 0
  %2168 = vmatprep.subr.bf16.mxu0 0
  %2169 = vmatpush1.bf16.msra.mxu0 0
  %2170 = vmatprep.subr.bf16.mxu0 0
  %2171 = vmatpush1.bf16.msra.mxu0 0
  %2172 = vmatprep.subr.bf16.mxu0 0
  %2173 = vmatpush1.bf16.msra.mxu0 0
  %2174 = vmatprep.mubr.bf16.mxu0 0
  %2175 = vmatmul.mubr.bf16.gmra.mrb[0].mxu0 %v740
  %v2176 = vpop.f32.mrb[0].mxu0
  %v2177 = vadd.f32 %v150, %v2176
  %v2178 = vpop.f32.mrb[0].mxu0
  %v2179 = vadd.f32 %v150, %v2178
  %v2180 = vpop.f32.mrb[0].mxu0
  %v2181 = vadd.f32 %v155, %v2180
  %v2182 = vpop.f32.mrb[0].mxu0
  %v2183 = vadd.f32 %v155, %v2182
  %2184 = vdwg.mxu0
  %2185 = vmatprep.subr.bf16.mxu0 %v605
  %2186 = vmatpush1.bf16.msra.mxu0 %v604
  %2187 = vmatprep.subr.bf16.mxu0 %v924
  %2188 = vmatpush1.bf16.msra.mxu0 %v921
  %2189 = vmatprep.subr.bf16.mxu0 0
  %2190 = vmatpush1.bf16.msra.mxu0 0
  %2191 = vmatprep.subr.bf16.mxu0 0
  %2192 = vmatpush1.bf16.msra.mxu0 0
  %2193 = vmatprep.subr.bf16.mxu0 0
  %2194 = vmatpush1.bf16.msra.mxu0 0
  %2195 = vmatprep.subr.bf16.mxu0 0
  %2196 = vmatpush1.bf16.msra.mxu0 0
  %2197 = vmatprep.subr.bf16.mxu0 0
  %2198 = vmatpush1.bf16.msra.mxu0 0
  %2199 = vmatprep.subr.bf16.mxu0 0
  %2200 = vmatpush1.bf16.msra.mxu0 0
  %2201 = vmatprep.subr.bf16.mxu0 0
  %2202 = vmatpush1.bf16.msra.mxu0 0
  %2203 = vmatprep.subr.bf16.mxu0 0
  %2204 = vmatpush1.bf16.msra.mxu0 0
  %2205 = vmatprep.subr.bf16.mxu0 0
  %2206 = vmatpush1.bf16.msra.mxu0 0
  %2207 = vmatprep.subr.bf16.mxu0 0
  %2208 = vmatpush1.bf16.msra.mxu0 0
  %2209 = vmatprep.subr.bf16.mxu0 0
  %2210 = vmatpush1.bf16.msra.mxu0 0
  %2211 = vmatprep.subr.bf16.mxu0 0
  %2212 = vmatpush1.bf16.msra.mxu0 0
  %2213 = vmatprep.subr.bf16.mxu0 0
  %2214 = vmatpush1.bf16.msra.mxu0 0
  %2215 = vmatprep.subr.bf16.mxu0 0
  %2216 = vmatpush1.bf16.msra.mxu0 0
  %2217 = vmatprep.mubr.bf16.mxu0 0
  %2218 = vmatmul.mubr.bf16.gmra.mrb[0].mxu0 %v740
  %v2219 = vpop.f32.mrb[0].mxu0
  %v2220 = vadd.f32 %v150, %v2219
  %v2221 = vpop.f32.mrb[0].mxu0
  %v2222 = vadd.f32 %v150, %v2221
  %v2223 = vpop.f32.mrb[0].mxu0
  %v2224 = vadd.f32 %v155, %v2223
  %v2225 = vpop.f32.mrb[0].mxu0
  %v2226 = vadd.f32 %v155, %v2225
  %2227 = vdwg.mxu0
  %2228 = vmatprep.subr.bf16.mxu0 %v607
  %2229 = vmatpush1.bf16.msra.mxu0 %v606
  %2230 = vmatprep.subr.bf16.mxu0 %v930
  %2231 = vmatpush1.bf16.msra.mxu0 %v927
  %2232 = vmatprep.subr.bf16.mxu0 0
  %2233 = vmatpush1.bf16.msra.mxu0 0
  %2234 = vmatprep.subr.bf16.mxu0 0
  %2235 = vmatpush1.bf16.msra.mxu0 0
  %2236 = vmatprep.subr.bf16.mxu0 0
  %2237 = vmatpush1.bf16.msra.mxu0 0
  %2238 = vmatprep.subr.bf16.mxu0 0
  %2239 = vmatpush1.bf16.msra.mxu0 0
  %2240 = vmatprep.subr.bf16.mxu0 0
  %2241 = vmatpush1.bf16.msra.mxu0 0
  %2242 = vmatprep.subr.bf16.mxu0 0
  %2243 = vmatpush1.bf16.msra.mxu0 0
  %2244 = vmatprep.subr.bf16.mxu0 0
  %2245 = vmatpush1.bf16.msra.mxu0 0
  %2246 = vmatprep.subr.bf16.mxu0 0
  %2247 = vmatpush1.bf16.msra.mxu0 0
  %2248 = vmatprep.subr.bf16.mxu0 0
  %2249 = vmatpush1.bf16.msra.mxu0 0
  %2250 = vmatprep.subr.bf16.mxu0 0
  %2251 = vmatpush1.bf16.msra.mxu0 0
  %2252 = vmatprep.subr.bf16.mxu0 0
  %2253 = vmatpush1.bf16.msra.mxu0 0
  %2254 = vmatprep.subr.bf16.mxu0 0
  %2255 = vmatpush1.bf16.msra.mxu0 0
  %2256 = vmatprep.subr.bf16.mxu0 0
  %2257 = vmatpush1.bf16.msra.mxu0 0
  %2258 = vmatprep.subr.bf16.mxu0 0
  %2259 = vmatpush1.bf16.msra.mxu0 0
  %2260 = vmatprep.mubr.bf16.mxu0 0
  %2261 = vmatmul.mubr.bf16.gmra.mrb[0].mxu0 %v740
  %v2262 = vpop.f32.mrb[0].mxu0
  %v2263 = vadd.f32 %v150, %v2262
  %v2264 = vpop.f32.mrb[0].mxu0
  %v2265 = vadd.f32 %v150, %v2264
  %v2266 = vpop.f32.mrb[0].mxu0
  %v2267 = vadd.f32 %v155, %v2266
  %v2268 = vpop.f32.mrb[0].mxu0
  %v2269 = vadd.f32 %v155, %v2268
  %2270 = vdwg.mxu0
  %2271 = vmatprep.subr.bf16.mxu0 %v609
  %2272 = vmatpush1.bf16.msra.mxu0 %v608
  %2273 = vmatprep.subr.bf16.mxu0 %v936
  %2274 = vmatpush1.bf16.msra.mxu0 %v933
  %2275 = vmatprep.subr.bf16.mxu0 0
  %2276 = vmatpush1.bf16.msra.mxu0 0
  %2277 = vmatprep.subr.bf16.mxu0 0
  %2278 = vmatpush1.bf16.msra.mxu0 0
  %2279 = vmatprep.subr.bf16.mxu0 0
  %2280 = vmatpush1.bf16.msra.mxu0 0
  %2281 = vmatprep.subr.bf16.mxu0 0
  %2282 = vmatpush1.bf16.msra.mxu0 0
  %2283 = vmatprep.subr.bf16.mxu0 0
  %2284 = vmatpush1.bf16.msra.mxu0 0
  %2285 = vmatprep.subr.bf16.mxu0 0
  %2286 = vmatpush1.bf16.msra.mxu0 0
  %2287 = vmatprep.subr.bf16.mxu0 0
  %2288 = vmatpush1.bf16.msra.mxu0 0
  %2289 = vmatprep.subr.bf16.mxu0 0
  %2290 = vmatpush1.bf16.msra.mxu0 0
  %2291 = vmatprep.subr.bf16.mxu0 0
  %2292 = vmatpush1.bf16.msra.mxu0 0
  %2293 = vmatprep.subr.bf16.mxu0 0
  %2294 = vmatpush1.bf16.msra.mxu0 0
  %2295 = vmatprep.subr.bf16.mxu0 0
  %2296 = vmatpush1.bf16.msra.mxu0 0
  %2297 = vmatprep.subr.bf16.mxu0 0
  %2298 = vmatpush1.bf16.msra.mxu0 0
  %2299 = vmatprep.subr.bf16.mxu0 0
  %2300 = vmatpush1.bf16.msra.mxu0 0
  %2301 = vmatprep.subr.bf16.mxu0 0
  %2302 = vmatpush1.bf16.msra.mxu0 0
  %2303 = vmatprep.mubr.bf16.mxu0 0
  %2304 = vmatmul.mubr.bf16.gmra.mrb[0].mxu0 %v740
  %v2305 = vpop.f32.mrb[0].mxu0
  %v2306 = vadd.f32 %v150, %v2305
  %v2307 = vpop.f32.mrb[0].mxu0
  %v2308 = vadd.f32 %v150, %v2307
  %v2309 = vpop.f32.mrb[0].mxu0
  %v2310 = vadd.f32 %v155, %v2309
  %v2311 = vpop.f32.mrb[0].mxu0
  %v2312 = vadd.f32 %v155, %v2311
  %2313 = vdwg.mxu0
  %v2314 = vmax.f32 %v973, 0.0
  %v2315 = vmax.f32 %v975, 0.0
  %v2316 = vmax.f32 %v1016, 0.0
  %v2317 = vmax.f32 %v1018, 0.0
  %v2318 = vmax.f32 %v1059, 0.0
  %v2319 = vmax.f32 %v1061, 0.0
  %v2320 = vmax.f32 %v1102, 0.0
  %v2321 = vmax.f32 %v1104, 0.0
  %v2322 = vmax.f32 %v1145, 0.0
  %v2323 = vmax.f32 %v1147, 0.0
  %v2324 = vmax.f32 %v1188, 0.0
  %v2325 = vmax.f32 %v1190, 0.0
  %v2326 = vmax.f32 %v1231, 0.0
  %v2327 = vmax.f32 %v1233, 0.0
  %v2328 = vmax.f32 %v1274, 0.0
  %v2329 = vmax.f32 %v1276, 0.0
  %v2330 = vmax.f32 %v1317, 0.0
  %v2331 = vmax.f32 %v1319, 0.0
  %v2332 = vmax.f32 %v1360, 0.0
  %v2333 = vmax.f32 %v1362, 0.0
  %v2334 = vmax.f32 %v1403, 0.0
  %v2335 = vmax.f32 %v1405, 0.0
  %v2336 = vmax.f32 %v1446, 0.0
  %v2337 = vmax.f32 %v1448, 0.0
  %v2338 = vmax.f32 %v1489, 0.0
  %v2339 = vmax.f32 %v1491, 0.0
  %v2340 = vmax.f32 %v1532, 0.0
  %v2341 = vmax.f32 %v1534, 0.0
  %v2342 = vmax.f32 %v1575, 0.0
  %v2343 = vmax.f32 %v1577, 0.0
  %v2344 = vmax.f32 %v1618, 0.0
  %v2345 = vmax.f32 %v1620, 0.0
  %v2346 = vmax.f32 %v1661, 0.0
  %v2347 = vmax.f32 %v1663, 0.0
  %v2348 = vmax.f32 %v1704, 0.0
  %v2349 = vmax.f32 %v1706, 0.0
  %v2350 = vmax.f32 %v1747, 0.0
  %v2351 = vmax.f32 %v1749, 0.0
  %v2352 = vmax.f32 %v1790, 0.0
  %v2353 = vmax.f32 %v1792, 0.0
  %v2354 = vmax.f32 %v1833, 0.0
  %v2355 = vmax.f32 %v1835, 0.0
  %v2356 = vmax.f32 %v1876, 0.0
  %v2357 = vmax.f32 %v1878, 0.0
  %v2358 = vmax.f32 %v1919, 0.0
  %v2359 = vmax.f32 %v1921, 0.0
  %v2360 = vmax.f32 %v1962, 0.0
  %v2361 = vmax.f32 %v1964, 0.0
  %v2362 = vmax.f32 %v2005, 0.0
  %v2363 = vmax.f32 %v2007, 0.0
  %v2364 = vmax.f32 %v2048, 0.0
  %v2365 = vmax.f32 %v2050, 0.0
  %v2366 = vmax.f32 %v2091, 0.0
  %v2367 = vmax.f32 %v2093, 0.0
  %v2368 = vmax.f32 %v2134, 0.0
  %v2369 = vmax.f32 %v2136, 0.0
  %v2370 = vmax.f32 %v2177, 0.0
  %v2371 = vmax.f32 %v2179, 0.0
  %v2372 = vmax.f32 %v2220, 0.0
  %v2373 = vmax.f32 %v2222, 0.0
  %v2374 = vmax.f32 %v2263, 0.0
  %v2375 = vmax.f32 %v2265, 0.0
  %v2376 = vmax.f32 %v2306, 0.0
  %v2377 = vmax.f32 %v2308, 0.0
  %v2378 = vmax.f32 %v977, 0.0
  %v2379 = vmax.f32 %v979, 0.0
  %v2380 = vmax.f32 %v1020, 0.0
  %v2381 = vmax.f32 %v1022, 0.0
  %v2382 = vmax.f32 %v1063, 0.0
  %v2383 = vmax.f32 %v1065, 0.0
  %v2384 = vmax.f32 %v1106, 0.0
  %v2385 = vmax.f32 %v1108, 0.0
  %v2386 = vmax.f32 %v1149, 0.0
  %v2387 = vmax.f32 %v1151, 0.0
  %v2388 = vmax.f32 %v1192, 0.0
  %v2389 = vmax.f32 %v1194, 0.0
  %v2390 = vmax.f32 %v1235, 0.0
  %v2391 = vmax.f32 %v1237, 0.0
  %v2392 = vmax.f32 %v1278, 0.0
  %v2393 = vmax.f32 %v1280, 0.0
  %v2394 = vmax.f32 %v1321, 0.0
  %v2395 = vmax.f32 %v1323, 0.0
  %v2396 = vmax.f32 %v1364, 0.0
  %v2397 = vmax.f32 %v1366, 0.0
  %v2398 = vmax.f32 %v1407, 0.0
  %v2399 = vmax.f32 %v1409, 0.0
  %v2400 = vmax.f32 %v1450, 0.0
  %v2401 = vmax.f32 %v1452, 0.0
  %v2402 = vmax.f32 %v1493, 0.0
  %v2403 = vmax.f32 %v1495, 0.0
  %v2404 = vmax.f32 %v1536, 0.0
  %v2405 = vmax.f32 %v1538, 0.0
  %v2406 = vmax.f32 %v1579, 0.0
  %v2407 = vmax.f32 %v1581, 0.0
  %v2408 = vmax.f32 %v1622, 0.0
  %v2409 = vmax.f32 %v1624, 0.0
  %v2410 = vmax.f32 %v1665, 0.0
  %v2411 = vmax.f32 %v1667, 0.0
  %v2412 = vmax.f32 %v1708, 0.0
  %v2413 = vmax.f32 %v1710, 0.0
  %v2414 = vmax.f32 %v1751, 0.0
  %v2415 = vmax.f32 %v1753, 0.0
  %v2416 = vmax.f32 %v1794, 0.0
  %v2417 = vmax.f32 %v1796, 0.0
  %v2418 = vmax.f32 %v1837, 0.0
  %v2419 = vmax.f32 %v1839, 0.0
  %v2420 = vmax.f32 %v1880, 0.0
  %v2421 = vmax.f32 %v1882, 0.0
  %v2422 = vmax.f32 %v1923, 0.0
  %v2423 = vmax.f32 %v1925, 0.0
  %v2424 = vmax.f32 %v1966, 0.0
  %v2425 = vmax.f32 %v1968, 0.0
  %v2426 = vmax.f32 %v2009, 0.0
  %v2427 = vmax.f32 %v2011, 0.0
  %v2428 = vmax.f32 %v2052, 0.0
  %v2429 = vmax.f32 %v2054, 0.0
  %v2430 = vmax.f32 %v2095, 0.0
  %v2431 = vmax.f32 %v2097, 0.0
  %v2432 = vmax.f32 %v2138, 0.0
  %v2433 = vmax.f32 %v2140, 0.0
  %v2434 = vmax.f32 %v2181, 0.0
  %v2435 = vmax.f32 %v2183, 0.0
  %v2436 = vmax.f32 %v2224, 0.0
  %v2437 = vmax.f32 %v2226, 0.0
  %v2438 = vmax.f32 %v2267, 0.0
  %v2439 = vmax.f32 %v2269, 0.0
  %v2440 = vmax.f32 %v2310, 0.0
  %v2441 = vmax.f32 %v2312, 0.0
  %v2442 = vmax.f32 %v2314, %v2330
  %v2443 = vmax.f32 %v2315, %v2331
  %v2444 = vmax.f32 %v2316, %v2332
  %v2445 = vmax.f32 %v2317, %v2333
  %v2446 = vmax.f32 %v2318, %v2334
  %v2447 = vmax.f32 %v2319, %v2335
  %v2448 = vmax.f32 %v2320, %v2336
  %v2449 = vmax.f32 %v2321, %v2337
  %v2450 = vmax.f32 %v2322, %v2338
  %v2451 = vmax.f32 %v2323, %v2339
  %v2452 = vmax.f32 %v2324, %v2340
  %v2453 = vmax.f32 %v2325, %v2341
  %v2454 = vmax.f32 %v2326, %v2342
  %v2455 = vmax.f32 %v2327, %v2343
  %v2456 = vmax.f32 %v2328, %v2344
  %v2457 = vmax.f32 %v2329, %v2345
  %v2458 = vmax.f32 %v2378, %v2394
  %v2459 = vmax.f32 %v2379, %v2395
  %v2460 = vmax.f32 %v2380, %v2396
  %v2461 = vmax.f32 %v2381, %v2397
  %v2462 = vmax.f32 %v2382, %v2398
  %v2463 = vmax.f32 %v2383, %v2399
  %v2464 = vmax.f32 %v2384, %v2400
  %v2465 = vmax.f32 %v2385, %v2401
  %v2466 = vmax.f32 %v2386, %v2402
  %v2467 = vmax.f32 %v2387, %v2403
  %v2468 = vmax.f32 %v2388, %v2404
  %v2469 = vmax.f32 %v2389, %v2405
  %v2470 = vmax.f32 %v2390, %v2406
  %v2471 = vmax.f32 %v2391, %v2407
  %v2472 = vmax.f32 %v2392, %v2408
  %v2473 = vmax.f32 %v2393, %v2409
  %v2474 = vmax.f32 %v2346, %v2362
  %v2475 = vmax.f32 %v2347, %v2363
  %v2476 = vmax.f32 %v2348, %v2364
  %v2477 = vmax.f32 %v2349, %v2365
  %v2478 = vmax.f32 %v2350, %v2366
  %v2479 = vmax.f32 %v2351, %v2367
  %v2480 = vmax.f32 %v2352, %v2368
  %v2481 = vmax.f32 %v2353, %v2369
  %v2482 = vmax.f32 %v2354, %v2370
  %v2483 = vmax.f32 %v2355, %v2371
  %v2484 = vmax.f32 %v2356, %v2372
  %v2485 = vmax.f32 %v2357, %v2373
  %v2486 = vmax.f32 %v2358, %v2374
  %v2487 = vmax.f32 %v2359, %v2375
  %v2488 = vmax.f32 %v2360, %v2376
  %v2489 = vmax.f32 %v2361, %v2377
  %v2490 = vmax.f32 %v2410, %v2426
  %v2491 = vmax.f32 %v2411, %v2427
  %v2492 = vmax.f32 %v2412, %v2428
  %v2493 = vmax.f32 %v2413, %v2429
  %v2494 = vmax.f32 %v2414, %v2430
  %v2495 = vmax.f32 %v2415, %v2431
  %v2496 = vmax.f32 %v2416, %v2432
  %v2497 = vmax.f32 %v2417, %v2433
  %v2498 = vmax.f32 %v2418, %v2434
  %v2499 = vmax.f32 %v2419, %v2435
  %v2500 = vmax.f32 %v2420, %v2436
  %v2501 = vmax.f32 %v2421, %v2437
  %v2502 = vmax.f32 %v2422, %v2438
  %v2503 = vmax.f32 %v2423, %v2439
  %v2504 = vmax.f32 %v2424, %v2440
  %v2505 = vmax.f32 %v2425, %v2441
  %v2506 = vmax.f32 %v2442, %v2474
  %v2507 = vmax.f32 %v2443, %v2475
  %v2508 = vmax.f32 %v2444, %v2476
  %v2509 = vmax.f32 %v2445, %v2477
  %v2510 = vmax.f32 %v2446, %v2478
  %v2511 = vmax.f32 %v2447, %v2479
  %v2512 = vmax.f32 %v2448, %v2480
  %v2513 = vmax.f32 %v2449, %v2481
  %v2514 = vmax.f32 %v2450, %v2482
  %v2515 = vmax.f32 %v2451, %v2483
  %v2516 = vmax.f32 %v2452, %v2484
  %v2517 = vmax.f32 %v2453, %v2485
  %v2518 = vmax.f32 %v2454, %v2486
  %v2519 = vmax.f32 %v2455, %v2487
  %v2520 = vmax.f32 %v2456, %v2488
  %v2521 = vmax.f32 %v2457, %v2489
  %v2522 = vmax.f32 %v2458, %v2490
  %v2523 = vmax.f32 %v2459, %v2491
  %v2524 = vmax.f32 %v2460, %v2492
  %v2525 = vmax.f32 %v2461, %v2493
  %v2526 = vmax.f32 %v2462, %v2494
  %v2527 = vmax.f32 %v2463, %v2495
  %v2528 = vmax.f32 %v2464, %v2496
  %v2529 = vmax.f32 %v2465, %v2497
  %v2530 = vmax.f32 %v2466, %v2498
  %v2531 = vmax.f32 %v2467, %v2499
  %v2532 = vmax.f32 %v2468, %v2500
  %v2533 = vmax.f32 %v2469, %v2501
  %v2534 = vmax.f32 %v2470, %v2502
  %v2535 = vmax.f32 %v2471, %v2503
  %v2536 = vmax.f32 %v2472, %v2504
  %v2537 = vmax.f32 %v2473, %v2505
  %v2538 = vpack.c.bf16 %v2522, %v2506
  %v2539 = vpack.c.bf16 %v2523, %v2507
  %v2540 = vpack.c.bf16 %v2524, %v2508
  %v2541 = vpack.c.bf16 %v2525, %v2509
  %v2542 = vpack.c.bf16 %v2526, %v2510
  %v2543 = vpack.c.bf16 %v2527, %v2511
  %v2544 = vpack.c.bf16 %v2528, %v2512
  %v2545 = vpack.c.bf16 %v2529, %v2513
  %v2546 = vpack.c.bf16 %v2530, %v2514
  %v2547 = vpack.c.bf16 %v2531, %v2515
  %v2548 = vpack.c.bf16 %v2532, %v2516
  %v2549 = vpack.c.bf16 %v2533, %v2517
  %v2550 = vpack.c.bf16 %v2534, %v2518
  %v2551 = vpack.c.bf16 %v2535, %v2519
  %v2552 = vpack.c.bf16 %v2536, %v2520
  %v2553 = vpack.c.bf16 %v2537, %v2521
  %v2570 = vunpack.c.l.b16 %v2538
  %v2571 = vunpack.c.l.b16 %v2539
  %v2572 = vunpack.c.l.b16 %v2540
  %v2573 = vunpack.c.l.b16 %v2541
  %v2574 = vunpack.c.l.b16 %v2542
  %v2575 = vunpack.c.l.b16 %v2543
  %v2576 = vunpack.c.l.b16 %v2544
  %v2577 = vunpack.c.l.b16 %v2545
  %v2578 = vunpack.c.l.b16 %v2546
  %v2579 = vunpack.c.l.b16 %v2547
  %v2580 = vunpack.c.l.b16 %v2548
  %v2581 = vunpack.c.l.b16 %v2549
  %v2582 = vunpack.c.l.b16 %v2550
  %v2583 = vunpack.c.l.b16 %v2551
  %v2584 = vunpack.c.l.b16 %v2552
  %v2585 = vunpack.c.l.b16 %v2553
  %v2586 = vunpack.c.h.b16 %v2538
  %v2587 = vunpack.c.h.b16 %v2539
  %v2588 = vunpack.c.h.b16 %v2540
  %v2589 = vunpack.c.h.b16 %v2541
  %v2590 = vunpack.c.h.b16 %v2542
  %v2591 = vunpack.c.h.b16 %v2543
  %v2592 = vunpack.c.h.b16 %v2544
  %v2593 = vunpack.c.h.b16 %v2545
  %v2594 = vunpack.c.h.b16 %v2546
  %v2595 = vunpack.c.h.b16 %v2547
  %v2596 = vunpack.c.h.b16 %v2548
  %v2597 = vunpack.c.h.b16 %v2549
  %v2598 = vunpack.c.h.b16 %v2550
  %v2599 = vunpack.c.h.b16 %v2551
  %v2600 = vunpack.c.h.b16 %v2552
  %v2601 = vunpack.c.h.b16 %v2553
  %v2602 = vpack.c.b16 %v2571, %v2570
  %v2603 = vpack.c.b16 %v2573, %v2572
  %v2604 = vpack.c.b16 %v2575, %v2574
  %v2605 = vpack.c.b16 %v2577, %v2576
  %v2606 = vpack.c.b16 %v2579, %v2578
  %v2607 = vpack.c.b16 %v2581, %v2580
  %v2608 = vpack.c.b16 %v2583, %v2582
  %v2609 = vpack.c.b16 %v2585, %v2584
  %v2610 = vpack.c.b16 %v2587, %v2586
  %v2611 = vpack.c.b16 %v2589, %v2588
  %v2612 = vpack.c.b16 %v2591, %v2590
  %v2613 = vpack.c.b16 %v2593, %v2592
  %v2614 = vpack.c.b16 %v2595, %v2594
  %v2615 = vpack.c.b16 %v2597, %v2596
  %v2616 = vpack.c.b16 %v2599, %v2598
  %v2617 = vpack.c.b16 %v2601, %v2600
  %2634 = vst [vmem:[%s3] sm:$0xff] %v2602
  %2635 = vst [vmem:[%s3 + $0x8] sm:$0xff] %v2603
  %2636 = vst [vmem:[%s3 + $0x10] sm:$0xff] %v2604
  %2637 = vst [vmem:[%s3 + $0x18] sm:$0xff] %v2605
  %2638 = vst [vmem:[%s3 + $0x20] sm:$0xff] %v2606
  %2639 = vst [vmem:[%s3 + $0x28] sm:$0xff] %v2607
  %2640 = vst [vmem:[%s3 + $0x30] sm:$0xff] %v2608
  %2641 = vst [vmem:[%s3 + $0x38] sm:$0xff] %v2609
  %2642 = vst [vmem:[%s3 + $0x40] sm:$0xff] %v2610
  %2643 = vst [vmem:[%s3 + $0x48] sm:$0xff] %v2611
  %2644 = vst [vmem:[%s3 + $0x50] sm:$0xff] %v2612
  %2645 = vst [vmem:[%s3 + $0x58] sm:$0xff] %v2613
  %2646 = vst [vmem:[%s3 + $0x60] sm:$0xff] %v2614
  %2647 = vst [vmem:[%s3 + $0x68] sm:$0xff] %v2615
  %2648 = vst [vmem:[%s3 + $0x70] sm:$0xff] %v2616
  %2649 = vst [vmem:[%s3 + $0x78] sm:$0xff] %v2617
  // Predicated region
  $region14: #{multi_class_cnn_forward.4} parent=0 // pred_check
    _
  $region15: #{multi_class_cnn_forward.4} parent=0 // pred_check_branch
    %2651 = sbr.rel (0) target = $region17
  $region16: #{multi_class_cnn_forward.4} parent=0 // pred_region
    _
  $region17: #{multi_class_cnn_forward.4} parent=0 // pred_fallthru
    _
  // Predicated region
  $region18: #{multi_class_cnn_forward.4} parent=0 // pred_check
    _
  $region19: #{multi_class_cnn_forward.4} parent=0 // pred_check_branch
    %2653 = sbr.rel (0) target = $region21
  $region20: #{multi_class_cnn_forward.4} parent=0 // pred_region
    _
  $region21: #{multi_class_cnn_forward.4} parent=0 // pred_fallthru
    _

// kernel: multi_class_cnn_forward.5
$region0: #{multi_class_cnn_forward.5}
  #allocation0 [shape = 'u32[]', space=smem, size = 0x4, offset = 0x4, fixed_abs, tag = 'smem constant byte address 0x4 - core index']
  #allocation1 [shape = 'u32[144,128]{1,0:T(1,128)}', space=vmem, size = 0x12000, scoped, tag = 'internal scratch']
  %s0 = inlined_call_operand.vmem [shape: bf16[1,144,2048], index: 0, kind: input, shape index: {}]
  %s1 = inlined_call_operand.vmem [shape: bf16[32,144], index: 1, kind: input, shape index: {}]
  %s2 = inlined_call_operand.vmem [shape: f32[32,1], index: 2, kind: input, shape index: {}]
  %s3 = inlined_call_operand.vmem [shape: bf16[1,32,512], index: 3, kind: output, shape index: {}]
  %s4 = sld [smem:[#allocation0]]
  $region22: #{multi_class_cnn_forward.5} parent=0
    _
  %s6 = ssub.s32 1, %s4
  %s7 = scalar_select 0, %s6, %s4
  // Predicated region
  $region2: #{multi_class_cnn_forward.5} parent=0 // pred_check
    _
  $region3: #{multi_class_cnn_forward.5} parent=0 // pred_check_branch
    %9 = sbr.rel (0) target = $region5
  $region4: #{multi_class_cnn_forward.5} parent=0 // pred_region
    _
  $region5: #{multi_class_cnn_forward.5} parent=0 // pred_fallthru
    _
  // Predicated region
  $region6: #{multi_class_cnn_forward.5} parent=0 // pred_check
    _
  $region7: #{multi_class_cnn_forward.5} parent=0 // pred_check_branch
    %11 = sbr.rel (0) target = $region9
  $region8: #{multi_class_cnn_forward.5} parent=0 // pred_region
    _
  $region9: #{multi_class_cnn_forward.5} parent=0 // pred_fallthru
    _
  // Predicated region
  $region10: #{multi_class_cnn_forward.5} parent=0 // pred_check
    _
  $region11: #{multi_class_cnn_forward.5} parent=0 // pred_check_branch
    %13 = sbr.rel (0) target = $region13
  $region12: #{multi_class_cnn_forward.5} parent=0 // pred_region
    _
  $region13: #{multi_class_cnn_forward.5} parent=0 // pred_fallthru
    _
  %v15 = vld [vmem:[%s1] sm:$0xff]
  %v16 = vld [vmem:[%s1 + $0x8] sm:$0xff]
  %v17 = vld [vmem:[%s1 + $0x10] sm:$0xff]
  %v18 = vld [vmem:[%s1 + $0x18] sm:$0xff]
  %v19 = vld [vmem:[%s0] sm:$0xff]
  %v20 = vld [vmem:[%s0 + $0x8] sm:$0xff]
  %v21 = vld [vmem:[%s0 + $0x10] sm:$0xff]
  %v22 = vld [vmem:[%s0 + $0x18] sm:$0xff]
  %v23 = vld [vmem:[%s0 + $0x20] sm:$0xff]
  %v24 = vld [vmem:[%s0 + $0x28] sm:$0xff]
  %v25 = vld [vmem:[%s0 + $0x30] sm:$0xff]
  %v26 = vld [vmem:[%s0 + $0x38] sm:$0xff]
  %v27 = vld [vmem:[%s0 + $0x40] sm:$0xff]
  %v28 = vld [vmem:[%s0 + $0x48] sm:$0xff]
  %v29 = vld [vmem:[%s0 + $0x50] sm:$0xff]
  %v30 = vld [vmem:[%s0 + $0x58] sm:$0xff]
  %v31 = vld [vmem:[%s0 + $0x60] sm:$0xff]
  %v32 = vld [vmem:[%s0 + $0x68] sm:$0xff]
  %v33 = vld [vmem:[%s0 + $0x70] sm:$0xff]
  %v34 = vld [vmem:[%s0 + $0x78] sm:$0xff]
  %v35 = vld [vmem:[%s0 + $0x80] sm:$0xff]
  %v36 = vld [vmem:[%s0 + $0x88] sm:$0xff]
  %v37 = vld [vmem:[%s0 + $0x90] sm:$0xff]
  %v38 = vld [vmem:[%s0 + $0x98] sm:$0xff]
  %v39 = vld [vmem:[%s0 + $0xa0] sm:$0xff]
  %v40 = vld [vmem:[%s0 + $0xa8] sm:$0xff]
  %v41 = vld [vmem:[%s0 + $0xb0] sm:$0xff]
  %v42 = vld [vmem:[%s0 + $0xb8] sm:$0xff]
  %v43 = vld [vmem:[%s0 + $0xc0] sm:$0xff]
  %v44 = vld [vmem:[%s0 + $0xc8] sm:$0xff]
  %v45 = vld [vmem:[%s0 + $0xd0] sm:$0xff]
  %v46 = vld [vmem:[%s0 + $0xd8] sm:$0xff]
  %v47 = vld [vmem:[%s0 + $0xe0] sm:$0xff]
  %v48 = vld [vmem:[%s0 + $0xe8] sm:$0xff]
  %v49 = vld [vmem:[%s0 + $0xf0] sm:$0xff]
  %v50 = vld [vmem:[%s0 + $0xf8] sm:$0xff]
  %v51 = vld [vmem:[%s0 + $0x100] sm:$0xff]
  %v52 = vld [vmem:[%s0 + $0x108] sm:$0xff]
  %v53 = vld [vmem:[%s0 + $0x110] sm:$0xff]
  %v54 = vld [vmem:[%s0 + $0x118] sm:$0xff]
  %v55 = vld [vmem:[%s0 + $0x120] sm:$0xff]
  %v56 = vld [vmem:[%s0 + $0x128] sm:$0xff]
  %v57 = vld [vmem:[%s0 + $0x130] sm:$0xff]
  %v58 = vld [vmem:[%s0 + $0x138] sm:$0xff]
  %v59 = vld [vmem:[%s0 + $0x140] sm:$0xff]
  %v60 = vld [vmem:[%s0 + $0x148] sm:$0xff]
  %v61 = vld [vmem:[%s0 + $0x150] sm:$0xff]
  %v62 = vld [vmem:[%s0 + $0x158] sm:$0xff]
  %v63 = vld [vmem:[%s0 + $0x160] sm:$0xff]
  %v64 = vld [vmem:[%s0 + $0x168] sm:$0xff]
  %v65 = vld [vmem:[%s0 + $0x170] sm:$0xff]
  %v66 = vld [vmem:[%s0 + $0x178] sm:$0xff]
  %v67 = vld [vmem:[%s0 + $0x180] sm:$0xff]
  %v68 = vld [vmem:[%s0 + $0x188] sm:$0xff]
  %v69 = vld [vmem:[%s0 + $0x190] sm:$0xff]
  %v70 = vld [vmem:[%s0 + $0x198] sm:$0xff]
  %v71 = vld [vmem:[%s0 + $0x1a0] sm:$0xff]
  %v72 = vld [vmem:[%s0 + $0x1a8] sm:$0xff]
  %v73 = vld [vmem:[%s0 + $0x1b0] sm:$0xff]
  %v74 = vld [vmem:[%s0 + $0x1b8] sm:$0xff]
  %v75 = vld [vmem:[%s0 + $0x1c0] sm:$0xff]
  %v76 = vld [vmem:[%s0 + $0x1c8] sm:$0xff]
  %v77 = vld [vmem:[%s0 + $0x1d0] sm:$0xff]
  %v78 = vld [vmem:[%s0 + $0x1d8] sm:$0xff]
  %v79 = vld [vmem:[%s0 + $0x1e0] sm:$0xff]
  %v80 = vld [vmem:[%s0 + $0x1e8] sm:$0xff]
  %v81 = vld [vmem:[%s0 + $0x1f0] sm:$0xff]
  %v82 = vld [vmem:[%s0 + $0x1f8] sm:$0xff]
  %v83 = vld [vmem:[%s0 + $0x200] sm:$0xff]
  %v84 = vld [vmem:[%s0 + $0x208] sm:$0xff]
  %v85 = vld [vmem:[%s0 + $0x210] sm:$0xff]
  %v86 = vld [vmem:[%s0 + $0x218] sm:$0xff]
  %v87 = vld [vmem:[%s0 + $0x220] sm:$0xff]
  %v88 = vld [vmem:[%s0 + $0x228] sm:$0xff]
  %v89 = vld [vmem:[%s0 + $0x230] sm:$0xff]
  %v90 = vld [vmem:[%s0 + $0x238] sm:$0xff]
  %v91 = vld [vmem:[%s0 + $0x240] sm:$0xff]
  %v92 = vld [vmem:[%s0 + $0x248] sm:$0xff]
  %v93 = vld [vmem:[%s0 + $0x250] sm:$0xff]
  %v94 = vld [vmem:[%s0 + $0x258] sm:$0xff]
  %v95 = vld [vmem:[%s0 + $0x260] sm:$0xff]
  %v96 = vld [vmem:[%s0 + $0x268] sm:$0xff]
  %v97 = vld [vmem:[%s0 + $0x270] sm:$0xff]
  %v98 = vld [vmem:[%s0 + $0x278] sm:$0xff]
  %v99 = vld [vmem:[%s0 + $0x280] sm:$0xff]
  %v100 = vld [vmem:[%s0 + $0x288] sm:$0xff]
  %v101 = vld [vmem:[%s0 + $0x290] sm:$0xff]
  %v102 = vld [vmem:[%s0 + $0x298] sm:$0xff]
  %v103 = vld [vmem:[%s0 + $0x2a0] sm:$0xff]
  %v104 = vld [vmem:[%s0 + $0x2a8] sm:$0xff]
  %v105 = vld [vmem:[%s0 + $0x2b0] sm:$0xff]
  %v106 = vld [vmem:[%s0 + $0x2b8] sm:$0xff]
  %v107 = vld [vmem:[%s0 + $0x2c0] sm:$0xff]
  %v108 = vld [vmem:[%s0 + $0x2c8] sm:$0xff]
  %v109 = vld [vmem:[%s0 + $0x2d0] sm:$0xff]
  %v110 = vld [vmem:[%s0 + $0x2d8] sm:$0xff]
  %v111 = vld [vmem:[%s0 + $0x2e0] sm:$0xff]
  %v112 = vld [vmem:[%s0 + $0x2e8] sm:$0xff]
  %v113 = vld [vmem:[%s0 + $0x2f0] sm:$0xff]
  %v114 = vld [vmem:[%s0 + $0x2f8] sm:$0xff]
  %v115 = vld [vmem:[%s0 + $0x300] sm:$0xff]
  %v116 = vld [vmem:[%s0 + $0x308] sm:$0xff]
  %v117 = vld [vmem:[%s0 + $0x310] sm:$0xff]
  %v118 = vld [vmem:[%s0 + $0x318] sm:$0xff]
  %v119 = vld [vmem:[%s0 + $0x320] sm:$0xff]
  %v120 = vld [vmem:[%s0 + $0x328] sm:$0xff]
  %v121 = vld [vmem:[%s0 + $0x330] sm:$0xff]
  %v122 = vld [vmem:[%s0 + $0x338] sm:$0xff]
  %v123 = vld [vmem:[%s0 + $0x340] sm:$0xff]
  %v124 = vld [vmem:[%s0 + $0x348] sm:$0xff]
  %v125 = vld [vmem:[%s0 + $0x350] sm:$0xff]
  %v126 = vld [vmem:[%s0 + $0x358] sm:$0xff]
  %v127 = vld [vmem:[%s0 + $0x360] sm:$0xff]
  %v128 = vld [vmem:[%s0 + $0x368] sm:$0xff]
  %v129 = vld [vmem:[%s0 + $0x370] sm:$0xff]
  %v130 = vld [vmem:[%s0 + $0x378] sm:$0xff]
  %v131 = vld [vmem:[%s0 + $0x380] sm:$0xff]
  %v132 = vld [vmem:[%s0 + $0x388] sm:$0xff]
  %v133 = vld [vmem:[%s0 + $0x390] sm:$0xff]
  %v134 = vld [vmem:[%s0 + $0x398] sm:$0xff]
  %v135 = vld [vmem:[%s0 + $0x3a0] sm:$0xff]
  %v136 = vld [vmem:[%s0 + $0x3a8] sm:$0xff]
  %v137 = vld [vmem:[%s0 + $0x3b0] sm:$0xff]
  %v138 = vld [vmem:[%s0 + $0x3b8] sm:$0xff]
  %v139 = vld [vmem:[%s0 + $0x3c0] sm:$0xff]
  %v140 = vld [vmem:[%s0 + $0x3c8] sm:$0xff]
  %v141 = vld [vmem:[%s0 + $0x3d0] sm:$0xff]
  %v142 = vld [vmem:[%s0 + $0x3d8] sm:$0xff]
  %v143 = vld [vmem:[%s0 + $0x3e0] sm:$0xff]
  %v144 = vld [vmem:[%s0 + $0x3e8] sm:$0xff]
  %v145 = vld [vmem:[%s0 + $0x3f0] sm:$0xff]
  %v146 = vld [vmem:[%s0 + $0x3f8] sm:$0xff]
  %v147 = vld [vmem:[%s0 + $0x400] sm:$0xff]
  %v148 = vld [vmem:[%s0 + $0x408] sm:$0xff]
  %v149 = vld [vmem:[%s0 + $0x410] sm:$0xff]
  %v150 = vld [vmem:[%s0 + $0x418] sm:$0xff]
  %v151 = vld [vmem:[%s0 + $0x420] sm:$0xff]
  %v152 = vld [vmem:[%s0 + $0x428] sm:$0xff]
  %v153 = vld [vmem:[%s0 + $0x430] sm:$0xff]
  %v154 = vld [vmem:[%s0 + $0x438] sm:$0xff]
  %v155 = vld [vmem:[%s0 + $0x440] sm:$0xff]
  %v156 = vld [vmem:[%s0 + $0x448] sm:$0xff]
  %v157 = vld [vmem:[%s0 + $0x450] sm:$0xff]
  %v158 = vld [vmem:[%s0 + $0x458] sm:$0xff]
  %v159 = vld [vmem:[%s0 + $0x460] sm:$0xff]
  %v160 = vld [vmem:[%s0 + $0x468] sm:$0xff]
  %v161 = vld [vmem:[%s0 + $0x470] sm:$0xff]
  %v162 = vld [vmem:[%s0 + $0x478] sm:$0xff]
  %v163 = vld [vmem:[%s2] sm:$0xff]
  %v164 = vld [vmem:[%s2 + $0x8] sm:$0xff]
  %v165 = vld [vmem:[%s2 + $0x10] sm:$0xff]
  %v166 = vld [vmem:[%s2 + $0x18] sm:$0xff]
  %168 = vset.pattern.permute.xlu0 0
  %169 = vperm.xlu0 %168, %v163
  %v170 = vpop.permute.xlu0 %169
  %173 = vset.pattern.permute.xlu0 0
  %174 = vperm.xlu0 %173, %v164
  %v175 = vpop.permute.xlu0 %174
  %178 = vset.pattern.permute.xlu0 0
  %179 = vperm.xlu0 %178, %v165
  %v180 = vpop.permute.xlu0 %179
  %183 = vset.pattern.permute.xlu0 0
  %184 = vperm.xlu0 %183, %v166
  %v185 = vpop.permute.xlu0 %184
  %v191 = vunpack.c.l.b16 %v15
  %v192 = vunpack.c.h.b16 %v15
  %v193 = vunpack.c.l.b16 %v16
  %v194 = vunpack.c.h.b16 %v16
  %v195 = vunpack.c.l.b16 %v17
  %v196 = vunpack.c.h.b16 %v17
  %v197 = vunpack.c.l.b16 %v18
  %v198 = vunpack.c.h.b16 %v18
  %v199 = vpack.c.b16 %v193, %v191
  %v200 = vpack.c.b16 %v194, %v192
  %v201 = vpack.c.b16 %v197, %v195
  %v202 = vpack.c.b16 %v198, %v196
  %v349 = vunpack.c.l.b16 %v19
  %v350 = vunpack.c.h.b16 %v19
  %v351 = vunpack.c.l.b16 %v20
  %v352 = vunpack.c.h.b16 %v20
  %v353 = vunpack.c.l.b16 %v21
  %v354 = vunpack.c.h.b16 %v21
  %v355 = vunpack.c.l.b16 %v22
  %v356 = vunpack.c.h.b16 %v22
  %v357 = vunpack.c.l.b16 %v23
  %v358 = vunpack.c.h.b16 %v23
  %v359 = vunpack.c.l.b16 %v24
  %v360 = vunpack.c.h.b16 %v24
  %v361 = vunpack.c.l.b16 %v25
  %v362 = vunpack.c.h.b16 %v25
  %v363 = vunpack.c.l.b16 %v26
  %v364 = vunpack.c.h.b16 %v26
  %v365 = vunpack.c.l.b16 %v27
  %v366 = vunpack.c.h.b16 %v27
  %v367 = vunpack.c.l.b16 %v28
  %v368 = vunpack.c.h.b16 %v28
  %v369 = vunpack.c.l.b16 %v29
  %v370 = vunpack.c.h.b16 %v29
  %v371 = vunpack.c.l.b16 %v30
  %v372 = vunpack.c.h.b16 %v30
  %v373 = vunpack.c.l.b16 %v31
  %v374 = vunpack.c.h.b16 %v31
  %v375 = vunpack.c.l.b16 %v32
  %v376 = vunpack.c.h.b16 %v32
  %v377 = vunpack.c.l.b16 %v33
  %v378 = vunpack.c.h.b16 %v33
  %v379 = vunpack.c.l.b16 %v34
  %v380 = vunpack.c.h.b16 %v34
  %v381 = vunpack.c.l.b16 %v35
  %v382 = vunpack.c.h.b16 %v35
  %v383 = vunpack.c.l.b16 %v36
  %v384 = vunpack.c.h.b16 %v36
  %v385 = vunpack.c.l.b16 %v37
  %v386 = vunpack.c.h.b16 %v37
  %v387 = vunpack.c.l.b16 %v38
  %v388 = vunpack.c.h.b16 %v38
  %v389 = vunpack.c.l.b16 %v39
  %v390 = vunpack.c.h.b16 %v39
  %v391 = vunpack.c.l.b16 %v40
  %v392 = vunpack.c.h.b16 %v40
  %v393 = vunpack.c.l.b16 %v41
  %v394 = vunpack.c.h.b16 %v41
  %v395 = vunpack.c.l.b16 %v42
  %v396 = vunpack.c.h.b16 %v42
  %v397 = vunpack.c.l.b16 %v43
  %v398 = vunpack.c.h.b16 %v43
  %v399 = vunpack.c.l.b16 %v44
  %v400 = vunpack.c.h.b16 %v44
  %v401 = vunpack.c.l.b16 %v45
  %v402 = vunpack.c.h.b16 %v45
  %v403 = vunpack.c.l.b16 %v46
  %v404 = vunpack.c.h.b16 %v46
  %v405 = vunpack.c.l.b16 %v47
  %v406 = vunpack.c.h.b16 %v47
  %v407 = vunpack.c.l.b16 %v48
  %v408 = vunpack.c.h.b16 %v48
  %v409 = vunpack.c.l.b16 %v49
  %v410 = vunpack.c.h.b16 %v49
  %v411 = vunpack.c.l.b16 %v50
  %v412 = vunpack.c.h.b16 %v50
  %v413 = vunpack.c.l.b16 %v51
  %v414 = vunpack.c.h.b16 %v51
  %v415 = vunpack.c.l.b16 %v52
  %v416 = vunpack.c.h.b16 %v52
  %v417 = vunpack.c.l.b16 %v53
  %v418 = vunpack.c.h.b16 %v53
  %v419 = vunpack.c.l.b16 %v54
  %v420 = vunpack.c.h.b16 %v54
  %v421 = vunpack.c.l.b16 %v55
  %v422 = vunpack.c.h.b16 %v55
  %v423 = vunpack.c.l.b16 %v56
  %v424 = vunpack.c.h.b16 %v56
  %v425 = vunpack.c.l.b16 %v57
  %v426 = vunpack.c.h.b16 %v57
  %v427 = vunpack.c.l.b16 %v58
  %v428 = vunpack.c.h.b16 %v58
  %v429 = vunpack.c.l.b16 %v59
  %v430 = vunpack.c.h.b16 %v59
  %v431 = vunpack.c.l.b16 %v60
  %v432 = vunpack.c.h.b16 %v60
  %v433 = vunpack.c.l.b16 %v61
  %v434 = vunpack.c.h.b16 %v61
  %v435 = vunpack.c.l.b16 %v62
  %v436 = vunpack.c.h.b16 %v62
  %v437 = vunpack.c.l.b16 %v63
  %v438 = vunpack.c.h.b16 %v63
  %v439 = vunpack.c.l.b16 %v64
  %v440 = vunpack.c.h.b16 %v64
  %v441 = vunpack.c.l.b16 %v65
  %v442 = vunpack.c.h.b16 %v65
  %v443 = vunpack.c.l.b16 %v66
  %v444 = vunpack.c.h.b16 %v66
  %v445 = vunpack.c.l.b16 %v67
  %v446 = vunpack.c.h.b16 %v67
  %v447 = vunpack.c.l.b16 %v68
  %v448 = vunpack.c.h.b16 %v68
  %v449 = vunpack.c.l.b16 %v69
  %v450 = vunpack.c.h.b16 %v69
  %v451 = vunpack.c.l.b16 %v70
  %v452 = vunpack.c.h.b16 %v70
  %v453 = vunpack.c.l.b16 %v71
  %v454 = vunpack.c.h.b16 %v71
  %v455 = vunpack.c.l.b16 %v72
  %v456 = vunpack.c.h.b16 %v72
  %v457 = vunpack.c.l.b16 %v73
  %v458 = vunpack.c.h.b16 %v73
  %v459 = vunpack.c.l.b16 %v74
  %v460 = vunpack.c.h.b16 %v74
  %v461 = vunpack.c.l.b16 %v75
  %v462 = vunpack.c.h.b16 %v75
  %v463 = vunpack.c.l.b16 %v76
  %v464 = vunpack.c.h.b16 %v76
  %v465 = vunpack.c.l.b16 %v77
  %v466 = vunpack.c.h.b16 %v77
  %v467 = vunpack.c.l.b16 %v78
  %v468 = vunpack.c.h.b16 %v78
  %v469 = vunpack.c.l.b16 %v79
  %v470 = vunpack.c.h.b16 %v79
  %v471 = vunpack.c.l.b16 %v80
  %v472 = vunpack.c.h.b16 %v80
  %v473 = vunpack.c.l.b16 %v81
  %v474 = vunpack.c.h.b16 %v81
  %v475 = vunpack.c.l.b16 %v82
  %v476 = vunpack.c.h.b16 %v82
  %v477 = vunpack.c.l.b16 %v83
  %v478 = vunpack.c.h.b16 %v83
  %v479 = vunpack.c.l.b16 %v84
  %v480 = vunpack.c.h.b16 %v84
  %v481 = vunpack.c.l.b16 %v85
  %v482 = vunpack.c.h.b16 %v85
  %v483 = vunpack.c.l.b16 %v86
  %v484 = vunpack.c.h.b16 %v86
  %v485 = vunpack.c.l.b16 %v87
  %v486 = vunpack.c.h.b16 %v87
  %v487 = vunpack.c.l.b16 %v88
  %v488 = vunpack.c.h.b16 %v88
  %v489 = vunpack.c.l.b16 %v89
  %v490 = vunpack.c.h.b16 %v89
  %v491 = vunpack.c.l.b16 %v90
  %v492 = vunpack.c.h.b16 %v90
  %v493 = vunpack.c.l.b16 %v91
  %v494 = vunpack.c.h.b16 %v91
  %v495 = vunpack.c.l.b16 %v92
  %v496 = vunpack.c.h.b16 %v92
  %v497 = vunpack.c.l.b16 %v93
  %v498 = vunpack.c.h.b16 %v93
  %v499 = vunpack.c.l.b16 %v94
  %v500 = vunpack.c.h.b16 %v94
  %v501 = vunpack.c.l.b16 %v95
  %v502 = vunpack.c.h.b16 %v95
  %v503 = vunpack.c.l.b16 %v96
  %v504 = vunpack.c.h.b16 %v96
  %v505 = vunpack.c.l.b16 %v97
  %v506 = vunpack.c.h.b16 %v97
  %v507 = vunpack.c.l.b16 %v98
  %v508 = vunpack.c.h.b16 %v98
  %v509 = vunpack.c.l.b16 %v99
  %v510 = vunpack.c.h.b16 %v99
  %v511 = vunpack.c.l.b16 %v100
  %v512 = vunpack.c.h.b16 %v100
  %v513 = vunpack.c.l.b16 %v101
  %v514 = vunpack.c.h.b16 %v101
  %v515 = vunpack.c.l.b16 %v102
  %v516 = vunpack.c.h.b16 %v102
  %v517 = vunpack.c.l.b16 %v103
  %v518 = vunpack.c.h.b16 %v103
  %v519 = vunpack.c.l.b16 %v104
  %v520 = vunpack.c.h.b16 %v104
  %v521 = vunpack.c.l.b16 %v105
  %v522 = vunpack.c.h.b16 %v105
  %v523 = vunpack.c.l.b16 %v106
  %v524 = vunpack.c.h.b16 %v106
  %v525 = vunpack.c.l.b16 %v107
  %v526 = vunpack.c.h.b16 %v107
  %v527 = vunpack.c.l.b16 %v108
  %v528 = vunpack.c.h.b16 %v108
  %v529 = vunpack.c.l.b16 %v109
  %v530 = vunpack.c.h.b16 %v109
  %v531 = vunpack.c.l.b16 %v110
  %v532 = vunpack.c.h.b16 %v110
  %v533 = vunpack.c.l.b16 %v111
  %v534 = vunpack.c.h.b16 %v111
  %v535 = vunpack.c.l.b16 %v112
  %v536 = vunpack.c.h.b16 %v112
  %v537 = vunpack.c.l.b16 %v113
  %v538 = vunpack.c.h.b16 %v113
  %v539 = vunpack.c.l.b16 %v114
  %v540 = vunpack.c.h.b16 %v114
  %v541 = vunpack.c.l.b16 %v115
  %v542 = vunpack.c.h.b16 %v115
  %v543 = vunpack.c.l.b16 %v116
  %v544 = vunpack.c.h.b16 %v116
  %v545 = vunpack.c.l.b16 %v117
  %v546 = vunpack.c.h.b16 %v117
  %v547 = vunpack.c.l.b16 %v118
  %v548 = vunpack.c.h.b16 %v118
  %v549 = vunpack.c.l.b16 %v119
  %v550 = vunpack.c.h.b16 %v119
  %v551 = vunpack.c.l.b16 %v120
  %v552 = vunpack.c.h.b16 %v120
  %v553 = vunpack.c.l.b16 %v121
  %v554 = vunpack.c.h.b16 %v121
  %v555 = vunpack.c.l.b16 %v122
  %v556 = vunpack.c.h.b16 %v122
  %v557 = vunpack.c.l.b16 %v123
  %v558 = vunpack.c.h.b16 %v123
  %v559 = vunpack.c.l.b16 %v124
  %v560 = vunpack.c.h.b16 %v124
  %v561 = vunpack.c.l.b16 %v125
  %v562 = vunpack.c.h.b16 %v125
  %v563 = vunpack.c.l.b16 %v126
  %v564 = vunpack.c.h.b16 %v126
  %v565 = vunpack.c.l.b16 %v127
  %v566 = vunpack.c.h.b16 %v127
  %v567 = vunpack.c.l.b16 %v128
  %v568 = vunpack.c.h.b16 %v128
  %v569 = vunpack.c.l.b16 %v129
  %v570 = vunpack.c.h.b16 %v129
  %v571 = vunpack.c.l.b16 %v130
  %v572 = vunpack.c.h.b16 %v130
  %v573 = vunpack.c.l.b16 %v131
  %v574 = vunpack.c.h.b16 %v131
  %v575 = vunpack.c.l.b16 %v132
  %v576 = vunpack.c.h.b16 %v132
  %v577 = vunpack.c.l.b16 %v133
  %v578 = vunpack.c.h.b16 %v133
  %v579 = vunpack.c.l.b16 %v134
  %v580 = vunpack.c.h.b16 %v134
  %v581 = vunpack.c.l.b16 %v135
  %v582 = vunpack.c.h.b16 %v135
  %v583 = vunpack.c.l.b16 %v136
  %v584 = vunpack.c.h.b16 %v136
  %v585 = vunpack.c.l.b16 %v137
  %v586 = vunpack.c.h.b16 %v137
  %v587 = vunpack.c.l.b16 %v138
  %v588 = vunpack.c.h.b16 %v138
  %v589 = vunpack.c.l.b16 %v139
  %v590 = vunpack.c.h.b16 %v139
  %v591 = vunpack.c.l.b16 %v140
  %v592 = vunpack.c.h.b16 %v140
  %v593 = vunpack.c.l.b16 %v141
  %v594 = vunpack.c.h.b16 %v141
  %v595 = vunpack.c.l.b16 %v142
  %v596 = vunpack.c.h.b16 %v142
  %v597 = vunpack.c.l.b16 %v143
  %v598 = vunpack.c.h.b16 %v143
  %v599 = vunpack.c.l.b16 %v144
  %v600 = vunpack.c.h.b16 %v144
  %v601 = vunpack.c.l.b16 %v145
  %v602 = vunpack.c.h.b16 %v145
  %v603 = vunpack.c.l.b16 %v146
  %v604 = vunpack.c.h.b16 %v146
  %v605 = vunpack.c.l.b16 %v147
  %v606 = vunpack.c.h.b16 %v147
  %v607 = vunpack.c.l.b16 %v148
  %v608 = vunpack.c.h.b16 %v148
  %v609 = vunpack.c.l.b16 %v149
  %v610 = vunpack.c.h.b16 %v149
  %v611 = vunpack.c.l.b16 %v150
  %v612 = vunpack.c.h.b16 %v150
  %v613 = vunpack.c.l.b16 %v151
  %v614 = vunpack.c.h.b16 %v151
  %v615 = vunpack.c.l.b16 %v152
  %v616 = vunpack.c.h.b16 %v152
  %v617 = vunpack.c.l.b16 %v153
  %v618 = vunpack.c.h.b16 %v153
  %v619 = vunpack.c.l.b16 %v154
  %v620 = vunpack.c.h.b16 %v154
  %v621 = vunpack.c.l.b16 %v155
  %v622 = vunpack.c.h.b16 %v155
  %v623 = vunpack.c.l.b16 %v156
  %v624 = vunpack.c.h.b16 %v156
  %v625 = vunpack.c.l.b16 %v157
  %v626 = vunpack.c.h.b16 %v157
  %v627 = vunpack.c.l.b16 %v158
  %v628 = vunpack.c.h.b16 %v158
  %v629 = vunpack.c.l.b16 %v159
  %v630 = vunpack.c.h.b16 %v159
  %v631 = vunpack.c.l.b16 %v160
  %v632 = vunpack.c.h.b16 %v160
  %v633 = vunpack.c.l.b16 %v161
  %v634 = vunpack.c.h.b16 %v161
  %v635 = vunpack.c.l.b16 %v162
  %v636 = vunpack.c.h.b16 %v162
  %v637 = vpack.c.b16 %v365, %v349
  %v638 = vpack.c.b16 %v366, %v350
  %v639 = vpack.c.b16 %v367, %v351
  %v640 = vpack.c.b16 %v368, %v352
  %v641 = vpack.c.b16 %v369, %v353
  %v642 = vpack.c.b16 %v370, %v354
  %v643 = vpack.c.b16 %v371, %v355
  %v644 = vpack.c.b16 %v372, %v356
  %v645 = vpack.c.b16 %v373, %v357
  %v646 = vpack.c.b16 %v374, %v358
  %v647 = vpack.c.b16 %v375, %v359
  %v648 = vpack.c.b16 %v376, %v360
  %v649 = vpack.c.b16 %v377, %v361
  %v650 = vpack.c.b16 %v378, %v362
  %v651 = vpack.c.b16 %v379, %v363
  %v652 = vpack.c.b16 %v380, %v364
  %v653 = vpack.c.b16 %v397, %v381
  %v654 = vpack.c.b16 %v398, %v382
  %v655 = vpack.c.b16 %v399, %v383
  %v656 = vpack.c.b16 %v400, %v384
  %v657 = vpack.c.b16 %v401, %v385
  %v658 = vpack.c.b16 %v402, %v386
  %v659 = vpack.c.b16 %v403, %v387
  %v660 = vpack.c.b16 %v404, %v388
  %v661 = vpack.c.b16 %v405, %v389
  %v662 = vpack.c.b16 %v406, %v390
  %v663 = vpack.c.b16 %v407, %v391
  %v664 = vpack.c.b16 %v408, %v392
  %v665 = vpack.c.b16 %v409, %v393
  %v666 = vpack.c.b16 %v410, %v394
  %v667 = vpack.c.b16 %v411, %v395
  %v668 = vpack.c.b16 %v412, %v396
  %v669 = vpack.c.b16 %v429, %v413
  %v670 = vpack.c.b16 %v430, %v414
  %v671 = vpack.c.b16 %v431, %v415
  %v672 = vpack.c.b16 %v432, %v416
  %v673 = vpack.c.b16 %v433, %v417
  %v674 = vpack.c.b16 %v434, %v418
  %v675 = vpack.c.b16 %v435, %v419
  %v676 = vpack.c.b16 %v436, %v420
  %v677 = vpack.c.b16 %v437, %v421
  %v678 = vpack.c.b16 %v438, %v422
  %v679 = vpack.c.b16 %v439, %v423
  %v680 = vpack.c.b16 %v440, %v424
  %v681 = vpack.c.b16 %v441, %v425
  %v682 = vpack.c.b16 %v442, %v426
  %v683 = vpack.c.b16 %v443, %v427
  %v684 = vpack.c.b16 %v444, %v428
  %v685 = vpack.c.b16 %v461, %v445
  %v686 = vpack.c.b16 %v462, %v446
  %v687 = vpack.c.b16 %v463, %v447
  %v688 = vpack.c.b16 %v464, %v448
  %v689 = vpack.c.b16 %v465, %v449
  %v690 = vpack.c.b16 %v466, %v450
  %v691 = vpack.c.b16 %v467, %v451
  %v692 = vpack.c.b16 %v468, %v452
  %v693 = vpack.c.b16 %v469, %v453
  %v694 = vpack.c.b16 %v470, %v454
  %v695 = vpack.c.b16 %v471, %v455
  %v696 = vpack.c.b16 %v472, %v456
  %v697 = vpack.c.b16 %v473, %v457
  %v698 = vpack.c.b16 %v474, %v458
  %v699 = vpack.c.b16 %v475, %v459
  %v700 = vpack.c.b16 %v476, %v460
  %v701 = vpack.c.b16 %v493, %v477
  %v702 = vpack.c.b16 %v494, %v478
  %v703 = vpack.c.b16 %v495, %v479
  %v704 = vpack.c.b16 %v496, %v480
  %v705 = vpack.c.b16 %v497, %v481
  %v706 = vpack.c.b16 %v498, %v482
  %v707 = vpack.c.b16 %v499, %v483
  %v708 = vpack.c.b16 %v500, %v484
  %v709 = vpack.c.b16 %v501, %v485
  %v710 = vpack.c.b16 %v502, %v486
  %v711 = vpack.c.b16 %v503, %v487
  %v712 = vpack.c.b16 %v504, %v488
  %v713 = vpack.c.b16 %v505, %v489
  %v714 = vpack.c.b16 %v506, %v490
  %v715 = vpack.c.b16 %v507, %v491
  %v716 = vpack.c.b16 %v508, %v492
  %v717 = vpack.c.b16 %v525, %v509
  %v718 = vpack.c.b16 %v526, %v510
  %v719 = vpack.c.b16 %v527, %v511
  %v720 = vpack.c.b16 %v528, %v512
  %v721 = vpack.c.b16 %v529, %v513
  %v722 = vpack.c.b16 %v530, %v514
  %v723 = vpack.c.b16 %v531, %v515
  %v724 = vpack.c.b16 %v532, %v516
  %v725 = vpack.c.b16 %v533, %v517
  %v726 = vpack.c.b16 %v534, %v518
  %v727 = vpack.c.b16 %v535, %v519
  %v728 = vpack.c.b16 %v536, %v520
  %v729 = vpack.c.b16 %v537, %v521
  %v730 = vpack.c.b16 %v538, %v522
  %v731 = vpack.c.b16 %v539, %v523
  %v732 = vpack.c.b16 %v540, %v524
  %v733 = vpack.c.b16 %v557, %v541
  %v734 = vpack.c.b16 %v558, %v542
  %v735 = vpack.c.b16 %v559, %v543
  %v736 = vpack.c.b16 %v560, %v544
  %v737 = vpack.c.b16 %v561, %v545
  %v738 = vpack.c.b16 %v562, %v546
  %v739 = vpack.c.b16 %v563, %v547
  %v740 = vpack.c.b16 %v564, %v548
  %v741 = vpack.c.b16 %v565, %v549
  %v742 = vpack.c.b16 %v566, %v550
  %v743 = vpack.c.b16 %v567, %v551
  %v744 = vpack.c.b16 %v568, %v552
  %v745 = vpack.c.b16 %v569, %v553
  %v746 = vpack.c.b16 %v570, %v554
  %v747 = vpack.c.b16 %v571, %v555
  %v748 = vpack.c.b16 %v572, %v556
  %v749 = vpack.c.b16 %v589, %v573
  %v750 = vpack.c.b16 %v590, %v574
  %v751 = vpack.c.b16 %v591, %v575
  %v752 = vpack.c.b16 %v592, %v576
  %v753 = vpack.c.b16 %v593, %v577
  %v754 = vpack.c.b16 %v594, %v578
  %v755 = vpack.c.b16 %v595, %v579
  %v756 = vpack.c.b16 %v596, %v580
  %v757 = vpack.c.b16 %v597, %v581
  %v758 = vpack.c.b16 %v598, %v582
  %v759 = vpack.c.b16 %v599, %v583
  %v760 = vpack.c.b16 %v600, %v584
  %v761 = vpack.c.b16 %v601, %v585
  %v762 = vpack.c.b16 %v602, %v586
  %v763 = vpack.c.b16 %v603, %v587
  %v764 = vpack.c.b16 %v604, %v588
  %v765 = vpack.c.b16 %v621, %v605
  %v766 = vpack.c.b16 %v622, %v606
  %v767 = vpack.c.b16 %v623, %v607
  %v768 = vpack.c.b16 %v624, %v608
  %v769 = vpack.c.b16 %v625, %v609
  %v770 = vpack.c.b16 %v626, %v610
  %v771 = vpack.c.b16 %v627, %v611
  %v772 = vpack.c.b16 %v628, %v612
  %v773 = vpack.c.b16 %v629, %v613
  %v774 = vpack.c.b16 %v630, %v614
  %v775 = vpack.c.b16 %v631, %v615
  %v776 = vpack.c.b16 %v632, %v616
  %v777 = vpack.c.b16 %v633, %v617
  %v778 = vpack.c.b16 %v634, %v618
  %v779 = vpack.c.b16 %v635, %v619
  %v780 = vpack.c.b16 %v636, %v620
  %vm925 = vcmask 130048
  %v927 = vsel %vm925, %v200, 0
  %v930 = vsel %vm925, %v202, 0
  %932 = vmatprep.subr.bf16.mxu0 %v638
  %933 = vmatpush1.bf16.msra.mxu0 %v637
  %934 = vmatprep.subr.bf16.mxu0 %v654
  %935 = vmatpush1.bf16.msra.mxu0 %v653
  %936 = vmatprep.subr.bf16.mxu0 %v670
  %937 = vmatpush1.bf16.msra.mxu0 %v669
  %938 = vmatprep.subr.bf16.mxu0 %v686
  %939 = vmatpush1.bf16.msra.mxu0 %v685
  %940 = vmatprep.subr.bf16.mxu0 %v702
  %941 = vmatpush1.bf16.msra.mxu0 %v701
  %942 = vmatprep.subr.bf16.mxu0 %v718
  %943 = vmatpush1.bf16.msra.mxu0 %v717
  %944 = vmatprep.subr.bf16.mxu0 %v734
  %945 = vmatpush1.bf16.msra.mxu0 %v733
  %946 = vmatprep.subr.bf16.mxu0 %v750
  %947 = vmatpush1.bf16.msra.mxu0 %v749
  %948 = vmatprep.subr.bf16.mxu0 %v766
  %949 = vmatpush1.bf16.msra.mxu0 %v765
  %950 = vmatprep.subr.bf16.mxu0 0
  %951 = vmatpush1.bf16.msra.mxu0 0
  %952 = vmatprep.subr.bf16.mxu0 0
  %953 = vmatpush1.bf16.msra.mxu0 0
  %954 = vmatprep.subr.bf16.mxu0 0
  %955 = vmatpush1.bf16.msra.mxu0 0
  %956 = vmatprep.subr.bf16.mxu0 0
  %957 = vmatpush1.bf16.msra.mxu0 0
  %958 = vmatprep.subr.bf16.mxu0 0
  %959 = vmatpush1.bf16.msra.mxu0 0
  %960 = vmatprep.subr.bf16.mxu0 0
  %961 = vmatpush1.bf16.msra.mxu0 0
  %962 = vmatprep.subr.bf16.mxu0 0
  %963 = vmatpush1.bf16.msra.mxu0 0
  %964 = vmatprep.mubr.bf16.mxu0 %v927
  %965 = vmatmul.mubr.bf16.gmra.mrb[0].mxu0 %v199
  %v966 = vpop.f32.mrb[0].mxu0
  %v967 = vadd.f32 %v170, %v966
  %v968 = vpop.f32.mrb[0].mxu0
  %v969 = vadd.f32 %v170, %v968
  %v970 = vpop.f32.mrb[0].mxu0
  %v971 = vadd.f32 %v175, %v970
  %v972 = vpop.f32.mrb[0].mxu0
  %v973 = vadd.f32 %v175, %v972
  %974 = vmatprep.mubr.bf16.mxu0 %v930
  %975 = vmatmul.mubr.bf16.gmra.mrb[0].mxu0 %v201
  %v976 = vpop.f32.mrb[0].mxu0
  %v977 = vadd.f32 %v180, %v976
  %v978 = vpop.f32.mrb[0].mxu0
  %v979 = vadd.f32 %v180, %v978
  %v980 = vpop.f32.mrb[0].mxu0
  %v981 = vadd.f32 %v185, %v980
  %v982 = vpop.f32.mrb[0].mxu0
  %v983 = vadd.f32 %v185, %v982
  %984 = vdwg.mxu0
  %985 = vmatprep.subr.bf16.mxu0 %v640
  %986 = vmatpush1.bf16.msra.mxu0 %v639
  %987 = vmatprep.subr.bf16.mxu0 %v656
  %988 = vmatpush1.bf16.msra.mxu0 %v655
  %989 = vmatprep.subr.bf16.mxu0 %v672
  %990 = vmatpush1.bf16.msra.mxu0 %v671
  %991 = vmatprep.subr.bf16.mxu0 %v688
  %992 = vmatpush1.bf16.msra.mxu0 %v687
  %993 = vmatprep.subr.bf16.mxu0 %v704
  %994 = vmatpush1.bf16.msra.mxu0 %v703
  %995 = vmatprep.subr.bf16.mxu0 %v720
  %996 = vmatpush1.bf16.msra.mxu0 %v719
  %997 = vmatprep.subr.bf16.mxu0 %v736
  %998 = vmatpush1.bf16.msra.mxu0 %v735
  %999 = vmatprep.subr.bf16.mxu0 %v752
  %1000 = vmatpush1.bf16.msra.mxu0 %v751
  %1001 = vmatprep.subr.bf16.mxu0 %v768
  %1002 = vmatpush1.bf16.msra.mxu0 %v767
  %1003 = vmatprep.subr.bf16.mxu0 0
  %1004 = vmatpush1.bf16.msra.mxu0 0
  %1005 = vmatprep.subr.bf16.mxu0 0
  %1006 = vmatpush1.bf16.msra.mxu0 0
  %1007 = vmatprep.subr.bf16.mxu0 0
  %1008 = vmatpush1.bf16.msra.mxu0 0
  %1009 = vmatprep.subr.bf16.mxu0 0
  %1010 = vmatpush1.bf16.msra.mxu0 0
  %1011 = vmatprep.subr.bf16.mxu0 0
  %1012 = vmatpush1.bf16.msra.mxu0 0
  %1013 = vmatprep.subr.bf16.mxu0 0
  %1014 = vmatpush1.bf16.msra.mxu0 0
  %1015 = vmatprep.subr.bf16.mxu0 0
  %1016 = vmatpush1.bf16.msra.mxu0 0
  %1017 = vmatprep.mubr.bf16.mxu0 %v927
  %1018 = vmatmul.mubr.bf16.gmra.mrb[0].mxu0 %v199
  %v1019 = vpop.f32.mrb[0].mxu0
  %v1020 = vadd.f32 %v170, %v1019
  %v1021 = vpop.f32.mrb[0].mxu0
  %v1022 = vadd.f32 %v170, %v1021
  %v1023 = vpop.f32.mrb[0].mxu0
  %v1024 = vadd.f32 %v175, %v1023
  %v1025 = vpop.f32.mrb[0].mxu0
  %v1026 = vadd.f32 %v175, %v1025
  %1027 = vmatprep.mubr.bf16.mxu0 %v930
  %1028 = vmatmul.mubr.bf16.gmra.mrb[0].mxu0 %v201
  %v1029 = vpop.f32.mrb[0].mxu0
  %v1030 = vadd.f32 %v180, %v1029
  %v1031 = vpop.f32.mrb[0].mxu0
  %v1032 = vadd.f32 %v180, %v1031
  %v1033 = vpop.f32.mrb[0].mxu0
  %v1034 = vadd.f32 %v185, %v1033
  %v1035 = vpop.f32.mrb[0].mxu0
  %v1036 = vadd.f32 %v185, %v1035
  %1037 = vdwg.mxu0
  %1038 = vmatprep.subr.bf16.mxu0 %v642
  %1039 = vmatpush1.bf16.msra.mxu0 %v641
  %1040 = vmatprep.subr.bf16.mxu0 %v658
  %1041 = vmatpush1.bf16.msra.mxu0 %v657
  %1042 = vmatprep.subr.bf16.mxu0 %v674
  %1043 = vmatpush1.bf16.msra.mxu0 %v673
  %1044 = vmatprep.subr.bf16.mxu0 %v690
  %1045 = vmatpush1.bf16.msra.mxu0 %v689
  %1046 = vmatprep.subr.bf16.mxu0 %v706
  %1047 = vmatpush1.bf16.msra.mxu0 %v705
  %1048 = vmatprep.subr.bf16.mxu0 %v722
  %1049 = vmatpush1.bf16.msra.mxu0 %v721
  %1050 = vmatprep.subr.bf16.mxu0 %v738
  %1051 = vmatpush1.bf16.msra.mxu0 %v737
  %1052 = vmatprep.subr.bf16.mxu0 %v754
  %1053 = vmatpush1.bf16.msra.mxu0 %v753
  %1054 = vmatprep.subr.bf16.mxu0 %v770
  %1055 = vmatpush1.bf16.msra.mxu0 %v769
  %1056 = vmatprep.subr.bf16.mxu0 0
  %1057 = vmatpush1.bf16.msra.mxu0 0
  %1058 = vmatprep.subr.bf16.mxu0 0
  %1059 = vmatpush1.bf16.msra.mxu0 0
  %1060 = vmatprep.subr.bf16.mxu0 0
  %1061 = vmatpush1.bf16.msra.mxu0 0
  %1062 = vmatprep.subr.bf16.mxu0 0
  %1063 = vmatpush1.bf16.msra.mxu0 0
  %1064 = vmatprep.subr.bf16.mxu0 0
  %1065 = vmatpush1.bf16.msra.mxu0 0
  %1066 = vmatprep.subr.bf16.mxu0 0
  %1067 = vmatpush1.bf16.msra.mxu0 0
  %1068 = vmatprep.subr.bf16.mxu0 0
  %1069 = vmatpush1.bf16.msra.mxu0 0
  %1070 = vmatprep.mubr.bf16.mxu0 %v927
  %1071 = vmatmul.mubr.bf16.gmra.mrb[0].mxu0 %v199
  %v1072 = vpop.f32.mrb[0].mxu0
  %v1073 = vadd.f32 %v170, %v1072
  %v1074 = vpop.f32.mrb[0].mxu0
  %v1075 = vadd.f32 %v170, %v1074
  %v1076 = vpop.f32.mrb[0].mxu0
  %v1077 = vadd.f32 %v175, %v1076
  %v1078 = vpop.f32.mrb[0].mxu0
  %v1079 = vadd.f32 %v175, %v1078
  %1080 = vmatprep.mubr.bf16.mxu0 %v930
  %1081 = vmatmul.mubr.bf16.gmra.mrb[0].mxu0 %v201
  %v1082 = vpop.f32.mrb[0].mxu0
  %v1083 = vadd.f32 %v180, %v1082
  %v1084 = vpop.f32.mrb[0].mxu0
  %v1085 = vadd.f32 %v180, %v1084
  %v1086 = vpop.f32.mrb[0].mxu0
  %v1087 = vadd.f32 %v185, %v1086
  %v1088 = vpop.f32.mrb[0].mxu0
  %v1089 = vadd.f32 %v185, %v1088
  %1090 = vdwg.mxu0
  %1091 = vmatprep.subr.bf16.mxu0 %v644
  %1092 = vmatpush1.bf16.msra.mxu0 %v643
  %1093 = vmatprep.subr.bf16.mxu0 %v660
  %1094 = vmatpush1.bf16.msra.mxu0 %v659
  %1095 = vmatprep.subr.bf16.mxu0 %v676
  %1096 = vmatpush1.bf16.msra.mxu0 %v675
  %1097 = vmatprep.subr.bf16.mxu0 %v692
  %1098 = vmatpush1.bf16.msra.mxu0 %v691
  %1099 = vmatprep.subr.bf16.mxu0 %v708
  %1100 = vmatpush1.bf16.msra.mxu0 %v707
  %1101 = vmatprep.subr.bf16.mxu0 %v724
  %1102 = vmatpush1.bf16.msra.mxu0 %v723
  %1103 = vmatprep.subr.bf16.mxu0 %v740
  %1104 = vmatpush1.bf16.msra.mxu0 %v739
  %1105 = vmatprep.subr.bf16.mxu0 %v756
  %1106 = vmatpush1.bf16.msra.mxu0 %v755
  %1107 = vmatprep.subr.bf16.mxu0 %v772
  %1108 = vmatpush1.bf16.msra.mxu0 %v771
  %1109 = vmatprep.subr.bf16.mxu0 0
  %1110 = vmatpush1.bf16.msra.mxu0 0
  %1111 = vmatprep.subr.bf16.mxu0 0
  %1112 = vmatpush1.bf16.msra.mxu0 0
  %1113 = vmatprep.subr.bf16.mxu0 0
  %1114 = vmatpush1.bf16.msra.mxu0 0
  %1115 = vmatprep.subr.bf16.mxu0 0
  %1116 = vmatpush1.bf16.msra.mxu0 0
  %1117 = vmatprep.subr.bf16.mxu0 0
  %1118 = vmatpush1.bf16.msra.mxu0 0
  %1119 = vmatprep.subr.bf16.mxu0 0
  %1120 = vmatpush1.bf16.msra.mxu0 0
  %1121 = vmatprep.subr.bf16.mxu0 0
  %1122 = vmatpush1.bf16.msra.mxu0 0
  %1123 = vmatprep.mubr.bf16.mxu0 %v927
  %1124 = vmatmul.mubr.bf16.gmra.mrb[0].mxu0 %v199
  %v1125 = vpop.f32.mrb[0].mxu0
  %v1126 = vadd.f32 %v170, %v1125
  %v1127 = vpop.f32.mrb[0].mxu0
  %v1128 = vadd.f32 %v170, %v1127
  %v1129 = vpop.f32.mrb[0].mxu0
  %v1130 = vadd.f32 %v175, %v1129
  %v1131 = vpop.f32.mrb[0].mxu0
  %v1132 = vadd.f32 %v175, %v1131
  %1133 = vmatprep.mubr.bf16.mxu0 %v930
  %1134 = vmatmul.mubr.bf16.gmra.mrb[0].mxu0 %v201
  %v1135 = vpop.f32.mrb[0].mxu0
  %v1136 = vadd.f32 %v180, %v1135
  %v1137 = vpop.f32.mrb[0].mxu0
  %v1138 = vadd.f32 %v180, %v1137
  %v1139 = vpop.f32.mrb[0].mxu0
  %v1140 = vadd.f32 %v185, %v1139
  %v1141 = vpop.f32.mrb[0].mxu0
  %v1142 = vadd.f32 %v185, %v1141
  %1143 = vdwg.mxu0
  %1144 = vmatprep.subr.bf16.mxu0 %v646
  %1145 = vmatpush1.bf16.msra.mxu0 %v645
  %1146 = vmatprep.subr.bf16.mxu0 %v662
  %1147 = vmatpush1.bf16.msra.mxu0 %v661
  %1148 = vmatprep.subr.bf16.mxu0 %v678
  %1149 = vmatpush1.bf16.msra.mxu0 %v677
  %1150 = vmatprep.subr.bf16.mxu0 %v694
  %1151 = vmatpush1.bf16.msra.mxu0 %v693
  %1152 = vmatprep.subr.bf16.mxu0 %v710
  %1153 = vmatpush1.bf16.msra.mxu0 %v709
  %1154 = vmatprep.subr.bf16.mxu0 %v726
  %1155 = vmatpush1.bf16.msra.mxu0 %v725
  %1156 = vmatprep.subr.bf16.mxu0 %v742
  %1157 = vmatpush1.bf16.msra.mxu0 %v741
  %1158 = vmatprep.subr.bf16.mxu0 %v758
  %1159 = vmatpush1.bf16.msra.mxu0 %v757
  %1160 = vmatprep.subr.bf16.mxu0 %v774
  %1161 = vmatpush1.bf16.msra.mxu0 %v773
  %1162 = vmatprep.subr.bf16.mxu0 0
  %1163 = vmatpush1.bf16.msra.mxu0 0
  %1164 = vmatprep.subr.bf16.mxu0 0
  %1165 = vmatpush1.bf16.msra.mxu0 0
  %1166 = vmatprep.subr.bf16.mxu0 0
  %1167 = vmatpush1.bf16.msra.mxu0 0
  %1168 = vmatprep.subr.bf16.mxu0 0
  %1169 = vmatpush1.bf16.msra.mxu0 0
  %1170 = vmatprep.subr.bf16.mxu0 0
  %1171 = vmatpush1.bf16.msra.mxu0 0
  %1172 = vmatprep.subr.bf16.mxu0 0
  %1173 = vmatpush1.bf16.msra.mxu0 0
  %1174 = vmatprep.subr.bf16.mxu0 0
  %1175 = vmatpush1.bf16.msra.mxu0 0
  %1176 = vmatprep.mubr.bf16.mxu0 %v927
  %1177 = vmatmul.mubr.bf16.gmra.mrb[0].mxu0 %v199
  %v1178 = vpop.f32.mrb[0].mxu0
  %v1179 = vadd.f32 %v170, %v1178
  %v1180 = vpop.f32.mrb[0].mxu0
  %v1181 = vadd.f32 %v170, %v1180
  %v1182 = vpop.f32.mrb[0].mxu0
  %v1183 = vadd.f32 %v175, %v1182
  %v1184 = vpop.f32.mrb[0].mxu0
  %v1185 = vadd.f32 %v175, %v1184
  %1186 = vmatprep.mubr.bf16.mxu0 %v930
  %1187 = vmatmul.mubr.bf16.gmra.mrb[0].mxu0 %v201
  %v1188 = vpop.f32.mrb[0].mxu0
  %v1189 = vadd.f32 %v180, %v1188
  %v1190 = vpop.f32.mrb[0].mxu0
  %v1191 = vadd.f32 %v180, %v1190
  %v1192 = vpop.f32.mrb[0].mxu0
  %v1193 = vadd.f32 %v185, %v1192
  %v1194 = vpop.f32.mrb[0].mxu0
  %v1195 = vadd.f32 %v185, %v1194
  %1196 = vdwg.mxu0
  %1197 = vmatprep.subr.bf16.mxu0 %v648
  %1198 = vmatpush1.bf16.msra.mxu0 %v647
  %1199 = vmatprep.subr.bf16.mxu0 %v664
  %1200 = vmatpush1.bf16.msra.mxu0 %v663
  %1201 = vmatprep.subr.bf16.mxu0 %v680
  %1202 = vmatpush1.bf16.msra.mxu0 %v679
  %1203 = vmatprep.subr.bf16.mxu0 %v696
  %1204 = vmatpush1.bf16.msra.mxu0 %v695
  %1205 = vmatprep.subr.bf16.mxu0 %v712
  %1206 = vmatpush1.bf16.msra.mxu0 %v711
  %1207 = vmatprep.subr.bf16.mxu0 %v728
  %1208 = vmatpush1.bf16.msra.mxu0 %v727
  %1209 = vmatprep.subr.bf16.mxu0 %v744
  %1210 = vmatpush1.bf16.msra.mxu0 %v743
  %1211 = vmatprep.subr.bf16.mxu0 %v760
  %1212 = vmatpush1.bf16.msra.mxu0 %v759
  %1213 = vmatprep.subr.bf16.mxu0 %v776
  %1214 = vmatpush1.bf16.msra.mxu0 %v775
  %1215 = vmatprep.subr.bf16.mxu0 0
  %1216 = vmatpush1.bf16.msra.mxu0 0
  %1217 = vmatprep.subr.bf16.mxu0 0
  %1218 = vmatpush1.bf16.msra.mxu0 0
  %1219 = vmatprep.subr.bf16.mxu0 0
  %1220 = vmatpush1.bf16.msra.mxu0 0
  %1221 = vmatprep.subr.bf16.mxu0 0
  %1222 = vmatpush1.bf16.msra.mxu0 0
  %1223 = vmatprep.subr.bf16.mxu0 0
  %1224 = vmatpush1.bf16.msra.mxu0 0
  %1225 = vmatprep.subr.bf16.mxu0 0
  %1226 = vmatpush1.bf16.msra.mxu0 0
  %1227 = vmatprep.subr.bf16.mxu0 0
  %1228 = vmatpush1.bf16.msra.mxu0 0
  %1229 = vmatprep.mubr.bf16.mxu0 %v927
  %1230 = vmatmul.mubr.bf16.gmra.mrb[0].mxu0 %v199
  %v1231 = vpop.f32.mrb[0].mxu0
  %v1232 = vadd.f32 %v170, %v1231
  %v1233 = vpop.f32.mrb[0].mxu0
  %v1234 = vadd.f32 %v170, %v1233
  %v1235 = vpop.f32.mrb[0].mxu0
  %v1236 = vadd.f32 %v175, %v1235
  %v1237 = vpop.f32.mrb[0].mxu0
  %v1238 = vadd.f32 %v175, %v1237
  %1239 = vmatprep.mubr.bf16.mxu0 %v930
  %1240 = vmatmul.mubr.bf16.gmra.mrb[0].mxu0 %v201
  %v1241 = vpop.f32.mrb[0].mxu0
  %v1242 = vadd.f32 %v180, %v1241
  %v1243 = vpop.f32.mrb[0].mxu0
  %v1244 = vadd.f32 %v180, %v1243
  %v1245 = vpop.f32.mrb[0].mxu0
  %v1246 = vadd.f32 %v185, %v1245
  %v1247 = vpop.f32.mrb[0].mxu0
  %v1248 = vadd.f32 %v185, %v1247
  %1249 = vdwg.mxu0
  %1250 = vmatprep.subr.bf16.mxu0 %v650
  %1251 = vmatpush1.bf16.msra.mxu0 %v649
  %1252 = vmatprep.subr.bf16.mxu0 %v666
  %1253 = vmatpush1.bf16.msra.mxu0 %v665
  %1254 = vmatprep.subr.bf16.mxu0 %v682
  %1255 = vmatpush1.bf16.msra.mxu0 %v681
  %1256 = vmatprep.subr.bf16.mxu0 %v698
  %1257 = vmatpush1.bf16.msra.mxu0 %v697
  %1258 = vmatprep.subr.bf16.mxu0 %v714
  %1259 = vmatpush1.bf16.msra.mxu0 %v713
  %1260 = vmatprep.subr.bf16.mxu0 %v730
  %1261 = vmatpush1.bf16.msra.mxu0 %v729
  %1262 = vmatprep.subr.bf16.mxu0 %v746
  %1263 = vmatpush1.bf16.msra.mxu0 %v745
  %1264 = vmatprep.subr.bf16.mxu0 %v762
  %1265 = vmatpush1.bf16.msra.mxu0 %v761
  %1266 = vmatprep.subr.bf16.mxu0 %v778
  %1267 = vmatpush1.bf16.msra.mxu0 %v777
  %1268 = vmatprep.subr.bf16.mxu0 0
  %1269 = vmatpush1.bf16.msra.mxu0 0
  %1270 = vmatprep.subr.bf16.mxu0 0
  %1271 = vmatpush1.bf16.msra.mxu0 0
  %1272 = vmatprep.subr.bf16.mxu0 0
  %1273 = vmatpush1.bf16.msra.mxu0 0
  %1274 = vmatprep.subr.bf16.mxu0 0
  %1275 = vmatpush1.bf16.msra.mxu0 0
  %1276 = vmatprep.subr.bf16.mxu0 0
  %1277 = vmatpush1.bf16.msra.mxu0 0
  %1278 = vmatprep.subr.bf16.mxu0 0
  %1279 = vmatpush1.bf16.msra.mxu0 0
  %1280 = vmatprep.subr.bf16.mxu0 0
  %1281 = vmatpush1.bf16.msra.mxu0 0
  %1282 = vmatprep.mubr.bf16.mxu0 %v927
  %1283 = vmatmul.mubr.bf16.gmra.mrb[0].mxu0 %v199
  %v1284 = vpop.f32.mrb[0].mxu0
  %v1285 = vadd.f32 %v170, %v1284
  %v1286 = vpop.f32.mrb[0].mxu0
  %v1287 = vadd.f32 %v170, %v1286
  %v1288 = vpop.f32.mrb[0].mxu0
  %v1289 = vadd.f32 %v175, %v1288
  %v1290 = vpop.f32.mrb[0].mxu0
  %v1291 = vadd.f32 %v175, %v1290
  %1292 = vmatprep.mubr.bf16.mxu0 %v930
  %1293 = vmatmul.mubr.bf16.gmra.mrb[0].mxu0 %v201
  %v1294 = vpop.f32.mrb[0].mxu0
  %v1295 = vadd.f32 %v180, %v1294
  %v1296 = vpop.f32.mrb[0].mxu0
  %v1297 = vadd.f32 %v180, %v1296
  %v1298 = vpop.f32.mrb[0].mxu0
  %v1299 = vadd.f32 %v185, %v1298
  %v1300 = vpop.f32.mrb[0].mxu0
  %v1301 = vadd.f32 %v185, %v1300
  %1302 = vdwg.mxu0
  %1303 = vmatprep.subr.bf16.mxu0 %v652
  %1304 = vmatpush1.bf16.msra.mxu0 %v651
  %1305 = vmatprep.subr.bf16.mxu0 %v668
  %1306 = vmatpush1.bf16.msra.mxu0 %v667
  %1307 = vmatprep.subr.bf16.mxu0 %v684
  %1308 = vmatpush1.bf16.msra.mxu0 %v683
  %1309 = vmatprep.subr.bf16.mxu0 %v700
  %1310 = vmatpush1.bf16.msra.mxu0 %v699
  %1311 = vmatprep.subr.bf16.mxu0 %v716
  %1312 = vmatpush1.bf16.msra.mxu0 %v715
  %1313 = vmatprep.subr.bf16.mxu0 %v732
  %1314 = vmatpush1.bf16.msra.mxu0 %v731
  %1315 = vmatprep.subr.bf16.mxu0 %v748
  %1316 = vmatpush1.bf16.msra.mxu0 %v747
  %1317 = vmatprep.subr.bf16.mxu0 %v764
  %1318 = vmatpush1.bf16.msra.mxu0 %v763
  %1319 = vmatprep.subr.bf16.mxu0 %v780
  %1320 = vmatpush1.bf16.msra.mxu0 %v779
  %1321 = vmatprep.subr.bf16.mxu0 0
  %1322 = vmatpush1.bf16.msra.mxu0 0
  %1323 = vmatprep.subr.bf16.mxu0 0
  %1324 = vmatpush1.bf16.msra.mxu0 0
  %1325 = vmatprep.subr.bf16.mxu0 0
  %1326 = vmatpush1.bf16.msra.mxu0 0
  %1327 = vmatprep.subr.bf16.mxu0 0
  %1328 = vmatpush1.bf16.msra.mxu0 0
  %1329 = vmatprep.subr.bf16.mxu0 0
  %1330 = vmatpush1.bf16.msra.mxu0 0
  %1331 = vmatprep.subr.bf16.mxu0 0
  %1332 = vmatpush1.bf16.msra.mxu0 0
  %1333 = vmatprep.subr.bf16.mxu0 0
  %1334 = vmatpush1.bf16.msra.mxu0 0
  %1335 = vmatprep.mubr.bf16.mxu0 %v927
  %1336 = vmatmul.mubr.bf16.gmra.mrb[0].mxu0 %v199
  %v1337 = vpop.f32.mrb[0].mxu0
  %v1338 = vadd.f32 %v170, %v1337
  %v1339 = vpop.f32.mrb[0].mxu0
  %v1340 = vadd.f32 %v170, %v1339
  %v1341 = vpop.f32.mrb[0].mxu0
  %v1342 = vadd.f32 %v175, %v1341
  %v1343 = vpop.f32.mrb[0].mxu0
  %v1344 = vadd.f32 %v175, %v1343
  %1345 = vmatprep.mubr.bf16.mxu0 %v930
  %1346 = vmatmul.mubr.bf16.gmra.mrb[0].mxu0 %v201
  %v1347 = vpop.f32.mrb[0].mxu0
  %v1348 = vadd.f32 %v180, %v1347
  %v1349 = vpop.f32.mrb[0].mxu0
  %v1350 = vadd.f32 %v180, %v1349
  %v1351 = vpop.f32.mrb[0].mxu0
  %v1352 = vadd.f32 %v185, %v1351
  %v1353 = vpop.f32.mrb[0].mxu0
  %v1354 = vadd.f32 %v185, %v1353
  %1355 = vdwg.mxu0
  %v1356 = vmax.f32 %v967, 0.0
  %v1357 = vmax.f32 %v969, 0.0
  %v1358 = vmax.f32 %v1020, 0.0
  %v1359 = vmax.f32 %v1022, 0.0
  %v1360 = vmax.f32 %v1073, 0.0
  %v1361 = vmax.f32 %v1075, 0.0
  %v1362 = vmax.f32 %v1126, 0.0
  %v1363 = vmax.f32 %v1128, 0.0
  %v1364 = vmax.f32 %v1179, 0.0
  %v1365 = vmax.f32 %v1181, 0.0
  %v1366 = vmax.f32 %v1232, 0.0
  %v1367 = vmax.f32 %v1234, 0.0
  %v1368 = vmax.f32 %v1285, 0.0
  %v1369 = vmax.f32 %v1287, 0.0
  %v1370 = vmax.f32 %v1338, 0.0
  %v1371 = vmax.f32 %v1340, 0.0
  %v1372 = vmax.f32 %v971, 0.0
  %v1373 = vmax.f32 %v973, 0.0
  %v1374 = vmax.f32 %v1024, 0.0
  %v1375 = vmax.f32 %v1026, 0.0
  %v1376 = vmax.f32 %v1077, 0.0
  %v1377 = vmax.f32 %v1079, 0.0
  %v1378 = vmax.f32 %v1130, 0.0
  %v1379 = vmax.f32 %v1132, 0.0
  %v1380 = vmax.f32 %v1183, 0.0
  %v1381 = vmax.f32 %v1185, 0.0
  %v1382 = vmax.f32 %v1236, 0.0
  %v1383 = vmax.f32 %v1238, 0.0
  %v1384 = vmax.f32 %v1289, 0.0
  %v1385 = vmax.f32 %v1291, 0.0
  %v1386 = vmax.f32 %v1342, 0.0
  %v1387 = vmax.f32 %v1344, 0.0
  %v1388 = vmax.f32 %v977, 0.0
  %v1389 = vmax.f32 %v979, 0.0
  %v1390 = vmax.f32 %v1030, 0.0
  %v1391 = vmax.f32 %v1032, 0.0
  %v1392 = vmax.f32 %v1083, 0.0
  %v1393 = vmax.f32 %v1085, 0.0
  %v1394 = vmax.f32 %v1136, 0.0
  %v1395 = vmax.f32 %v1138, 0.0
  %v1396 = vmax.f32 %v1189, 0.0
  %v1397 = vmax.f32 %v1191, 0.0
  %v1398 = vmax.f32 %v1242, 0.0
  %v1399 = vmax.f32 %v1244, 0.0
  %v1400 = vmax.f32 %v1295, 0.0
  %v1401 = vmax.f32 %v1297, 0.0
  %v1402 = vmax.f32 %v1348, 0.0
  %v1403 = vmax.f32 %v1350, 0.0
  %v1404 = vmax.f32 %v981, 0.0
  %v1405 = vmax.f32 %v983, 0.0
  %v1406 = vmax.f32 %v1034, 0.0
  %v1407 = vmax.f32 %v1036, 0.0
  %v1408 = vmax.f32 %v1087, 0.0
  %v1409 = vmax.f32 %v1089, 0.0
  %v1410 = vmax.f32 %v1140, 0.0
  %v1411 = vmax.f32 %v1142, 0.0
  %v1412 = vmax.f32 %v1193, 0.0
  %v1413 = vmax.f32 %v1195, 0.0
  %v1414 = vmax.f32 %v1246, 0.0
  %v1415 = vmax.f32 %v1248, 0.0
  %v1416 = vmax.f32 %v1299, 0.0
  %v1417 = vmax.f32 %v1301, 0.0
  %v1418 = vmax.f32 %v1352, 0.0
  %v1419 = vmax.f32 %v1354, 0.0
  %v1420 = vmax.f32 %v1356, %v1360
  %v1421 = vmax.f32 %v1357, %v1361
  %v1422 = vmax.f32 %v1358, %v1362
  %v1423 = vmax.f32 %v1359, %v1363
  %v1424 = vmax.f32 %v1372, %v1376
  %v1425 = vmax.f32 %v1373, %v1377
  %v1426 = vmax.f32 %v1374, %v1378
  %v1427 = vmax.f32 %v1375, %v1379
  %v1428 = vmax.f32 %v1388, %v1392
  %v1429 = vmax.f32 %v1389, %v1393
  %v1430 = vmax.f32 %v1390, %v1394
  %v1431 = vmax.f32 %v1391, %v1395
  %v1432 = vmax.f32 %v1404, %v1408
  %v1433 = vmax.f32 %v1405, %v1409
  %v1434 = vmax.f32 %v1406, %v1410
  %v1435 = vmax.f32 %v1407, %v1411
  %v1436 = vmax.f32 %v1364, %v1368
  %v1437 = vmax.f32 %v1365, %v1369
  %v1438 = vmax.f32 %v1366, %v1370
  %v1439 = vmax.f32 %v1367, %v1371
  %v1440 = vmax.f32 %v1380, %v1384
  %v1441 = vmax.f32 %v1381, %v1385
  %v1442 = vmax.f32 %v1382, %v1386
  %v1443 = vmax.f32 %v1383, %v1387
  %v1444 = vmax.f32 %v1396, %v1400
  %v1445 = vmax.f32 %v1397, %v1401
  %v1446 = vmax.f32 %v1398, %v1402
  %v1447 = vmax.f32 %v1399, %v1403
  %v1448 = vmax.f32 %v1412, %v1416
  %v1449 = vmax.f32 %v1413, %v1417
  %v1450 = vmax.f32 %v1414, %v1418
  %v1451 = vmax.f32 %v1415, %v1419
  %v1452 = vmax.f32 %v1420, %v1436
  %v1453 = vmax.f32 %v1421, %v1437
  %v1454 = vmax.f32 %v1422, %v1438
  %v1455 = vmax.f32 %v1423, %v1439
  %v1456 = vmax.f32 %v1424, %v1440
  %v1457 = vmax.f32 %v1425, %v1441
  %v1458 = vmax.f32 %v1426, %v1442
  %v1459 = vmax.f32 %v1427, %v1443
  %v1460 = vmax.f32 %v1428, %v1444
  %v1461 = vmax.f32 %v1429, %v1445
  %v1462 = vmax.f32 %v1430, %v1446
  %v1463 = vmax.f32 %v1431, %v1447
  %v1464 = vmax.f32 %v1432, %v1448
  %v1465 = vmax.f32 %v1433, %v1449
  %v1466 = vmax.f32 %v1434, %v1450
  %v1467 = vmax.f32 %v1435, %v1451
  %v1468 = vpack.c.bf16 %v1456, %v1452
  %v1469 = vpack.c.bf16 %v1457, %v1453
  %v1470 = vpack.c.bf16 %v1458, %v1454
  %v1471 = vpack.c.bf16 %v1459, %v1455
  %v1472 = vpack.c.bf16 %v1464, %v1460
  %v1473 = vpack.c.bf16 %v1465, %v1461
  %v1474 = vpack.c.bf16 %v1466, %v1462
  %v1475 = vpack.c.bf16 %v1467, %v1463
  %v1484 = vunpack.c.l.b16 %v1468
  %v1485 = vunpack.c.l.b16 %v1469
  %v1486 = vunpack.c.l.b16 %v1470
  %v1487 = vunpack.c.l.b16 %v1471
  %v1488 = vunpack.c.h.b16 %v1468
  %v1489 = vunpack.c.h.b16 %v1469
  %v1490 = vunpack.c.h.b16 %v1470
  %v1491 = vunpack.c.h.b16 %v1471
  %v1492 = vunpack.c.l.b16 %v1472
  %v1493 = vunpack.c.l.b16 %v1473
  %v1494 = vunpack.c.l.b16 %v1474
  %v1495 = vunpack.c.l.b16 %v1475
  %v1496 = vunpack.c.h.b16 %v1472
  %v1497 = vunpack.c.h.b16 %v1473
  %v1498 = vunpack.c.h.b16 %v1474
  %v1499 = vunpack.c.h.b16 %v1475
  %v1500 = vpack.c.b16 %v1485, %v1484
  %v1501 = vpack.c.b16 %v1487, %v1486
  %v1502 = vpack.c.b16 %v1489, %v1488
  %v1503 = vpack.c.b16 %v1491, %v1490
  %v1504 = vpack.c.b16 %v1493, %v1492
  %v1505 = vpack.c.b16 %v1495, %v1494
  %v1506 = vpack.c.b16 %v1497, %v1496
  %v1507 = vpack.c.b16 %v1499, %v1498
  %1516 = vst [vmem:[%s3] sm:$0xff] %v1500
  %1517 = vst [vmem:[%s3 + $0x8] sm:$0xff] %v1501
  %1518 = vst [vmem:[%s3 + $0x10] sm:$0xff] %v1502
  %1519 = vst [vmem:[%s3 + $0x18] sm:$0xff] %v1503
  %1520 = vst [vmem:[%s3 + $0x20] sm:$0xff] %v1504
  %1521 = vst [vmem:[%s3 + $0x28] sm:$0xff] %v1505
  %1522 = vst [vmem:[%s3 + $0x30] sm:$0xff] %v1506
  %1523 = vst [vmem:[%s3 + $0x38] sm:$0xff] %v1507
  // Predicated region
  $region14: #{multi_class_cnn_forward.5} parent=0 // pred_check
    _
  $region15: #{multi_class_cnn_forward.5} parent=0 // pred_check_branch
    %1525 = sbr.rel (0) target = $region17
  $region16: #{multi_class_cnn_forward.5} parent=0 // pred_region
    _
  $region17: #{multi_class_cnn_forward.5} parent=0 // pred_fallthru
    _
  // Predicated region
  $region18: #{multi_class_cnn_forward.5} parent=0 // pred_check
    _
  $region19: #{multi_class_cnn_forward.5} parent=0 // pred_check_branch
    %1527 = sbr.rel (0) target = $region21
  $region20: #{multi_class_cnn_forward.5} parent=0 // pred_region
    _
  $region21: #{multi_class_cnn_forward.5} parent=0 // pred_fallthru
    _

// kernel: multi_class_cnn_forward.6
$region0: #{multi_class_cnn_forward.6}
  #allocation0 [shape = 'u32[]', space=smem, size = 0x4, offset = 0x4, fixed_abs, tag = 'smem constant byte address 0x4 - core index']
  #allocation1 [shape = 'u32[144,128]{1,0:T(1,128)}', space=vmem, size = 0x12000, scoped, tag = 'internal scratch']
  %s0 = inlined_call_operand.vmem [shape: bf16[1,288,512], index: 0, kind: input, shape index: {}]
  %s1 = inlined_call_operand.vmem [shape: bf16[64,288], index: 1, kind: input, shape index: {}]
  %s2 = inlined_call_operand.vmem [shape: f32[64,1], index: 2, kind: input, shape index: {}]
  %s3 = inlined_call_operand.vmem [shape: bf16[1,64,128], index: 3, kind: output, shape index: {}]
  %s4 = sld [smem:[#allocation0]]
  $region22: #{multi_class_cnn_forward.6} parent=0
    _
  %s6 = ssub.s32 1, %s4
  %s7 = scalar_select 0, %s6, %s4
  // Predicated region
  $region2: #{multi_class_cnn_forward.6} parent=0 // pred_check
    _
  $region3: #{multi_class_cnn_forward.6} parent=0 // pred_check_branch
    %9 = sbr.rel (0) target = $region5
  $region4: #{multi_class_cnn_forward.6} parent=0 // pred_region
    _
  $region5: #{multi_class_cnn_forward.6} parent=0 // pred_fallthru
    _
  // Predicated region
  $region6: #{multi_class_cnn_forward.6} parent=0 // pred_check
    _
  $region7: #{multi_class_cnn_forward.6} parent=0 // pred_check_branch
    %11 = sbr.rel (0) target = $region9
  $region8: #{multi_class_cnn_forward.6} parent=0 // pred_region
    _
  $region9: #{multi_class_cnn_forward.6} parent=0 // pred_fallthru
    _
  // Predicated region
  $region10: #{multi_class_cnn_forward.6} parent=0 // pred_check
    _
  $region11: #{multi_class_cnn_forward.6} parent=0 // pred_check_branch
    %13 = sbr.rel (0) target = $region13
  $region12: #{multi_class_cnn_forward.6} parent=0 // pred_region
    _
  $region13: #{multi_class_cnn_forward.6} parent=0 // pred_fallthru
    _
  %v15 = vld [vmem:[%s1] sm:$0xff]
  %v16 = vld [vmem:[%s1 + $0x8] sm:$0xf]
  %v17 = vld [vmem:[%s1 + $0xc] sm:$0xff]
  %v18 = vld [vmem:[%s1 + $0x14] sm:$0xf]
  %v19 = vld [vmem:[%s1 + $0x18] sm:$0xff]
  %v20 = vld [vmem:[%s1 + $0x20] sm:$0xf]
  %v21 = vld [vmem:[%s1 + $0x24] sm:$0xff]
  %v22 = vld [vmem:[%s1 + $0x2c] sm:$0xf]
  %v23 = vld [vmem:[%s1 + $0x30] sm:$0xff]
  %v24 = vld [vmem:[%s1 + $0x38] sm:$0xf]
  %v25 = vld [vmem:[%s1 + $0x3c] sm:$0xff]
  %v26 = vld [vmem:[%s1 + $0x44] sm:$0xf]
  %v27 = vld [vmem:[%s1 + $0x48] sm:$0xff]
  %v28 = vld [vmem:[%s1 + $0x50] sm:$0xf]
  %v29 = vld [vmem:[%s1 + $0x54] sm:$0xff]
  %v30 = vld [vmem:[%s1 + $0x5c] sm:$0xf]
  %v31 = vld [vmem:[%s0] sm:$0xff]
  %v32 = vld [vmem:[%s0 + $0x8] sm:$0xff]
  %v33 = vld [vmem:[%s0 + $0x10] sm:$0xff]
  %v34 = vld [vmem:[%s0 + $0x18] sm:$0xff]
  %v35 = vld [vmem:[%s0 + $0x20] sm:$0xff]
  %v36 = vld [vmem:[%s0 + $0x28] sm:$0xff]
  %v37 = vld [vmem:[%s0 + $0x30] sm:$0xff]
  %v38 = vld [vmem:[%s0 + $0x38] sm:$0xff]
  %v39 = vld [vmem:[%s0 + $0x40] sm:$0xff]
  %v40 = vld [vmem:[%s0 + $0x48] sm:$0xff]
  %v41 = vld [vmem:[%s0 + $0x50] sm:$0xff]
  %v42 = vld [vmem:[%s0 + $0x58] sm:$0xff]
  %v43 = vld [vmem:[%s0 + $0x60] sm:$0xff]
  %v44 = vld [vmem:[%s0 + $0x68] sm:$0xff]
  %v45 = vld [vmem:[%s0 + $0x70] sm:$0xff]
  %v46 = vld [vmem:[%s0 + $0x78] sm:$0xff]
  %v47 = vld [vmem:[%s0 + $0x80] sm:$0xff]
  %v48 = vld [vmem:[%s0 + $0x88] sm:$0xff]
  %v49 = vld [vmem:[%s0 + $0x90] sm:$0xff]
  %v50 = vld [vmem:[%s0 + $0x98] sm:$0xff]
  %v51 = vld [vmem:[%s0 + $0xa0] sm:$0xff]
  %v52 = vld [vmem:[%s0 + $0xa8] sm:$0xff]
  %v53 = vld [vmem:[%s0 + $0xb0] sm:$0xff]
  %v54 = vld [vmem:[%s0 + $0xb8] sm:$0xff]
  %v55 = vld [vmem:[%s0 + $0xc0] sm:$0xff]
  %v56 = vld [vmem:[%s0 + $0xc8] sm:$0xff]
  %v57 = vld [vmem:[%s0 + $0xd0] sm:$0xff]
  %v58 = vld [vmem:[%s0 + $0xd8] sm:$0xff]
  %v59 = vld [vmem:[%s0 + $0xe0] sm:$0xff]
  %v60 = vld [vmem:[%s0 + $0xe8] sm:$0xff]
  %v61 = vld [vmem:[%s0 + $0xf0] sm:$0xff]
  %v62 = vld [vmem:[%s0 + $0xf8] sm:$0xff]
  %v63 = vld [vmem:[%s0 + $0x100] sm:$0xff]
  %v64 = vld [vmem:[%s0 + $0x108] sm:$0xff]
  %v65 = vld [vmem:[%s0 + $0x110] sm:$0xff]
  %v66 = vld [vmem:[%s0 + $0x118] sm:$0xff]
  %v67 = vld [vmem:[%s0 + $0x120] sm:$0xff]
  %v68 = vld [vmem:[%s0 + $0x128] sm:$0xff]
  %v69 = vld [vmem:[%s0 + $0x130] sm:$0xff]
  %v70 = vld [vmem:[%s0 + $0x138] sm:$0xff]
  %v71 = vld [vmem:[%s0 + $0x140] sm:$0xff]
  %v72 = vld [vmem:[%s0 + $0x148] sm:$0xff]
  %v73 = vld [vmem:[%s0 + $0x150] sm:$0xff]
  %v74 = vld [vmem:[%s0 + $0x158] sm:$0xff]
  %v75 = vld [vmem:[%s0 + $0x160] sm:$0xff]
  %v76 = vld [vmem:[%s0 + $0x168] sm:$0xff]
  %v77 = vld [vmem:[%s0 + $0x170] sm:$0xff]
  %v78 = vld [vmem:[%s0 + $0x178] sm:$0xff]
  %v79 = vld [vmem:[%s0 + $0x180] sm:$0xff]
  %v80 = vld [vmem:[%s0 + $0x188] sm:$0xff]
  %v81 = vld [vmem:[%s0 + $0x190] sm:$0xff]
  %v82 = vld [vmem:[%s0 + $0x198] sm:$0xff]
  %v83 = vld [vmem:[%s0 + $0x1a0] sm:$0xff]
  %v84 = vld [vmem:[%s0 + $0x1a8] sm:$0xff]
  %v85 = vld [vmem:[%s0 + $0x1b0] sm:$0xff]
  %v86 = vld [vmem:[%s0 + $0x1b8] sm:$0xff]
  %v87 = vld [vmem:[%s0 + $0x1c0] sm:$0xff]
  %v88 = vld [vmem:[%s0 + $0x1c8] sm:$0xff]
  %v89 = vld [vmem:[%s0 + $0x1d0] sm:$0xff]
  %v90 = vld [vmem:[%s0 + $0x1d8] sm:$0xff]
  %v91 = vld [vmem:[%s0 + $0x1e0] sm:$0xff]
  %v92 = vld [vmem:[%s0 + $0x1e8] sm:$0xff]
  %v93 = vld [vmem:[%s0 + $0x1f0] sm:$0xff]
  %v94 = vld [vmem:[%s0 + $0x1f8] sm:$0xff]
  %v95 = vld [vmem:[%s0 + $0x200] sm:$0xff]
  %v96 = vld [vmem:[%s0 + $0x208] sm:$0xff]
  %v97 = vld [vmem:[%s0 + $0x210] sm:$0xff]
  %v98 = vld [vmem:[%s0 + $0x218] sm:$0xff]
  %v99 = vld [vmem:[%s0 + $0x220] sm:$0xff]
  %v100 = vld [vmem:[%s0 + $0x228] sm:$0xff]
  %v101 = vld [vmem:[%s0 + $0x230] sm:$0xff]
  %v102 = vld [vmem:[%s0 + $0x238] sm:$0xff]
  %v103 = vld [vmem:[%s2] sm:$0xff]
  %v104 = vld [vmem:[%s2 + $0x8] sm:$0xff]
  %v105 = vld [vmem:[%s2 + $0x10] sm:$0xff]
  %v106 = vld [vmem:[%s2 + $0x18] sm:$0xff]
  %v107 = vld [vmem:[%s2 + $0x20] sm:$0xff]
  %v108 = vld [vmem:[%s2 + $0x28] sm:$0xff]
  %v109 = vld [vmem:[%s2 + $0x30] sm:$0xff]
  %v110 = vld [vmem:[%s2 + $0x38] sm:$0xff]
  %112 = vset.pattern.permute.xlu0 0
  %113 = vperm.xlu0 %112, %v103
  %v114 = vpop.permute.xlu0 %113
  %117 = vset.pattern.permute.xlu0 0
  %118 = vperm.xlu0 %117, %v104
  %v119 = vpop.permute.xlu0 %118
  %122 = vset.pattern.permute.xlu0 0
  %123 = vperm.xlu0 %122, %v105
  %v124 = vpop.permute.xlu0 %123
  %127 = vset.pattern.permute.xlu0 0
  %128 = vperm.xlu0 %127, %v106
  %v129 = vpop.permute.xlu0 %128
  %132 = vset.pattern.permute.xlu0 0
  %133 = vperm.xlu0 %132, %v107
  %v134 = vpop.permute.xlu0 %133
  %137 = vset.pattern.permute.xlu0 0
  %138 = vperm.xlu0 %137, %v108
  %v139 = vpop.permute.xlu0 %138
  %142 = vset.pattern.permute.xlu0 0
  %143 = vperm.xlu0 %142, %v109
  %v144 = vpop.permute.xlu0 %143
  %147 = vset.pattern.permute.xlu0 0
  %148 = vperm.xlu0 %147, %v110
  %v149 = vpop.permute.xlu0 %148
  %v167 = vunpack.c.l.b16 %v15
  %v168 = vunpack.c.h.b16 %v15
  %v169 = vunpack.c.l.b16 %v16
  %v170 = vunpack.c.l.b16 %v17
  %v171 = vunpack.c.h.b16 %v17
  %v172 = vunpack.c.l.b16 %v18
  %v173 = vunpack.c.l.b16 %v19
  %v174 = vunpack.c.h.b16 %v19
  %v175 = vunpack.c.l.b16 %v20
  %v176 = vunpack.c.l.b16 %v21
  %v177 = vunpack.c.h.b16 %v21
  %v178 = vunpack.c.l.b16 %v22
  %v179 = vunpack.c.l.b16 %v23
  %v180 = vunpack.c.h.b16 %v23
  %v181 = vunpack.c.l.b16 %v24
  %v182 = vunpack.c.l.b16 %v25
  %v183 = vunpack.c.h.b16 %v25
  %v184 = vunpack.c.l.b16 %v26
  %v185 = vunpack.c.l.b16 %v27
  %v186 = vunpack.c.h.b16 %v27
  %v187 = vunpack.c.l.b16 %v28
  %v188 = vunpack.c.l.b16 %v29
  %v189 = vunpack.c.h.b16 %v29
  %v190 = vunpack.c.l.b16 %v30
  %v191 = vpack.c.b16 %v170, %v167
  %v192 = vpack.c.b16 %v171, %v168
  %v193 = vpack.c.b16 %v172, %v169
  %v194 = vpack.c.b16 %v176, %v173
  %v195 = vpack.c.b16 %v177, %v174
  %v196 = vpack.c.b16 %v178, %v175
  %v197 = vpack.c.b16 %v182, %v179
  %v198 = vpack.c.b16 %v183, %v180
  %v199 = vpack.c.b16 %v184, %v181
  %v200 = vpack.c.b16 %v188, %v185
  %v201 = vpack.c.b16 %v189, %v186
  %v202 = vpack.c.b16 %v190, %v187
  %v283 = vunpack.c.l.b16 %v31
  %v284 = vunpack.c.h.b16 %v31
  %v285 = vunpack.c.l.b16 %v32
  %v286 = vunpack.c.h.b16 %v32
  %v287 = vunpack.c.l.b16 %v33
  %v288 = vunpack.c.h.b16 %v33
  %v289 = vunpack.c.l.b16 %v34
  %v290 = vunpack.c.h.b16 %v34
  %v291 = vunpack.c.l.b16 %v35
  %v292 = vunpack.c.h.b16 %v35
  %v293 = vunpack.c.l.b16 %v36
  %v294 = vunpack.c.h.b16 %v36
  %v295 = vunpack.c.l.b16 %v37
  %v296 = vunpack.c.h.b16 %v37
  %v297 = vunpack.c.l.b16 %v38
  %v298 = vunpack.c.h.b16 %v38
  %v299 = vunpack.c.l.b16 %v39
  %v300 = vunpack.c.h.b16 %v39
  %v301 = vunpack.c.l.b16 %v40
  %v302 = vunpack.c.h.b16 %v40
  %v303 = vunpack.c.l.b16 %v41
  %v304 = vunpack.c.h.b16 %v41
  %v305 = vunpack.c.l.b16 %v42
  %v306 = vunpack.c.h.b16 %v42
  %v307 = vunpack.c.l.b16 %v43
  %v308 = vunpack.c.h.b16 %v43
  %v309 = vunpack.c.l.b16 %v44
  %v310 = vunpack.c.h.b16 %v44
  %v311 = vunpack.c.l.b16 %v45
  %v312 = vunpack.c.h.b16 %v45
  %v313 = vunpack.c.l.b16 %v46
  %v314 = vunpack.c.h.b16 %v46
  %v315 = vunpack.c.l.b16 %v47
  %v316 = vunpack.c.h.b16 %v47
  %v317 = vunpack.c.l.b16 %v48
  %v318 = vunpack.c.h.b16 %v48
  %v319 = vunpack.c.l.b16 %v49
  %v320 = vunpack.c.h.b16 %v49
  %v321 = vunpack.c.l.b16 %v50
  %v322 = vunpack.c.h.b16 %v50
  %v323 = vunpack.c.l.b16 %v51
  %v324 = vunpack.c.h.b16 %v51
  %v325 = vunpack.c.l.b16 %v52
  %v326 = vunpack.c.h.b16 %v52
  %v327 = vunpack.c.l.b16 %v53
  %v328 = vunpack.c.h.b16 %v53
  %v329 = vunpack.c.l.b16 %v54
  %v330 = vunpack.c.h.b16 %v54
  %v331 = vunpack.c.l.b16 %v55
  %v332 = vunpack.c.h.b16 %v55
  %v333 = vunpack.c.l.b16 %v56
  %v334 = vunpack.c.h.b16 %v56
  %v335 = vunpack.c.l.b16 %v57
  %v336 = vunpack.c.h.b16 %v57
  %v337 = vunpack.c.l.b16 %v58
  %v338 = vunpack.c.h.b16 %v58
  %v339 = vunpack.c.l.b16 %v59
  %v340 = vunpack.c.h.b16 %v59
  %v341 = vunpack.c.l.b16 %v60
  %v342 = vunpack.c.h.b16 %v60
  %v343 = vunpack.c.l.b16 %v61
  %v344 = vunpack.c.h.b16 %v61
  %v345 = vunpack.c.l.b16 %v62
  %v346 = vunpack.c.h.b16 %v62
  %v347 = vunpack.c.l.b16 %v63
  %v348 = vunpack.c.h.b16 %v63
  %v349 = vunpack.c.l.b16 %v64
  %v350 = vunpack.c.h.b16 %v64
  %v351 = vunpack.c.l.b16 %v65
  %v352 = vunpack.c.h.b16 %v65
  %v353 = vunpack.c.l.b16 %v66
  %v354 = vunpack.c.h.b16 %v66
  %v355 = vunpack.c.l.b16 %v67
  %v356 = vunpack.c.h.b16 %v67
  %v357 = vunpack.c.l.b16 %v68
  %v358 = vunpack.c.h.b16 %v68
  %v359 = vunpack.c.l.b16 %v69
  %v360 = vunpack.c.h.b16 %v69
  %v361 = vunpack.c.l.b16 %v70
  %v362 = vunpack.c.h.b16 %v70
  %v363 = vunpack.c.l.b16 %v71
  %v364 = vunpack.c.h.b16 %v71
  %v365 = vunpack.c.l.b16 %v72
  %v366 = vunpack.c.h.b16 %v72
  %v367 = vunpack.c.l.b16 %v73
  %v368 = vunpack.c.h.b16 %v73
  %v369 = vunpack.c.l.b16 %v74
  %v370 = vunpack.c.h.b16 %v74
  %v371 = vunpack.c.l.b16 %v75
  %v372 = vunpack.c.h.b16 %v75
  %v373 = vunpack.c.l.b16 %v76
  %v374 = vunpack.c.h.b16 %v76
  %v375 = vunpack.c.l.b16 %v77
  %v376 = vunpack.c.h.b16 %v77
  %v377 = vunpack.c.l.b16 %v78
  %v378 = vunpack.c.h.b16 %v78
  %v379 = vunpack.c.l.b16 %v79
  %v380 = vunpack.c.h.b16 %v79
  %v381 = vunpack.c.l.b16 %v80
  %v382 = vunpack.c.h.b16 %v80
  %v383 = vunpack.c.l.b16 %v81
  %v384 = vunpack.c.h.b16 %v81
  %v385 = vunpack.c.l.b16 %v82
  %v386 = vunpack.c.h.b16 %v82
  %v387 = vunpack.c.l.b16 %v83
  %v388 = vunpack.c.h.b16 %v83
  %v389 = vunpack.c.l.b16 %v84
  %v390 = vunpack.c.h.b16 %v84
  %v391 = vunpack.c.l.b16 %v85
  %v392 = vunpack.c.h.b16 %v85
  %v393 = vunpack.c.l.b16 %v86
  %v394 = vunpack.c.h.b16 %v86
  %v395 = vunpack.c.l.b16 %v87
  %v396 = vunpack.c.h.b16 %v87
  %v397 = vunpack.c.l.b16 %v88
  %v398 = vunpack.c.h.b16 %v88
  %v399 = vunpack.c.l.b16 %v89
  %v400 = vunpack.c.h.b16 %v89
  %v401 = vunpack.c.l.b16 %v90
  %v402 = vunpack.c.h.b16 %v90
  %v403 = vunpack.c.l.b16 %v91
  %v404 = vunpack.c.h.b16 %v91
  %v405 = vunpack.c.l.b16 %v92
  %v406 = vunpack.c.h.b16 %v92
  %v407 = vunpack.c.l.b16 %v93
  %v408 = vunpack.c.h.b16 %v93
  %v409 = vunpack.c.l.b16 %v94
  %v410 = vunpack.c.h.b16 %v94
  %v411 = vunpack.c.l.b16 %v95
  %v412 = vunpack.c.h.b16 %v95
  %v413 = vunpack.c.l.b16 %v96
  %v414 = vunpack.c.h.b16 %v96
  %v415 = vunpack.c.l.b16 %v97
  %v416 = vunpack.c.h.b16 %v97
  %v417 = vunpack.c.l.b16 %v98
  %v418 = vunpack.c.h.b16 %v98
  %v419 = vunpack.c.l.b16 %v99
  %v420 = vunpack.c.h.b16 %v99
  %v421 = vunpack.c.l.b16 %v100
  %v422 = vunpack.c.h.b16 %v100
  %v423 = vunpack.c.l.b16 %v101
  %v424 = vunpack.c.h.b16 %v101
  %v425 = vunpack.c.l.b16 %v102
  %v426 = vunpack.c.h.b16 %v102
  %v427 = vpack.c.b16 %v287, %v283
  %v428 = vpack.c.b16 %v288, %v284
  %v429 = vpack.c.b16 %v289, %v285
  %v430 = vpack.c.b16 %v290, %v286
  %v431 = vpack.c.b16 %v295, %v291
  %v432 = vpack.c.b16 %v296, %v292
  %v433 = vpack.c.b16 %v297, %v293
  %v434 = vpack.c.b16 %v298, %v294
  %v435 = vpack.c.b16 %v303, %v299
  %v436 = vpack.c.b16 %v304, %v300
  %v437 = vpack.c.b16 %v305, %v301
  %v438 = vpack.c.b16 %v306, %v302
  %v439 = vpack.c.b16 %v311, %v307
  %v440 = vpack.c.b16 %v312, %v308
  %v441 = vpack.c.b16 %v313, %v309
  %v442 = vpack.c.b16 %v314, %v310
  %v443 = vpack.c.b16 %v319, %v315
  %v444 = vpack.c.b16 %v320, %v316
  %v445 = vpack.c.b16 %v321, %v317
  %v446 = vpack.c.b16 %v322, %v318
  %v447 = vpack.c.b16 %v327, %v323
  %v448 = vpack.c.b16 %v328, %v324
  %v449 = vpack.c.b16 %v329, %v325
  %v450 = vpack.c.b16 %v330, %v326
  %v451 = vpack.c.b16 %v335, %v331
  %v452 = vpack.c.b16 %v336, %v332
  %v453 = vpack.c.b16 %v337, %v333
  %v454 = vpack.c.b16 %v338, %v334
  %v455 = vpack.c.b16 %v343, %v339
  %v456 = vpack.c.b16 %v344, %v340
  %v457 = vpack.c.b16 %v345, %v341
  %v458 = vpack.c.b16 %v346, %v342
  %v459 = vpack.c.b16 %v351, %v347
  %v460 = vpack.c.b16 %v352, %v348
  %v461 = vpack.c.b16 %v353, %v349
  %v462 = vpack.c.b16 %v354, %v350
  %v463 = vpack.c.b16 %v359, %v355
  %v464 = vpack.c.b16 %v360, %v356
  %v465 = vpack.c.b16 %v361, %v357
  %v466 = vpack.c.b16 %v362, %v358
  %v467 = vpack.c.b16 %v367, %v363
  %v468 = vpack.c.b16 %v368, %v364
  %v469 = vpack.c.b16 %v369, %v365
  %v470 = vpack.c.b16 %v370, %v366
  %v471 = vpack.c.b16 %v375, %v371
  %v472 = vpack.c.b16 %v376, %v372
  %v473 = vpack.c.b16 %v377, %v373
  %v474 = vpack.c.b16 %v378, %v374
  %v475 = vpack.c.b16 %v383, %v379
  %v476 = vpack.c.b16 %v384, %v380
  %v477 = vpack.c.b16 %v385, %v381
  %v478 = vpack.c.b16 %v386, %v382
  %v479 = vpack.c.b16 %v391, %v387
  %v480 = vpack.c.b16 %v392, %v388
  %v481 = vpack.c.b16 %v393, %v389
  %v482 = vpack.c.b16 %v394, %v390
  %v483 = vpack.c.b16 %v399, %v395
  %v484 = vpack.c.b16 %v400, %v396
  %v485 = vpack.c.b16 %v401, %v397
  %v486 = vpack.c.b16 %v402, %v398
  %v487 = vpack.c.b16 %v407, %v403
  %v488 = vpack.c.b16 %v408, %v404
  %v489 = vpack.c.b16 %v409, %v405
  %v490 = vpack.c.b16 %v410, %v406
  %v491 = vpack.c.b16 %v415, %v411
  %v492 = vpack.c.b16 %v416, %v412
  %v493 = vpack.c.b16 %v417, %v413
  %v494 = vpack.c.b16 %v418, %v414
  %v495 = vpack.c.b16 %v423, %v419
  %v496 = vpack.c.b16 %v424, %v420
  %v497 = vpack.c.b16 %v425, %v421
  %v498 = vpack.c.b16 %v426, %v422
  %vm571 = vcmask 261120
  %v573 = vsel %vm571, %v193, 0
  %v576 = vsel %vm571, %v196, 0
  %v579 = vsel %vm571, %v199, 0
  %v582 = vsel %vm571, %v202, 0
  %584 = vmatprep.subr.bf16.mxu0 %v428
  %585 = vmatpush1.bf16.msra.mxu0 %v427
  %586 = vmatprep.subr.bf16.mxu0 %v432
  %587 = vmatpush1.bf16.msra.mxu0 %v431
  %588 = vmatprep.subr.bf16.mxu0 %v436
  %589 = vmatpush1.bf16.msra.mxu0 %v435
  %590 = vmatprep.subr.bf16.mxu0 %v440
  %591 = vmatpush1.bf16.msra.mxu0 %v439
  %592 = vmatprep.subr.bf16.mxu0 %v444
  %593 = vmatpush1.bf16.msra.mxu0 %v443
  %594 = vmatprep.subr.bf16.mxu0 %v448
  %595 = vmatpush1.bf16.msra.mxu0 %v447
  %596 = vmatprep.subr.bf16.mxu0 %v452
  %597 = vmatpush1.bf16.msra.mxu0 %v451
  %598 = vmatprep.subr.bf16.mxu0 %v456
  %599 = vmatpush1.bf16.msra.mxu0 %v455
  %600 = vmatprep.subr.bf16.mxu0 %v460
  %601 = vmatpush1.bf16.msra.mxu0 %v459
  %602 = vmatprep.subr.bf16.mxu0 %v464
  %603 = vmatpush1.bf16.msra.mxu0 %v463
  %604 = vmatprep.subr.bf16.mxu0 %v468
  %605 = vmatpush1.bf16.msra.mxu0 %v467
  %606 = vmatprep.subr.bf16.mxu0 %v472
  %607 = vmatpush1.bf16.msra.mxu0 %v471
  %608 = vmatprep.subr.bf16.mxu0 %v476
  %609 = vmatpush1.bf16.msra.mxu0 %v475
  %610 = vmatprep.subr.bf16.mxu0 %v480
  %611 = vmatpush1.bf16.msra.mxu0 %v479
  %612 = vmatprep.subr.bf16.mxu0 %v484
  %613 = vmatpush1.bf16.msra.mxu0 %v483
  %614 = vmatprep.subr.bf16.mxu0 %v488
  %615 = vmatpush1.bf16.msra.mxu0 %v487
  %616 = vmatprep.mubr.bf16.mxu0 %v192
  %617 = vmatmul.mubr.bf16.gmra.mrb[0].mxu0 %v191
  %v618 = vpop.f32.mrb[0].mxu0
  %v619 = vadd.f32 %v114, %v618
  %v620 = vpop.f32.mrb[0].mxu0
  %v621 = vadd.f32 %v114, %v620
  %v622 = vpop.f32.mrb[0].mxu0
  %v623 = vadd.f32 %v119, %v622
  %v624 = vpop.f32.mrb[0].mxu0
  %v625 = vadd.f32 %v119, %v624
  %626 = vmatprep.mubr.bf16.mxu0 %v195
  %627 = vmatmul.mubr.bf16.gmra.mrb[0].mxu0 %v194
  %v628 = vpop.f32.mrb[0].mxu0
  %v629 = vadd.f32 %v124, %v628
  %v630 = vpop.f32.mrb[0].mxu0
  %v631 = vadd.f32 %v124, %v630
  %v632 = vpop.f32.mrb[0].mxu0
  %v633 = vadd.f32 %v129, %v632
  %v634 = vpop.f32.mrb[0].mxu0
  %v635 = vadd.f32 %v129, %v634
  %636 = vmatprep.mubr.bf16.mxu0 %v198
  %637 = vmatmul.mubr.bf16.gmra.mrb[0].mxu0 %v197
  %v638 = vpop.f32.mrb[0].mxu0
  %v639 = vadd.f32 %v134, %v638
  %v640 = vpop.f32.mrb[0].mxu0
  %v641 = vadd.f32 %v134, %v640
  %v642 = vpop.f32.mrb[0].mxu0
  %v643 = vadd.f32 %v139, %v642
  %v644 = vpop.f32.mrb[0].mxu0
  %v645 = vadd.f32 %v139, %v644
  %646 = vmatprep.mubr.bf16.mxu0 %v201
  %647 = vmatmul.mubr.bf16.gmra.mrb[0].mxu0 %v200
  %v648 = vpop.f32.mrb[0].mxu0
  %v649 = vadd.f32 %v144, %v648
  %v650 = vpop.f32.mrb[0].mxu0
  %v651 = vadd.f32 %v144, %v650
  %v652 = vpop.f32.mrb[0].mxu0
  %v653 = vadd.f32 %v149, %v652
  %v654 = vpop.f32.mrb[0].mxu0
  %v655 = vadd.f32 %v149, %v654
  %656 = vdwg.mxu0
  %657 = vmatprep.subr.bf16.mxu0 %v492
  %658 = vmatpush1.bf16.msra.mxu0 %v491
  %659 = vmatprep.subr.bf16.mxu0 %v496
  %660 = vmatpush1.bf16.msra.mxu0 %v495
  %661 = vmatprep.subr.bf16.mxu0 0
  %662 = vmatpush1.bf16.msra.mxu0 0
  %663 = vmatprep.subr.bf16.mxu0 0
  %664 = vmatpush1.bf16.msra.mxu0 0
  %665 = vmatprep.subr.bf16.mxu0 0
  %666 = vmatpush1.bf16.msra.mxu0 0
  %667 = vmatprep.subr.bf16.mxu0 0
  %668 = vmatpush1.bf16.msra.mxu0 0
  %669 = vmatprep.subr.bf16.mxu0 0
  %670 = vmatpush1.bf16.msra.mxu0 0
  %671 = vmatprep.subr.bf16.mxu0 0
  %672 = vmatpush1.bf16.msra.mxu0 0
  %673 = vmatprep.subr.bf16.mxu0 0
  %674 = vmatpush1.bf16.msra.mxu0 0
  %675 = vmatprep.subr.bf16.mxu0 0
  %676 = vmatpush1.bf16.msra.mxu0 0
  %677 = vmatprep.subr.bf16.mxu0 0
  %678 = vmatpush1.bf16.msra.mxu0 0
  %679 = vmatprep.subr.bf16.mxu0 0
  %680 = vmatpush1.bf16.msra.mxu0 0
  %681 = vmatprep.subr.bf16.mxu0 0
  %682 = vmatpush1.bf16.msra.mxu0 0
  %683 = vmatprep.subr.bf16.mxu0 0
  %684 = vmatpush1.bf16.msra.mxu0 0
  %685 = vmatprep.subr.bf16.mxu0 0
  %686 = vmatpush1.bf16.msra.mxu0 0
  %687 = vmatprep.subr.bf16.mxu0 0
  %688 = vmatpush1.bf16.msra.mxu0 0
  %689 = vmatprep.mubr.bf16.mxu0 0
  %690 = vmatmul.mubr.bf16.gmra.mrb[0].mxu0 %v573
  %v691 = vpop.f32.mrb[0].mxu0
  %v692 = vadd.f32 %v619, %v691
  %v693 = vpop.f32.mrb[0].mxu0
  %v694 = vadd.f32 %v621, %v693
  %v695 = vpop.f32.mrb[0].mxu0
  %v696 = vadd.f32 %v623, %v695
  %v697 = vpop.f32.mrb[0].mxu0
  %v698 = vadd.f32 %v625, %v697
  %699 = vmatprep.mubr.bf16.mxu0 0
  %700 = vmatmul.mubr.bf16.gmra.mrb[0].mxu0 %v576
  %v701 = vpop.f32.mrb[0].mxu0
  %v702 = vadd.f32 %v629, %v701
  %v703 = vpop.f32.mrb[0].mxu0
  %v704 = vadd.f32 %v631, %v703
  %v705 = vpop.f32.mrb[0].mxu0
  %v706 = vadd.f32 %v633, %v705
  %v707 = vpop.f32.mrb[0].mxu0
  %v708 = vadd.f32 %v635, %v707
  %709 = vmatprep.mubr.bf16.mxu0 0
  %710 = vmatmul.mubr.bf16.gmra.mrb[0].mxu0 %v579
  %v711 = vpop.f32.mrb[0].mxu0
  %v712 = vadd.f32 %v639, %v711
  %v713 = vpop.f32.mrb[0].mxu0
  %v714 = vadd.f32 %v641, %v713
  %v715 = vpop.f32.mrb[0].mxu0
  %v716 = vadd.f32 %v643, %v715
  %v717 = vpop.f32.mrb[0].mxu0
  %v718 = vadd.f32 %v645, %v717
  %719 = vmatprep.mubr.bf16.mxu0 0
  %720 = vmatmul.mubr.bf16.gmra.mrb[0].mxu0 %v582
  %v721 = vpop.f32.mrb[0].mxu0
  %v722 = vadd.f32 %v649, %v721
  %v723 = vpop.f32.mrb[0].mxu0
  %v724 = vadd.f32 %v651, %v723
  %v725 = vpop.f32.mrb[0].mxu0
  %v726 = vadd.f32 %v653, %v725
  %v727 = vpop.f32.mrb[0].mxu0
  %v728 = vadd.f32 %v655, %v727
  %729 = vdwg.mxu0
  %730 = vmatprep.subr.bf16.mxu0 %v430
  %731 = vmatpush1.bf16.msra.mxu0 %v429
  %732 = vmatprep.subr.bf16.mxu0 %v434
  %733 = vmatpush1.bf16.msra.mxu0 %v433
  %734 = vmatprep.subr.bf16.mxu0 %v438
  %735 = vmatpush1.bf16.msra.mxu0 %v437
  %736 = vmatprep.subr.bf16.mxu0 %v442
  %737 = vmatpush1.bf16.msra.mxu0 %v441
  %738 = vmatprep.subr.bf16.mxu0 %v446
  %739 = vmatpush1.bf16.msra.mxu0 %v445
  %740 = vmatprep.subr.bf16.mxu0 %v450
  %741 = vmatpush1.bf16.msra.mxu0 %v449
  %742 = vmatprep.subr.bf16.mxu0 %v454
  %743 = vmatpush1.bf16.msra.mxu0 %v453
  %744 = vmatprep.subr.bf16.mxu0 %v458
  %745 = vmatpush1.bf16.msra.mxu0 %v457
  %746 = vmatprep.subr.bf16.mxu0 %v462
  %747 = vmatpush1.bf16.msra.mxu0 %v461
  %748 = vmatprep.subr.bf16.mxu0 %v466
  %749 = vmatpush1.bf16.msra.mxu0 %v465
  %750 = vmatprep.subr.bf16.mxu0 %v470
  %751 = vmatpush1.bf16.msra.mxu0 %v469
  %752 = vmatprep.subr.bf16.mxu0 %v474
  %753 = vmatpush1.bf16.msra.mxu0 %v473
  %754 = vmatprep.subr.bf16.mxu0 %v478
  %755 = vmatpush1.bf16.msra.mxu0 %v477
  %756 = vmatprep.subr.bf16.mxu0 %v482
  %757 = vmatpush1.bf16.msra.mxu0 %v481
  %758 = vmatprep.subr.bf16.mxu0 %v486
  %759 = vmatpush1.bf16.msra.mxu0 %v485
  %760 = vmatprep.subr.bf16.mxu0 %v490
  %761 = vmatpush1.bf16.msra.mxu0 %v489
  %762 = vmatprep.mubr.bf16.mxu0 %v192
  %763 = vmatmul.mubr.bf16.gmra.mrb[0].mxu0 %v191
  %v764 = vpop.f32.mrb[0].mxu0
  %v765 = vadd.f32 %v114, %v764
  %v766 = vpop.f32.mrb[0].mxu0
  %v767 = vadd.f32 %v114, %v766
  %v768 = vpop.f32.mrb[0].mxu0
  %v769 = vadd.f32 %v119, %v768
  %v770 = vpop.f32.mrb[0].mxu0
  %v771 = vadd.f32 %v119, %v770
  %772 = vmatprep.mubr.bf16.mxu0 %v195
  %773 = vmatmul.mubr.bf16.gmra.mrb[0].mxu0 %v194
  %v774 = vpop.f32.mrb[0].mxu0
  %v775 = vadd.f32 %v124, %v774
  %v776 = vpop.f32.mrb[0].mxu0
  %v777 = vadd.f32 %v124, %v776
  %v778 = vpop.f32.mrb[0].mxu0
  %v779 = vadd.f32 %v129, %v778
  %v780 = vpop.f32.mrb[0].mxu0
  %v781 = vadd.f32 %v129, %v780
  %782 = vmatprep.mubr.bf16.mxu0 %v198
  %783 = vmatmul.mubr.bf16.gmra.mrb[0].mxu0 %v197
  %v784 = vpop.f32.mrb[0].mxu0
  %v785 = vadd.f32 %v134, %v784
  %v786 = vpop.f32.mrb[0].mxu0
  %v787 = vadd.f32 %v134, %v786
  %v788 = vpop.f32.mrb[0].mxu0
  %v789 = vadd.f32 %v139, %v788
  %v790 = vpop.f32.mrb[0].mxu0
  %v791 = vadd.f32 %v139, %v790
  %792 = vmatprep.mubr.bf16.mxu0 %v201
  %793 = vmatmul.mubr.bf16.gmra.mrb[0].mxu0 %v200
  %v794 = vpop.f32.mrb[0].mxu0
  %v795 = vadd.f32 %v144, %v794
  %v796 = vpop.f32.mrb[0].mxu0
  %v797 = vadd.f32 %v144, %v796
  %v798 = vpop.f32.mrb[0].mxu0
  %v799 = vadd.f32 %v149, %v798
  %v800 = vpop.f32.mrb[0].mxu0
  %v801 = vadd.f32 %v149, %v800
  %802 = vdwg.mxu0
  %803 = vmatprep.subr.bf16.mxu0 %v494
  %804 = vmatpush1.bf16.msra.mxu0 %v493
  %805 = vmatprep.subr.bf16.mxu0 %v498
  %806 = vmatpush1.bf16.msra.mxu0 %v497
  %807 = vmatprep.subr.bf16.mxu0 0
  %808 = vmatpush1.bf16.msra.mxu0 0
  %809 = vmatprep.subr.bf16.mxu0 0
  %810 = vmatpush1.bf16.msra.mxu0 0
  %811 = vmatprep.subr.bf16.mxu0 0
  %812 = vmatpush1.bf16.msra.mxu0 0
  %813 = vmatprep.subr.bf16.mxu0 0
  %814 = vmatpush1.bf16.msra.mxu0 0
  %815 = vmatprep.subr.bf16.mxu0 0
  %816 = vmatpush1.bf16.msra.mxu0 0
  %817 = vmatprep.subr.bf16.mxu0 0
  %818 = vmatpush1.bf16.msra.mxu0 0
  %819 = vmatprep.subr.bf16.mxu0 0
  %820 = vmatpush1.bf16.msra.mxu0 0
  %821 = vmatprep.subr.bf16.mxu0 0
  %822 = vmatpush1.bf16.msra.mxu0 0
  %823 = vmatprep.subr.bf16.mxu0 0
  %824 = vmatpush1.bf16.msra.mxu0 0
  %825 = vmatprep.subr.bf16.mxu0 0
  %826 = vmatpush1.bf16.msra.mxu0 0
  %827 = vmatprep.subr.bf16.mxu0 0
  %828 = vmatpush1.bf16.msra.mxu0 0
  %829 = vmatprep.subr.bf16.mxu0 0
  %830 = vmatpush1.bf16.msra.mxu0 0
  %831 = vmatprep.subr.bf16.mxu0 0
  %832 = vmatpush1.bf16.msra.mxu0 0
  %833 = vmatprep.subr.bf16.mxu0 0
  %834 = vmatpush1.bf16.msra.mxu0 0
  %835 = vmatprep.mubr.bf16.mxu0 0
  %836 = vmatmul.mubr.bf16.gmra.mrb[0].mxu0 %v573
  %v837 = vpop.f32.mrb[0].mxu0
  %v838 = vadd.f32 %v765, %v837
  %v839 = vpop.f32.mrb[0].mxu0
  %v840 = vadd.f32 %v767, %v839
  %v841 = vpop.f32.mrb[0].mxu0
  %v842 = vadd.f32 %v769, %v841
  %v843 = vpop.f32.mrb[0].mxu0
  %v844 = vadd.f32 %v771, %v843
  %845 = vmatprep.mubr.bf16.mxu0 0
  %846 = vmatmul.mubr.bf16.gmra.mrb[0].mxu0 %v576
  %v847 = vpop.f32.mrb[0].mxu0
  %v848 = vadd.f32 %v775, %v847
  %v849 = vpop.f32.mrb[0].mxu0
  %v850 = vadd.f32 %v777, %v849
  %v851 = vpop.f32.mrb[0].mxu0
  %v852 = vadd.f32 %v779, %v851
  %v853 = vpop.f32.mrb[0].mxu0
  %v854 = vadd.f32 %v781, %v853
  %855 = vmatprep.mubr.bf16.mxu0 0
  %856 = vmatmul.mubr.bf16.gmra.mrb[0].mxu0 %v579
  %v857 = vpop.f32.mrb[0].mxu0
  %v858 = vadd.f32 %v785, %v857
  %v859 = vpop.f32.mrb[0].mxu0
  %v860 = vadd.f32 %v787, %v859
  %v861 = vpop.f32.mrb[0].mxu0
  %v862 = vadd.f32 %v789, %v861
  %v863 = vpop.f32.mrb[0].mxu0
  %v864 = vadd.f32 %v791, %v863
  %865 = vmatprep.mubr.bf16.mxu0 0
  %866 = vmatmul.mubr.bf16.gmra.mrb[0].mxu0 %v582
  %v867 = vpop.f32.mrb[0].mxu0
  %v868 = vadd.f32 %v795, %v867
  %v869 = vpop.f32.mrb[0].mxu0
  %v870 = vadd.f32 %v797, %v869
  %v871 = vpop.f32.mrb[0].mxu0
  %v872 = vadd.f32 %v799, %v871
  %v873 = vpop.f32.mrb[0].mxu0
  %v874 = vadd.f32 %v801, %v873
  %875 = vdwg.mxu0
  %v876 = vmax.f32 %v692, 0.0
  %v877 = vmax.f32 %v694, 0.0
  %v878 = vmax.f32 %v838, 0.0
  %v879 = vmax.f32 %v840, 0.0
  %v880 = vmax.f32 %v696, 0.0
  %v881 = vmax.f32 %v698, 0.0
  %v882 = vmax.f32 %v842, 0.0
  %v883 = vmax.f32 %v844, 0.0
  %v884 = vmax.f32 %v702, 0.0
  %v885 = vmax.f32 %v704, 0.0
  %v886 = vmax.f32 %v848, 0.0
  %v887 = vmax.f32 %v850, 0.0
  %v888 = vmax.f32 %v706, 0.0
  %v889 = vmax.f32 %v708, 0.0
  %v890 = vmax.f32 %v852, 0.0
  %v891 = vmax.f32 %v854, 0.0
  %v892 = vmax.f32 %v712, 0.0
  %v893 = vmax.f32 %v714, 0.0
  %v894 = vmax.f32 %v858, 0.0
  %v895 = vmax.f32 %v860, 0.0
  %v896 = vmax.f32 %v716, 0.0
  %v897 = vmax.f32 %v718, 0.0
  %v898 = vmax.f32 %v862, 0.0
  %v899 = vmax.f32 %v864, 0.0
  %v900 = vmax.f32 %v722, 0.0
  %v901 = vmax.f32 %v724, 0.0
  %v902 = vmax.f32 %v868, 0.0
  %v903 = vmax.f32 %v870, 0.0
  %v904 = vmax.f32 %v726, 0.0
  %v905 = vmax.f32 %v728, 0.0
  %v906 = vmax.f32 %v872, 0.0
  %v907 = vmax.f32 %v874, 0.0
  %v908 = vmax.f32 %v876, %v877
  %v909 = vmax.f32 %v880, %v881
  %v910 = vmax.f32 %v884, %v885
  %v911 = vmax.f32 %v888, %v889
  %v912 = vmax.f32 %v892, %v893
  %v913 = vmax.f32 %v896, %v897
  %v914 = vmax.f32 %v900, %v901
  %v915 = vmax.f32 %v904, %v905
  %v916 = vmax.f32 %v878, %v879
  %v917 = vmax.f32 %v882, %v883
  %v918 = vmax.f32 %v886, %v887
  %v919 = vmax.f32 %v890, %v891
  %v920 = vmax.f32 %v894, %v895
  %v921 = vmax.f32 %v898, %v899
  %v922 = vmax.f32 %v902, %v903
  %v923 = vmax.f32 %v906, %v907
  %v924 = vmax.f32 %v908, %v916
  %v925 = vmax.f32 %v909, %v917
  %v926 = vmax.f32 %v910, %v918
  %v927 = vmax.f32 %v911, %v919
  %v928 = vmax.f32 %v912, %v920
  %v929 = vmax.f32 %v913, %v921
  %v930 = vmax.f32 %v914, %v922
  %v931 = vmax.f32 %v915, %v923
  %v932 = vpack.c.bf16 %v925, %v924
  %v933 = vpack.c.bf16 %v927, %v926
  %v934 = vpack.c.bf16 %v929, %v928
  %v935 = vpack.c.bf16 %v931, %v930
  %v940 = vunpack.c.l.b16 %v932
  %v941 = vunpack.c.h.b16 %v932
  %v942 = vunpack.c.l.b16 %v933
  %v943 = vunpack.c.h.b16 %v933
  %v944 = vunpack.c.l.b16 %v934
  %v945 = vunpack.c.h.b16 %v934
  %v946 = vunpack.c.l.b16 %v935
  %v947 = vunpack.c.h.b16 %v935
  %v948 = vpack.c.b16 %v940, %v940
  %v949 = vpack.c.b16 %v941, %v941
  %v950 = vpack.c.b16 %v942, %v942
  %v951 = vpack.c.b16 %v943, %v943
  %v952 = vpack.c.b16 %v944, %v944
  %v953 = vpack.c.b16 %v945, %v945
  %v954 = vpack.c.b16 %v946, %v946
  %v955 = vpack.c.b16 %v947, %v947
  %964 = vst [vmem:[%s3] sm:$0xf] %v948
  %965 = vst [vmem:[%s3 + $0x4] sm:$0xf] %v949
  %966 = vst [vmem:[%s3 + $0x8] sm:$0xf] %v950
  %967 = vst [vmem:[%s3 + $0xc] sm:$0xf] %v951
  %968 = vst [vmem:[%s3 + $0x10] sm:$0xf] %v952
  %969 = vst [vmem:[%s3 + $0x14] sm:$0xf] %v953
  %970 = vst [vmem:[%s3 + $0x18] sm:$0xf] %v954
  %971 = vst [vmem:[%s3 + $0x1c] sm:$0xf] %v955
  // Predicated region
  $region14: #{multi_class_cnn_forward.6} parent=0 // pred_check
    _
  $region15: #{multi_class_cnn_forward.6} parent=0 // pred_check_branch
    %973 = sbr.rel (0) target = $region17
  $region16: #{multi_class_cnn_forward.6} parent=0 // pred_region
    _
  $region17: #{multi_class_cnn_forward.6} parent=0 // pred_fallthru
    _
  // Predicated region
  $region18: #{multi_class_cnn_forward.6} parent=0 // pred_check
    _
  $region19: #{multi_class_cnn_forward.6} parent=0 // pred_check_branch
    %975 = sbr.rel (0) target = $region21
  $region20: #{multi_class_cnn_forward.6} parent=0 // pred_region
    _
  $region21: #{multi_class_cnn_forward.6} parent=0 // pred_fallthru
    _

// kernel: multi_class_cnn_forward.7
$region0: #{multi_class_cnn_forward.7}
  #allocation0 [shape = 'u32[]', space=smem, size = 0x4, offset = 0x4, fixed_abs, tag = 'smem constant byte address 0x4 - core index']
  #allocation1 [shape = 'u32[144,128]{1,0:T(1,128)}', space=vmem, size = 0x12000, scoped, tag = 'internal scratch']
  %s0 = inlined_call_operand.vmem [shape: bf16[16,4096], index: 0, kind: input, shape index: {}]
  %s1 = inlined_call_operand.vmem [shape: bf16[4096,128], index: 1, kind: input, shape index: {}]
  %s2 = inlined_call_operand.vmem [shape: f32[1,128], index: 2, kind: input, shape index: {}]
  %s3 = inlined_call_operand.vmem [shape: bf16[128,10], index: 3, kind: input, shape index: {}]
  %s4 = inlined_call_operand.vmem [shape: f32[1,10], index: 4, kind: input, shape index: {}]
  %s5 = inlined_call_operand.vmem [shape: f32[16,10], index: 5, kind: output, shape index: {}]
  %s6 = sld [smem:[#allocation0]]
  $region30: #{multi_class_cnn_forward.7} parent=0
    _
  %s8 = ssub.s32 1, %s6
  %s9 = scalar_select 0, %s8, %s6
  // Predicated region
  $region2: #{multi_class_cnn_forward.7} parent=0 // pred_check
    _
  $region3: #{multi_class_cnn_forward.7} parent=0 // pred_check_branch
    %11 = sbr.rel (0) target = $region5
  $region4: #{multi_class_cnn_forward.7} parent=0 // pred_region
    _
  $region5: #{multi_class_cnn_forward.7} parent=0 // pred_fallthru
    _
  // Predicated region
  $region6: #{multi_class_cnn_forward.7} parent=0 // pred_check
    _
  $region7: #{multi_class_cnn_forward.7} parent=0 // pred_check_branch
    %13 = sbr.rel (0) target = $region9
  $region8: #{multi_class_cnn_forward.7} parent=0 // pred_region
    _
  $region9: #{multi_class_cnn_forward.7} parent=0 // pred_fallthru
    _
  // Predicated region
  $region10: #{multi_class_cnn_forward.7} parent=0 // pred_check
    _
  $region11: #{multi_class_cnn_forward.7} parent=0 // pred_check_branch
    %15 = sbr.rel (0) target = $region13
  $region12: #{multi_class_cnn_forward.7} parent=0 // pred_region
    _
  $region13: #{multi_class_cnn_forward.7} parent=0 // pred_fallthru
    _
  // Predicated region
  $region14: #{multi_class_cnn_forward.7} parent=0 // pred_check
    _
  $region15: #{multi_class_cnn_forward.7} parent=0 // pred_check_branch
    %17 = sbr.rel (0) target = $region17
  $region16: #{multi_class_cnn_forward.7} parent=0 // pred_region
    _
  $region17: #{multi_class_cnn_forward.7} parent=0 // pred_fallthru
    _
  // Predicated region
  $region18: #{multi_class_cnn_forward.7} parent=0 // pred_check
    _
  $region19: #{multi_class_cnn_forward.7} parent=0 // pred_check_branch
    %19 = sbr.rel (0) target = $region21
  $region20: #{multi_class_cnn_forward.7} parent=0 // pred_region
    _
  $region21: #{multi_class_cnn_forward.7} parent=0 // pred_fallthru
    _
  %v21 = vld [vmem:[%s0] sm:$0xff]
  %v22 = vld [vmem:[%s0 + $0x8] sm:$0xff]
  %v23 = vld [vmem:[%s0 + $0x10] sm:$0xff]
  %v24 = vld [vmem:[%s0 + $0x18] sm:$0xff]
  %v25 = vld [vmem:[%s0 + $0x20] sm:$0xff]
  %v26 = vld [vmem:[%s0 + $0x28] sm:$0xff]
  %v27 = vld [vmem:[%s0 + $0x30] sm:$0xff]
  %v28 = vld [vmem:[%s0 + $0x38] sm:$0xff]
  %v29 = vld [vmem:[%s0 + $0x40] sm:$0xff]
  %v30 = vld [vmem:[%s0 + $0x48] sm:$0xff]
  %v31 = vld [vmem:[%s0 + $0x50] sm:$0xff]
  %v32 = vld [vmem:[%s0 + $0x58] sm:$0xff]
  %v33 = vld [vmem:[%s0 + $0x60] sm:$0xff]
  %v34 = vld [vmem:[%s0 + $0x68] sm:$0xff]
  %v35 = vld [vmem:[%s0 + $0x70] sm:$0xff]
  %v36 = vld [vmem:[%s0 + $0x78] sm:$0xff]
  %v37 = vld [vmem:[%s0 + $0x80] sm:$0xff]
  %v38 = vld [vmem:[%s0 + $0x88] sm:$0xff]
  %v39 = vld [vmem:[%s0 + $0x90] sm:$0xff]
  %v40 = vld [vmem:[%s0 + $0x98] sm:$0xff]
  %v41 = vld [vmem:[%s0 + $0xa0] sm:$0xff]
  %v42 = vld [vmem:[%s0 + $0xa8] sm:$0xff]
  %v43 = vld [vmem:[%s0 + $0xb0] sm:$0xff]
  %v44 = vld [vmem:[%s0 + $0xb8] sm:$0xff]
  %v45 = vld [vmem:[%s0 + $0xc0] sm:$0xff]
  %v46 = vld [vmem:[%s0 + $0xc8] sm:$0xff]
  %v47 = vld [vmem:[%s0 + $0xd0] sm:$0xff]
  %v48 = vld [vmem:[%s0 + $0xd8] sm:$0xff]
  %v49 = vld [vmem:[%s0 + $0xe0] sm:$0xff]
  %v50 = vld [vmem:[%s0 + $0xe8] sm:$0xff]
  %v51 = vld [vmem:[%s0 + $0xf0] sm:$0xff]
  %v52 = vld [vmem:[%s0 + $0xf8] sm:$0xff]
  %v53 = vld [vmem:[%s1] sm:$0xf]
  %v54 = vld [vmem:[%s1 + $0x4] sm:$0xf]
  %v55 = vld [vmem:[%s1 + $0x8] sm:$0xf]
  %v56 = vld [vmem:[%s1 + $0xc] sm:$0xf]
  %v57 = vld [vmem:[%s1 + $0x10] sm:$0xf]
  %v58 = vld [vmem:[%s1 + $0x14] sm:$0xf]
  %v59 = vld [vmem:[%s1 + $0x18] sm:$0xf]
  %v60 = vld [vmem:[%s1 + $0x1c] sm:$0xf]
  %v61 = vld [vmem:[%s1 + $0x20] sm:$0xf]
  %v62 = vld [vmem:[%s1 + $0x24] sm:$0xf]
  %v63 = vld [vmem:[%s1 + $0x28] sm:$0xf]
  %v64 = vld [vmem:[%s1 + $0x2c] sm:$0xf]
  %v65 = vld [vmem:[%s1 + $0x30] sm:$0xf]
  %v66 = vld [vmem:[%s1 + $0x34] sm:$0xf]
  %v67 = vld [vmem:[%s1 + $0x38] sm:$0xf]
  %v68 = vld [vmem:[%s1 + $0x3c] sm:$0xf]
  %v69 = vld [vmem:[%s1 + $0x40] sm:$0xf]
  %v70 = vld [vmem:[%s1 + $0x44] sm:$0xf]
  %v71 = vld [vmem:[%s1 + $0x48] sm:$0xf]
  %v72 = vld [vmem:[%s1 + $0x4c] sm:$0xf]
  %v73 = vld [vmem:[%s1 + $0x50] sm:$0xf]
  %v74 = vld [vmem:[%s1 + $0x54] sm:$0xf]
  %v75 = vld [vmem:[%s1 + $0x58] sm:$0xf]
  %v76 = vld [vmem:[%s1 + $0x5c] sm:$0xf]
  %v77 = vld [vmem:[%s1 + $0x60] sm:$0xf]
  %v78 = vld [vmem:[%s1 + $0x64] sm:$0xf]
  %v79 = vld [vmem:[%s1 + $0x68] sm:$0xf]
  %v80 = vld [vmem:[%s1 + $0x6c] sm:$0xf]
  %v81 = vld [vmem:[%s1 + $0x70] sm:$0xf]
  %v82 = vld [vmem:[%s1 + $0x74] sm:$0xf]
  %v83 = vld [vmem:[%s1 + $0x78] sm:$0xf]
  %v84 = vld [vmem:[%s1 + $0x7c] sm:$0xf]
  %v85 = vld [vmem:[%s1 + $0x80] sm:$0xf]
  %v86 = vld [vmem:[%s1 + $0x84] sm:$0xf]
  %v87 = vld [vmem:[%s1 + $0x88] sm:$0xf]
  %v88 = vld [vmem:[%s1 + $0x8c] sm:$0xf]
  %v89 = vld [vmem:[%s1 + $0x90] sm:$0xf]
  %v90 = vld [vmem:[%s1 + $0x94] sm:$0xf]
  %v91 = vld [vmem:[%s1 + $0x98] sm:$0xf]
  %v92 = vld [vmem:[%s1 + $0x9c] sm:$0xf]
  %v93 = vld [vmem:[%s1 + $0xa0] sm:$0xf]
  %v94 = vld [vmem:[%s1 + $0xa4] sm:$0xf]
  %v95 = vld [vmem:[%s1 + $0xa8] sm:$0xf]
  %v96 = vld [vmem:[%s1 + $0xac] sm:$0xf]
  %v97 = vld [vmem:[%s1 + $0xb0] sm:$0xf]
  %v98 = vld [vmem:[%s1 + $0xb4] sm:$0xf]
  %v99 = vld [vmem:[%s1 + $0xb8] sm:$0xf]
  %v100 = vld [vmem:[%s1 + $0xbc] sm:$0xf]
  %v101 = vld [vmem:[%s1 + $0xc0] sm:$0xf]
  %v102 = vld [vmem:[%s1 + $0xc4] sm:$0xf]
  %v103 = vld [vmem:[%s1 + $0xc8] sm:$0xf]
  %v104 = vld [vmem:[%s1 + $0xcc] sm:$0xf]
  %v105 = vld [vmem:[%s1 + $0xd0] sm:$0xf]
  %v106 = vld [vmem:[%s1 + $0xd4] sm:$0xf]
  %v107 = vld [vmem:[%s1 + $0xd8] sm:$0xf]
  %v108 = vld [vmem:[%s1 + $0xdc] sm:$0xf]
  %v109 = vld [vmem:[%s1 + $0xe0] sm:$0xf]
  %v110 = vld [vmem:[%s1 + $0xe4] sm:$0xf]
  %v111 = vld [vmem:[%s1 + $0xe8] sm:$0xf]
  %v112 = vld [vmem:[%s1 + $0xec] sm:$0xf]
  %v113 = vld [vmem:[%s1 + $0xf0] sm:$0xf]
  %v114 = vld [vmem:[%s1 + $0xf4] sm:$0xf]
  %v115 = vld [vmem:[%s1 + $0xf8] sm:$0xf]
  %v116 = vld [vmem:[%s1 + $0xfc] sm:$0xf]
  %v117 = vld [vmem:[%s1 + $0x100] sm:$0xf]
  %v118 = vld [vmem:[%s1 + $0x104] sm:$0xf]
  %v119 = vld [vmem:[%s1 + $0x108] sm:$0xf]
  %v120 = vld [vmem:[%s1 + $0x10c] sm:$0xf]
  %v121 = vld [vmem:[%s1 + $0x110] sm:$0xf]
  %v122 = vld [vmem:[%s1 + $0x114] sm:$0xf]
  %v123 = vld [vmem:[%s1 + $0x118] sm:$0xf]
  %v124 = vld [vmem:[%s1 + $0x11c] sm:$0xf]
  %v125 = vld [vmem:[%s1 + $0x120] sm:$0xf]
  %v126 = vld [vmem:[%s1 + $0x124] sm:$0xf]
  %v127 = vld [vmem:[%s1 + $0x128] sm:$0xf]
  %v128 = vld [vmem:[%s1 + $0x12c] sm:$0xf]
  %v129 = vld [vmem:[%s1 + $0x130] sm:$0xf]
  %v130 = vld [vmem:[%s1 + $0x134] sm:$0xf]
  %v131 = vld [vmem:[%s1 + $0x138] sm:$0xf]
  %v132 = vld [vmem:[%s1 + $0x13c] sm:$0xf]
  %v133 = vld [vmem:[%s1 + $0x140] sm:$0xf]
  %v134 = vld [vmem:[%s1 + $0x144] sm:$0xf]
  %v135 = vld [vmem:[%s1 + $0x148] sm:$0xf]
  %v136 = vld [vmem:[%s1 + $0x14c] sm:$0xf]
  %v137 = vld [vmem:[%s1 + $0x150] sm:$0xf]
  %v138 = vld [vmem:[%s1 + $0x154] sm:$0xf]
  %v139 = vld [vmem:[%s1 + $0x158] sm:$0xf]
  %v140 = vld [vmem:[%s1 + $0x15c] sm:$0xf]
  %v141 = vld [vmem:[%s1 + $0x160] sm:$0xf]
  %v142 = vld [vmem:[%s1 + $0x164] sm:$0xf]
  %v143 = vld [vmem:[%s1 + $0x168] sm:$0xf]
  %v144 = vld [vmem:[%s1 + $0x16c] sm:$0xf]
  %v145 = vld [vmem:[%s1 + $0x170] sm:$0xf]
  %v146 = vld [vmem:[%s1 + $0x174] sm:$0xf]
  %v147 = vld [vmem:[%s1 + $0x178] sm:$0xf]
  %v148 = vld [vmem:[%s1 + $0x17c] sm:$0xf]
  %v149 = vld [vmem:[%s1 + $0x180] sm:$0xf]
  %v150 = vld [vmem:[%s1 + $0x184] sm:$0xf]
  %v151 = vld [vmem:[%s1 + $0x188] sm:$0xf]
  %v152 = vld [vmem:[%s1 + $0x18c] sm:$0xf]
  %v153 = vld [vmem:[%s1 + $0x190] sm:$0xf]
  %v154 = vld [vmem:[%s1 + $0x194] sm:$0xf]
  %v155 = vld [vmem:[%s1 + $0x198] sm:$0xf]
  %v156 = vld [vmem:[%s1 + $0x19c] sm:$0xf]
  %v157 = vld [vmem:[%s1 + $0x1a0] sm:$0xf]
  %v158 = vld [vmem:[%s1 + $0x1a4] sm:$0xf]
  %v159 = vld [vmem:[%s1 + $0x1a8] sm:$0xf]
  %v160 = vld [vmem:[%s1 + $0x1ac] sm:$0xf]
  %v161 = vld [vmem:[%s1 + $0x1b0] sm:$0xf]
  %v162 = vld [vmem:[%s1 + $0x1b4] sm:$0xf]
  %v163 = vld [vmem:[%s1 + $0x1b8] sm:$0xf]
  %v164 = vld [vmem:[%s1 + $0x1bc] sm:$0xf]
  %v165 = vld [vmem:[%s1 + $0x1c0] sm:$0xf]
  %v166 = vld [vmem:[%s1 + $0x1c4] sm:$0xf]
  %v167 = vld [vmem:[%s1 + $0x1c8] sm:$0xf]
  %v168 = vld [vmem:[%s1 + $0x1cc] sm:$0xf]
  %v169 = vld [vmem:[%s1 + $0x1d0] sm:$0xf]
  %v170 = vld [vmem:[%s1 + $0x1d4] sm:$0xf]
  %v171 = vld [vmem:[%s1 + $0x1d8] sm:$0xf]
  %v172 = vld [vmem:[%s1 + $0x1dc] sm:$0xf]
  %v173 = vld [vmem:[%s1 + $0x1e0] sm:$0xf]
  %v174 = vld [vmem:[%s1 + $0x1e4] sm:$0xf]
  %v175 = vld [vmem:[%s1 + $0x1e8] sm:$0xf]
  %v176 = vld [vmem:[%s1 + $0x1ec] sm:$0xf]
  %v177 = vld [vmem:[%s1 + $0x1f0] sm:$0xf]
  %v178 = vld [vmem:[%s1 + $0x1f4] sm:$0xf]
  %v179 = vld [vmem:[%s1 + $0x1f8] sm:$0xf]
  %v180 = vld [vmem:[%s1 + $0x1fc] sm:$0xf]
  %v181 = vld [vmem:[%s1 + $0x200] sm:$0xf]
  %v182 = vld [vmem:[%s1 + $0x204] sm:$0xf]
  %v183 = vld [vmem:[%s1 + $0x208] sm:$0xf]
  %v184 = vld [vmem:[%s1 + $0x20c] sm:$0xf]
  %v185 = vld [vmem:[%s1 + $0x210] sm:$0xf]
  %v186 = vld [vmem:[%s1 + $0x214] sm:$0xf]
  %v187 = vld [vmem:[%s1 + $0x218] sm:$0xf]
  %v188 = vld [vmem:[%s1 + $0x21c] sm:$0xf]
  %v189 = vld [vmem:[%s1 + $0x220] sm:$0xf]
  %v190 = vld [vmem:[%s1 + $0x224] sm:$0xf]
  %v191 = vld [vmem:[%s1 + $0x228] sm:$0xf]
  %v192 = vld [vmem:[%s1 + $0x22c] sm:$0xf]
  %v193 = vld [vmem:[%s1 + $0x230] sm:$0xf]
  %v194 = vld [vmem:[%s1 + $0x234] sm:$0xf]
  %v195 = vld [vmem:[%s1 + $0x238] sm:$0xf]
  %v196 = vld [vmem:[%s1 + $0x23c] sm:$0xf]
  %v197 = vld [vmem:[%s1 + $0x240] sm:$0xf]
  %v198 = vld [vmem:[%s1 + $0x244] sm:$0xf]
  %v199 = vld [vmem:[%s1 + $0x248] sm:$0xf]
  %v200 = vld [vmem:[%s1 + $0x24c] sm:$0xf]
  %v201 = vld [vmem:[%s1 + $0x250] sm:$0xf]
  %v202 = vld [vmem:[%s1 + $0x254] sm:$0xf]
  %v203 = vld [vmem:[%s1 + $0x258] sm:$0xf]
  %v204 = vld [vmem:[%s1 + $0x25c] sm:$0xf]
  %v205 = vld [vmem:[%s1 + $0x260] sm:$0xf]
  %v206 = vld [vmem:[%s1 + $0x264] sm:$0xf]
  %v207 = vld [vmem:[%s1 + $0x268] sm:$0xf]
  %v208 = vld [vmem:[%s1 + $0x26c] sm:$0xf]
  %v209 = vld [vmem:[%s1 + $0x270] sm:$0xf]
  %v210 = vld [vmem:[%s1 + $0x274] sm:$0xf]
  %v211 = vld [vmem:[%s1 + $0x278] sm:$0xf]
  %v212 = vld [vmem:[%s1 + $0x27c] sm:$0xf]
  %v213 = vld [vmem:[%s1 + $0x280] sm:$0xf]
  %v214 = vld [vmem:[%s1 + $0x284] sm:$0xf]
  %v215 = vld [vmem:[%s1 + $0x288] sm:$0xf]
  %v216 = vld [vmem:[%s1 + $0x28c] sm:$0xf]
  %v217 = vld [vmem:[%s1 + $0x290] sm:$0xf]
  %v218 = vld [vmem:[%s1 + $0x294] sm:$0xf]
  %v219 = vld [vmem:[%s1 + $0x298] sm:$0xf]
  %v220 = vld [vmem:[%s1 + $0x29c] sm:$0xf]
  %v221 = vld [vmem:[%s1 + $0x2a0] sm:$0xf]
  %v222 = vld [vmem:[%s1 + $0x2a4] sm:$0xf]
  %v223 = vld [vmem:[%s1 + $0x2a8] sm:$0xf]
  %v224 = vld [vmem:[%s1 + $0x2ac] sm:$0xf]
  %v225 = vld [vmem:[%s1 + $0x2b0] sm:$0xf]
  %v226 = vld [vmem:[%s1 + $0x2b4] sm:$0xf]
  %v227 = vld [vmem:[%s1 + $0x2b8] sm:$0xf]
  %v228 = vld [vmem:[%s1 + $0x2bc] sm:$0xf]
  %v229 = vld [vmem:[%s1 + $0x2c0] sm:$0xf]
  %v230 = vld [vmem:[%s1 + $0x2c4] sm:$0xf]
  %v231 = vld [vmem:[%s1 + $0x2c8] sm:$0xf]
  %v232 = vld [vmem:[%s1 + $0x2cc] sm:$0xf]
  %v233 = vld [vmem:[%s1 + $0x2d0] sm:$0xf]
  %v234 = vld [vmem:[%s1 + $0x2d4] sm:$0xf]
  %v235 = vld [vmem:[%s1 + $0x2d8] sm:$0xf]
  %v236 = vld [vmem:[%s1 + $0x2dc] sm:$0xf]
  %v237 = vld [vmem:[%s1 + $0x2e0] sm:$0xf]
  %v238 = vld [vmem:[%s1 + $0x2e4] sm:$0xf]
  %v239 = vld [vmem:[%s1 + $0x2e8] sm:$0xf]
  %v240 = vld [vmem:[%s1 + $0x2ec] sm:$0xf]
  %v241 = vld [vmem:[%s1 + $0x2f0] sm:$0xf]
  %v242 = vld [vmem:[%s1 + $0x2f4] sm:$0xf]
  %v243 = vld [vmem:[%s1 + $0x2f8] sm:$0xf]
  %v244 = vld [vmem:[%s1 + $0x2fc] sm:$0xf]
  %v245 = vld [vmem:[%s1 + $0x300] sm:$0xf]
  %v246 = vld [vmem:[%s1 + $0x304] sm:$0xf]
  %v247 = vld [vmem:[%s1 + $0x308] sm:$0xf]
  %v248 = vld [vmem:[%s1 + $0x30c] sm:$0xf]
  %v249 = vld [vmem:[%s1 + $0x310] sm:$0xf]
  %v250 = vld [vmem:[%s1 + $0x314] sm:$0xf]
  %v251 = vld [vmem:[%s1 + $0x318] sm:$0xf]
  %v252 = vld [vmem:[%s1 + $0x31c] sm:$0xf]
  %v253 = vld [vmem:[%s1 + $0x320] sm:$0xf]
  %v254 = vld [vmem:[%s1 + $0x324] sm:$0xf]
  %v255 = vld [vmem:[%s1 + $0x328] sm:$0xf]
  %v256 = vld [vmem:[%s1 + $0x32c] sm:$0xf]
  %v257 = vld [vmem:[%s1 + $0x330] sm:$0xf]
  %v258 = vld [vmem:[%s1 + $0x334] sm:$0xf]
  %v259 = vld [vmem:[%s1 + $0x338] sm:$0xf]
  %v260 = vld [vmem:[%s1 + $0x33c] sm:$0xf]
  %v261 = vld [vmem:[%s1 + $0x340] sm:$0xf]
  %v262 = vld [vmem:[%s1 + $0x344] sm:$0xf]
  %v263 = vld [vmem:[%s1 + $0x348] sm:$0xf]
  %v264 = vld [vmem:[%s1 + $0x34c] sm:$0xf]
  %v265 = vld [vmem:[%s1 + $0x350] sm:$0xf]
  %v266 = vld [vmem:[%s1 + $0x354] sm:$0xf]
  %v267 = vld [vmem:[%s1 + $0x358] sm:$0xf]
  %v268 = vld [vmem:[%s1 + $0x35c] sm:$0xf]
  %v269 = vld [vmem:[%s1 + $0x360] sm:$0xf]
  %v270 = vld [vmem:[%s1 + $0x364] sm:$0xf]
  %v271 = vld [vmem:[%s1 + $0x368] sm:$0xf]
  %v272 = vld [vmem:[%s1 + $0x36c] sm:$0xf]
  %v273 = vld [vmem:[%s1 + $0x370] sm:$0xf]
  %v274 = vld [vmem:[%s1 + $0x374] sm:$0xf]
  %v275 = vld [vmem:[%s1 + $0x378] sm:$0xf]
  %v276 = vld [vmem:[%s1 + $0x37c] sm:$0xf]
  %v277 = vld [vmem:[%s1 + $0x380] sm:$0xf]
  %v278 = vld [vmem:[%s1 + $0x384] sm:$0xf]
  %v279 = vld [vmem:[%s1 + $0x388] sm:$0xf]
  %v280 = vld [vmem:[%s1 + $0x38c] sm:$0xf]
  %v281 = vld [vmem:[%s1 + $0x390] sm:$0xf]
  %v282 = vld [vmem:[%s1 + $0x394] sm:$0xf]
  %v283 = vld [vmem:[%s1 + $0x398] sm:$0xf]
  %v284 = vld [vmem:[%s1 + $0x39c] sm:$0xf]
  %v285 = vld [vmem:[%s1 + $0x3a0] sm:$0xf]
  %v286 = vld [vmem:[%s1 + $0x3a4] sm:$0xf]
  %v287 = vld [vmem:[%s1 + $0x3a8] sm:$0xf]
  %v288 = vld [vmem:[%s1 + $0x3ac] sm:$0xf]
  %v289 = vld [vmem:[%s1 + $0x3b0] sm:$0xf]
  %v290 = vld [vmem:[%s1 + $0x3b4] sm:$0xf]
  %v291 = vld [vmem:[%s1 + $0x3b8] sm:$0xf]
  %v292 = vld [vmem:[%s1 + $0x3bc] sm:$0xf]
  %v293 = vld [vmem:[%s1 + $0x3c0] sm:$0xf]
  %v294 = vld [vmem:[%s1 + $0x3c4] sm:$0xf]
  %v295 = vld [vmem:[%s1 + $0x3c8] sm:$0xf]
  %v296 = vld [vmem:[%s1 + $0x3cc] sm:$0xf]
  %v297 = vld [vmem:[%s1 + $0x3d0] sm:$0xf]
  %v298 = vld [vmem:[%s1 + $0x3d4] sm:$0xf]
  %v299 = vld [vmem:[%s1 + $0x3d8] sm:$0xf]
  %v300 = vld [vmem:[%s1 + $0x3dc] sm:$0xf]
  %v301 = vld [vmem:[%s1 + $0x3e0] sm:$0xf]
  %v302 = vld [vmem:[%s1 + $0x3e4] sm:$0xf]
  %v303 = vld [vmem:[%s1 + $0x3e8] sm:$0xf]
  %v304 = vld [vmem:[%s1 + $0x3ec] sm:$0xf]
  %v305 = vld [vmem:[%s1 + $0x3f0] sm:$0xf]
  %v306 = vld [vmem:[%s1 + $0x3f4] sm:$0xf]
  %v307 = vld [vmem:[%s1 + $0x3f8] sm:$0xf]
  %v308 = vld [vmem:[%s1 + $0x3fc] sm:$0xf]
  %v309 = vld [vmem:[%s1 + $0x400] sm:$0xf]
  %v310 = vld [vmem:[%s1 + $0x404] sm:$0xf]
  %v311 = vld [vmem:[%s1 + $0x408] sm:$0xf]
  %v312 = vld [vmem:[%s1 + $0x40c] sm:$0xf]
  %v313 = vld [vmem:[%s1 + $0x410] sm:$0xf]
  %v314 = vld [vmem:[%s1 + $0x414] sm:$0xf]
  %v315 = vld [vmem:[%s1 + $0x418] sm:$0xf]
  %v316 = vld [vmem:[%s1 + $0x41c] sm:$0xf]
  %v317 = vld [vmem:[%s1 + $0x420] sm:$0xf]
  %v318 = vld [vmem:[%s1 + $0x424] sm:$0xf]
  %v319 = vld [vmem:[%s1 + $0x428] sm:$0xf]
  %v320 = vld [vmem:[%s1 + $0x42c] sm:$0xf]
  %v321 = vld [vmem:[%s1 + $0x430] sm:$0xf]
  %v322 = vld [vmem:[%s1 + $0x434] sm:$0xf]
  %v323 = vld [vmem:[%s1 + $0x438] sm:$0xf]
  %v324 = vld [vmem:[%s1 + $0x43c] sm:$0xf]
  %v325 = vld [vmem:[%s1 + $0x440] sm:$0xf]
  %v326 = vld [vmem:[%s1 + $0x444] sm:$0xf]
  %v327 = vld [vmem:[%s1 + $0x448] sm:$0xf]
  %v328 = vld [vmem:[%s1 + $0x44c] sm:$0xf]
  %v329 = vld [vmem:[%s1 + $0x450] sm:$0xf]
  %v330 = vld [vmem:[%s1 + $0x454] sm:$0xf]
  %v331 = vld [vmem:[%s1 + $0x458] sm:$0xf]
  %v332 = vld [vmem:[%s1 + $0x45c] sm:$0xf]
  %v333 = vld [vmem:[%s1 + $0x460] sm:$0xf]
  %v334 = vld [vmem:[%s1 + $0x464] sm:$0xf]
  %v335 = vld [vmem:[%s1 + $0x468] sm:$0xf]
  %v336 = vld [vmem:[%s1 + $0x46c] sm:$0xf]
  %v337 = vld [vmem:[%s1 + $0x470] sm:$0xf]
  %v338 = vld [vmem:[%s1 + $0x474] sm:$0xf]
  %v339 = vld [vmem:[%s1 + $0x478] sm:$0xf]
  %v340 = vld [vmem:[%s1 + $0x47c] sm:$0xf]
  %v341 = vld [vmem:[%s1 + $0x480] sm:$0xf]
  %v342 = vld [vmem:[%s1 + $0x484] sm:$0xf]
  %v343 = vld [vmem:[%s1 + $0x488] sm:$0xf]
  %v344 = vld [vmem:[%s1 + $0x48c] sm:$0xf]
  %v345 = vld [vmem:[%s1 + $0x490] sm:$0xf]
  %v346 = vld [vmem:[%s1 + $0x494] sm:$0xf]
  %v347 = vld [vmem:[%s1 + $0x498] sm:$0xf]
  %v348 = vld [vmem:[%s1 + $0x49c] sm:$0xf]
  %v349 = vld [vmem:[%s1 + $0x4a0] sm:$0xf]
  %v350 = vld [vmem:[%s1 + $0x4a4] sm:$0xf]
  %v351 = vld [vmem:[%s1 + $0x4a8] sm:$0xf]
  %v352 = vld [vmem:[%s1 + $0x4ac] sm:$0xf]
  %v353 = vld [vmem:[%s1 + $0x4b0] sm:$0xf]
  %v354 = vld [vmem:[%s1 + $0x4b4] sm:$0xf]
  %v355 = vld [vmem:[%s1 + $0x4b8] sm:$0xf]
  %v356 = vld [vmem:[%s1 + $0x4bc] sm:$0xf]
  %v357 = vld [vmem:[%s1 + $0x4c0] sm:$0xf]
  %v358 = vld [vmem:[%s1 + $0x4c4] sm:$0xf]
  %v359 = vld [vmem:[%s1 + $0x4c8] sm:$0xf]
  %v360 = vld [vmem:[%s1 + $0x4cc] sm:$0xf]
  %v361 = vld [vmem:[%s1 + $0x4d0] sm:$0xf]
  %v362 = vld [vmem:[%s1 + $0x4d4] sm:$0xf]
  %v363 = vld [vmem:[%s1 + $0x4d8] sm:$0xf]
  %v364 = vld [vmem:[%s1 + $0x4dc] sm:$0xf]
  %v365 = vld [vmem:[%s1 + $0x4e0] sm:$0xf]
  %v366 = vld [vmem:[%s1 + $0x4e4] sm:$0xf]
  %v367 = vld [vmem:[%s1 + $0x4e8] sm:$0xf]
  %v368 = vld [vmem:[%s1 + $0x4ec] sm:$0xf]
  %v369 = vld [vmem:[%s1 + $0x4f0] sm:$0xf]
  %v370 = vld [vmem:[%s1 + $0x4f4] sm:$0xf]
  %v371 = vld [vmem:[%s1 + $0x4f8] sm:$0xf]
  %v372 = vld [vmem:[%s1 + $0x4fc] sm:$0xf]
  %v373 = vld [vmem:[%s1 + $0x500] sm:$0xf]
  %v374 = vld [vmem:[%s1 + $0x504] sm:$0xf]
  %v375 = vld [vmem:[%s1 + $0x508] sm:$0xf]
  %v376 = vld [vmem:[%s1 + $0x50c] sm:$0xf]
  %v377 = vld [vmem:[%s1 + $0x510] sm:$0xf]
  %v378 = vld [vmem:[%s1 + $0x514] sm:$0xf]
  %v379 = vld [vmem:[%s1 + $0x518] sm:$0xf]
  %v380 = vld [vmem:[%s1 + $0x51c] sm:$0xf]
  %v381 = vld [vmem:[%s1 + $0x520] sm:$0xf]
  %v382 = vld [vmem:[%s1 + $0x524] sm:$0xf]
  %v383 = vld [vmem:[%s1 + $0x528] sm:$0xf]
  %v384 = vld [vmem:[%s1 + $0x52c] sm:$0xf]
  %v385 = vld [vmem:[%s1 + $0x530] sm:$0xf]
  %v386 = vld [vmem:[%s1 + $0x534] sm:$0xf]
  %v387 = vld [vmem:[%s1 + $0x538] sm:$0xf]
  %v388 = vld [vmem:[%s1 + $0x53c] sm:$0xf]
  %v389 = vld [vmem:[%s1 + $0x540] sm:$0xf]
  %v390 = vld [vmem:[%s1 + $0x544] sm:$0xf]
  %v391 = vld [vmem:[%s1 + $0x548] sm:$0xf]
  %v392 = vld [vmem:[%s1 + $0x54c] sm:$0xf]
  %v393 = vld [vmem:[%s1 + $0x550] sm:$0xf]
  %v394 = vld [vmem:[%s1 + $0x554] sm:$0xf]
  %v395 = vld [vmem:[%s1 + $0x558] sm:$0xf]
  %v396 = vld [vmem:[%s1 + $0x55c] sm:$0xf]
  %v397 = vld [vmem:[%s1 + $0x560] sm:$0xf]
  %v398 = vld [vmem:[%s1 + $0x564] sm:$0xf]
  %v399 = vld [vmem:[%s1 + $0x568] sm:$0xf]
  %v400 = vld [vmem:[%s1 + $0x56c] sm:$0xf]
  %v401 = vld [vmem:[%s1 + $0x570] sm:$0xf]
  %v402 = vld [vmem:[%s1 + $0x574] sm:$0xf]
  %v403 = vld [vmem:[%s1 + $0x578] sm:$0xf]
  %v404 = vld [vmem:[%s1 + $0x57c] sm:$0xf]
  %v405 = vld [vmem:[%s1 + $0x580] sm:$0xf]
  %v406 = vld [vmem:[%s1 + $0x584] sm:$0xf]
  %v407 = vld [vmem:[%s1 + $0x588] sm:$0xf]
  %v408 = vld [vmem:[%s1 + $0x58c] sm:$0xf]
  %v409 = vld [vmem:[%s1 + $0x590] sm:$0xf]
  %v410 = vld [vmem:[%s1 + $0x594] sm:$0xf]
  %v411 = vld [vmem:[%s1 + $0x598] sm:$0xf]
  %v412 = vld [vmem:[%s1 + $0x59c] sm:$0xf]
  %v413 = vld [vmem:[%s1 + $0x5a0] sm:$0xf]
  %v414 = vld [vmem:[%s1 + $0x5a4] sm:$0xf]
  %v415 = vld [vmem:[%s1 + $0x5a8] sm:$0xf]
  %v416 = vld [vmem:[%s1 + $0x5ac] sm:$0xf]
  %v417 = vld [vmem:[%s1 + $0x5b0] sm:$0xf]
  %v418 = vld [vmem:[%s1 + $0x5b4] sm:$0xf]
  %v419 = vld [vmem:[%s1 + $0x5b8] sm:$0xf]
  %v420 = vld [vmem:[%s1 + $0x5bc] sm:$0xf]
  %v421 = vld [vmem:[%s1 + $0x5c0] sm:$0xf]
  %v422 = vld [vmem:[%s1 + $0x5c4] sm:$0xf]
  %v423 = vld [vmem:[%s1 + $0x5c8] sm:$0xf]
  %v424 = vld [vmem:[%s1 + $0x5cc] sm:$0xf]
  %v425 = vld [vmem:[%s1 + $0x5d0] sm:$0xf]
  %v426 = vld [vmem:[%s1 + $0x5d4] sm:$0xf]
  %v427 = vld [vmem:[%s1 + $0x5d8] sm:$0xf]
  %v428 = vld [vmem:[%s1 + $0x5dc] sm:$0xf]
  %v429 = vld [vmem:[%s1 + $0x5e0] sm:$0xf]
  %v430 = vld [vmem:[%s1 + $0x5e4] sm:$0xf]
  %v431 = vld [vmem:[%s1 + $0x5e8] sm:$0xf]
  %v432 = vld [vmem:[%s1 + $0x5ec] sm:$0xf]
  %v433 = vld [vmem:[%s1 + $0x5f0] sm:$0xf]
  %v434 = vld [vmem:[%s1 + $0x5f4] sm:$0xf]
  %v435 = vld [vmem:[%s1 + $0x5f8] sm:$0xf]
  %v436 = vld [vmem:[%s1 + $0x5fc] sm:$0xf]
  %v437 = vld [vmem:[%s1 + $0x600] sm:$0xf]
  %v438 = vld [vmem:[%s1 + $0x604] sm:$0xf]
  %v439 = vld [vmem:[%s1 + $0x608] sm:$0xf]
  %v440 = vld [vmem:[%s1 + $0x60c] sm:$0xf]
  %v441 = vld [vmem:[%s1 + $0x610] sm:$0xf]
  %v442 = vld [vmem:[%s1 + $0x614] sm:$0xf]
  %v443 = vld [vmem:[%s1 + $0x618] sm:$0xf]
  %v444 = vld [vmem:[%s1 + $0x61c] sm:$0xf]
  %v445 = vld [vmem:[%s1 + $0x620] sm:$0xf]
  %v446 = vld [vmem:[%s1 + $0x624] sm:$0xf]
  %v447 = vld [vmem:[%s1 + $0x628] sm:$0xf]
  %v448 = vld [vmem:[%s1 + $0x62c] sm:$0xf]
  %v449 = vld [vmem:[%s1 + $0x630] sm:$0xf]
  %v450 = vld [vmem:[%s1 + $0x634] sm:$0xf]
  %v451 = vld [vmem:[%s1 + $0x638] sm:$0xf]
  %v452 = vld [vmem:[%s1 + $0x63c] sm:$0xf]
  %v453 = vld [vmem:[%s1 + $0x640] sm:$0xf]
  %v454 = vld [vmem:[%s1 + $0x644] sm:$0xf]
  %v455 = vld [vmem:[%s1 + $0x648] sm:$0xf]
  %v456 = vld [vmem:[%s1 + $0x64c] sm:$0xf]
  %v457 = vld [vmem:[%s1 + $0x650] sm:$0xf]
  %v458 = vld [vmem:[%s1 + $0x654] sm:$0xf]
  %v459 = vld [vmem:[%s1 + $0x658] sm:$0xf]
  %v460 = vld [vmem:[%s1 + $0x65c] sm:$0xf]
  %v461 = vld [vmem:[%s1 + $0x660] sm:$0xf]
  %v462 = vld [vmem:[%s1 + $0x664] sm:$0xf]
  %v463 = vld [vmem:[%s1 + $0x668] sm:$0xf]
  %v464 = vld [vmem:[%s1 + $0x66c] sm:$0xf]
  %v465 = vld [vmem:[%s1 + $0x670] sm:$0xf]
  %v466 = vld [vmem:[%s1 + $0x674] sm:$0xf]
  %v467 = vld [vmem:[%s1 + $0x678] sm:$0xf]
  %v468 = vld [vmem:[%s1 + $0x67c] sm:$0xf]
  %v469 = vld [vmem:[%s1 + $0x680] sm:$0xf]
  %v470 = vld [vmem:[%s1 + $0x684] sm:$0xf]
  %v471 = vld [vmem:[%s1 + $0x688] sm:$0xf]
  %v472 = vld [vmem:[%s1 + $0x68c] sm:$0xf]
  %v473 = vld [vmem:[%s1 + $0x690] sm:$0xf]
  %v474 = vld [vmem:[%s1 + $0x694] sm:$0xf]
  %v475 = vld [vmem:[%s1 + $0x698] sm:$0xf]
  %v476 = vld [vmem:[%s1 + $0x69c] sm:$0xf]
  %v477 = vld [vmem:[%s1 + $0x6a0] sm:$0xf]
  %v478 = vld [vmem:[%s1 + $0x6a4] sm:$0xf]
  %v479 = vld [vmem:[%s1 + $0x6a8] sm:$0xf]
  %v480 = vld [vmem:[%s1 + $0x6ac] sm:$0xf]
  %v481 = vld [vmem:[%s1 + $0x6b0] sm:$0xf]
  %v482 = vld [vmem:[%s1 + $0x6b4] sm:$0xf]
  %v483 = vld [vmem:[%s1 + $0x6b8] sm:$0xf]
  %v484 = vld [vmem:[%s1 + $0x6bc] sm:$0xf]
  %v485 = vld [vmem:[%s1 + $0x6c0] sm:$0xf]
  %v486 = vld [vmem:[%s1 + $0x6c4] sm:$0xf]
  %v487 = vld [vmem:[%s1 + $0x6c8] sm:$0xf]
  %v488 = vld [vmem:[%s1 + $0x6cc] sm:$0xf]
  %v489 = vld [vmem:[%s1 + $0x6d0] sm:$0xf]
  %v490 = vld [vmem:[%s1 + $0x6d4] sm:$0xf]
  %v491 = vld [vmem:[%s1 + $0x6d8] sm:$0xf]
  %v492 = vld [vmem:[%s1 + $0x6dc] sm:$0xf]
  %v493 = vld [vmem:[%s1 + $0x6e0] sm:$0xf]
  %v494 = vld [vmem:[%s1 + $0x6e4] sm:$0xf]
  %v495 = vld [vmem:[%s1 + $0x6e8] sm:$0xf]
  %v496 = vld [vmem:[%s1 + $0x6ec] sm:$0xf]
  %v497 = vld [vmem:[%s1 + $0x6f0] sm:$0xf]
  %v498 = vld [vmem:[%s1 + $0x6f4] sm:$0xf]
  %v499 = vld [vmem:[%s1 + $0x6f8] sm:$0xf]
  %v500 = vld [vmem:[%s1 + $0x6fc] sm:$0xf]
  %v501 = vld [vmem:[%s1 + $0x700] sm:$0xf]
  %v502 = vld [vmem:[%s1 + $0x704] sm:$0xf]
  %v503 = vld [vmem:[%s1 + $0x708] sm:$0xf]
  %v504 = vld [vmem:[%s1 + $0x70c] sm:$0xf]
  %v505 = vld [vmem:[%s1 + $0x710] sm:$0xf]
  %v506 = vld [vmem:[%s1 + $0x714] sm:$0xf]
  %v507 = vld [vmem:[%s1 + $0x718] sm:$0xf]
  %v508 = vld [vmem:[%s1 + $0x71c] sm:$0xf]
  %v509 = vld [vmem:[%s1 + $0x720] sm:$0xf]
  %v510 = vld [vmem:[%s1 + $0x724] sm:$0xf]
  %v511 = vld [vmem:[%s1 + $0x728] sm:$0xf]
  %v512 = vld [vmem:[%s1 + $0x72c] sm:$0xf]
  %v513 = vld [vmem:[%s1 + $0x730] sm:$0xf]
  %v514 = vld [vmem:[%s1 + $0x734] sm:$0xf]
  %v515 = vld [vmem:[%s1 + $0x738] sm:$0xf]
  %v516 = vld [vmem:[%s1 + $0x73c] sm:$0xf]
  %v517 = vld [vmem:[%s1 + $0x740] sm:$0xf]
  %v518 = vld [vmem:[%s1 + $0x744] sm:$0xf]
  %v519 = vld [vmem:[%s1 + $0x748] sm:$0xf]
  %v520 = vld [vmem:[%s1 + $0x74c] sm:$0xf]
  %v521 = vld [vmem:[%s1 + $0x750] sm:$0xf]
  %v522 = vld [vmem:[%s1 + $0x754] sm:$0xf]
  %v523 = vld [vmem:[%s1 + $0x758] sm:$0xf]
  %v524 = vld [vmem:[%s1 + $0x75c] sm:$0xf]
  %v525 = vld [vmem:[%s1 + $0x760] sm:$0xf]
  %v526 = vld [vmem:[%s1 + $0x764] sm:$0xf]
  %v527 = vld [vmem:[%s1 + $0x768] sm:$0xf]
  %v528 = vld [vmem:[%s1 + $0x76c] sm:$0xf]
  %v529 = vld [vmem:[%s1 + $0x770] sm:$0xf]
  %v530 = vld [vmem:[%s1 + $0x774] sm:$0xf]
  %v531 = vld [vmem:[%s1 + $0x778] sm:$0xf]
  %v532 = vld [vmem:[%s1 + $0x77c] sm:$0xf]
  %v533 = vld [vmem:[%s1 + $0x780] sm:$0xf]
  %v534 = vld [vmem:[%s1 + $0x784] sm:$0xf]
  %v535 = vld [vmem:[%s1 + $0x788] sm:$0xf]
  %v536 = vld [vmem:[%s1 + $0x78c] sm:$0xf]
  %v537 = vld [vmem:[%s1 + $0x790] sm:$0xf]
  %v538 = vld [vmem:[%s1 + $0x794] sm:$0xf]
  %v539 = vld [vmem:[%s1 + $0x798] sm:$0xf]
  %v540 = vld [vmem:[%s1 + $0x79c] sm:$0xf]
  %v541 = vld [vmem:[%s1 + $0x7a0] sm:$0xf]
  %v542 = vld [vmem:[%s1 + $0x7a4] sm:$0xf]
  %v543 = vld [vmem:[%s1 + $0x7a8] sm:$0xf]
  %v544 = vld [vmem:[%s1 + $0x7ac] sm:$0xf]
  %v545 = vld [vmem:[%s1 + $0x7b0] sm:$0xf]
  %v546 = vld [vmem:[%s1 + $0x7b4] sm:$0xf]
  %v547 = vld [vmem:[%s1 + $0x7b8] sm:$0xf]
  %v548 = vld [vmem:[%s1 + $0x7bc] sm:$0xf]
  %v549 = vld [vmem:[%s1 + $0x7c0] sm:$0xf]
  %v550 = vld [vmem:[%s1 + $0x7c4] sm:$0xf]
  %v551 = vld [vmem:[%s1 + $0x7c8] sm:$0xf]
  %v552 = vld [vmem:[%s1 + $0x7cc] sm:$0xf]
  %v553 = vld [vmem:[%s1 + $0x7d0] sm:$0xf]
  %v554 = vld [vmem:[%s1 + $0x7d4] sm:$0xf]
  %v555 = vld [vmem:[%s1 + $0x7d8] sm:$0xf]
  %v556 = vld [vmem:[%s1 + $0x7dc] sm:$0xf]
  %v557 = vld [vmem:[%s1 + $0x7e0] sm:$0xf]
  %v558 = vld [vmem:[%s1 + $0x7e4] sm:$0xf]
  %v559 = vld [vmem:[%s1 + $0x7e8] sm:$0xf]
  %v560 = vld [vmem:[%s1 + $0x7ec] sm:$0xf]
  %v561 = vld [vmem:[%s1 + $0x7f0] sm:$0xf]
  %v562 = vld [vmem:[%s1 + $0x7f4] sm:$0xf]
  %v563 = vld [vmem:[%s1 + $0x7f8] sm:$0xf]
  %v564 = vld [vmem:[%s1 + $0x7fc] sm:$0xf]
  %v565 = vld [vmem:[%s2] sm:$0x1]
  %v567 = vlaneseq
  %v568 = vshrl.u32 %v567, 7
  %v569 = vsub.s32 0, %v568
  %v570 = vrot.slane %v565, %v569
  %v604 = vunpack.c.l.b16 %v21
  %v605 = vunpack.c.h.b16 %v21
  %v606 = vunpack.c.l.b16 %v22
  %v607 = vunpack.c.h.b16 %v22
  %v608 = vunpack.c.l.b16 %v23
  %v609 = vunpack.c.h.b16 %v23
  %v610 = vunpack.c.l.b16 %v24
  %v611 = vunpack.c.h.b16 %v24
  %v612 = vunpack.c.l.b16 %v25
  %v613 = vunpack.c.h.b16 %v25
  %v614 = vunpack.c.l.b16 %v26
  %v615 = vunpack.c.h.b16 %v26
  %v616 = vunpack.c.l.b16 %v27
  %v617 = vunpack.c.h.b16 %v27
  %v618 = vunpack.c.l.b16 %v28
  %v619 = vunpack.c.h.b16 %v28
  %v620 = vunpack.c.l.b16 %v29
  %v621 = vunpack.c.h.b16 %v29
  %v622 = vunpack.c.l.b16 %v30
  %v623 = vunpack.c.h.b16 %v30
  %v624 = vunpack.c.l.b16 %v31
  %v625 = vunpack.c.h.b16 %v31
  %v626 = vunpack.c.l.b16 %v32
  %v627 = vunpack.c.h.b16 %v32
  %v628 = vunpack.c.l.b16 %v33
  %v629 = vunpack.c.h.b16 %v33
  %v630 = vunpack.c.l.b16 %v34
  %v631 = vunpack.c.h.b16 %v34
  %v632 = vunpack.c.l.b16 %v35
  %v633 = vunpack.c.h.b16 %v35
  %v634 = vunpack.c.l.b16 %v36
  %v635 = vunpack.c.h.b16 %v36
  %v636 = vunpack.c.l.b16 %v37
  %v637 = vunpack.c.h.b16 %v37
  %v638 = vunpack.c.l.b16 %v38
  %v639 = vunpack.c.h.b16 %v38
  %v640 = vunpack.c.l.b16 %v39
  %v641 = vunpack.c.h.b16 %v39
  %v642 = vunpack.c.l.b16 %v40
  %v643 = vunpack.c.h.b16 %v40
  %v644 = vunpack.c.l.b16 %v41
  %v645 = vunpack.c.h.b16 %v41
  %v646 = vunpack.c.l.b16 %v42
  %v647 = vunpack.c.h.b16 %v42
  %v648 = vunpack.c.l.b16 %v43
  %v649 = vunpack.c.h.b16 %v43
  %v650 = vunpack.c.l.b16 %v44
  %v651 = vunpack.c.h.b16 %v44
  %v652 = vunpack.c.l.b16 %v45
  %v653 = vunpack.c.h.b16 %v45
  %v654 = vunpack.c.l.b16 %v46
  %v655 = vunpack.c.h.b16 %v46
  %v656 = vunpack.c.l.b16 %v47
  %v657 = vunpack.c.h.b16 %v47
  %v658 = vunpack.c.l.b16 %v48
  %v659 = vunpack.c.h.b16 %v48
  %v660 = vunpack.c.l.b16 %v49
  %v661 = vunpack.c.h.b16 %v49
  %v662 = vunpack.c.l.b16 %v50
  %v663 = vunpack.c.h.b16 %v50
  %v664 = vunpack.c.l.b16 %v51
  %v665 = vunpack.c.h.b16 %v51
  %v666 = vunpack.c.l.b16 %v52
  %v667 = vunpack.c.h.b16 %v52
  %v668 = vpack.c.b16 %v636, %v604
  %v669 = vpack.c.b16 %v637, %v605
  %v670 = vpack.c.b16 %v638, %v606
  %v671 = vpack.c.b16 %v639, %v607
  %v672 = vpack.c.b16 %v640, %v608
  %v673 = vpack.c.b16 %v641, %v609
  %v674 = vpack.c.b16 %v642, %v610
  %v675 = vpack.c.b16 %v643, %v611
  %v676 = vpack.c.b16 %v644, %v612
  %v677 = vpack.c.b16 %v645, %v613
  %v678 = vpack.c.b16 %v646, %v614
  %v679 = vpack.c.b16 %v647, %v615
  %v680 = vpack.c.b16 %v648, %v616
  %v681 = vpack.c.b16 %v649, %v617
  %v682 = vpack.c.b16 %v650, %v618
  %v683 = vpack.c.b16 %v651, %v619
  %v684 = vpack.c.b16 %v652, %v620
  %v685 = vpack.c.b16 %v653, %v621
  %v686 = vpack.c.b16 %v654, %v622
  %v687 = vpack.c.b16 %v655, %v623
  %v688 = vpack.c.b16 %v656, %v624
  %v689 = vpack.c.b16 %v657, %v625
  %v690 = vpack.c.b16 %v658, %v626
  %v691 = vpack.c.b16 %v659, %v627
  %v692 = vpack.c.b16 %v660, %v628
  %v693 = vpack.c.b16 %v661, %v629
  %v694 = vpack.c.b16 %v662, %v630
  %v695 = vpack.c.b16 %v663, %v631
  %v696 = vpack.c.b16 %v664, %v632
  %v697 = vpack.c.b16 %v665, %v633
  %v698 = vpack.c.b16 %v666, %v634
  %v699 = vpack.c.b16 %v667, %v635
  %v1244 = vunpack.c.l.b16 %v53
  %v1245 = vunpack.c.l.b16 %v54
  %v1246 = vunpack.c.l.b16 %v55
  %v1247 = vunpack.c.l.b16 %v56
  %v1248 = vunpack.c.l.b16 %v57
  %v1249 = vunpack.c.l.b16 %v58
  %v1250 = vunpack.c.l.b16 %v59
  %v1251 = vunpack.c.l.b16 %v60
  %v1252 = vunpack.c.l.b16 %v61
  %v1253 = vunpack.c.l.b16 %v62
  %v1254 = vunpack.c.l.b16 %v63
  %v1255 = vunpack.c.l.b16 %v64
  %v1256 = vunpack.c.l.b16 %v65
  %v1257 = vunpack.c.l.b16 %v66
  %v1258 = vunpack.c.l.b16 %v67
  %v1259 = vunpack.c.l.b16 %v68
  %v1260 = vunpack.c.l.b16 %v69
  %v1261 = vunpack.c.l.b16 %v70
  %v1262 = vunpack.c.l.b16 %v71
  %v1263 = vunpack.c.l.b16 %v72
  %v1264 = vunpack.c.l.b16 %v73
  %v1265 = vunpack.c.l.b16 %v74
  %v1266 = vunpack.c.l.b16 %v75
  %v1267 = vunpack.c.l.b16 %v76
  %v1268 = vunpack.c.l.b16 %v77
  %v1269 = vunpack.c.l.b16 %v78
  %v1270 = vunpack.c.l.b16 %v79
  %v1271 = vunpack.c.l.b16 %v80
  %v1272 = vunpack.c.l.b16 %v81
  %v1273 = vunpack.c.l.b16 %v82
  %v1274 = vunpack.c.l.b16 %v83
  %v1275 = vunpack.c.l.b16 %v84
  %v1276 = vunpack.c.l.b16 %v85
  %v1277 = vunpack.c.l.b16 %v86
  %v1278 = vunpack.c.l.b16 %v87
  %v1279 = vunpack.c.l.b16 %v88
  %v1280 = vunpack.c.l.b16 %v89
  %v1281 = vunpack.c.l.b16 %v90
  %v1282 = vunpack.c.l.b16 %v91
  %v1283 = vunpack.c.l.b16 %v92
  %v1284 = vunpack.c.l.b16 %v93
  %v1285 = vunpack.c.l.b16 %v94
  %v1286 = vunpack.c.l.b16 %v95
  %v1287 = vunpack.c.l.b16 %v96
  %v1288 = vunpack.c.l.b16 %v97
  %v1289 = vunpack.c.l.b16 %v98
  %v1290 = vunpack.c.l.b16 %v99
  %v1291 = vunpack.c.l.b16 %v100
  %v1292 = vunpack.c.l.b16 %v101
  %v1293 = vunpack.c.l.b16 %v102
  %v1294 = vunpack.c.l.b16 %v103
  %v1295 = vunpack.c.l.b16 %v104
  %v1296 = vunpack.c.l.b16 %v105
  %v1297 = vunpack.c.l.b16 %v106
  %v1298 = vunpack.c.l.b16 %v107
  %v1299 = vunpack.c.l.b16 %v108
  %v1300 = vunpack.c.l.b16 %v109
  %v1301 = vunpack.c.l.b16 %v110
  %v1302 = vunpack.c.l.b16 %v111
  %v1303 = vunpack.c.l.b16 %v112
  %v1304 = vunpack.c.l.b16 %v113
  %v1305 = vunpack.c.l.b16 %v114
  %v1306 = vunpack.c.l.b16 %v115
  %v1307 = vunpack.c.l.b16 %v116
  %v1308 = vunpack.c.l.b16 %v117
  %v1309 = vunpack.c.l.b16 %v118
  %v1310 = vunpack.c.l.b16 %v119
  %v1311 = vunpack.c.l.b16 %v120
  %v1312 = vunpack.c.l.b16 %v121
  %v1313 = vunpack.c.l.b16 %v122
  %v1314 = vunpack.c.l.b16 %v123
  %v1315 = vunpack.c.l.b16 %v124
  %v1316 = vunpack.c.l.b16 %v125
  %v1317 = vunpack.c.l.b16 %v126
  %v1318 = vunpack.c.l.b16 %v127
  %v1319 = vunpack.c.l.b16 %v128
  %v1320 = vunpack.c.l.b16 %v129
  %v1321 = vunpack.c.l.b16 %v130
  %v1322 = vunpack.c.l.b16 %v131
  %v1323 = vunpack.c.l.b16 %v132
  %v1324 = vunpack.c.l.b16 %v133
  %v1325 = vunpack.c.l.b16 %v134
  %v1326 = vunpack.c.l.b16 %v135
  %v1327 = vunpack.c.l.b16 %v136
  %v1328 = vunpack.c.l.b16 %v137
  %v1329 = vunpack.c.l.b16 %v138
  %v1330 = vunpack.c.l.b16 %v139
  %v1331 = vunpack.c.l.b16 %v140
  %v1332 = vunpack.c.l.b16 %v141
  %v1333 = vunpack.c.l.b16 %v142
  %v1334 = vunpack.c.l.b16 %v143
  %v1335 = vunpack.c.l.b16 %v144
  %v1336 = vunpack.c.l.b16 %v145
  %v1337 = vunpack.c.l.b16 %v146
  %v1338 = vunpack.c.l.b16 %v147
  %v1339 = vunpack.c.l.b16 %v148
  %v1340 = vunpack.c.l.b16 %v149
  %v1341 = vunpack.c.l.b16 %v150
  %v1342 = vunpack.c.l.b16 %v151
  %v1343 = vunpack.c.l.b16 %v152
  %v1344 = vunpack.c.l.b16 %v153
  %v1345 = vunpack.c.l.b16 %v154
  %v1346 = vunpack.c.l.b16 %v155
  %v1347 = vunpack.c.l.b16 %v156
  %v1348 = vunpack.c.l.b16 %v157
  %v1349 = vunpack.c.l.b16 %v158
  %v1350 = vunpack.c.l.b16 %v159
  %v1351 = vunpack.c.l.b16 %v160
  %v1352 = vunpack.c.l.b16 %v161
  %v1353 = vunpack.c.l.b16 %v162
  %v1354 = vunpack.c.l.b16 %v163
  %v1355 = vunpack.c.l.b16 %v164
  %v1356 = vunpack.c.l.b16 %v165
  %v1357 = vunpack.c.l.b16 %v166
  %v1358 = vunpack.c.l.b16 %v167
  %v1359 = vunpack.c.l.b16 %v168
  %v1360 = vunpack.c.l.b16 %v169
  %v1361 = vunpack.c.l.b16 %v170
  %v1362 = vunpack.c.l.b16 %v171
  %v1363 = vunpack.c.l.b16 %v172
  %v1364 = vunpack.c.l.b16 %v173
  %v1365 = vunpack.c.l.b16 %v174
  %v1366 = vunpack.c.l.b16 %v175
  %v1367 = vunpack.c.l.b16 %v176
  %v1368 = vunpack.c.l.b16 %v177
  %v1369 = vunpack.c.l.b16 %v178
  %v1370 = vunpack.c.l.b16 %v179
  %v1371 = vunpack.c.l.b16 %v180
  %v1372 = vunpack.c.l.b16 %v181
  %v1373 = vunpack.c.l.b16 %v182
  %v1374 = vunpack.c.l.b16 %v183
  %v1375 = vunpack.c.l.b16 %v184
  %v1376 = vunpack.c.l.b16 %v185
  %v1377 = vunpack.c.l.b16 %v186
  %v1378 = vunpack.c.l.b16 %v187
  %v1379 = vunpack.c.l.b16 %v188
  %v1380 = vunpack.c.l.b16 %v189
  %v1381 = vunpack.c.l.b16 %v190
  %v1382 = vunpack.c.l.b16 %v191
  %v1383 = vunpack.c.l.b16 %v192
  %v1384 = vunpack.c.l.b16 %v193
  %v1385 = vunpack.c.l.b16 %v194
  %v1386 = vunpack.c.l.b16 %v195
  %v1387 = vunpack.c.l.b16 %v196
  %v1388 = vunpack.c.l.b16 %v197
  %v1389 = vunpack.c.l.b16 %v198
  %v1390 = vunpack.c.l.b16 %v199
  %v1391 = vunpack.c.l.b16 %v200
  %v1392 = vunpack.c.l.b16 %v201
  %v1393 = vunpack.c.l.b16 %v202
  %v1394 = vunpack.c.l.b16 %v203
  %v1395 = vunpack.c.l.b16 %v204
  %v1396 = vunpack.c.l.b16 %v205
  %v1397 = vunpack.c.l.b16 %v206
  %v1398 = vunpack.c.l.b16 %v207
  %v1399 = vunpack.c.l.b16 %v208
  %v1400 = vunpack.c.l.b16 %v209
  %v1401 = vunpack.c.l.b16 %v210
  %v1402 = vunpack.c.l.b16 %v211
  %v1403 = vunpack.c.l.b16 %v212
  %v1404 = vunpack.c.l.b16 %v213
  %v1405 = vunpack.c.l.b16 %v214
  %v1406 = vunpack.c.l.b16 %v215
  %v1407 = vunpack.c.l.b16 %v216
  %v1408 = vunpack.c.l.b16 %v217
  %v1409 = vunpack.c.l.b16 %v218
  %v1410 = vunpack.c.l.b16 %v219
  %v1411 = vunpack.c.l.b16 %v220
  %v1412 = vunpack.c.l.b16 %v221
  %v1413 = vunpack.c.l.b16 %v222
  %v1414 = vunpack.c.l.b16 %v223
  %v1415 = vunpack.c.l.b16 %v224
  %v1416 = vunpack.c.l.b16 %v225
  %v1417 = vunpack.c.l.b16 %v226
  %v1418 = vunpack.c.l.b16 %v227
  %v1419 = vunpack.c.l.b16 %v228
  %v1420 = vunpack.c.l.b16 %v229
  %v1421 = vunpack.c.l.b16 %v230
  %v1422 = vunpack.c.l.b16 %v231
  %v1423 = vunpack.c.l.b16 %v232
  %v1424 = vunpack.c.l.b16 %v233
  %v1425 = vunpack.c.l.b16 %v234
  %v1426 = vunpack.c.l.b16 %v235
  %v1427 = vunpack.c.l.b16 %v236
  %v1428 = vunpack.c.l.b16 %v237
  %v1429 = vunpack.c.l.b16 %v238
  %v1430 = vunpack.c.l.b16 %v239
  %v1431 = vunpack.c.l.b16 %v240
  %v1432 = vunpack.c.l.b16 %v241
  %v1433 = vunpack.c.l.b16 %v242
  %v1434 = vunpack.c.l.b16 %v243
  %v1435 = vunpack.c.l.b16 %v244
  %v1436 = vunpack.c.l.b16 %v245
  %v1437 = vunpack.c.l.b16 %v246
  %v1438 = vunpack.c.l.b16 %v247
  %v1439 = vunpack.c.l.b16 %v248
  %v1440 = vunpack.c.l.b16 %v249
  %v1441 = vunpack.c.l.b16 %v250
  %v1442 = vunpack.c.l.b16 %v251
  %v1443 = vunpack.c.l.b16 %v252
  %v1444 = vunpack.c.l.b16 %v253
  %v1445 = vunpack.c.l.b16 %v254
  %v1446 = vunpack.c.l.b16 %v255
  %v1447 = vunpack.c.l.b16 %v256
  %v1448 = vunpack.c.l.b16 %v257
  %v1449 = vunpack.c.l.b16 %v258
  %v1450 = vunpack.c.l.b16 %v259
  %v1451 = vunpack.c.l.b16 %v260
  %v1452 = vunpack.c.l.b16 %v261
  %v1453 = vunpack.c.l.b16 %v262
  %v1454 = vunpack.c.l.b16 %v263
  %v1455 = vunpack.c.l.b16 %v264
  %v1456 = vunpack.c.l.b16 %v265
  %v1457 = vunpack.c.l.b16 %v266
  %v1458 = vunpack.c.l.b16 %v267
  %v1459 = vunpack.c.l.b16 %v268
  %v1460 = vunpack.c.l.b16 %v269
  %v1461 = vunpack.c.l.b16 %v270
  %v1462 = vunpack.c.l.b16 %v271
  %v1463 = vunpack.c.l.b16 %v272
  %v1464 = vunpack.c.l.b16 %v273
  %v1465 = vunpack.c.l.b16 %v274
  %v1466 = vunpack.c.l.b16 %v275
  %v1467 = vunpack.c.l.b16 %v276
  %v1468 = vunpack.c.l.b16 %v277
  %v1469 = vunpack.c.l.b16 %v278
  %v1470 = vunpack.c.l.b16 %v279
  %v1471 = vunpack.c.l.b16 %v280
  %v1472 = vunpack.c.l.b16 %v281
  %v1473 = vunpack.c.l.b16 %v282
  %v1474 = vunpack.c.l.b16 %v283
  %v1475 = vunpack.c.l.b16 %v284
  %v1476 = vunpack.c.l.b16 %v285
  %v1477 = vunpack.c.l.b16 %v286
  %v1478 = vunpack.c.l.b16 %v287
  %v1479 = vunpack.c.l.b16 %v288
  %v1480 = vunpack.c.l.b16 %v289
  %v1481 = vunpack.c.l.b16 %v290
  %v1482 = vunpack.c.l.b16 %v291
  %v1483 = vunpack.c.l.b16 %v292
  %v1484 = vunpack.c.l.b16 %v293
  %v1485 = vunpack.c.l.b16 %v294
  %v1486 = vunpack.c.l.b16 %v295
  %v1487 = vunpack.c.l.b16 %v296
  %v1488 = vunpack.c.l.b16 %v297
  %v1489 = vunpack.c.l.b16 %v298
  %v1490 = vunpack.c.l.b16 %v299
  %v1491 = vunpack.c.l.b16 %v300
  %v1492 = vunpack.c.l.b16 %v301
  %v1493 = vunpack.c.l.b16 %v302
  %v1494 = vunpack.c.l.b16 %v303
  %v1495 = vunpack.c.l.b16 %v304
  %v1496 = vunpack.c.l.b16 %v305
  %v1497 = vunpack.c.l.b16 %v306
  %v1498 = vunpack.c.l.b16 %v307
  %v1499 = vunpack.c.l.b16 %v308
  %v1500 = vunpack.c.l.b16 %v309
  %v1501 = vunpack.c.l.b16 %v310
  %v1502 = vunpack.c.l.b16 %v311
  %v1503 = vunpack.c.l.b16 %v312
  %v1504 = vunpack.c.l.b16 %v313
  %v1505 = vunpack.c.l.b16 %v314
  %v1506 = vunpack.c.l.b16 %v315
  %v1507 = vunpack.c.l.b16 %v316
  %v1508 = vunpack.c.l.b16 %v317
  %v1509 = vunpack.c.l.b16 %v318
  %v1510 = vunpack.c.l.b16 %v319
  %v1511 = vunpack.c.l.b16 %v320
  %v1512 = vunpack.c.l.b16 %v321
  %v1513 = vunpack.c.l.b16 %v322
  %v1514 = vunpack.c.l.b16 %v323
  %v1515 = vunpack.c.l.b16 %v324
  %v1516 = vunpack.c.l.b16 %v325
  %v1517 = vunpack.c.l.b16 %v326
  %v1518 = vunpack.c.l.b16 %v327
  %v1519 = vunpack.c.l.b16 %v328
  %v1520 = vunpack.c.l.b16 %v329
  %v1521 = vunpack.c.l.b16 %v330
  %v1522 = vunpack.c.l.b16 %v331
  %v1523 = vunpack.c.l.b16 %v332
  %v1524 = vunpack.c.l.b16 %v333
  %v1525 = vunpack.c.l.b16 %v334
  %v1526 = vunpack.c.l.b16 %v335
  %v1527 = vunpack.c.l.b16 %v336
  %v1528 = vunpack.c.l.b16 %v337
  %v1529 = vunpack.c.l.b16 %v338
  %v1530 = vunpack.c.l.b16 %v339
  %v1531 = vunpack.c.l.b16 %v340
  %v1532 = vunpack.c.l.b16 %v341
  %v1533 = vunpack.c.l.b16 %v342
  %v1534 = vunpack.c.l.b16 %v343
  %v1535 = vunpack.c.l.b16 %v344
  %v1536 = vunpack.c.l.b16 %v345
  %v1537 = vunpack.c.l.b16 %v346
  %v1538 = vunpack.c.l.b16 %v347
  %v1539 = vunpack.c.l.b16 %v348
  %v1540 = vunpack.c.l.b16 %v349
  %v1541 = vunpack.c.l.b16 %v350
  %v1542 = vunpack.c.l.b16 %v351
  %v1543 = vunpack.c.l.b16 %v352
  %v1544 = vunpack.c.l.b16 %v353
  %v1545 = vunpack.c.l.b16 %v354
  %v1546 = vunpack.c.l.b16 %v355
  %v1547 = vunpack.c.l.b16 %v356
  %v1548 = vunpack.c.l.b16 %v357
  %v1549 = vunpack.c.l.b16 %v358
  %v1550 = vunpack.c.l.b16 %v359
  %v1551 = vunpack.c.l.b16 %v360
  %v1552 = vunpack.c.l.b16 %v361
  %v1553 = vunpack.c.l.b16 %v362
  %v1554 = vunpack.c.l.b16 %v363
  %v1555 = vunpack.c.l.b16 %v364
  %v1556 = vunpack.c.l.b16 %v365
  %v1557 = vunpack.c.l.b16 %v366
  %v1558 = vunpack.c.l.b16 %v367
  %v1559 = vunpack.c.l.b16 %v368
  %v1560 = vunpack.c.l.b16 %v369
  %v1561 = vunpack.c.l.b16 %v370
  %v1562 = vunpack.c.l.b16 %v371
  %v1563 = vunpack.c.l.b16 %v372
  %v1564 = vunpack.c.l.b16 %v373
  %v1565 = vunpack.c.l.b16 %v374
  %v1566 = vunpack.c.l.b16 %v375
  %v1567 = vunpack.c.l.b16 %v376
  %v1568 = vunpack.c.l.b16 %v377
  %v1569 = vunpack.c.l.b16 %v378
  %v1570 = vunpack.c.l.b16 %v379
  %v1571 = vunpack.c.l.b16 %v380
  %v1572 = vunpack.c.l.b16 %v381
  %v1573 = vunpack.c.l.b16 %v382
  %v1574 = vunpack.c.l.b16 %v383
  %v1575 = vunpack.c.l.b16 %v384
  %v1576 = vunpack.c.l.b16 %v385
  %v1577 = vunpack.c.l.b16 %v386
  %v1578 = vunpack.c.l.b16 %v387
  %v1579 = vunpack.c.l.b16 %v388
  %v1580 = vunpack.c.l.b16 %v389
  %v1581 = vunpack.c.l.b16 %v390
  %v1582 = vunpack.c.l.b16 %v391
  %v1583 = vunpack.c.l.b16 %v392
  %v1584 = vunpack.c.l.b16 %v393
  %v1585 = vunpack.c.l.b16 %v394
  %v1586 = vunpack.c.l.b16 %v395
  %v1587 = vunpack.c.l.b16 %v396
  %v1588 = vunpack.c.l.b16 %v397
  %v1589 = vunpack.c.l.b16 %v398
  %v1590 = vunpack.c.l.b16 %v399
  %v1591 = vunpack.c.l.b16 %v400
  %v1592 = vunpack.c.l.b16 %v401
  %v1593 = vunpack.c.l.b16 %v402
  %v1594 = vunpack.c.l.b16 %v403
  %v1595 = vunpack.c.l.b16 %v404
  %v1596 = vunpack.c.l.b16 %v405
  %v1597 = vunpack.c.l.b16 %v406
  %v1598 = vunpack.c.l.b16 %v407
  %v1599 = vunpack.c.l.b16 %v408
  %v1600 = vunpack.c.l.b16 %v409
  %v1601 = vunpack.c.l.b16 %v410
  %v1602 = vunpack.c.l.b16 %v411
  %v1603 = vunpack.c.l.b16 %v412
  %v1604 = vunpack.c.l.b16 %v413
  %v1605 = vunpack.c.l.b16 %v414
  %v1606 = vunpack.c.l.b16 %v415
  %v1607 = vunpack.c.l.b16 %v416
  %v1608 = vunpack.c.l.b16 %v417
  %v1609 = vunpack.c.l.b16 %v418
  %v1610 = vunpack.c.l.b16 %v419
  %v1611 = vunpack.c.l.b16 %v420
  %v1612 = vunpack.c.l.b16 %v421
  %v1613 = vunpack.c.l.b16 %v422
  %v1614 = vunpack.c.l.b16 %v423
  %v1615 = vunpack.c.l.b16 %v424
  %v1616 = vunpack.c.l.b16 %v425
  %v1617 = vunpack.c.l.b16 %v426
  %v1618 = vunpack.c.l.b16 %v427
  %v1619 = vunpack.c.l.b16 %v428
  %v1620 = vunpack.c.l.b16 %v429
  %v1621 = vunpack.c.l.b16 %v430
  %v1622 = vunpack.c.l.b16 %v431
  %v1623 = vunpack.c.l.b16 %v432
  %v1624 = vunpack.c.l.b16 %v433
  %v1625 = vunpack.c.l.b16 %v434
  %v1626 = vunpack.c.l.b16 %v435
  %v1627 = vunpack.c.l.b16 %v436
  %v1628 = vunpack.c.l.b16 %v437
  %v1629 = vunpack.c.l.b16 %v438
  %v1630 = vunpack.c.l.b16 %v439
  %v1631 = vunpack.c.l.b16 %v440
  %v1632 = vunpack.c.l.b16 %v441
  %v1633 = vunpack.c.l.b16 %v442
  %v1634 = vunpack.c.l.b16 %v443
  %v1635 = vunpack.c.l.b16 %v444
  %v1636 = vunpack.c.l.b16 %v445
  %v1637 = vunpack.c.l.b16 %v446
  %v1638 = vunpack.c.l.b16 %v447
  %v1639 = vunpack.c.l.b16 %v448
  %v1640 = vunpack.c.l.b16 %v449
  %v1641 = vunpack.c.l.b16 %v450
  %v1642 = vunpack.c.l.b16 %v451
  %v1643 = vunpack.c.l.b16 %v452
  %v1644 = vunpack.c.l.b16 %v453
  %v1645 = vunpack.c.l.b16 %v454
  %v1646 = vunpack.c.l.b16 %v455
  %v1647 = vunpack.c.l.b16 %v456
  %v1648 = vunpack.c.l.b16 %v457
  %v1649 = vunpack.c.l.b16 %v458
  %v1650 = vunpack.c.l.b16 %v459
  %v1651 = vunpack.c.l.b16 %v460
  %v1652 = vunpack.c.l.b16 %v461
  %v1653 = vunpack.c.l.b16 %v462
  %v1654 = vunpack.c.l.b16 %v463
  %v1655 = vunpack.c.l.b16 %v464
  %v1656 = vunpack.c.l.b16 %v465
  %v1657 = vunpack.c.l.b16 %v466
  %v1658 = vunpack.c.l.b16 %v467
  %v1659 = vunpack.c.l.b16 %v468
  %v1660 = vunpack.c.l.b16 %v469
  %v1661 = vunpack.c.l.b16 %v470
  %v1662 = vunpack.c.l.b16 %v471
  %v1663 = vunpack.c.l.b16 %v472
  %v1664 = vunpack.c.l.b16 %v473
  %v1665 = vunpack.c.l.b16 %v474
  %v1666 = vunpack.c.l.b16 %v475
  %v1667 = vunpack.c.l.b16 %v476
  %v1668 = vunpack.c.l.b16 %v477
  %v1669 = vunpack.c.l.b16 %v478
  %v1670 = vunpack.c.l.b16 %v479
  %v1671 = vunpack.c.l.b16 %v480
  %v1672 = vunpack.c.l.b16 %v481
  %v1673 = vunpack.c.l.b16 %v482
  %v1674 = vunpack.c.l.b16 %v483
  %v1675 = vunpack.c.l.b16 %v484
  %v1676 = vunpack.c.l.b16 %v485
  %v1677 = vunpack.c.l.b16 %v486
  %v1678 = vunpack.c.l.b16 %v487
  %v1679 = vunpack.c.l.b16 %v488
  %v1680 = vunpack.c.l.b16 %v489
  %v1681 = vunpack.c.l.b16 %v490
  %v1682 = vunpack.c.l.b16 %v491
  %v1683 = vunpack.c.l.b16 %v492
  %v1684 = vunpack.c.l.b16 %v493
  %v1685 = vunpack.c.l.b16 %v494
  %v1686 = vunpack.c.l.b16 %v495
  %v1687 = vunpack.c.l.b16 %v496
  %v1688 = vunpack.c.l.b16 %v497
  %v1689 = vunpack.c.l.b16 %v498
  %v1690 = vunpack.c.l.b16 %v499
  %v1691 = vunpack.c.l.b16 %v500
  %v1692 = vunpack.c.l.b16 %v501
  %v1693 = vunpack.c.l.b16 %v502
  %v1694 = vunpack.c.l.b16 %v503
  %v1695 = vunpack.c.l.b16 %v504
  %v1696 = vunpack.c.l.b16 %v505
  %v1697 = vunpack.c.l.b16 %v506
  %v1698 = vunpack.c.l.b16 %v507
  %v1699 = vunpack.c.l.b16 %v508
  %v1700 = vunpack.c.l.b16 %v509
  %v1701 = vunpack.c.l.b16 %v510
  %v1702 = vunpack.c.l.b16 %v511
  %v1703 = vunpack.c.l.b16 %v512
  %v1704 = vunpack.c.l.b16 %v513
  %v1705 = vunpack.c.l.b16 %v514
  %v1706 = vunpack.c.l.b16 %v515
  %v1707 = vunpack.c.l.b16 %v516
  %v1708 = vunpack.c.l.b16 %v517
  %v1709 = vunpack.c.l.b16 %v518
  %v1710 = vunpack.c.l.b16 %v519
  %v1711 = vunpack.c.l.b16 %v520
  %v1712 = vunpack.c.l.b16 %v521
  %v1713 = vunpack.c.l.b16 %v522
  %v1714 = vunpack.c.l.b16 %v523
  %v1715 = vunpack.c.l.b16 %v524
  %v1716 = vunpack.c.l.b16 %v525
  %v1717 = vunpack.c.l.b16 %v526
  %v1718 = vunpack.c.l.b16 %v527
  %v1719 = vunpack.c.l.b16 %v528
  %v1720 = vunpack.c.l.b16 %v529
  %v1721 = vunpack.c.l.b16 %v530
  %v1722 = vunpack.c.l.b16 %v531
  %v1723 = vunpack.c.l.b16 %v532
  %v1724 = vunpack.c.l.b16 %v533
  %v1725 = vunpack.c.l.b16 %v534
  %v1726 = vunpack.c.l.b16 %v535
  %v1727 = vunpack.c.l.b16 %v536
  %v1728 = vunpack.c.l.b16 %v537
  %v1729 = vunpack.c.l.b16 %v538
  %v1730 = vunpack.c.l.b16 %v539
  %v1731 = vunpack.c.l.b16 %v540
  %v1732 = vunpack.c.l.b16 %v541
  %v1733 = vunpack.c.l.b16 %v542
  %v1734 = vunpack.c.l.b16 %v543
  %v1735 = vunpack.c.l.b16 %v544
  %v1736 = vunpack.c.l.b16 %v545
  %v1737 = vunpack.c.l.b16 %v546
  %v1738 = vunpack.c.l.b16 %v547
  %v1739 = vunpack.c.l.b16 %v548
  %v1740 = vunpack.c.l.b16 %v549
  %v1741 = vunpack.c.l.b16 %v550
  %v1742 = vunpack.c.l.b16 %v551
  %v1743 = vunpack.c.l.b16 %v552
  %v1744 = vunpack.c.l.b16 %v553
  %v1745 = vunpack.c.l.b16 %v554
  %v1746 = vunpack.c.l.b16 %v555
  %v1747 = vunpack.c.l.b16 %v556
  %v1748 = vunpack.c.l.b16 %v557
  %v1749 = vunpack.c.l.b16 %v558
  %v1750 = vunpack.c.l.b16 %v559
  %v1751 = vunpack.c.l.b16 %v560
  %v1752 = vunpack.c.l.b16 %v561
  %v1753 = vunpack.c.l.b16 %v562
  %v1754 = vunpack.c.l.b16 %v563
  %v1755 = vunpack.c.l.b16 %v564
  %v1756 = vpack.c.b16 %v1245, %v1244
  %v1757 = vpack.c.b16 %v1247, %v1246
  %v1758 = vpack.c.b16 %v1249, %v1248
  %v1759 = vpack.c.b16 %v1251, %v1250
  %v1760 = vpack.c.b16 %v1253, %v1252
  %v1761 = vpack.c.b16 %v1255, %v1254
  %v1762 = vpack.c.b16 %v1257, %v1256
  %v1763 = vpack.c.b16 %v1259, %v1258
  %v1764 = vpack.c.b16 %v1261, %v1260
  %v1765 = vpack.c.b16 %v1263, %v1262
  %v1766 = vpack.c.b16 %v1265, %v1264
  %v1767 = vpack.c.b16 %v1267, %v1266
  %v1768 = vpack.c.b16 %v1269, %v1268
  %v1769 = vpack.c.b16 %v1271, %v1270
  %v1770 = vpack.c.b16 %v1273, %v1272
  %v1771 = vpack.c.b16 %v1275, %v1274
  %v1772 = vpack.c.b16 %v1277, %v1276
  %v1773 = vpack.c.b16 %v1279, %v1278
  %v1774 = vpack.c.b16 %v1281, %v1280
  %v1775 = vpack.c.b16 %v1283, %v1282
  %v1776 = vpack.c.b16 %v1285, %v1284
  %v1777 = vpack.c.b16 %v1287, %v1286
  %v1778 = vpack.c.b16 %v1289, %v1288
  %v1779 = vpack.c.b16 %v1291, %v1290
  %v1780 = vpack.c.b16 %v1293, %v1292
  %v1781 = vpack.c.b16 %v1295, %v1294
  %v1782 = vpack.c.b16 %v1297, %v1296
  %v1783 = vpack.c.b16 %v1299, %v1298
  %v1784 = vpack.c.b16 %v1301, %v1300
  %v1785 = vpack.c.b16 %v1303, %v1302
  %v1786 = vpack.c.b16 %v1305, %v1304
  %v1787 = vpack.c.b16 %v1307, %v1306
  %v1788 = vpack.c.b16 %v1309, %v1308
  %v1789 = vpack.c.b16 %v1311, %v1310
  %v1790 = vpack.c.b16 %v1313, %v1312
  %v1791 = vpack.c.b16 %v1315, %v1314
  %v1792 = vpack.c.b16 %v1317, %v1316
  %v1793 = vpack.c.b16 %v1319, %v1318
  %v1794 = vpack.c.b16 %v1321, %v1320
  %v1795 = vpack.c.b16 %v1323, %v1322
  %v1796 = vpack.c.b16 %v1325, %v1324
  %v1797 = vpack.c.b16 %v1327, %v1326
  %v1798 = vpack.c.b16 %v1329, %v1328
  %v1799 = vpack.c.b16 %v1331, %v1330
  %v1800 = vpack.c.b16 %v1333, %v1332
  %v1801 = vpack.c.b16 %v1335, %v1334
  %v1802 = vpack.c.b16 %v1337, %v1336
  %v1803 = vpack.c.b16 %v1339, %v1338
  %v1804 = vpack.c.b16 %v1341, %v1340
  %v1805 = vpack.c.b16 %v1343, %v1342
  %v1806 = vpack.c.b16 %v1345, %v1344
  %v1807 = vpack.c.b16 %v1347, %v1346
  %v1808 = vpack.c.b16 %v1349, %v1348
  %v1809 = vpack.c.b16 %v1351, %v1350
  %v1810 = vpack.c.b16 %v1353, %v1352
  %v1811 = vpack.c.b16 %v1355, %v1354
  %v1812 = vpack.c.b16 %v1357, %v1356
  %v1813 = vpack.c.b16 %v1359, %v1358
  %v1814 = vpack.c.b16 %v1361, %v1360
  %v1815 = vpack.c.b16 %v1363, %v1362
  %v1816 = vpack.c.b16 %v1365, %v1364
  %v1817 = vpack.c.b16 %v1367, %v1366
  %v1818 = vpack.c.b16 %v1369, %v1368
  %v1819 = vpack.c.b16 %v1371, %v1370
  %v1820 = vpack.c.b16 %v1373, %v1372
  %v1821 = vpack.c.b16 %v1375, %v1374
  %v1822 = vpack.c.b16 %v1377, %v1376
  %v1823 = vpack.c.b16 %v1379, %v1378
  %v1824 = vpack.c.b16 %v1381, %v1380
  %v1825 = vpack.c.b16 %v1383, %v1382
  %v1826 = vpack.c.b16 %v1385, %v1384
  %v1827 = vpack.c.b16 %v1387, %v1386
  %v1828 = vpack.c.b16 %v1389, %v1388
  %v1829 = vpack.c.b16 %v1391, %v1390
  %v1830 = vpack.c.b16 %v1393, %v1392
  %v1831 = vpack.c.b16 %v1395, %v1394
  %v1832 = vpack.c.b16 %v1397, %v1396
  %v1833 = vpack.c.b16 %v1399, %v1398
  %v1834 = vpack.c.b16 %v1401, %v1400
  %v1835 = vpack.c.b16 %v1403, %v1402
  %v1836 = vpack.c.b16 %v1405, %v1404
  %v1837 = vpack.c.b16 %v1407, %v1406
  %v1838 = vpack.c.b16 %v1409, %v1408
  %v1839 = vpack.c.b16 %v1411, %v1410
  %v1840 = vpack.c.b16 %v1413, %v1412
  %v1841 = vpack.c.b16 %v1415, %v1414
  %v1842 = vpack.c.b16 %v1417, %v1416
  %v1843 = vpack.c.b16 %v1419, %v1418
  %v1844 = vpack.c.b16 %v1421, %v1420
  %v1845 = vpack.c.b16 %v1423, %v1422
  %v1846 = vpack.c.b16 %v1425, %v1424
  %v1847 = vpack.c.b16 %v1427, %v1426
  %v1848 = vpack.c.b16 %v1429, %v1428
  %v1849 = vpack.c.b16 %v1431, %v1430
  %v1850 = vpack.c.b16 %v1433, %v1432
  %v1851 = vpack.c.b16 %v1435, %v1434
  %v1852 = vpack.c.b16 %v1437, %v1436
  %v1853 = vpack.c.b16 %v1439, %v1438
  %v1854 = vpack.c.b16 %v1441, %v1440
  %v1855 = vpack.c.b16 %v1443, %v1442
  %v1856 = vpack.c.b16 %v1445, %v1444
  %v1857 = vpack.c.b16 %v1447, %v1446
  %v1858 = vpack.c.b16 %v1449, %v1448
  %v1859 = vpack.c.b16 %v1451, %v1450
  %v1860 = vpack.c.b16 %v1453, %v1452
  %v1861 = vpack.c.b16 %v1455, %v1454
  %v1862 = vpack.c.b16 %v1457, %v1456
  %v1863 = vpack.c.b16 %v1459, %v1458
  %v1864 = vpack.c.b16 %v1461, %v1460
  %v1865 = vpack.c.b16 %v1463, %v1462
  %v1866 = vpack.c.b16 %v1465, %v1464
  %v1867 = vpack.c.b16 %v1467, %v1466
  %v1868 = vpack.c.b16 %v1469, %v1468
  %v1869 = vpack.c.b16 %v1471, %v1470
  %v1870 = vpack.c.b16 %v1473, %v1472
  %v1871 = vpack.c.b16 %v1475, %v1474
  %v1872 = vpack.c.b16 %v1477, %v1476
  %v1873 = vpack.c.b16 %v1479, %v1478
  %v1874 = vpack.c.b16 %v1481, %v1480
  %v1875 = vpack.c.b16 %v1483, %v1482
  %v1876 = vpack.c.b16 %v1485, %v1484
  %v1877 = vpack.c.b16 %v1487, %v1486
  %v1878 = vpack.c.b16 %v1489, %v1488
  %v1879 = vpack.c.b16 %v1491, %v1490
  %v1880 = vpack.c.b16 %v1493, %v1492
  %v1881 = vpack.c.b16 %v1495, %v1494
  %v1882 = vpack.c.b16 %v1497, %v1496
  %v1883 = vpack.c.b16 %v1499, %v1498
  %v1884 = vpack.c.b16 %v1501, %v1500
  %v1885 = vpack.c.b16 %v1503, %v1502
  %v1886 = vpack.c.b16 %v1505, %v1504
  %v1887 = vpack.c.b16 %v1507, %v1506
  %v1888 = vpack.c.b16 %v1509, %v1508
  %v1889 = vpack.c.b16 %v1511, %v1510
  %v1890 = vpack.c.b16 %v1513, %v1512
  %v1891 = vpack.c.b16 %v1515, %v1514
  %v1892 = vpack.c.b16 %v1517, %v1516
  %v1893 = vpack.c.b16 %v1519, %v1518
  %v1894 = vpack.c.b16 %v1521, %v1520
  %v1895 = vpack.c.b16 %v1523, %v1522
  %v1896 = vpack.c.b16 %v1525, %v1524
  %v1897 = vpack.c.b16 %v1527, %v1526
  %v1898 = vpack.c.b16 %v1529, %v1528
  %v1899 = vpack.c.b16 %v1531, %v1530
  %v1900 = vpack.c.b16 %v1533, %v1532
  %v1901 = vpack.c.b16 %v1535, %v1534
  %v1902 = vpack.c.b16 %v1537, %v1536
  %v1903 = vpack.c.b16 %v1539, %v1538
  %v1904 = vpack.c.b16 %v1541, %v1540
  %v1905 = vpack.c.b16 %v1543, %v1542
  %v1906 = vpack.c.b16 %v1545, %v1544
  %v1907 = vpack.c.b16 %v1547, %v1546
  %v1908 = vpack.c.b16 %v1549, %v1548
  %v1909 = vpack.c.b16 %v1551, %v1550
  %v1910 = vpack.c.b16 %v1553, %v1552
  %v1911 = vpack.c.b16 %v1555, %v1554
  %v1912 = vpack.c.b16 %v1557, %v1556
  %v1913 = vpack.c.b16 %v1559, %v1558
  %v1914 = vpack.c.b16 %v1561, %v1560
  %v1915 = vpack.c.b16 %v1563, %v1562
  %v1916 = vpack.c.b16 %v1565, %v1564
  %v1917 = vpack.c.b16 %v1567, %v1566
  %v1918 = vpack.c.b16 %v1569, %v1568
  %v1919 = vpack.c.b16 %v1571, %v1570
  %v1920 = vpack.c.b16 %v1573, %v1572
  %v1921 = vpack.c.b16 %v1575, %v1574
  %v1922 = vpack.c.b16 %v1577, %v1576
  %v1923 = vpack.c.b16 %v1579, %v1578
  %v1924 = vpack.c.b16 %v1581, %v1580
  %v1925 = vpack.c.b16 %v1583, %v1582
  %v1926 = vpack.c.b16 %v1585, %v1584
  %v1927 = vpack.c.b16 %v1587, %v1586
  %v1928 = vpack.c.b16 %v1589, %v1588
  %v1929 = vpack.c.b16 %v1591, %v1590
  %v1930 = vpack.c.b16 %v1593, %v1592
  %v1931 = vpack.c.b16 %v1595, %v1594
  %v1932 = vpack.c.b16 %v1597, %v1596
  %v1933 = vpack.c.b16 %v1599, %v1598
  %v1934 = vpack.c.b16 %v1601, %v1600
  %v1935 = vpack.c.b16 %v1603, %v1602
  %v1936 = vpack.c.b16 %v1605, %v1604
  %v1937 = vpack.c.b16 %v1607, %v1606
  %v1938 = vpack.c.b16 %v1609, %v1608
  %v1939 = vpack.c.b16 %v1611, %v1610
  %v1940 = vpack.c.b16 %v1613, %v1612
  %v1941 = vpack.c.b16 %v1615, %v1614
  %v1942 = vpack.c.b16 %v1617, %v1616
  %v1943 = vpack.c.b16 %v1619, %v1618
  %v1944 = vpack.c.b16 %v1621, %v1620
  %v1945 = vpack.c.b16 %v1623, %v1622
  %v1946 = vpack.c.b16 %v1625, %v1624
  %v1947 = vpack.c.b16 %v1627, %v1626
  %v1948 = vpack.c.b16 %v1629, %v1628
  %v1949 = vpack.c.b16 %v1631, %v1630
  %v1950 = vpack.c.b16 %v1633, %v1632
  %v1951 = vpack.c.b16 %v1635, %v1634
  %v1952 = vpack.c.b16 %v1637, %v1636
  %v1953 = vpack.c.b16 %v1639, %v1638
  %v1954 = vpack.c.b16 %v1641, %v1640
  %v1955 = vpack.c.b16 %v1643, %v1642
  %v1956 = vpack.c.b16 %v1645, %v1644
  %v1957 = vpack.c.b16 %v1647, %v1646
  %v1958 = vpack.c.b16 %v1649, %v1648
  %v1959 = vpack.c.b16 %v1651, %v1650
  %v1960 = vpack.c.b16 %v1653, %v1652
  %v1961 = vpack.c.b16 %v1655, %v1654
  %v1962 = vpack.c.b16 %v1657, %v1656
  %v1963 = vpack.c.b16 %v1659, %v1658
  %v1964 = vpack.c.b16 %v1661, %v1660
  %v1965 = vpack.c.b16 %v1663, %v1662
  %v1966 = vpack.c.b16 %v1665, %v1664
  %v1967 = vpack.c.b16 %v1667, %v1666
  %v1968 = vpack.c.b16 %v1669, %v1668
  %v1969 = vpack.c.b16 %v1671, %v1670
  %v1970 = vpack.c.b16 %v1673, %v1672
  %v1971 = vpack.c.b16 %v1675, %v1674
  %v1972 = vpack.c.b16 %v1677, %v1676
  %v1973 = vpack.c.b16 %v1679, %v1678
  %v1974 = vpack.c.b16 %v1681, %v1680
  %v1975 = vpack.c.b16 %v1683, %v1682
  %v1976 = vpack.c.b16 %v1685, %v1684
  %v1977 = vpack.c.b16 %v1687, %v1686
  %v1978 = vpack.c.b16 %v1689, %v1688
  %v1979 = vpack.c.b16 %v1691, %v1690
  %v1980 = vpack.c.b16 %v1693, %v1692
  %v1981 = vpack.c.b16 %v1695, %v1694
  %v1982 = vpack.c.b16 %v1697, %v1696
  %v1983 = vpack.c.b16 %v1699, %v1698
  %v1984 = vpack.c.b16 %v1701, %v1700
  %v1985 = vpack.c.b16 %v1703, %v1702
  %v1986 = vpack.c.b16 %v1705, %v1704
  %v1987 = vpack.c.b16 %v1707, %v1706
  %v1988 = vpack.c.b16 %v1709, %v1708
  %v1989 = vpack.c.b16 %v1711, %v1710
  %v1990 = vpack.c.b16 %v1713, %v1712
  %v1991 = vpack.c.b16 %v1715, %v1714
  %v1992 = vpack.c.b16 %v1717, %v1716
  %v1993 = vpack.c.b16 %v1719, %v1718
  %v1994 = vpack.c.b16 %v1721, %v1720
  %v1995 = vpack.c.b16 %v1723, %v1722
  %v1996 = vpack.c.b16 %v1725, %v1724
  %v1997 = vpack.c.b16 %v1727, %v1726
  %v1998 = vpack.c.b16 %v1729, %v1728
  %v1999 = vpack.c.b16 %v1731, %v1730
  %v2000 = vpack.c.b16 %v1733, %v1732
  %v2001 = vpack.c.b16 %v1735, %v1734
  %v2002 = vpack.c.b16 %v1737, %v1736
  %v2003 = vpack.c.b16 %v1739, %v1738
  %v2004 = vpack.c.b16 %v1741, %v1740
  %v2005 = vpack.c.b16 %v1743, %v1742
  %v2006 = vpack.c.b16 %v1745, %v1744
  %v2007 = vpack.c.b16 %v1747, %v1746
  %v2008 = vpack.c.b16 %v1749, %v1748
  %v2009 = vpack.c.b16 %v1751, %v1750
  %v2010 = vpack.c.b16 %v1753, %v1752
  %v2011 = vpack.c.b16 %v1755, %v1754
  %2268 = vmatprep.subr.bf16.mxu0 0
  %2269 = vmatpush1.bf16.msra.mxu0 %v1756
  %2270 = vmatprep.subr.bf16.mxu0 0
  %2271 = vmatpush1.bf16.msra.mxu0 %v1757
  %2272 = vmatprep.subr.bf16.mxu0 0
  %2273 = vmatpush1.bf16.msra.mxu0 %v1758
  %2274 = vmatprep.subr.bf16.mxu0 0
  %2275 = vmatpush1.bf16.msra.mxu0 %v1759
  %2276 = vmatprep.subr.bf16.mxu0 0
  %2277 = vmatpush1.bf16.msra.mxu0 %v1760
  %2278 = vmatprep.subr.bf16.mxu0 0
  %2279 = vmatpush1.bf16.msra.mxu0 %v1761
  %2280 = vmatprep.subr.bf16.mxu0 0
  %2281 = vmatpush1.bf16.msra.mxu0 %v1762
  %2282 = vmatprep.subr.bf16.mxu0 0
  %2283 = vmatpush1.bf16.msra.mxu0 %v1763
  %2284 = vmatprep.subr.bf16.mxu0 0
  %2285 = vmatpush1.bf16.msra.mxu0 %v1764
  %2286 = vmatprep.subr.bf16.mxu0 0
  %2287 = vmatpush1.bf16.msra.mxu0 %v1765
  %2288 = vmatprep.subr.bf16.mxu0 0
  %2289 = vmatpush1.bf16.msra.mxu0 %v1766
  %2290 = vmatprep.subr.bf16.mxu0 0
  %2291 = vmatpush1.bf16.msra.mxu0 %v1767
  %2292 = vmatprep.subr.bf16.mxu0 0
  %2293 = vmatpush1.bf16.msra.mxu0 %v1768
  %2294 = vmatprep.subr.bf16.mxu0 0
  %2295 = vmatpush1.bf16.msra.mxu0 %v1769
  %2296 = vmatprep.subr.bf16.mxu0 0
  %2297 = vmatpush1.bf16.msra.mxu0 %v1770
  %2298 = vmatprep.subr.bf16.mxu0 0
  %2299 = vmatpush1.bf16.msra.mxu0 %v1771
  %2300 = vmatprep.mubr.bf16.mxu0 %v669
  %2301 = vmatmul.mubr.bf16.gmra.mrb[0].mxu0 %v668
  %v2302 = vpop.f32.mrb[0].mxu0
  %v2303 = vadd.f32 %v570, %v2302
  %v2304 = vpop.f32.mrb[0].mxu0
  %v2305 = vpop.f32.mrb[0].mxu0
  %v2306 = vadd.f32 %v570, %v2305
  %v2307 = vpop.f32.mrb[0].mxu0
  %2308 = vdwg.mxu0
  %2309 = vmatprep.subr.bf16.mxu0 0
  %2310 = vmatpush1.bf16.msra.mxu0 %v1772
  %2311 = vmatprep.subr.bf16.mxu0 0
  %2312 = vmatpush1.bf16.msra.mxu0 %v1773
  %2313 = vmatprep.subr.bf16.mxu0 0
  %2314 = vmatpush1.bf16.msra.mxu0 %v1774
  %2315 = vmatprep.subr.bf16.mxu0 0
  %2316 = vmatpush1.bf16.msra.mxu0 %v1775
  %2317 = vmatprep.subr.bf16.mxu0 0
  %2318 = vmatpush1.bf16.msra.mxu0 %v1776
  %2319 = vmatprep.subr.bf16.mxu0 0
  %2320 = vmatpush1.bf16.msra.mxu0 %v1777
  %2321 = vmatprep.subr.bf16.mxu0 0
  %2322 = vmatpush1.bf16.msra.mxu0 %v1778
  %2323 = vmatprep.subr.bf16.mxu0 0
  %2324 = vmatpush1.bf16.msra.mxu0 %v1779
  %2325 = vmatprep.subr.bf16.mxu0 0
  %2326 = vmatpush1.bf16.msra.mxu0 %v1780
  %2327 = vmatprep.subr.bf16.mxu0 0
  %2328 = vmatpush1.bf16.msra.mxu0 %v1781
  %2329 = vmatprep.subr.bf16.mxu0 0
  %2330 = vmatpush1.bf16.msra.mxu0 %v1782
  %2331 = vmatprep.subr.bf16.mxu0 0
  %2332 = vmatpush1.bf16.msra.mxu0 %v1783
  %2333 = vmatprep.subr.bf16.mxu0 0
  %2334 = vmatpush1.bf16.msra.mxu0 %v1784
  %2335 = vmatprep.subr.bf16.mxu0 0
  %2336 = vmatpush1.bf16.msra.mxu0 %v1785
  %2337 = vmatprep.subr.bf16.mxu0 0
  %2338 = vmatpush1.bf16.msra.mxu0 %v1786
  %2339 = vmatprep.subr.bf16.mxu0 0
  %2340 = vmatpush1.bf16.msra.mxu0 %v1787
  %2341 = vmatprep.mubr.bf16.mxu0 %v671
  %2342 = vmatmul.mubr.bf16.gmra.mrb[0].mxu0 %v670
  %v2343 = vpop.f32.mrb[0].mxu0
  %v2344 = vadd.f32 %v2303, %v2343
  %v2345 = vpop.f32.mrb[0].mxu0
  %v2346 = vpop.f32.mrb[0].mxu0
  %v2347 = vadd.f32 %v2306, %v2346
  %v2348 = vpop.f32.mrb[0].mxu0
  %2349 = vdwg.mxu0
  %2350 = vmatprep.subr.bf16.mxu0 0
  %2351 = vmatpush1.bf16.msra.mxu0 %v1788
  %2352 = vmatprep.subr.bf16.mxu0 0
  %2353 = vmatpush1.bf16.msra.mxu0 %v1789
  %2354 = vmatprep.subr.bf16.mxu0 0
  %2355 = vmatpush1.bf16.msra.mxu0 %v1790
  %2356 = vmatprep.subr.bf16.mxu0 0
  %2357 = vmatpush1.bf16.msra.mxu0 %v1791
  %2358 = vmatprep.subr.bf16.mxu0 0
  %2359 = vmatpush1.bf16.msra.mxu0 %v1792
  %2360 = vmatprep.subr.bf16.mxu0 0
  %2361 = vmatpush1.bf16.msra.mxu0 %v1793
  %2362 = vmatprep.subr.bf16.mxu0 0
  %2363 = vmatpush1.bf16.msra.mxu0 %v1794
  %2364 = vmatprep.subr.bf16.mxu0 0
  %2365 = vmatpush1.bf16.msra.mxu0 %v1795
  %2366 = vmatprep.subr.bf16.mxu0 0
  %2367 = vmatpush1.bf16.msra.mxu0 %v1796
  %2368 = vmatprep.subr.bf16.mxu0 0
  %2369 = vmatpush1.bf16.msra.mxu0 %v1797
  %2370 = vmatprep.subr.bf16.mxu0 0
  %2371 = vmatpush1.bf16.msra.mxu0 %v1798
  %2372 = vmatprep.subr.bf16.mxu0 0
  %2373 = vmatpush1.bf16.msra.mxu0 %v1799
  %2374 = vmatprep.subr.bf16.mxu0 0
  %2375 = vmatpush1.bf16.msra.mxu0 %v1800
  %2376 = vmatprep.subr.bf16.mxu0 0
  %2377 = vmatpush1.bf16.msra.mxu0 %v1801
  %2378 = vmatprep.subr.bf16.mxu0 0
  %2379 = vmatpush1.bf16.msra.mxu0 %v1802
  %2380 = vmatprep.subr.bf16.mxu0 0
  %2381 = vmatpush1.bf16.msra.mxu0 %v1803
  %2382 = vmatprep.mubr.bf16.mxu0 %v673
  %2383 = vmatmul.mubr.bf16.gmra.mrb[0].mxu0 %v672
  %v2384 = vpop.f32.mrb[0].mxu0
  %v2385 = vadd.f32 %v2344, %v2384
  %v2386 = vpop.f32.mrb[0].mxu0
  %v2387 = vpop.f32.mrb[0].mxu0
  %v2388 = vadd.f32 %v2347, %v2387
  %v2389 = vpop.f32.mrb[0].mxu0
  %2390 = vdwg.mxu0
  %2391 = vmatprep.subr.bf16.mxu0 0
  %2392 = vmatpush1.bf16.msra.mxu0 %v1804
  %2393 = vmatprep.subr.bf16.mxu0 0
  %2394 = vmatpush1.bf16.msra.mxu0 %v1805
  %2395 = vmatprep.subr.bf16.mxu0 0
  %2396 = vmatpush1.bf16.msra.mxu0 %v1806
  %2397 = vmatprep.subr.bf16.mxu0 0
  %2398 = vmatpush1.bf16.msra.mxu0 %v1807
  %2399 = vmatprep.subr.bf16.mxu0 0
  %2400 = vmatpush1.bf16.msra.mxu0 %v1808
  %2401 = vmatprep.subr.bf16.mxu0 0
  %2402 = vmatpush1.bf16.msra.mxu0 %v1809
  %2403 = vmatprep.subr.bf16.mxu0 0
  %2404 = vmatpush1.bf16.msra.mxu0 %v1810
  %2405 = vmatprep.subr.bf16.mxu0 0
  %2406 = vmatpush1.bf16.msra.mxu0 %v1811
  %2407 = vmatprep.subr.bf16.mxu0 0
  %2408 = vmatpush1.bf16.msra.mxu0 %v1812
  %2409 = vmatprep.subr.bf16.mxu0 0
  %2410 = vmatpush1.bf16.msra.mxu0 %v1813
  %2411 = vmatprep.subr.bf16.mxu0 0
  %2412 = vmatpush1.bf16.msra.mxu0 %v1814
  %2413 = vmatprep.subr.bf16.mxu0 0
  %2414 = vmatpush1.bf16.msra.mxu0 %v1815
  %2415 = vmatprep.subr.bf16.mxu0 0
  %2416 = vmatpush1.bf16.msra.mxu0 %v1816
  %2417 = vmatprep.subr.bf16.mxu0 0
  %2418 = vmatpush1.bf16.msra.mxu0 %v1817
  %2419 = vmatprep.subr.bf16.mxu0 0
  %2420 = vmatpush1.bf16.msra.mxu0 %v1818
  %2421 = vmatprep.subr.bf16.mxu0 0
  %2422 = vmatpush1.bf16.msra.mxu0 %v1819
  %2423 = vmatprep.mubr.bf16.mxu0 %v675
  %2424 = vmatmul.mubr.bf16.gmra.mrb[0].mxu0 %v674
  %v2425 = vpop.f32.mrb[0].mxu0
  %v2426 = vadd.f32 %v2385, %v2425
  %v2427 = vpop.f32.mrb[0].mxu0
  %v2428 = vpop.f32.mrb[0].mxu0
  %v2429 = vadd.f32 %v2388, %v2428
  %v2430 = vpop.f32.mrb[0].mxu0
  %2431 = vdwg.mxu0
  %2432 = vmatprep.subr.bf16.mxu0 0
  %2433 = vmatpush1.bf16.msra.mxu0 %v1820
  %2434 = vmatprep.subr.bf16.mxu0 0
  %2435 = vmatpush1.bf16.msra.mxu0 %v1821
  %2436 = vmatprep.subr.bf16.mxu0 0
  %2437 = vmatpush1.bf16.msra.mxu0 %v1822
  %2438 = vmatprep.subr.bf16.mxu0 0
  %2439 = vmatpush1.bf16.msra.mxu0 %v1823
  %2440 = vmatprep.subr.bf16.mxu0 0
  %2441 = vmatpush1.bf16.msra.mxu0 %v1824
  %2442 = vmatprep.subr.bf16.mxu0 0
  %2443 = vmatpush1.bf16.msra.mxu0 %v1825
  %2444 = vmatprep.subr.bf16.mxu0 0
  %2445 = vmatpush1.bf16.msra.mxu0 %v1826
  %2446 = vmatprep.subr.bf16.mxu0 0
  %2447 = vmatpush1.bf16.msra.mxu0 %v1827
  %2448 = vmatprep.subr.bf16.mxu0 0
  %2449 = vmatpush1.bf16.msra.mxu0 %v1828
  %2450 = vmatprep.subr.bf16.mxu0 0
  %2451 = vmatpush1.bf16.msra.mxu0 %v1829
  %2452 = vmatprep.subr.bf16.mxu0 0
  %2453 = vmatpush1.bf16.msra.mxu0 %v1830
  %2454 = vmatprep.subr.bf16.mxu0 0
  %2455 = vmatpush1.bf16.msra.mxu0 %v1831
  %2456 = vmatprep.subr.bf16.mxu0 0
  %2457 = vmatpush1.bf16.msra.mxu0 %v1832
  %2458 = vmatprep.subr.bf16.mxu0 0
  %2459 = vmatpush1.bf16.msra.mxu0 %v1833
  %2460 = vmatprep.subr.bf16.mxu0 0
  %2461 = vmatpush1.bf16.msra.mxu0 %v1834
  %2462 = vmatprep.subr.bf16.mxu0 0
  %2463 = vmatpush1.bf16.msra.mxu0 %v1835
  %2464 = vmatprep.mubr.bf16.mxu0 %v677
  %2465 = vmatmul.mubr.bf16.gmra.mrb[0].mxu0 %v676
  %v2466 = vpop.f32.mrb[0].mxu0
  %v2467 = vadd.f32 %v2426, %v2466
  %v2468 = vpop.f32.mrb[0].mxu0
  %v2469 = vpop.f32.mrb[0].mxu0
  %v2470 = vadd.f32 %v2429, %v2469
  %v2471 = vpop.f32.mrb[0].mxu0
  %2472 = vdwg.mxu0
  %2473 = vmatprep.subr.bf16.mxu0 0
  %2474 = vmatpush1.bf16.msra.mxu0 %v1836
  %2475 = vmatprep.subr.bf16.mxu0 0
  %2476 = vmatpush1.bf16.msra.mxu0 %v1837
  %2477 = vmatprep.subr.bf16.mxu0 0
  %2478 = vmatpush1.bf16.msra.mxu0 %v1838
  %2479 = vmatprep.subr.bf16.mxu0 0
  %2480 = vmatpush1.bf16.msra.mxu0 %v1839
  %2481 = vmatprep.subr.bf16.mxu0 0
  %2482 = vmatpush1.bf16.msra.mxu0 %v1840
  %2483 = vmatprep.subr.bf16.mxu0 0
  %2484 = vmatpush1.bf16.msra.mxu0 %v1841
  %2485 = vmatprep.subr.bf16.mxu0 0
  %2486 = vmatpush1.bf16.msra.mxu0 %v1842
  %2487 = vmatprep.subr.bf16.mxu0 0
  %2488 = vmatpush1.bf16.msra.mxu0 %v1843
  %2489 = vmatprep.subr.bf16.mxu0 0
  %2490 = vmatpush1.bf16.msra.mxu0 %v1844
  %2491 = vmatprep.subr.bf16.mxu0 0
  %2492 = vmatpush1.bf16.msra.mxu0 %v1845
  %2493 = vmatprep.subr.bf16.mxu0 0
  %2494 = vmatpush1.bf16.msra.mxu0 %v1846
  %2495 = vmatprep.subr.bf16.mxu0 0
  %2496 = vmatpush1.bf16.msra.mxu0 %v1847
  %2497 = vmatprep.subr.bf16.mxu0 0
  %2498 = vmatpush1.bf16.msra.mxu0 %v1848
  %2499 = vmatprep.subr.bf16.mxu0 0
  %2500 = vmatpush1.bf16.msra.mxu0 %v1849
  %2501 = vmatprep.subr.bf16.mxu0 0
  %2502 = vmatpush1.bf16.msra.mxu0 %v1850
  %2503 = vmatprep.subr.bf16.mxu0 0
  %2504 = vmatpush1.bf16.msra.mxu0 %v1851
  %2505 = vmatprep.mubr.bf16.mxu0 %v679
  %2506 = vmatmul.mubr.bf16.gmra.mrb[0].mxu0 %v678
  %v2507 = vpop.f32.mrb[0].mxu0
  %v2508 = vadd.f32 %v2467, %v2507
  %v2509 = vpop.f32.mrb[0].mxu0
  %v2510 = vpop.f32.mrb[0].mxu0
  %v2511 = vadd.f32 %v2470, %v2510
  %v2512 = vpop.f32.mrb[0].mxu0
  %2513 = vdwg.mxu0
  %2514 = vmatprep.subr.bf16.mxu0 0
  %2515 = vmatpush1.bf16.msra.mxu0 %v1852
  %2516 = vmatprep.subr.bf16.mxu0 0
  %2517 = vmatpush1.bf16.msra.mxu0 %v1853
  %2518 = vmatprep.subr.bf16.mxu0 0
  %2519 = vmatpush1.bf16.msra.mxu0 %v1854
  %2520 = vmatprep.subr.bf16.mxu0 0
  %2521 = vmatpush1.bf16.msra.mxu0 %v1855
  %2522 = vmatprep.subr.bf16.mxu0 0
  %2523 = vmatpush1.bf16.msra.mxu0 %v1856
  %2524 = vmatprep.subr.bf16.mxu0 0
  %2525 = vmatpush1.bf16.msra.mxu0 %v1857
  %2526 = vmatprep.subr.bf16.mxu0 0
  %2527 = vmatpush1.bf16.msra.mxu0 %v1858
  %2528 = vmatprep.subr.bf16.mxu0 0
  %2529 = vmatpush1.bf16.msra.mxu0 %v1859
  %2530 = vmatprep.subr.bf16.mxu0 0
  %2531 = vmatpush1.bf16.msra.mxu0 %v1860
  %2532 = vmatprep.subr.bf16.mxu0 0
  %2533 = vmatpush1.bf16.msra.mxu0 %v1861
  %2534 = vmatprep.subr.bf16.mxu0 0
  %2535 = vmatpush1.bf16.msra.mxu0 %v1862
  %2536 = vmatprep.subr.bf16.mxu0 0
  %2537 = vmatpush1.bf16.msra.mxu0 %v1863
  %2538 = vmatprep.subr.bf16.mxu0 0
  %2539 = vmatpush1.bf16.msra.mxu0 %v1864
  %2540 = vmatprep.subr.bf16.mxu0 0
  %2541 = vmatpush1.bf16.msra.mxu0 %v1865
  %2542 = vmatprep.subr.bf16.mxu0 0
  %2543 = vmatpush1.bf16.msra.mxu0 %v1866
  %2544 = vmatprep.subr.bf16.mxu0 0
  %2545 = vmatpush1.bf16.msra.mxu0 %v1867
  %2546 = vmatprep.mubr.bf16.mxu0 %v681
  %2547 = vmatmul.mubr.bf16.gmra.mrb[0].mxu0 %v680
  %v2548 = vpop.f32.mrb[0].mxu0
  %v2549 = vadd.f32 %v2508, %v2548
  %v2550 = vpop.f32.mrb[0].mxu0
  %v2551 = vpop.f32.mrb[0].mxu0
  %v2552 = vadd.f32 %v2511, %v2551
  %v2553 = vpop.f32.mrb[0].mxu0
  %2554 = vdwg.mxu0
  %2555 = vmatprep.subr.bf16.mxu0 0
  %2556 = vmatpush1.bf16.msra.mxu0 %v1868
  %2557 = vmatprep.subr.bf16.mxu0 0
  %2558 = vmatpush1.bf16.msra.mxu0 %v1869
  %2559 = vmatprep.subr.bf16.mxu0 0
  %2560 = vmatpush1.bf16.msra.mxu0 %v1870
  %2561 = vmatprep.subr.bf16.mxu0 0
  %2562 = vmatpush1.bf16.msra.mxu0 %v1871
  %2563 = vmatprep.subr.bf16.mxu0 0
  %2564 = vmatpush1.bf16.msra.mxu0 %v1872
  %2565 = vmatprep.subr.bf16.mxu0 0
  %2566 = vmatpush1.bf16.msra.mxu0 %v1873
  %2567 = vmatprep.subr.bf16.mxu0 0
  %2568 = vmatpush1.bf16.msra.mxu0 %v1874
  %2569 = vmatprep.subr.bf16.mxu0 0
  %2570 = vmatpush1.bf16.msra.mxu0 %v1875
  %2571 = vmatprep.subr.bf16.mxu0 0
  %2572 = vmatpush1.bf16.msra.mxu0 %v1876
  %2573 = vmatprep.subr.bf16.mxu0 0
  %2574 = vmatpush1.bf16.msra.mxu0 %v1877
  %2575 = vmatprep.subr.bf16.mxu0 0
  %2576 = vmatpush1.bf16.msra.mxu0 %v1878
  %2577 = vmatprep.subr.bf16.mxu0 0
  %2578 = vmatpush1.bf16.msra.mxu0 %v1879
  %2579 = vmatprep.subr.bf16.mxu0 0
  %2580 = vmatpush1.bf16.msra.mxu0 %v1880
  %2581 = vmatprep.subr.bf16.mxu0 0
  %2582 = vmatpush1.bf16.msra.mxu0 %v1881
  %2583 = vmatprep.subr.bf16.mxu0 0
  %2584 = vmatpush1.bf16.msra.mxu0 %v1882
  %2585 = vmatprep.subr.bf16.mxu0 0
  %2586 = vmatpush1.bf16.msra.mxu0 %v1883
  %2587 = vmatprep.mubr.bf16.mxu0 %v683
  %2588 = vmatmul.mubr.bf16.gmra.mrb[0].mxu0 %v682
  %v2589 = vpop.f32.mrb[0].mxu0
  %v2590 = vadd.f32 %v2549, %v2589
  %v2591 = vpop.f32.mrb[0].mxu0
  %v2592 = vpop.f32.mrb[0].mxu0
  %v2593 = vadd.f32 %v2552, %v2592
  %v2594 = vpop.f32.mrb[0].mxu0
  %2595 = vdwg.mxu0
  %2596 = vmatprep.subr.bf16.mxu0 0
  %2597 = vmatpush1.bf16.msra.mxu0 %v1884
  %2598 = vmatprep.subr.bf16.mxu0 0
  %2599 = vmatpush1.bf16.msra.mxu0 %v1885
  %2600 = vmatprep.subr.bf16.mxu0 0
  %2601 = vmatpush1.bf16.msra.mxu0 %v1886
  %2602 = vmatprep.subr.bf16.mxu0 0
  %2603 = vmatpush1.bf16.msra.mxu0 %v1887
  %2604 = vmatprep.subr.bf16.mxu0 0
  %2605 = vmatpush1.bf16.msra.mxu0 %v1888
  %2606 = vmatprep.subr.bf16.mxu0 0
  %2607 = vmatpush1.bf16.msra.mxu0 %v1889
  %2608 = vmatprep.subr.bf16.mxu0 0
  %2609 = vmatpush1.bf16.msra.mxu0 %v1890
  %2610 = vmatprep.subr.bf16.mxu0 0
  %2611 = vmatpush1.bf16.msra.mxu0 %v1891
  %2612 = vmatprep.subr.bf16.mxu0 0
  %2613 = vmatpush1.bf16.msra.mxu0 %v1892
  %2614 = vmatprep.subr.bf16.mxu0 0
  %2615 = vmatpush1.bf16.msra.mxu0 %v1893
  %2616 = vmatprep.subr.bf16.mxu0 0
  %2617 = vmatpush1.bf16.msra.mxu0 %v1894
  %2618 = vmatprep.subr.bf16.mxu0 0
  %2619 = vmatpush1.bf16.msra.mxu0 %v1895
  %2620 = vmatprep.subr.bf16.mxu0 0
  %2621 = vmatpush1.bf16.msra.mxu0 %v1896
  %2622 = vmatprep.subr.bf16.mxu0 0
  %2623 = vmatpush1.bf16.msra.mxu0 %v1897
  %2624 = vmatprep.subr.bf16.mxu0 0
  %2625 = vmatpush1.bf16.msra.mxu0 %v1898
  %2626 = vmatprep.subr.bf16.mxu0 0
  %2627 = vmatpush1.bf16.msra.mxu0 %v1899
  %2628 = vmatprep.mubr.bf16.mxu0 %v685
  %2629 = vmatmul.mubr.bf16.gmra.mrb[0].mxu0 %v684
  %v2630 = vpop.f32.mrb[0].mxu0
  %v2631 = vadd.f32 %v2590, %v2630
  %v2632 = vpop.f32.mrb[0].mxu0
  %v2633 = vpop.f32.mrb[0].mxu0
  %v2634 = vadd.f32 %v2593, %v2633
  %v2635 = vpop.f32.mrb[0].mxu0
  %2636 = vdwg.mxu0
  %2637 = vmatprep.subr.bf16.mxu0 0
  %2638 = vmatpush1.bf16.msra.mxu0 %v1900
  %2639 = vmatprep.subr.bf16.mxu0 0
  %2640 = vmatpush1.bf16.msra.mxu0 %v1901
  %2641 = vmatprep.subr.bf16.mxu0 0
  %2642 = vmatpush1.bf16.msra.mxu0 %v1902
  %2643 = vmatprep.subr.bf16.mxu0 0
  %2644 = vmatpush1.bf16.msra.mxu0 %v1903
  %2645 = vmatprep.subr.bf16.mxu0 0
  %2646 = vmatpush1.bf16.msra.mxu0 %v1904
  %2647 = vmatprep.subr.bf16.mxu0 0
  %2648 = vmatpush1.bf16.msra.mxu0 %v1905
  %2649 = vmatprep.subr.bf16.mxu0 0
  %2650 = vmatpush1.bf16.msra.mxu0 %v1906
  %2651 = vmatprep.subr.bf16.mxu0 0
  %2652 = vmatpush1.bf16.msra.mxu0 %v1907
  %2653 = vmatprep.subr.bf16.mxu0 0
  %2654 = vmatpush1.bf16.msra.mxu0 %v1908
  %2655 = vmatprep.subr.bf16.mxu0 0
  %2656 = vmatpush1.bf16.msra.mxu0 %v1909
  %2657 = vmatprep.subr.bf16.mxu0 0
  %2658 = vmatpush1.bf16.msra.mxu0 %v1910
  %2659 = vmatprep.subr.bf16.mxu0 0
  %2660 = vmatpush1.bf16.msra.mxu0 %v1911
  %2661 = vmatprep.subr.bf16.mxu0 0
  %2662 = vmatpush1.bf16.msra.mxu0 %v1912
  %2663 = vmatprep.subr.bf16.mxu0 0
  %2664 = vmatpush1.bf16.msra.mxu0 %v1913
  %2665 = vmatprep.subr.bf16.mxu0 0
  %2666 = vmatpush1.bf16.msra.mxu0 %v1914
  %2667 = vmatprep.subr.bf16.mxu0 0
  %2668 = vmatpush1.bf16.msra.mxu0 %v1915
  %2669 = vmatprep.mubr.bf16.mxu0 %v687
  %2670 = vmatmul.mubr.bf16.gmra.mrb[0].mxu0 %v686
  %v2671 = vpop.f32.mrb[0].mxu0
  %v2672 = vadd.f32 %v2631, %v2671
  %v2673 = vpop.f32.mrb[0].mxu0
  %v2674 = vpop.f32.mrb[0].mxu0
  %v2675 = vadd.f32 %v2634, %v2674
  %v2676 = vpop.f32.mrb[0].mxu0
  %2677 = vdwg.mxu0
  %2678 = vmatprep.subr.bf16.mxu0 0
  %2679 = vmatpush1.bf16.msra.mxu0 %v1916
  %2680 = vmatprep.subr.bf16.mxu0 0
  %2681 = vmatpush1.bf16.msra.mxu0 %v1917
  %2682 = vmatprep.subr.bf16.mxu0 0
  %2683 = vmatpush1.bf16.msra.mxu0 %v1918
  %2684 = vmatprep.subr.bf16.mxu0 0
  %2685 = vmatpush1.bf16.msra.mxu0 %v1919
  %2686 = vmatprep.subr.bf16.mxu0 0
  %2687 = vmatpush1.bf16.msra.mxu0 %v1920
  %2688 = vmatprep.subr.bf16.mxu0 0
  %2689 = vmatpush1.bf16.msra.mxu0 %v1921
  %2690 = vmatprep.subr.bf16.mxu0 0
  %2691 = vmatpush1.bf16.msra.mxu0 %v1922
  %2692 = vmatprep.subr.bf16.mxu0 0
  %2693 = vmatpush1.bf16.msra.mxu0 %v1923
  %2694 = vmatprep.subr.bf16.mxu0 0
  %2695 = vmatpush1.bf16.msra.mxu0 %v1924
  %2696 = vmatprep.subr.bf16.mxu0 0
  %2697 = vmatpush1.bf16.msra.mxu0 %v1925
  %2698 = vmatprep.subr.bf16.mxu0 0
  %2699 = vmatpush1.bf16.msra.mxu0 %v1926
  %2700 = vmatprep.subr.bf16.mxu0 0
  %2701 = vmatpush1.bf16.msra.mxu0 %v1927
  %2702 = vmatprep.subr.bf16.mxu0 0
  %2703 = vmatpush1.bf16.msra.mxu0 %v1928
  %2704 = vmatprep.subr.bf16.mxu0 0
  %2705 = vmatpush1.bf16.msra.mxu0 %v1929
  %2706 = vmatprep.subr.bf16.mxu0 0
  %2707 = vmatpush1.bf16.msra.mxu0 %v1930
  %2708 = vmatprep.subr.bf16.mxu0 0
  %2709 = vmatpush1.bf16.msra.mxu0 %v1931
  %2710 = vmatprep.mubr.bf16.mxu0 %v689
  %2711 = vmatmul.mubr.bf16.gmra.mrb[0].mxu0 %v688
  %v2712 = vpop.f32.mrb[0].mxu0
  %v2713 = vadd.f32 %v2672, %v2712
  %v2714 = vpop.f32.mrb[0].mxu0
  %v2715 = vpop.f32.mrb[0].mxu0
  %v2716 = vadd.f32 %v2675, %v2715
  %v2717 = vpop.f32.mrb[0].mxu0
  %2718 = vdwg.mxu0
  %2719 = vmatprep.subr.bf16.mxu0 0
  %2720 = vmatpush1.bf16.msra.mxu0 %v1932
  %2721 = vmatprep.subr.bf16.mxu0 0
  %2722 = vmatpush1.bf16.msra.mxu0 %v1933
  %2723 = vmatprep.subr.bf16.mxu0 0
  %2724 = vmatpush1.bf16.msra.mxu0 %v1934
  %2725 = vmatprep.subr.bf16.mxu0 0
  %2726 = vmatpush1.bf16.msra.mxu0 %v1935
  %2727 = vmatprep.subr.bf16.mxu0 0
  %2728 = vmatpush1.bf16.msra.mxu0 %v1936
  %2729 = vmatprep.subr.bf16.mxu0 0
  %2730 = vmatpush1.bf16.msra.mxu0 %v1937
  %2731 = vmatprep.subr.bf16.mxu0 0
  %2732 = vmatpush1.bf16.msra.mxu0 %v1938
  %2733 = vmatprep.subr.bf16.mxu0 0
  %2734 = vmatpush1.bf16.msra.mxu0 %v1939
  %2735 = vmatprep.subr.bf16.mxu0 0
  %2736 = vmatpush1.bf16.msra.mxu0 %v1940
  %2737 = vmatprep.subr.bf16.mxu0 0
  %2738 = vmatpush1.bf16.msra.mxu0 %v1941
  %2739 = vmatprep.subr.bf16.mxu0 0
  %2740 = vmatpush1.bf16.msra.mxu0 %v1942
  %2741 = vmatprep.subr.bf16.mxu0 0
  %2742 = vmatpush1.bf16.msra.mxu0 %v1943
  %2743 = vmatprep.subr.bf16.mxu0 0
  %2744 = vmatpush1.bf16.msra.mxu0 %v1944
  %2745 = vmatprep.subr.bf16.mxu0 0
  %2746 = vmatpush1.bf16.msra.mxu0 %v1945
  %2747 = vmatprep.subr.bf16.mxu0 0
  %2748 = vmatpush1.bf16.msra.mxu0 %v1946
  %2749 = vmatprep.subr.bf16.mxu0 0
  %2750 = vmatpush1.bf16.msra.mxu0 %v1947
  %2751 = vmatprep.mubr.bf16.mxu0 %v691
  %2752 = vmatmul.mubr.bf16.gmra.mrb[0].mxu0 %v690
  %v2753 = vpop.f32.mrb[0].mxu0
  %v2754 = vadd.f32 %v2713, %v2753
  %v2755 = vpop.f32.mrb[0].mxu0
  %v2756 = vpop.f32.mrb[0].mxu0
  %v2757 = vadd.f32 %v2716, %v2756
  %v2758 = vpop.f32.mrb[0].mxu0
  %2759 = vdwg.mxu0
  %2760 = vmatprep.subr.bf16.mxu0 0
  %2761 = vmatpush1.bf16.msra.mxu0 %v1948
  %2762 = vmatprep.subr.bf16.mxu0 0
  %2763 = vmatpush1.bf16.msra.mxu0 %v1949
  %2764 = vmatprep.subr.bf16.mxu0 0
  %2765 = vmatpush1.bf16.msra.mxu0 %v1950
  %2766 = vmatprep.subr.bf16.mxu0 0
  %2767 = vmatpush1.bf16.msra.mxu0 %v1951
  %2768 = vmatprep.subr.bf16.mxu0 0
  %2769 = vmatpush1.bf16.msra.mxu0 %v1952
  %2770 = vmatprep.subr.bf16.mxu0 0
  %2771 = vmatpush1.bf16.msra.mxu0 %v1953
  %2772 = vmatprep.subr.bf16.mxu0 0
  %2773 = vmatpush1.bf16.msra.mxu0 %v1954
  %2774 = vmatprep.subr.bf16.mxu0 0
  %2775 = vmatpush1.bf16.msra.mxu0 %v1955
  %2776 = vmatprep.subr.bf16.mxu0 0
  %2777 = vmatpush1.bf16.msra.mxu0 %v1956
  %2778 = vmatprep.subr.bf16.mxu0 0
  %2779 = vmatpush1.bf16.msra.mxu0 %v1957
  %2780 = vmatprep.subr.bf16.mxu0 0
  %2781 = vmatpush1.bf16.msra.mxu0 %v1958
  %2782 = vmatprep.subr.bf16.mxu0 0
  %2783 = vmatpush1.bf16.msra.mxu0 %v1959
  %2784 = vmatprep.subr.bf16.mxu0 0
  %2785 = vmatpush1.bf16.msra.mxu0 %v1960
  %2786 = vmatprep.subr.bf16.mxu0 0
  %2787 = vmatpush1.bf16.msra.mxu0 %v1961
  %2788 = vmatprep.subr.bf16.mxu0 0
  %2789 = vmatpush1.bf16.msra.mxu0 %v1962
  %2790 = vmatprep.subr.bf16.mxu0 0
  %2791 = vmatpush1.bf16.msra.mxu0 %v1963
  %2792 = vmatprep.mubr.bf16.mxu0 %v693
  %2793 = vmatmul.mubr.bf16.gmra.mrb[0].mxu0 %v692
  %v2794 = vpop.f32.mrb[0].mxu0
  %v2795 = vadd.f32 %v2754, %v2794
  %v2796 = vpop.f32.mrb[0].mxu0
  %v2797 = vpop.f32.mrb[0].mxu0
  %v2798 = vadd.f32 %v2757, %v2797
  %v2799 = vpop.f32.mrb[0].mxu0
  %2800 = vdwg.mxu0
  %2801 = vmatprep.subr.bf16.mxu0 0
  %2802 = vmatpush1.bf16.msra.mxu0 %v1964
  %2803 = vmatprep.subr.bf16.mxu0 0
  %2804 = vmatpush1.bf16.msra.mxu0 %v1965
  %2805 = vmatprep.subr.bf16.mxu0 0
  %2806 = vmatpush1.bf16.msra.mxu0 %v1966
  %2807 = vmatprep.subr.bf16.mxu0 0
  %2808 = vmatpush1.bf16.msra.mxu0 %v1967
  %2809 = vmatprep.subr.bf16.mxu0 0
  %2810 = vmatpush1.bf16.msra.mxu0 %v1968
  %2811 = vmatprep.subr.bf16.mxu0 0
  %2812 = vmatpush1.bf16.msra.mxu0 %v1969
  %2813 = vmatprep.subr.bf16.mxu0 0
  %2814 = vmatpush1.bf16.msra.mxu0 %v1970
  %2815 = vmatprep.subr.bf16.mxu0 0
  %2816 = vmatpush1.bf16.msra.mxu0 %v1971
  %2817 = vmatprep.subr.bf16.mxu0 0
  %2818 = vmatpush1.bf16.msra.mxu0 %v1972
  %2819 = vmatprep.subr.bf16.mxu0 0
  %2820 = vmatpush1.bf16.msra.mxu0 %v1973
  %2821 = vmatprep.subr.bf16.mxu0 0
  %2822 = vmatpush1.bf16.msra.mxu0 %v1974
  %2823 = vmatprep.subr.bf16.mxu0 0
  %2824 = vmatpush1.bf16.msra.mxu0 %v1975
  %2825 = vmatprep.subr.bf16.mxu0 0
  %2826 = vmatpush1.bf16.msra.mxu0 %v1976
  %2827 = vmatprep.subr.bf16.mxu0 0
  %2828 = vmatpush1.bf16.msra.mxu0 %v1977
  %2829 = vmatprep.subr.bf16.mxu0 0
  %2830 = vmatpush1.bf16.msra.mxu0 %v1978
  %2831 = vmatprep.subr.bf16.mxu0 0
  %2832 = vmatpush1.bf16.msra.mxu0 %v1979
  %2833 = vmatprep.mubr.bf16.mxu0 %v695
  %2834 = vmatmul.mubr.bf16.gmra.mrb[0].mxu0 %v694
  %v2835 = vpop.f32.mrb[0].mxu0
  %v2836 = vadd.f32 %v2795, %v2835
  %v2837 = vpop.f32.mrb[0].mxu0
  %v2838 = vpop.f32.mrb[0].mxu0
  %v2839 = vadd.f32 %v2798, %v2838
  %v2840 = vpop.f32.mrb[0].mxu0
  %2841 = vdwg.mxu0
  %2842 = vmatprep.subr.bf16.mxu0 0
  %2843 = vmatpush1.bf16.msra.mxu0 %v1980
  %2844 = vmatprep.subr.bf16.mxu0 0
  %2845 = vmatpush1.bf16.msra.mxu0 %v1981
  %2846 = vmatprep.subr.bf16.mxu0 0
  %2847 = vmatpush1.bf16.msra.mxu0 %v1982
  %2848 = vmatprep.subr.bf16.mxu0 0
  %2849 = vmatpush1.bf16.msra.mxu0 %v1983
  %2850 = vmatprep.subr.bf16.mxu0 0
  %2851 = vmatpush1.bf16.msra.mxu0 %v1984
  %2852 = vmatprep.subr.bf16.mxu0 0
  %2853 = vmatpush1.bf16.msra.mxu0 %v1985
  %2854 = vmatprep.subr.bf16.mxu0 0
  %2855 = vmatpush1.bf16.msra.mxu0 %v1986
  %2856 = vmatprep.subr.bf16.mxu0 0
  %2857 = vmatpush1.bf16.msra.mxu0 %v1987
  %2858 = vmatprep.subr.bf16.mxu0 0
  %2859 = vmatpush1.bf16.msra.mxu0 %v1988
  %2860 = vmatprep.subr.bf16.mxu0 0
  %2861 = vmatpush1.bf16.msra.mxu0 %v1989
  %2862 = vmatprep.subr.bf16.mxu0 0
  %2863 = vmatpush1.bf16.msra.mxu0 %v1990
  %2864 = vmatprep.subr.bf16.mxu0 0
  %2865 = vmatpush1.bf16.msra.mxu0 %v1991
  %2866 = vmatprep.subr.bf16.mxu0 0
  %2867 = vmatpush1.bf16.msra.mxu0 %v1992
  %2868 = vmatprep.subr.bf16.mxu0 0
  %2869 = vmatpush1.bf16.msra.mxu0 %v1993
  %2870 = vmatprep.subr.bf16.mxu0 0
  %2871 = vmatpush1.bf16.msra.mxu0 %v1994
  %2872 = vmatprep.subr.bf16.mxu0 0
  %2873 = vmatpush1.bf16.msra.mxu0 %v1995
  %2874 = vmatprep.mubr.bf16.mxu0 %v697
  %2875 = vmatmul.mubr.bf16.gmra.mrb[0].mxu0 %v696
  %v2876 = vpop.f32.mrb[0].mxu0
  %v2877 = vadd.f32 %v2836, %v2876
  %v2878 = vpop.f32.mrb[0].mxu0
  %v2879 = vpop.f32.mrb[0].mxu0
  %v2880 = vadd.f32 %v2839, %v2879
  %v2881 = vpop.f32.mrb[0].mxu0
  %2882 = vdwg.mxu0
  %2883 = vmatprep.subr.bf16.mxu0 0
  %2884 = vmatpush1.bf16.msra.mxu0 %v1996
  %2885 = vmatprep.subr.bf16.mxu0 0
  %2886 = vmatpush1.bf16.msra.mxu0 %v1997
  %2887 = vmatprep.subr.bf16.mxu0 0
  %2888 = vmatpush1.bf16.msra.mxu0 %v1998
  %2889 = vmatprep.subr.bf16.mxu0 0
  %2890 = vmatpush1.bf16.msra.mxu0 %v1999
  %2891 = vmatprep.subr.bf16.mxu0 0
  %2892 = vmatpush1.bf16.msra.mxu0 %v2000
  %2893 = vmatprep.subr.bf16.mxu0 0
  %2894 = vmatpush1.bf16.msra.mxu0 %v2001
  %2895 = vmatprep.subr.bf16.mxu0 0
  %2896 = vmatpush1.bf16.msra.mxu0 %v2002
  %2897 = vmatprep.subr.bf16.mxu0 0
  %2898 = vmatpush1.bf16.msra.mxu0 %v2003
  %2899 = vmatprep.subr.bf16.mxu0 0
  %2900 = vmatpush1.bf16.msra.mxu0 %v2004
  %2901 = vmatprep.subr.bf16.mxu0 0
  %2902 = vmatpush1.bf16.msra.mxu0 %v2005
  %2903 = vmatprep.subr.bf16.mxu0 0
  %2904 = vmatpush1.bf16.msra.mxu0 %v2006
  %2905 = vmatprep.subr.bf16.mxu0 0
  %2906 = vmatpush1.bf16.msra.mxu0 %v2007
  %2907 = vmatprep.subr.bf16.mxu0 0
  %2908 = vmatpush1.bf16.msra.mxu0 %v2008
  %2909 = vmatprep.subr.bf16.mxu0 0
  %2910 = vmatpush1.bf16.msra.mxu0 %v2009
  %2911 = vmatprep.subr.bf16.mxu0 0
  %2912 = vmatpush1.bf16.msra.mxu0 %v2010
  %2913 = vmatprep.subr.bf16.mxu0 0
  %2914 = vmatpush1.bf16.msra.mxu0 %v2011
  %2915 = vmatprep.mubr.bf16.mxu0 %v699
  %2916 = vmatmul.mubr.bf16.gmra.mrb[0].mxu0 %v698
  %v2917 = vpop.f32.mrb[0].mxu0
  %v2918 = vadd.f32 %v2877, %v2917
  %v2919 = vpop.f32.mrb[0].mxu0
  %v2920 = vpop.f32.mrb[0].mxu0
  %v2921 = vadd.f32 %v2880, %v2920
  %v2922 = vpop.f32.mrb[0].mxu0
  %2923 = vdwg.mxu0
  %v2924 = vmax.f32 %v2918, 0.0
  %v2925 = vmax.f32 %v2921, 0.0
  %v2926 = vpack.c.bf16 %v2925, %v2924
  %v2927 = vld [vmem:[%s3] sm:$0xf]
  %v2928 = vld [vmem:[%s3 + $0x4] sm:$0xf]
  %v2929 = vld [vmem:[%s3 + $0x8] sm:$0xf]
  %v2930 = vld [vmem:[%s3 + $0xc] sm:$0xf]
  %v2931 = vld [vmem:[%s3 + $0x10] sm:$0xf]
  %v2932 = vld [vmem:[%s3 + $0x14] sm:$0xf]
  %v2933 = vld [vmem:[%s3 + $0x18] sm:$0xf]
  %v2934 = vld [vmem:[%s3 + $0x1c] sm:$0xf]
  %v2935 = vld [vmem:[%s3 + $0x20] sm:$0xf]
  %v2936 = vld [vmem:[%s3 + $0x24] sm:$0xf]
  %v2937 = vld [vmem:[%s3 + $0x28] sm:$0xf]
  %v2938 = vld [vmem:[%s3 + $0x2c] sm:$0xf]
  %v2939 = vld [vmem:[%s3 + $0x30] sm:$0xf]
  %v2940 = vld [vmem:[%s3 + $0x34] sm:$0xf]
  %v2941 = vld [vmem:[%s3 + $0x38] sm:$0xf]
  %v2942 = vld [vmem:[%s3 + $0x3c] sm:$0xf]
  %v2943 = vld [vmem:[%s4] sm:$0x1]
  %v2945 = vlaneseq
  %v2946 = vshrl.u32 %v2945, 7
  %v2947 = vsub.s32 0, %v2946
  %v2948 = vrot.slane %v2943, %v2947
  %v2966 = vunpack.c.l.b16 %v2927
  %v2967 = vunpack.c.l.b16 %v2928
  %v2968 = vunpack.c.l.b16 %v2929
  %v2969 = vunpack.c.l.b16 %v2930
  %v2970 = vunpack.c.l.b16 %v2931
  %v2971 = vunpack.c.l.b16 %v2932
  %v2972 = vunpack.c.l.b16 %v2933
  %v2973 = vunpack.c.l.b16 %v2934
  %v2974 = vunpack.c.l.b16 %v2935
  %v2975 = vunpack.c.l.b16 %v2936
  %v2976 = vunpack.c.l.b16 %v2937
  %v2977 = vunpack.c.l.b16 %v2938
  %v2978 = vunpack.c.l.b16 %v2939
  %v2979 = vunpack.c.l.b16 %v2940
  %v2980 = vunpack.c.l.b16 %v2941
  %v2981 = vunpack.c.l.b16 %v2942
  %v2982 = vpack.c.b16 %v2967, %v2966
  %v2983 = vpack.c.b16 %v2969, %v2968
  %v2984 = vpack.c.b16 %v2971, %v2970
  %v2985 = vpack.c.b16 %v2973, %v2972
  %v2986 = vpack.c.b16 %v2975, %v2974
  %v2987 = vpack.c.b16 %v2977, %v2976
  %v2988 = vpack.c.b16 %v2979, %v2978
  %v2989 = vpack.c.b16 %v2981, %v2980
  %2998 = vmatprep.subr.bf16.mxu0 0
  %2999 = vmatpush1.bf16.msra.mxu0 %v2982
  %3000 = vmatprep.subr.bf16.mxu0 0
  %3001 = vmatpush1.bf16.msra.mxu0 %v2983
  %3002 = vmatprep.subr.bf16.mxu0 0
  %3003 = vmatpush1.bf16.msra.mxu0 %v2984
  %3004 = vmatprep.subr.bf16.mxu0 0
  %3005 = vmatpush1.bf16.msra.mxu0 %v2985
  %3006 = vmatprep.subr.bf16.mxu0 0
  %3007 = vmatpush1.bf16.msra.mxu0 %v2986
  %3008 = vmatprep.subr.bf16.mxu0 0
  %3009 = vmatpush1.bf16.msra.mxu0 %v2987
  %3010 = vmatprep.subr.bf16.mxu0 0
  %3011 = vmatpush1.bf16.msra.mxu0 %v2988
  %3012 = vmatprep.subr.bf16.mxu0 0
  %3013 = vmatpush1.bf16.msra.mxu0 %v2989
  %3014 = vmatprep.subr.bf16.mxu0 0
  %3015 = vmatpush1.bf16.msra.mxu0 0
  %3016 = vmatprep.subr.bf16.mxu0 0
  %3017 = vmatpush1.bf16.msra.mxu0 0
  %3018 = vmatprep.subr.bf16.mxu0 0
  %3019 = vmatpush1.bf16.msra.mxu0 0
  %3020 = vmatprep.subr.bf16.mxu0 0
  %3021 = vmatpush1.bf16.msra.mxu0 0
  %3022 = vmatprep.subr.bf16.mxu0 0
  %3023 = vmatpush1.bf16.msra.mxu0 0
  %3024 = vmatprep.subr.bf16.mxu0 0
  %3025 = vmatpush1.bf16.msra.mxu0 0
  %3026 = vmatprep.subr.bf16.mxu0 0
  %3027 = vmatpush1.bf16.msra.mxu0 0
  %3028 = vmatprep.subr.bf16.mxu0 0
  %3029 = vmatpush1.bf16.msra.mxu0 0
  %3030 = vmatprep.mubr.bf16.mxu0 0
  %3031 = vmatmul.mubr.bf16.gmra.mrb[0].mxu0 %v2926
  %v3032 = vpop.f32.mrb[0].mxu0
  %v3033 = vadd.f32 %v2948, %v3032
  %v3034 = vpop.f32.mrb[0].mxu0
  %v3035 = vpop.f32.mrb[0].mxu0
  %v3036 = vadd.f32 %v2948, %v3035
  %v3037 = vpop.f32.mrb[0].mxu0
  %3038 = vdwg.mxu0
  %vm3039 = vcmask 80896
  %3040 = vst.msk [vmem:[%s5] sm:$0xff] %vm3039, %v3033
  %3041 = vst.msk [vmem:[%s5 + $0x8] sm:$0xff] %vm3039, %v3036
  // Predicated region
  $region22: #{multi_class_cnn_forward.7} parent=0 // pred_check
    _
  $region23: #{multi_class_cnn_forward.7} parent=0 // pred_check_branch
    %3043 = sbr.rel (0) target = $region25
  $region24: #{multi_class_cnn_forward.7} parent=0 // pred_region
    _
  $region25: #{multi_class_cnn_forward.7} parent=0 // pred_fallthru
    _
  // Predicated region
  $region26: #{multi_class_cnn_forward.7} parent=0 // pred_check
    _
  $region27: #{multi_class_cnn_forward.7} parent=0 // pred_check_branch
    %3045 = sbr.rel (0) target = $region29
  $region28: #{multi_class_cnn_forward.7} parent=0 // pred_region
    _
  $region29: #{multi_class_cnn_forward.7} parent=0 // pred_fallthru
    _

</llo_original>
